<compile_context>
chip_gen: v6e
topology: v6e:2x2x1
jax: 0.10.0
libtpu: 0.0.40
codegen_flags: <defaults>
</compile_context>

<pallas_src>
import math

import jax
import jax.numpy as jnp
from jax.experimental import pallas as pl
from jax.experimental.pallas import tpu as pltpu

# ----- module hyper-parameters (consistent with the torch module) -----
HIDDEN = 64          # hidden_channels
FILTER = 128         # filter_channels
N_HEADS = 2
N_LAYERS = 2
KERNEL_SIZE = 3
WINDOW_SIZE = 4      # attentions.Encoder default window_size (relative attn)
NREL = 2 * WINDOW_SIZE + 1
EPS = 1e-5           # VITS LayerNorm eps
HEAD_DIM = HIDDEN // N_HEADS
MXU_DTYPE = jnp.bfloat16   # MXU operand dtype; elementwise math stays f32 (v5e-safe)
# TODO(synk): p_dropout is treated as eval-mode (identity); no RNG dropout in kernel.


# ----------------------------- in-kernel helpers -----------------------------
def _layer_norm(x, gamma, beta):
    # LayerNorm over the channel (last) dim, biased variance, eps=1e-5.
    mean = jnp.mean(x, axis=-1, keepdims=True)
    var = jnp.mean((x - mean) ** 2, axis=-1, keepdims=True)
    return (x - mean) * jax.lax.rsqrt(var + EPS) * gamma + beta


def _softmax_last(x):
    m = jnp.max(x, axis=-1, keepdims=True)
    e = jnp.exp(x - m)
    return e / jnp.sum(e, axis=-1, keepdims=True)


def _conv1d_im2col(x3, w_flat, b):
    # x3: (Bb, T, Cin) f32, shifts respect per-sequence boundaries (zero fill).
    # w_flat: (K*Cin, Cout) bf16 (pre-reshaped in the wrapper), b: (1, Cout) f32.
    bb, t, cin = x3.shape
    pad_l = (KERNEL_SIZE - 1) // 2
    cols = []
    for j in range(KERNEL_SIZE):          # static unroll over taps
        s = j - pad_l
        if s < 0:
            col = jnp.concatenate(
                [jnp.zeros((bb, -s, cin), x3.dtype), x3[:, :t + s, :]], axis=1)
        elif s > 0:
            col = jnp.concatenate(
                [x3[:, s:, :], jnp.zeros((bb, s, cin), x3.dtype)], axis=1)
        else:
            col = x3
        cols.append(col)
    patches = jnp.concatenate(cols, axis=-1).reshape(bb * t, KERNEL_SIZE * cin)
    y = jnp.dot(patches.astype(MXU_DTYPE), w_flat,
                preferred_element_type=jnp.float32) + b
    return y.reshape(bb, t, -1)


# --------------------------------- the kernel --------------------------------
def _text_encoder_kernel(
    lens_ref,                                            # scalar prefetch (SMEM)
    x_ref,
    wqkv_ref, bqkv_ref, wo_ref, bo_ref,
    rkT_ref, rv_ref, g1_ref, be1_ref,
    w1_ref, b1_ref, w2_ref, b2_ref, g2_ref, be2_ref,
    c_ref,
):
    Bb, T, C = x_ref.shape
    R = Bb * T
    scale = HEAD_DIM ** -0.5
    base = pl.program_id(0) * Bb

    # ---- build sequence masks in-kernel from prefetched lengths ----
    t_iota = jax.lax.broadcasted_iota(jnp.int32, (Bb, T, 1), 1)
    s_iota = jax.lax.broadcasted_iota(jnp.int32, (Bb, 1, T), 2)
    b_iota_c = jax.lax.broadcasted_iota(jnp.int32, (Bb, T, 1), 0)
    b_iota_r = jax.lax.broadcasted_iota(jnp.int32, (Bb, 1, T), 0)
    len_c = jnp.zeros((Bb, T, 1), jnp.int32)
    len_r = jnp.zeros((Bb, 1, T), jnp.int32)
    for i in range(Bb):                                   # static, Bb is small
        li = lens_ref[base + i]
        len_c = jnp.where(b_iota_c == i, li, len_c)
        len_r = jnp.where(b_iota_r == i, li, len_r)
    mcol = (t_iota < len_c).astype(jnp.float32)           # (Bb, T, 1)
    mrow = (s_iota < len_r).astype(jnp.float32)           # (Bb, 1, T)
    attn_mask = mcol * mrow                               # (Bb, T, T)

    # band index of (query t, key s): s - t + W ; valid iff in [0, 2W]
    rows = jax.lax.broadcasted_iota(jnp.int32, (T, T), 0)
    cols = jax.lax.broadcasted_iota(jnp.int32, (T, T), 1)
    band = cols - rows + WINDOW_SIZE

    x = x_ref[...] * mcol                                 # Encoder: x = x * x_mask

    for l in range(N_LAYERS):                             # static unroll over layers
        # ---- fused QKV projection: one (R, C) @ (C, 3C) matmul ----
        xf = x.reshape(R, C)
        qkv = (jnp.dot(xf.astype(MXU_DTYPE), wqkv_ref[l],
                       preferred_element_type=jnp.float32) + bqkv_ref[l])   # (R, 3C)

        rkT = rkT_ref[l]                                  # (HEAD_DIM, 2W+1) f32
        rvl = rv_ref[l]                                   # (2W+1, HEAD_DIM) f32

        heads = []
        for h in range(N_HEADS):                          # static unroll over heads
            lo = h * HEAD_DIM
            qf = qkv[:, lo:lo + HEAD_DIM] * scale                        # (R, D)
            q3 = qf.reshape(Bb, T, HEAD_DIM)
            k3 = qkv[:, C + lo:C + lo + HEAD_DIM].reshape(Bb, T, HEAD_DIM)
            v3 = qkv[:, 2 * C + lo:2 * C + lo + HEAD_DIM].reshape(Bb, T, HEAD_DIM)

            scores = jnp.einsum('btd,bsd->bts',
                                q3.astype(MXU_DTYPE), k3.astype(MXU_DTYPE),
                                preferred_element_type=jnp.float32)      # (Bb,T,T)

            # windowed relative-key logits: (R, D) @ (D, 2W+1), banded scatter
            rlog = jnp.dot(qf, rkT,
                           preferred_element_type=jnp.float32).reshape(Bb, T, NREL)
            for r in range(NREL):                         # static, 2W+1 taps
                scores = scores + jnp.where(band == r, rlog[:, :, r:r + 1], 0.0)

            scores = jnp.where(attn_mask > 0.0, scores, jnp.float32(-1e4))
            p = _softmax_last(scores)                                    # f32

            oh = jnp.einsum('bts,bsd->btd',
                            p.astype(MXU_DTYPE), v3.astype(MXU_DTYPE),
                            preferred_element_type=jnp.float32)          # (Bb,T,D)

            # windowed relative-value contribution (banded weights x emb_rel_v)
            for r in range(NREL):
                rw = jnp.sum(jnp.where(band == r, p, 0.0),
                             axis=-1, keepdims=True)                     # (Bb,T,1)
                oh = oh + rw * rvl[r:r + 1, :][None]                     # (1,1,D)
            heads.append(oh)

        # fused output projection over concatenated heads
        o_cat = jnp.concatenate(heads, axis=-1).reshape(R, C)
        y = (jnp.dot(o_cat.astype(MXU_DTYPE), wo_ref[l],
                     preferred_element_type=jnp.float32) + bo_ref[l])    # (R, C)
        x = _layer_norm(x + y.reshape(Bb, T, C), g1_ref[l], be1_ref[l])

        # ---- FFN: im2col conv -> relu -> im2col conv, masked like VITS FFN ----
        h1 = _conv1d_im2col(x * mcol, w1_ref[l], b1_ref[l])
        h1 = jnp.maximum(h1, 0.0)
        y2 = _conv1d_im2col(h1 * mcol, w2_ref[l], b2_ref[l])
        y2 = y2 * mcol
        x = _layer_norm(x + y2, g2_ref[l], be2_ref[l])

    c_ref[...] = x * mcol                                 # final Encoder mask


# ------------------------------ parameter setup ------------------------------
def init_params(key):
    keys = iter(jax.random.split(key, 32))

    def nrm(shape, scale):
        return (scale * jax.random.normal(next(keys), shape)).astype(jnp.float32)

    L = N_LAYERS
    p = {}
    p['emb_phone'] = nrm((63, HIDDEN), HIDDEN ** -0.5)
    p['emb_score'] = nrm((128, HIDDEN), HIDDEN ** -0.5)
    p['emb_slurs'] = nrm((2, HIDDEN), HIDDEN ** -0.5)
    p['wqkv'] = nrm((L, HIDDEN, 3 * HIDDEN), HIDDEN ** -0.5)      # [Wq | Wk | Wv]
    p['bqkv'] = jnp.zeros((L, 1, 3 * HIDDEN), jnp.float32)
    p['wo'] = nrm((L, HIDDEN, HIDDEN), HIDDEN ** -0.5)
    p['bo'] = jnp.zeros((L, 1, HIDDEN), jnp.float32)
    p['emb_rel_k'] = nrm((L, NREL, HEAD_DIM), HEAD_DIM ** -0.5)   # heads_share=True
    p['emb_rel_v'] = nrm((L, NREL, HEAD_DIM), HEAD_DIM ** -0.5)
    p['g1'] = jnp.ones((L, 1, HIDDEN), jnp.float32)
    p['be1'] = jnp.zeros((L, 1, HIDDEN), jnp.float32)
    p['w1'] = nrm((L, KERNEL_SIZE, HIDDEN, FILTER), (HIDDEN * KERNEL_SIZE) ** -0.5)
    p['b1'] = jnp.zeros((L, 1, FILTER), jnp.float32)
    p['w2'] = nrm((L, KERNEL_SIZE, FILTER, HIDDEN), (FILTER * KERNEL_SIZE) ** -0.5)
    p['b2'] = jnp.zeros((L, 1, HIDDEN), jnp.float32)
    p['g2'] = jnp.ones((L, 1, HIDDEN), jnp.float32)
    p['be2'] = jnp.zeros((L, 1, HIDDEN), jnp.float32)
    p['wp'] = nrm((HIDDEN, 2), HIDDEN ** -0.5)
    p['bp'] = jnp.zeros((1, 2), jnp.float32)
    return p


# --------------------------------- wrapper ------------------------------------
def _pick_block_b(B, T):
    # fold enough sequences per grid step to target ~256 MXU rows; must divide B.
    bb = max(1, min(B, 256 // max(T, 1)))
    while bb > 1 and B % bb != 0:
        bb -= 1
    return bb


def _block_spec_batched(shape, bb):
    nd = len(shape)
    return pl.BlockSpec((bb,) + tuple(shape[1:]),
                        lambda b, *_, _nd=nd: (b,) + (0,) * (_nd - 1))


def _block_spec_full(arr):
    nd = arr.ndim
    return pl.BlockSpec(arr.shape, lambda b, *_, _nd=nd: (0,) * _nd)


def text_encoder_forward(params, phone, lengths, score, slurs):
    B, T = phone.shape
    L = N_LAYERS

    # x = (emb_phone + emb_score + emb_slurs) * sqrt(hidden)   -> (B, T, C)
    x = (params['emb_phone'][phone] + params['emb_score'][score]
         + params['emb_slurs'][slurs]) * math.sqrt(HIDDEN)
    x = x.astype(jnp.float32)

    lengths = lengths.astype(jnp.int32)
    mask = (jnp.arange(T)[None, :] < lengths[:, None]).astype(jnp.float32)  # (B, T)
    x_mask = mask[:, None, :]                                               # (B, 1, T)

    # weights: fused / reshaped, matmul weights in bf16 (f32 accumulation in-kernel)
    wqkv = params['wqkv'].astype(MXU_DTYPE)
    wo = params['wo'].astype(MXU_DTYPE)
    w1f = params['w1'].reshape(L, KERNEL_SIZE * HIDDEN, FILTER).astype(MXU_DTYPE)
    w2f = params['w2'].reshape(L, KERNEL_SIZE * FILTER, HIDDEN).astype(MXU_DTYPE)
    rkT = jnp.transpose(params['emb_rel_k'], (0, 2, 1))   # (L, D, 2W+1) f32
    rv = params['emb_rel_v']                              # (L, 2W+1, D) f32

    param_in = [wqkv, params['bqkv'], wo, params['bo'], rkT, rv,
                params['g1'], params['be1'],
                w1f, params['b1'], w2f, params['b2'],
                params['g2'], params['be2']]

    Bb = _pick_block_b(B, T)
    grid = (B // Bb,)

    in_specs = ([_block_spec_batched(x.shape, Bb)]
                + [_block_spec_full(a) for a in param_in])
    out_spec = pl.BlockSpec((Bb, T, HIDDEN), lambda b, *_: (b, 0, 0))
    out_shape = jax.ShapeDtypeStruct((B, T, HIDDEN), jnp.float32)

    c = pl.pallas_call(
        _text_encoder_kernel,
        out_shape=out_shape,
        grid_spec=pltpu.PrefetchScalarGridSpec(
            num_scalar_prefetch=1,            # lengths -> SMEM, masks built in-kernel
            grid=grid,
            in_specs=in_specs,
            out_specs=out_spec),
        compiler_params=pltpu.CompilerParams(
            dimension_semantics=("parallel",)),
    )(lengths, x, *param_in)

    # final 1x1 projection (hidden -> 2) in plain JAX: keeps the kernel output
    # lane-dense and fuses with the transpose below.
    x_proj = jnp.matmul(c, params['wp']) + params['bp']   # (B, T, 2)

    # back to PyTorch convention: (B, 2, T), (B, 1, T), (B, C, T)
    x_out = jnp.transpose(x_proj, (0, 2, 1))
    c_out = jnp.transpose(c, (0, 2, 1))
    return x_out, x_mask, c_out


# ----------------------------------- main -------------------------------------
if __name__ == "__main__":
    key = jax.random.PRNGKey(0)
    pkey, dkey = jax.random.split(key)
    params = init_params(pkey)

    B, T = 2, 16
    k1, k2, k3 = jax.random.split(dkey, 3)
    phone = jax.random.randint(k1, (B, T), 0, 63, dtype=jnp.int32)
    score = jax.random.randint(k2, (B, T), 0, 128, dtype=jnp.int32)
    slurs = jax.random.randint(k3, (B, T), 0, 2, dtype=jnp.int32)
    lengths = jnp.array([T, T - 5], dtype=jnp.int32)

    fwd = jax.jit(lambda ph, ln, sc, sl: text_encoder_forward(params, ph, ln, sc, sl))
    x_out, x_mask, c = fwd(phone, lengths, score, slurs)
    jax.block_until_ready((x_out, x_mask, c))

    assert x_out.shape == (B, 2, T)
    assert x_mask.shape == (B, 1, T)
    assert c.shape == (B, HIDDEN, T)
    print("KERNEL_OK")
</pallas_src>

<mosaic_0001>
module attributes {stable_mosaic.version = 11 : i64} {
  func.func @_text_encoder_kernel(%arg0: i32, %arg1: memref<2xi32, #tpu.memory_space<smem>>, %arg2: memref<2x16x64xf32, #tpu.memory_space<vmem>>, %arg3: memref<2x64x192xbf16, #tpu.memory_space<vmem>>, %arg4: memref<2x1x192xf32, #tpu.memory_space<vmem>>, %arg5: memref<2x64x64xbf16, #tpu.memory_space<vmem>>, %arg6: memref<2x1x64xf32, #tpu.memory_space<vmem>>, %arg7: memref<2x32x9xf32, #tpu.memory_space<vmem>>, %arg8: memref<2x9x32xf32, #tpu.memory_space<vmem>>, %arg9: memref<2x1x64xf32, #tpu.memory_space<vmem>>, %arg10: memref<2x1x64xf32, #tpu.memory_space<vmem>>, %arg11: memref<2x192x128xbf16, #tpu.memory_space<vmem>>, %arg12: memref<2x1x128xf32, #tpu.memory_space<vmem>>, %arg13: memref<2x384x64xbf16, #tpu.memory_space<vmem>>, %arg14: memref<2x1x64xf32, #tpu.memory_space<vmem>>, %arg15: memref<2x1x64xf32, #tpu.memory_space<vmem>>, %arg16: memref<2x1x64xf32, #tpu.memory_space<vmem>>, %arg17: memref<2x16x64xf32, #tpu.memory_space<vmem>>) attributes {dimension_semantics = [#tpu.dimension_semantics<parallel>], iteration_bounds = array<i64: 1>, scalar_prefetch = 1 : i64, scratch_operands = 0 : i64, tpu.core_type = #tpu.core_type<tc>, window_params = [{transform_indices = @transform_0, window_bounds = array<i64: 2, 16, 64>}, {pipeline_mode = #tpu.pipeline_mode<synchronous>, transform_indices = @transform_1, window_bounds = array<i64: 2, 64, 192>}, {pipeline_mode = #tpu.pipeline_mode<synchronous>, transform_indices = @transform_2, window_bounds = array<i64: 2, 1, 192>}, {pipeline_mode = #tpu.pipeline_mode<synchronous>, transform_indices = @transform_3, window_bounds = array<i64: 2, 64, 64>}, {pipeline_mode = #tpu.pipeline_mode<synchronous>, transform_indices = @transform_4, window_bounds = array<i64: 2, 1, 64>}, {pipeline_mode = #tpu.pipeline_mode<synchronous>, transform_indices = @transform_5, window_bounds = array<i64: 2, 32, 9>}, {pipeline_mode = #tpu.pipeline_mode<synchronous>, transform_indices = @transform_6, window_bounds = array<i64: 2, 9, 32>}, {pipeline_mode = #tpu.pipeline_mode<synchronous>, transform_indices = @transform_7, window_bounds = array<i64: 2, 1, 64>}, {pipeline_mode = #tpu.pipeline_mode<synchronous>, transform_indices = @transform_8, window_bounds = array<i64: 2, 1, 64>}, {pipeline_mode = #tpu.pipeline_mode<synchronous>, transform_indices = @transform_9, window_bounds = array<i64: 2, 192, 128>}, {pipeline_mode = #tpu.pipeline_mode<synchronous>, transform_indices = @transform_10, window_bounds = array<i64: 2, 1, 128>}, {pipeline_mode = #tpu.pipeline_mode<synchronous>, transform_indices = @transform_11, window_bounds = array<i64: 2, 384, 64>}, {pipeline_mode = #tpu.pipeline_mode<synchronous>, transform_indices = @transform_12, window_bounds = array<i64: 2, 1, 64>}, {pipeline_mode = #tpu.pipeline_mode<synchronous>, transform_indices = @transform_13, window_bounds = array<i64: 2, 1, 64>}, {pipeline_mode = #tpu.pipeline_mode<synchronous>, transform_indices = @transform_14, window_bounds = array<i64: 2, 1, 64>}, {transform_indices = @transform_15, window_bounds = array<i64: 2, 16, 64>}]} {
    %c2_i32 = arith.constant 2 : i32
    %0 = arith.muli %arg0, %c2_i32 : i32
    %1 = tpu.iota {dimensions = array<i32: 1>} : vector<2x16x1xi32>
    %2 = tpu.iota {dimensions = array<i32: 2>} : vector<2x1x16xi32>
    %3 = tpu.iota {dimensions = array<i32: 0>} : vector<2x16x1xi32>
    %4 = tpu.iota {dimensions = array<i32: 0>} : vector<2x1x16xi32>
    %c0_i32 = arith.constant 0 : i32
    %5 = vector.broadcast %c0_i32 : i32 to vector<2x16x1xi32>
    %c0_i32_0 = arith.constant 0 : i32
    %6 = vector.broadcast %c0_i32_0 : i32 to vector<2x1x16xi32>
    %c0_i32_1 = arith.constant 0 : i32
    %7 = arith.addi %0, %c0_i32_1 : i32
    %8 = arith.index_cast %7 : i32 to index
    %9 = memref.load %arg1[%8] : memref<2xi32, #tpu.memory_space<smem>>
    %c0_i32_2 = arith.constant 0 : i32
    %10 = vector.broadcast %c0_i32_2 : i32 to vector<2x16x1xi32>
    %11 = arith.cmpi eq, %3, %10 : vector<2x16x1xi32>
    %12 = vector.broadcast %9 : i32 to vector<2x16x1xi32>
    %13 = arith.select %11, %12, %5 : vector<2x16x1xi1>, vector<2x16x1xi32>
    %c0_i32_3 = arith.constant 0 : i32
    %14 = vector.broadcast %c0_i32_3 : i32 to vector<2x1x16xi32>
    %15 = arith.cmpi eq, %4, %14 : vector<2x1x16xi32>
    %16 = vector.broadcast %9 : i32 to vector<2x1x16xi32>
    %17 = arith.select %15, %16, %6 : vector<2x1x16xi1>, vector<2x1x16xi32>
    %c1_i32 = arith.constant 1 : i32
    %18 = arith.addi %0, %c1_i32 : i32
    %19 = arith.index_cast %18 : i32 to index
    %20 = memref.load %arg1[%19] : memref<2xi32, #tpu.memory_space<smem>>
    %c1_i32_4 = arith.constant 1 : i32
    %21 = vector.broadcast %c1_i32_4 : i32 to vector<2x16x1xi32>
    %22 = arith.cmpi eq, %3, %21 : vector<2x16x1xi32>
    %23 = vector.broadcast %20 : i32 to vector<2x16x1xi32>
    %24 = arith.select %22, %23, %13 : vector<2x16x1xi1>, vector<2x16x1xi32>
    %c1_i32_5 = arith.constant 1 : i32
    %25 = vector.broadcast %c1_i32_5 : i32 to vector<2x1x16xi32>
    %26 = arith.cmpi eq, %4, %25 : vector<2x1x16xi32>
    %27 = vector.broadcast %20 : i32 to vector<2x1x16xi32>
    %28 = arith.select %26, %27, %17 : vector<2x1x16xi1>, vector<2x1x16xi32>
    %29 = arith.cmpi slt, %1, %24 : vector<2x16x1xi32>
    %30 = arith.extui %29 : vector<2x16x1xi1> to vector<2x16x1xi32>
    %31 = arith.sitofp %30 : vector<2x16x1xi32> to vector<2x16x1xf32>
    %32 = arith.cmpi slt, %2, %28 : vector<2x1x16xi32>
    %33 = arith.extui %32 : vector<2x1x16xi1> to vector<2x1x16xi32>
    %34 = arith.sitofp %33 : vector<2x1x16xi32> to vector<2x1x16xf32>
    %35 = vector.broadcast %31 : vector<2x16x1xf32> to vector<2x16x16xf32>
    %36 = vector.broadcast %34 : vector<2x1x16xf32> to vector<2x16x16xf32>
    %37 = arith.mulf %35, %36 : vector<2x16x16xf32>
    %38 = tpu.iota {dimensions = array<i32: 0>} : vector<16x16xi32>
    %39 = tpu.iota {dimensions = array<i32: 1>} : vector<16x16xi32>
    %40 = arith.subi %39, %38 : vector<16x16xi32>
    %c4_i32 = arith.constant 4 : i32
    %41 = vector.broadcast %c4_i32 : i32 to vector<16x16xi32>
    %42 = arith.addi %40, %41 : vector<16x16xi32>
    %c0 = arith.constant 0 : index
    %c0_6 = arith.constant 0 : index
    %c0_7 = arith.constant 0 : index
    %43 = vector.load %arg2[%c0, %c0_6, %c0_7] : memref<2x16x64xf32, #tpu.memory_space<vmem>>, vector<2x16x64xf32>
    %44 = vector.broadcast %31 : vector<2x16x1xf32> to vector<2x16x64xf32>
    %45 = arith.mulf %43, %44 : vector<2x16x64xf32>
    %46 = vector.shape_cast %45 : vector<2x16x64xf32> to vector<32x64xf32>
    %47 = arith.truncf %46 : vector<32x64xf32> to vector<32x64xbf16>
    %c0_8 = arith.constant 0 : index
    %c0_9 = arith.constant 0 : index
    %c0_10 = arith.constant 0 : index
    %48 = vector.load %arg3[%c0_8, %c0_9, %c0_10] : memref<2x64x192xbf16, #tpu.memory_space<vmem>>, vector<1x64x192xbf16>
    %49 = vector.shape_cast %48 : vector<1x64x192xbf16> to vector<64x192xbf16>
    %cst = arith.constant dense<0.000000e+00> : vector<32x192xf32>
    %50 = tpu.matmul %47, %49, %cst {dimension_numbers = #tpu.dot_dimension_numbers<[1], [0], [0], [1], [0, 0, 1, 1], [], []>} : vector<32x64xbf16>, vector<64x192xbf16>, vector<32x192xf32> -> vector<32x192xf32>
    %c0_11 = arith.constant 0 : index
    %c0_12 = arith.constant 0 : index
    %c0_13 = arith.constant 0 : index
    %51 = vector.load %arg4[%c0_11, %c0_12, %c0_13] : memref<2x1x192xf32, #tpu.memory_space<vmem>>, vector<1x1x192xf32>
    %52 = vector.shape_cast %51 : vector<1x1x192xf32> to vector<1x192xf32>
    %53 = vector.broadcast %52 : vector<1x192xf32> to vector<32x192xf32>
    %54 = arith.addf %50, %53 : vector<32x192xf32>
    %c0_14 = arith.constant 0 : index
    %c0_15 = arith.constant 0 : index
    %c0_16 = arith.constant 0 : index
    %55 = vector.load %arg7[%c0_14, %c0_15, %c0_16] : memref<2x32x9xf32, #tpu.memory_space<vmem>>, vector<1x32x9xf32>
    %56 = vector.shape_cast %55 : vector<1x32x9xf32> to vector<32x9xf32>
    %c0_17 = arith.constant 0 : index
    %c0_18 = arith.constant 0 : index
    %c0_19 = arith.constant 0 : index
    %57 = vector.load %arg8[%c0_17, %c0_18, %c0_19] : memref<2x9x32xf32, #tpu.memory_space<vmem>>, vector<1x9x32xf32>
    %58 = vector.shape_cast %57 : vector<1x9x32xf32> to vector<9x32xf32>
    %59 = vector.extract_strided_slice %54 {offsets = [0, 0], sizes = [32, 32], strides = [1, 1]} : vector<32x192xf32> to vector<32x32xf32>
    %cst_20 = arith.constant 0.176776692 : f32
    %60 = vector.broadcast %cst_20 : f32 to vector<32x32xf32>
    %61 = arith.mulf %59, %60 : vector<32x32xf32>
    %62 = vector.shape_cast %61 : vector<32x32xf32> to vector<2x16x32xf32>
    %63 = vector.extract_strided_slice %54 {offsets = [0, 64], sizes = [32, 32], strides = [1, 1]} : vector<32x192xf32> to vector<32x32xf32>
    %64 = vector.shape_cast %63 : vector<32x32xf32> to vector<2x16x32xf32>
    %65 = vector.extract_strided_slice %54 {offsets = [0, 128], sizes = [32, 32], strides = [1, 1]} : vector<32x192xf32> to vector<32x32xf32>
    %66 = vector.shape_cast %65 : vector<32x32xf32> to vector<2x16x32xf32>
    %67 = arith.truncf %62 : vector<2x16x32xf32> to vector<2x16x32xbf16>
    %68 = arith.truncf %64 : vector<2x16x32xf32> to vector<2x16x32xbf16>
    "tpu.trace_start"() <{level = 10 : i32, message = "btd,bsd->bts"}> : () -> ()
    %cst_21 = arith.constant dense<0.000000e+00> : vector<2x16x16xf32>
    %69 = tpu.matmul %67, %68, %cst_21 {dimension_numbers = #tpu.dot_dimension_numbers<[2], [2], [1], [1], [0, 0, 0, 1, 1, 1], [0], [0]>} : vector<2x16x32xbf16>, vector<2x16x32xbf16>, vector<2x16x16xf32> -> vector<2x16x16xf32>
    "tpu.trace_stop"() : () -> ()
    %cst_22 = arith.constant dense<0.000000e+00> : vector<32x9xf32>
    %70 = tpu.matmul %61, %56, %cst_22 {dimension_numbers = #tpu.dot_dimension_numbers<[1], [0], [0], [1], [0, 0, 1, 1], [], []>} : vector<32x32xf32>, vector<32x9xf32>, vector<32x9xf32> -> vector<32x9xf32>
    %71 = vector.shape_cast %70 : vector<32x9xf32> to vector<2x16x9xf32>
    %c0_i32_23 = arith.constant 0 : i32
    %72 = vector.broadcast %c0_i32_23 : i32 to vector<16x16xi32>
    %73 = arith.cmpi eq, %42, %72 : vector<16x16xi32>
    %74 = vector.extract_strided_slice %71 {offsets = [0, 0, 0], sizes = [2, 16, 1], strides = [1, 1, 1]} : vector<2x16x9xf32> to vector<2x16x1xf32>
    %cst_24 = arith.constant 0.000000e+00 : f32
    %75 = vector.shape_cast %73 : vector<16x16xi1> to vector<1x16x16xi1>
    %76 = vector.broadcast %75 : vector<1x16x16xi1> to vector<2x16x16xi1>
    %77 = vector.shape_cast %74 : vector<2x16x1xf32> to vector<2x16x1xf32>
    %78 = vector.broadcast %77 : vector<2x16x1xf32> to vector<2x16x16xf32>
    %79 = vector.broadcast %cst_24 : f32 to vector<2x16x16xf32>
    %80 = arith.select %76, %78, %79 : vector<2x16x16xi1>, vector<2x16x16xf32>
    %81 = arith.addf %69, %80 : vector<2x16x16xf32>
    %c1_i32_25 = arith.constant 1 : i32
    %82 = vector.broadcast %c1_i32_25 : i32 to vector<16x16xi32>
    %83 = arith.cmpi eq, %42, %82 : vector<16x16xi32>
    %84 = vector.extract_strided_slice %71 {offsets = [0, 0, 1], sizes = [2, 16, 1], strides = [1, 1, 1]} : vector<2x16x9xf32> to vector<2x16x1xf32>
    %cst_26 = arith.constant 0.000000e+00 : f32
    %85 = vector.shape_cast %83 : vector<16x16xi1> to vector<1x16x16xi1>
    %86 = vector.broadcast %85 : vector<1x16x16xi1> to vector<2x16x16xi1>
    %87 = vector.shape_cast %84 : vector<2x16x1xf32> to vector<2x16x1xf32>
    %88 = vector.broadcast %87 : vector<2x16x1xf32> to vector<2x16x16xf32>
    %89 = vector.broadcast %cst_26 : f32 to vector<2x16x16xf32>
    %90 = arith.select %86, %88, %89 : vector<2x16x16xi1>, vector<2x16x16xf32>
    %91 = arith.addf %81, %90 : vector<2x16x16xf32>
    %c2_i32_27 = arith.constant 2 : i32
    %92 = vector.broadcast %c2_i32_27 : i32 to vector<16x16xi32>
    %93 = arith.cmpi eq, %42, %92 : vector<16x16xi32>
    %94 = vector.extract_strided_slice %71 {offsets = [0, 0, 2], sizes = [2, 16, 1], strides = [1, 1, 1]} : vector<2x16x9xf32> to vector<2x16x1xf32>
    %cst_28 = arith.constant 0.000000e+00 : f32
    %95 = vector.shape_cast %93 : vector<16x16xi1> to vector<1x16x16xi1>
    %96 = vector.broadcast %95 : vector<1x16x16xi1> to vector<2x16x16xi1>
    %97 = vector.shape_cast %94 : vector<2x16x1xf32> to vector<2x16x1xf32>
    %98 = vector.broadcast %97 : vector<2x16x1xf32> to vector<2x16x16xf32>
    %99 = vector.broadcast %cst_28 : f32 to vector<2x16x16xf32>
    %100 = arith.select %96, %98, %99 : vector<2x16x16xi1>, vector<2x16x16xf32>
    %101 = arith.addf %91, %100 : vector<2x16x16xf32>
    %c3_i32 = arith.constant 3 : i32
    %102 = vector.broadcast %c3_i32 : i32 to vector<16x16xi32>
    %103 = arith.cmpi eq, %42, %102 : vector<16x16xi32>
    %104 = vector.extract_strided_slice %71 {offsets = [0, 0, 3], sizes = [2, 16, 1], strides = [1, 1, 1]} : vector<2x16x9xf32> to vector<2x16x1xf32>
    %cst_29 = arith.constant 0.000000e+00 : f32
    %105 = vector.shape_cast %103 : vector<16x16xi1> to vector<1x16x16xi1>
    %106 = vector.broadcast %105 : vector<1x16x16xi1> to vector<2x16x16xi1>
    %107 = vector.shape_cast %104 : vector<2x16x1xf32> to vector<2x16x1xf32>
    %108 = vector.broadcast %107 : vector<2x16x1xf32> to vector<2x16x16xf32>
    %109 = vector.broadcast %cst_29 : f32 to vector<2x16x16xf32>
    %110 = arith.select %106, %108, %109 : vector<2x16x16xi1>, vector<2x16x16xf32>
    %111 = arith.addf %101, %110 : vector<2x16x16xf32>
    %c4_i32_30 = arith.constant 4 : i32
    %112 = vector.broadcast %c4_i32_30 : i32 to vector<16x16xi32>
    %113 = arith.cmpi eq, %42, %112 : vector<16x16xi32>
    %114 = vector.extract_strided_slice %71 {offsets = [0, 0, 4], sizes = [2, 16, 1], strides = [1, 1, 1]} : vector<2x16x9xf32> to vector<2x16x1xf32>
    %cst_31 = arith.constant 0.000000e+00 : f32
    %115 = vector.shape_cast %113 : vector<16x16xi1> to vector<1x16x16xi1>
    %116 = vector.broadcast %115 : vector<1x16x16xi1> to vector<2x16x16xi1>
    %117 = vector.shape_cast %114 : vector<2x16x1xf32> to vector<2x16x1xf32>
    %118 = vector.broadcast %117 : vector<2x16x1xf32> to vector<2x16x16xf32>
    %119 = vector.broadcast %cst_31 : f32 to vector<2x16x16xf32>
    %120 = arith.select %116, %118, %119 : vector<2x16x16xi1>, vector<2x16x16xf32>
    %121 = arith.addf %111, %120 : vector<2x16x16xf32>
    %c5_i32 = arith.constant 5 : i32
    %122 = vector.broadcast %c5_i32 : i32 to vector<16x16xi32>
    %123 = arith.cmpi eq, %42, %122 : vector<16x16xi32>
    %124 = vector.extract_strided_slice %71 {offsets = [0, 0, 5], sizes = [2, 16, 1], strides = [1, 1, 1]} : vector<2x16x9xf32> to vector<2x16x1xf32>
    %cst_32 = arith.constant 0.000000e+00 : f32
    %125 = vector.shape_cast %123 : vector<16x16xi1> to vector<1x16x16xi1>
    %126 = vector.broadcast %125 : vector<1x16x16xi1> to vector<2x16x16xi1>
    %127 = vector.shape_cast %124 : vector<2x16x1xf32> to vector<2x16x1xf32>
    %128 = vector.broadcast %127 : vector<2x16x1xf32> to vector<2x16x16xf32>
    %129 = vector.broadcast %cst_32 : f32 to vector<2x16x16xf32>
    %130 = arith.select %126, %128, %129 : vector<2x16x16xi1>, vector<2x16x16xf32>
    %131 = arith.addf %121, %130 : vector<2x16x16xf32>
    %c6_i32 = arith.constant 6 : i32
    %132 = vector.broadcast %c6_i32 : i32 to vector<16x16xi32>
    %133 = arith.cmpi eq, %42, %132 : vector<16x16xi32>
    %134 = vector.extract_strided_slice %71 {offsets = [0, 0, 6], sizes = [2, 16, 1], strides = [1, 1, 1]} : vector<2x16x9xf32> to vector<2x16x1xf32>
    %cst_33 = arith.constant 0.000000e+00 : f32
    %135 = vector.shape_cast %133 : vector<16x16xi1> to vector<1x16x16xi1>
    %136 = vector.broadcast %135 : vector<1x16x16xi1> to vector<2x16x16xi1>
    %137 = vector.shape_cast %134 : vector<2x16x1xf32> to vector<2x16x1xf32>
    %138 = vector.broadcast %137 : vector<2x16x1xf32> to vector<2x16x16xf32>
    %139 = vector.broadcast %cst_33 : f32 to vector<2x16x16xf32>
    %140 = arith.select %136, %138, %139 : vector<2x16x16xi1>, vector<2x16x16xf32>
    %141 = arith.addf %131, %140 : vector<2x16x16xf32>
    %c7_i32 = arith.constant 7 : i32
    %142 = vector.broadcast %c7_i32 : i32 to vector<16x16xi32>
    %143 = arith.cmpi eq, %42, %142 : vector<16x16xi32>
    %144 = vector.extract_strided_slice %71 {offsets = [0, 0, 7], sizes = [2, 16, 1], strides = [1, 1, 1]} : vector<2x16x9xf32> to vector<2x16x1xf32>
    %cst_34 = arith.constant 0.000000e+00 : f32
    %145 = vector.shape_cast %143 : vector<16x16xi1> to vector<1x16x16xi1>
    %146 = vector.broadcast %145 : vector<1x16x16xi1> to vector<2x16x16xi1>
    %147 = vector.shape_cast %144 : vector<2x16x1xf32> to vector<2x16x1xf32>
    %148 = vector.broadcast %147 : vector<2x16x1xf32> to vector<2x16x16xf32>
    %149 = vector.broadcast %cst_34 : f32 to vector<2x16x16xf32>
    %150 = arith.select %146, %148, %149 : vector<2x16x16xi1>, vector<2x16x16xf32>
    %151 = arith.addf %141, %150 : vector<2x16x16xf32>
    %c8_i32 = arith.constant 8 : i32
    %152 = vector.broadcast %c8_i32 : i32 to vector<16x16xi32>
    %153 = arith.cmpi eq, %42, %152 : vector<16x16xi32>
    %154 = vector.extract_strided_slice %71 {offsets = [0, 0, 8], sizes = [2, 16, 1], strides = [1, 1, 1]} : vector<2x16x9xf32> to vector<2x16x1xf32>
    %cst_35 = arith.constant 0.000000e+00 : f32
    %155 = vector.shape_cast %153 : vector<16x16xi1> to vector<1x16x16xi1>
    %156 = vector.broadcast %155 : vector<1x16x16xi1> to vector<2x16x16xi1>
    %157 = vector.shape_cast %154 : vector<2x16x1xf32> to vector<2x16x1xf32>
    %158 = vector.broadcast %157 : vector<2x16x1xf32> to vector<2x16x16xf32>
    %159 = vector.broadcast %cst_35 : f32 to vector<2x16x16xf32>
    %160 = arith.select %156, %158, %159 : vector<2x16x16xi1>, vector<2x16x16xf32>
    %161 = arith.addf %151, %160 : vector<2x16x16xf32>
    %cst_36 = arith.constant 0.000000e+00 : f32
    %162 = vector.broadcast %cst_36 : f32 to vector<2x16x16xf32>
    %163 = arith.cmpf ogt, %37, %162 : vector<2x16x16xf32>
    %cst_37 = arith.constant -1.000000e+04 : f32
    %164 = vector.broadcast %cst_37 : f32 to vector<2x16x16xf32>
    %165 = arith.select %163, %161, %164 : vector<2x16x16xi1>, vector<2x16x16xf32>
    %cst_38 = arith.constant dense<0xFF800000> : vector<2x16xf32>
    %166 = vector.multi_reduction <maximumf>, %165, %cst_38 [2] : vector<2x16x16xf32> to vector<2x16xf32>
    %167 = vector.shape_cast %166 : vector<2x16xf32> to vector<2x16x1xf32>
    %168 = vector.broadcast %167 : vector<2x16x1xf32> to vector<2x16x16xf32>
    %169 = arith.subf %165, %168 : vector<2x16x16xf32>
    %170 = math.exp %169 : vector<2x16x16xf32>
    %cst_39 = arith.constant dense<0.000000e+00> : vector<2x16xf32>
    %171 = vector.multi_reduction <add>, %170, %cst_39 [2] : vector<2x16x16xf32> to vector<2x16xf32>
    %172 = vector.shape_cast %171 : vector<2x16xf32> to vector<2x16x1xf32>
    %173 = vector.broadcast %172 : vector<2x16x1xf32> to vector<2x16x16xf32>
    %174 = arith.divf %170, %173 : vector<2x16x16xf32>
    %175 = arith.truncf %174 : vector<2x16x16xf32> to vector<2x16x16xbf16>
    %176 = arith.truncf %66 : vector<2x16x32xf32> to vector<2x16x32xbf16>
    "tpu.trace_start"() <{level = 10 : i32, message = "bts,bsd->btd"}> : () -> ()
    %cst_40 = arith.constant dense<0.000000e+00> : vector<2x16x32xf32>
    %177 = tpu.matmul %175, %176, %cst_40 {dimension_numbers = #tpu.dot_dimension_numbers<[2], [1], [1], [2], [0, 0, 0, 1, 1, 2], [0], [0]>} : vector<2x16x16xbf16>, vector<2x16x32xbf16>, vector<2x16x32xf32> -> vector<2x16x32xf32>
    %c0_i32_41 = arith.constant 0 : i32
    "tpu.trace_stop"() : () -> ()
    %178 = vector.broadcast %c0_i32_41 : i32 to vector<16x16xi32>
    %179 = arith.cmpi eq, %42, %178 : vector<16x16xi32>
    %cst_42 = arith.constant 0.000000e+00 : f32
    %180 = vector.shape_cast %179 : vector<16x16xi1> to vector<1x16x16xi1>
    %181 = vector.broadcast %180 : vector<1x16x16xi1> to vector<2x16x16xi1>
    %182 = vector.broadcast %cst_42 : f32 to vector<2x16x16xf32>
    %183 = arith.select %181, %174, %182 : vector<2x16x16xi1>, vector<2x16x16xf32>
    %cst_43 = arith.constant dense<0.000000e+00> : vector<2x16xf32>
    %184 = vector.multi_reduction <add>, %183, %cst_43 [2] : vector<2x16x16xf32> to vector<2x16xf32>
    %185 = vector.shape_cast %184 : vector<2x16xf32> to vector<2x16x1xf32>
    %186 = vector.extract_strided_slice %58 {offsets = [0, 0], sizes = [1, 32], strides = [1, 1]} : vector<9x32xf32> to vector<1x32xf32>
    %187 = vector.shape_cast %186 : vector<1x32xf32> to vector<1x1x32xf32>
    %188 = vector.broadcast %185 : vector<2x16x1xf32> to vector<2x16x32xf32>
    %189 = vector.broadcast %187 : vector<1x1x32xf32> to vector<2x16x32xf32>
    %190 = arith.mulf %188, %189 : vector<2x16x32xf32>
    %191 = arith.addf %177, %190 : vector<2x16x32xf32>
    %c1_i32_44 = arith.constant 1 : i32
    %192 = vector.broadcast %c1_i32_44 : i32 to vector<16x16xi32>
    %193 = arith.cmpi eq, %42, %192 : vector<16x16xi32>
    %cst_45 = arith.constant 0.000000e+00 : f32
    %194 = vector.shape_cast %193 : vector<16x16xi1> to vector<1x16x16xi1>
    %195 = vector.broadcast %194 : vector<1x16x16xi1> to vector<2x16x16xi1>
    %196 = vector.broadcast %cst_45 : f32 to vector<2x16x16xf32>
    %197 = arith.select %195, %174, %196 : vector<2x16x16xi1>, vector<2x16x16xf32>
    %cst_46 = arith.constant dense<0.000000e+00> : vector<2x16xf32>
    %198 = vector.multi_reduction <add>, %197, %cst_46 [2] : vector<2x16x16xf32> to vector<2x16xf32>
    %199 = vector.shape_cast %198 : vector<2x16xf32> to vector<2x16x1xf32>
    %200 = vector.extract_strided_slice %58 {offsets = [1, 0], sizes = [1, 32], strides = [1, 1]} : vector<9x32xf32> to vector<1x32xf32>
    %201 = vector.shape_cast %200 : vector<1x32xf32> to vector<1x1x32xf32>
    %202 = vector.broadcast %199 : vector<2x16x1xf32> to vector<2x16x32xf32>
    %203 = vector.broadcast %201 : vector<1x1x32xf32> to vector<2x16x32xf32>
    %204 = arith.mulf %202, %203 : vector<2x16x32xf32>
    %205 = arith.addf %191, %204 : vector<2x16x32xf32>
    %c2_i32_47 = arith.constant 2 : i32
    %206 = vector.broadcast %c2_i32_47 : i32 to vector<16x16xi32>
    %207 = arith.cmpi eq, %42, %206 : vector<16x16xi32>
    %cst_48 = arith.constant 0.000000e+00 : f32
    %208 = vector.shape_cast %207 : vector<16x16xi1> to vector<1x16x16xi1>
    %209 = vector.broadcast %208 : vector<1x16x16xi1> to vector<2x16x16xi1>
    %210 = vector.broadcast %cst_48 : f32 to vector<2x16x16xf32>
    %211 = arith.select %209, %174, %210 : vector<2x16x16xi1>, vector<2x16x16xf32>
    %cst_49 = arith.constant dense<0.000000e+00> : vector<2x16xf32>
    %212 = vector.multi_reduction <add>, %211, %cst_49 [2] : vector<2x16x16xf32> to vector<2x16xf32>
    %213 = vector.shape_cast %212 : vector<2x16xf32> to vector<2x16x1xf32>
    %214 = vector.extract_strided_slice %58 {offsets = [2, 0], sizes = [1, 32], strides = [1, 1]} : vector<9x32xf32> to vector<1x32xf32>
    %215 = vector.shape_cast %214 : vector<1x32xf32> to vector<1x1x32xf32>
    %216 = vector.broadcast %213 : vector<2x16x1xf32> to vector<2x16x32xf32>
    %217 = vector.broadcast %215 : vector<1x1x32xf32> to vector<2x16x32xf32>
    %218 = arith.mulf %216, %217 : vector<2x16x32xf32>
    %219 = arith.addf %205, %218 : vector<2x16x32xf32>
    %c3_i32_50 = arith.constant 3 : i32
    %220 = vector.broadcast %c3_i32_50 : i32 to vector<16x16xi32>
    %221 = arith.cmpi eq, %42, %220 : vector<16x16xi32>
    %cst_51 = arith.constant 0.000000e+00 : f32
    %222 = vector.shape_cast %221 : vector<16x16xi1> to vector<1x16x16xi1>
    %223 = vector.broadcast %222 : vector<1x16x16xi1> to vector<2x16x16xi1>
    %224 = vector.broadcast %cst_51 : f32 to vector<2x16x16xf32>
    %225 = arith.select %223, %174, %224 : vector<2x16x16xi1>, vector<2x16x16xf32>
    %cst_52 = arith.constant dense<0.000000e+00> : vector<2x16xf32>
    %226 = vector.multi_reduction <add>, %225, %cst_52 [2] : vector<2x16x16xf32> to vector<2x16xf32>
    %227 = vector.shape_cast %226 : vector<2x16xf32> to vector<2x16x1xf32>
    %228 = vector.extract_strided_slice %58 {offsets = [3, 0], sizes = [1, 32], strides = [1, 1]} : vector<9x32xf32> to vector<1x32xf32>
    %229 = vector.shape_cast %228 : vector<1x32xf32> to vector<1x1x32xf32>
    %230 = vector.broadcast %227 : vector<2x16x1xf32> to vector<2x16x32xf32>
    %231 = vector.broadcast %229 : vector<1x1x32xf32> to vector<2x16x32xf32>
    %232 = arith.mulf %230, %231 : vector<2x16x32xf32>
    %233 = arith.addf %219, %232 : vector<2x16x32xf32>
    %c4_i32_53 = arith.constant 4 : i32
    %234 = vector.broadcast %c4_i32_53 : i32 to vector<16x16xi32>
    %235 = arith.cmpi eq, %42, %234 : vector<16x16xi32>
    %cst_54 = arith.constant 0.000000e+00 : f32
    %236 = vector.shape_cast %235 : vector<16x16xi1> to vector<1x16x16xi1>
    %237 = vector.broadcast %236 : vector<1x16x16xi1> to vector<2x16x16xi1>
    %238 = vector.broadcast %cst_54 : f32 to vector<2x16x16xf32>
    %239 = arith.select %237, %174, %238 : vector<2x16x16xi1>, vector<2x16x16xf32>
    %cst_55 = arith.constant dense<0.000000e+00> : vector<2x16xf32>
    %240 = vector.multi_reduction <add>, %239, %cst_55 [2] : vector<2x16x16xf32> to vector<2x16xf32>
    %241 = vector.shape_cast %240 : vector<2x16xf32> to vector<2x16x1xf32>
    %242 = vector.extract_strided_slice %58 {offsets = [4, 0], sizes = [1, 32], strides = [1, 1]} : vector<9x32xf32> to vector<1x32xf32>
    %243 = vector.shape_cast %242 : vector<1x32xf32> to vector<1x1x32xf32>
    %244 = vector.broadcast %241 : vector<2x16x1xf32> to vector<2x16x32xf32>
    %245 = vector.broadcast %243 : vector<1x1x32xf32> to vector<2x16x32xf32>
    %246 = arith.mulf %244, %245 : vector<2x16x32xf32>
    %247 = arith.addf %233, %246 : vector<2x16x32xf32>
    %c5_i32_56 = arith.constant 5 : i32
    %248 = vector.broadcast %c5_i32_56 : i32 to vector<16x16xi32>
    %249 = arith.cmpi eq, %42, %248 : vector<16x16xi32>
    %cst_57 = arith.constant 0.000000e+00 : f32
    %250 = vector.shape_cast %249 : vector<16x16xi1> to vector<1x16x16xi1>
    %251 = vector.broadcast %250 : vector<1x16x16xi1> to vector<2x16x16xi1>
    %252 = vector.broadcast %cst_57 : f32 to vector<2x16x16xf32>
    %253 = arith.select %251, %174, %252 : vector<2x16x16xi1>, vector<2x16x16xf32>
    %cst_58 = arith.constant dense<0.000000e+00> : vector<2x16xf32>
    %254 = vector.multi_reduction <add>, %253, %cst_58 [2] : vector<2x16x16xf32> to vector<2x16xf32>
    %255 = vector.shape_cast %254 : vector<2x16xf32> to vector<2x16x1xf32>
    %256 = vector.extract_strided_slice %58 {offsets = [5, 0], sizes = [1, 32], strides = [1, 1]} : vector<9x32xf32> to vector<1x32xf32>
    %257 = vector.shape_cast %256 : vector<1x32xf32> to vector<1x1x32xf32>
    %258 = vector.broadcast %255 : vector<2x16x1xf32> to vector<2x16x32xf32>
    %259 = vector.broadcast %257 : vector<1x1x32xf32> to vector<2x16x32xf32>
    %260 = arith.mulf %258, %259 : vector<2x16x32xf32>
    %261 = arith.addf %247, %260 : vector<2x16x32xf32>
    %c6_i32_59 = arith.constant 6 : i32
    %262 = vector.broadcast %c6_i32_59 : i32 to vector<16x16xi32>
    %263 = arith.cmpi eq, %42, %262 : vector<16x16xi32>
    %cst_60 = arith.constant 0.000000e+00 : f32
    %264 = vector.shape_cast %263 : vector<16x16xi1> to vector<1x16x16xi1>
    %265 = vector.broadcast %264 : vector<1x16x16xi1> to vector<2x16x16xi1>
    %266 = vector.broadcast %cst_60 : f32 to vector<2x16x16xf32>
    %267 = arith.select %265, %174, %266 : vector<2x16x16xi1>, vector<2x16x16xf32>
    %cst_61 = arith.constant dense<0.000000e+00> : vector<2x16xf32>
    %268 = vector.multi_reduction <add>, %267, %cst_61 [2] : vector<2x16x16xf32> to vector<2x16xf32>
    %269 = vector.shape_cast %268 : vector<2x16xf32> to vector<2x16x1xf32>
    %270 = vector.extract_strided_slice %58 {offsets = [6, 0], sizes = [1, 32], strides = [1, 1]} : vector<9x32xf32> to vector<1x32xf32>
    %271 = vector.shape_cast %270 : vector<1x32xf32> to vector<1x1x32xf32>
    %272 = vector.broadcast %269 : vector<2x16x1xf32> to vector<2x16x32xf32>
    %273 = vector.broadcast %271 : vector<1x1x32xf32> to vector<2x16x32xf32>
    %274 = arith.mulf %272, %273 : vector<2x16x32xf32>
    %275 = arith.addf %261, %274 : vector<2x16x32xf32>
    %c7_i32_62 = arith.constant 7 : i32
    %276 = vector.broadcast %c7_i32_62 : i32 to vector<16x16xi32>
    %277 = arith.cmpi eq, %42, %276 : vector<16x16xi32>
    %cst_63 = arith.constant 0.000000e+00 : f32
    %278 = vector.shape_cast %277 : vector<16x16xi1> to vector<1x16x16xi1>
    %279 = vector.broadcast %278 : vector<1x16x16xi1> to vector<2x16x16xi1>
    %280 = vector.broadcast %cst_63 : f32 to vector<2x16x16xf32>
    %281 = arith.select %279, %174, %280 : vector<2x16x16xi1>, vector<2x16x16xf32>
    %cst_64 = arith.constant dense<0.000000e+00> : vector<2x16xf32>
    %282 = vector.multi_reduction <add>, %281, %cst_64 [2] : vector<2x16x16xf32> to vector<2x16xf32>
    %283 = vector.shape_cast %282 : vector<2x16xf32> to vector<2x16x1xf32>
    %284 = vector.extract_strided_slice %58 {offsets = [7, 0], sizes = [1, 32], strides = [1, 1]} : vector<9x32xf32> to vector<1x32xf32>
    %285 = vector.shape_cast %284 : vector<1x32xf32> to vector<1x1x32xf32>
    %286 = vector.broadcast %283 : vector<2x16x1xf32> to vector<2x16x32xf32>
    %287 = vector.broadcast %285 : vector<1x1x32xf32> to vector<2x16x32xf32>
    %288 = arith.mulf %286, %287 : vector<2x16x32xf32>
    %289 = arith.addf %275, %288 : vector<2x16x32xf32>
    %c8_i32_65 = arith.constant 8 : i32
    %290 = vector.broadcast %c8_i32_65 : i32 to vector<16x16xi32>
    %291 = arith.cmpi eq, %42, %290 : vector<16x16xi32>
    %cst_66 = arith.constant 0.000000e+00 : f32
    %292 = vector.shape_cast %291 : vector<16x16xi1> to vector<1x16x16xi1>
    %293 = vector.broadcast %292 : vector<1x16x16xi1> to vector<2x16x16xi1>
    %294 = vector.broadcast %cst_66 : f32 to vector<2x16x16xf32>
    %295 = arith.select %293, %174, %294 : vector<2x16x16xi1>, vector<2x16x16xf32>
    %cst_67 = arith.constant dense<0.000000e+00> : vector<2x16xf32>
    %296 = vector.multi_reduction <add>, %295, %cst_67 [2] : vector<2x16x16xf32> to vector<2x16xf32>
    %297 = vector.shape_cast %296 : vector<2x16xf32> to vector<2x16x1xf32>
    %298 = vector.extract_strided_slice %58 {offsets = [8, 0], sizes = [1, 32], strides = [1, 1]} : vector<9x32xf32> to vector<1x32xf32>
    %299 = vector.shape_cast %298 : vector<1x32xf32> to vector<1x1x32xf32>
    %300 = vector.broadcast %297 : vector<2x16x1xf32> to vector<2x16x32xf32>
    %301 = vector.broadcast %299 : vector<1x1x32xf32> to vector<2x16x32xf32>
    %302 = arith.mulf %300, %301 : vector<2x16x32xf32>
    %303 = arith.addf %289, %302 : vector<2x16x32xf32>
    %304 = vector.extract_strided_slice %54 {offsets = [0, 32], sizes = [32, 32], strides = [1, 1]} : vector<32x192xf32> to vector<32x32xf32>
    %cst_68 = arith.constant 0.176776692 : f32
    %305 = vector.broadcast %cst_68 : f32 to vector<32x32xf32>
    %306 = arith.mulf %304, %305 : vector<32x32xf32>
    %307 = vector.shape_cast %306 : vector<32x32xf32> to vector<2x16x32xf32>
    %308 = vector.extract_strided_slice %54 {offsets = [0, 96], sizes = [32, 32], strides = [1, 1]} : vector<32x192xf32> to vector<32x32xf32>
    %309 = vector.shape_cast %308 : vector<32x32xf32> to vector<2x16x32xf32>
    %310 = vector.extract_strided_slice %54 {offsets = [0, 160], sizes = [32, 32], strides = [1, 1]} : vector<32x192xf32> to vector<32x32xf32>
    %311 = vector.shape_cast %310 : vector<32x32xf32> to vector<2x16x32xf32>
    %312 = arith.truncf %307 : vector<2x16x32xf32> to vector<2x16x32xbf16>
    %313 = arith.truncf %309 : vector<2x16x32xf32> to vector<2x16x32xbf16>
    "tpu.trace_start"() <{level = 10 : i32, message = "btd,bsd->bts"}> : () -> ()
    %cst_69 = arith.constant dense<0.000000e+00> : vector<2x16x16xf32>
    %314 = tpu.matmul %312, %313, %cst_69 {dimension_numbers = #tpu.dot_dimension_numbers<[2], [2], [1], [1], [0, 0, 0, 1, 1, 1], [0], [0]>} : vector<2x16x32xbf16>, vector<2x16x32xbf16>, vector<2x16x16xf32> -> vector<2x16x16xf32>
    "tpu.trace_stop"() : () -> ()
    %cst_70 = arith.constant dense<0.000000e+00> : vector<32x9xf32>
    %315 = tpu.matmul %306, %56, %cst_70 {dimension_numbers = #tpu.dot_dimension_numbers<[1], [0], [0], [1], [0, 0, 1, 1], [], []>} : vector<32x32xf32>, vector<32x9xf32>, vector<32x9xf32> -> vector<32x9xf32>
    %316 = vector.shape_cast %315 : vector<32x9xf32> to vector<2x16x9xf32>
    %c0_i32_71 = arith.constant 0 : i32
    %317 = vector.broadcast %c0_i32_71 : i32 to vector<16x16xi32>
    %318 = arith.cmpi eq, %42, %317 : vector<16x16xi32>
    %319 = vector.extract_strided_slice %316 {offsets = [0, 0, 0], sizes = [2, 16, 1], strides = [1, 1, 1]} : vector<2x16x9xf32> to vector<2x16x1xf32>
    %cst_72 = arith.constant 0.000000e+00 : f32
    %320 = vector.shape_cast %318 : vector<16x16xi1> to vector<1x16x16xi1>
    %321 = vector.broadcast %320 : vector<1x16x16xi1> to vector<2x16x16xi1>
    %322 = vector.shape_cast %319 : vector<2x16x1xf32> to vector<2x16x1xf32>
    %323 = vector.broadcast %322 : vector<2x16x1xf32> to vector<2x16x16xf32>
    %324 = vector.broadcast %cst_72 : f32 to vector<2x16x16xf32>
    %325 = arith.select %321, %323, %324 : vector<2x16x16xi1>, vector<2x16x16xf32>
    %326 = arith.addf %314, %325 : vector<2x16x16xf32>
    %c1_i32_73 = arith.constant 1 : i32
    %327 = vector.broadcast %c1_i32_73 : i32 to vector<16x16xi32>
    %328 = arith.cmpi eq, %42, %327 : vector<16x16xi32>
    %329 = vector.extract_strided_slice %316 {offsets = [0, 0, 1], sizes = [2, 16, 1], strides = [1, 1, 1]} : vector<2x16x9xf32> to vector<2x16x1xf32>
    %cst_74 = arith.constant 0.000000e+00 : f32
    %330 = vector.shape_cast %328 : vector<16x16xi1> to vector<1x16x16xi1>
    %331 = vector.broadcast %330 : vector<1x16x16xi1> to vector<2x16x16xi1>
    %332 = vector.shape_cast %329 : vector<2x16x1xf32> to vector<2x16x1xf32>
    %333 = vector.broadcast %332 : vector<2x16x1xf32> to vector<2x16x16xf32>
    %334 = vector.broadcast %cst_74 : f32 to vector<2x16x16xf32>
    %335 = arith.select %331, %333, %334 : vector<2x16x16xi1>, vector<2x16x16xf32>
    %336 = arith.addf %326, %335 : vector<2x16x16xf32>
    %c2_i32_75 = arith.constant 2 : i32
    %337 = vector.broadcast %c2_i32_75 : i32 to vector<16x16xi32>
    %338 = arith.cmpi eq, %42, %337 : vector<16x16xi32>
    %339 = vector.extract_strided_slice %316 {offsets = [0, 0, 2], sizes = [2, 16, 1], strides = [1, 1, 1]} : vector<2x16x9xf32> to vector<2x16x1xf32>
    %cst_76 = arith.constant 0.000000e+00 : f32
    %340 = vector.shape_cast %338 : vector<16x16xi1> to vector<1x16x16xi1>
    %341 = vector.broadcast %340 : vector<1x16x16xi1> to vector<2x16x16xi1>
    %342 = vector.shape_cast %339 : vector<2x16x1xf32> to vector<2x16x1xf32>
    %343 = vector.broadcast %342 : vector<2x16x1xf32> to vector<2x16x16xf32>
    %344 = vector.broadcast %cst_76 : f32 to vector<2x16x16xf32>
    %345 = arith.select %341, %343, %344 : vector<2x16x16xi1>, vector<2x16x16xf32>
    %346 = arith.addf %336, %345 : vector<2x16x16xf32>
    %c3_i32_77 = arith.constant 3 : i32
    %347 = vector.broadcast %c3_i32_77 : i32 to vector<16x16xi32>
    %348 = arith.cmpi eq, %42, %347 : vector<16x16xi32>
    %349 = vector.extract_strided_slice %316 {offsets = [0, 0, 3], sizes = [2, 16, 1], strides = [1, 1, 1]} : vector<2x16x9xf32> to vector<2x16x1xf32>
    %cst_78 = arith.constant 0.000000e+00 : f32
    %350 = vector.shape_cast %348 : vector<16x16xi1> to vector<1x16x16xi1>
    %351 = vector.broadcast %350 : vector<1x16x16xi1> to vector<2x16x16xi1>
    %352 = vector.shape_cast %349 : vector<2x16x1xf32> to vector<2x16x1xf32>
    %353 = vector.broadcast %352 : vector<2x16x1xf32> to vector<2x16x16xf32>
    %354 = vector.broadcast %cst_78 : f32 to vector<2x16x16xf32>
    %355 = arith.select %351, %353, %354 : vector<2x16x16xi1>, vector<2x16x16xf32>
    %356 = arith.addf %346, %355 : vector<2x16x16xf32>
    %c4_i32_79 = arith.constant 4 : i32
    %357 = vector.broadcast %c4_i32_79 : i32 to vector<16x16xi32>
    %358 = arith.cmpi eq, %42, %357 : vector<16x16xi32>
    %359 = vector.extract_strided_slice %316 {offsets = [0, 0, 4], sizes = [2, 16, 1], strides = [1, 1, 1]} : vector<2x16x9xf32> to vector<2x16x1xf32>
    %cst_80 = arith.constant 0.000000e+00 : f32
    %360 = vector.shape_cast %358 : vector<16x16xi1> to vector<1x16x16xi1>
    %361 = vector.broadcast %360 : vector<1x16x16xi1> to vector<2x16x16xi1>
    %362 = vector.shape_cast %359 : vector<2x16x1xf32> to vector<2x16x1xf32>
    %363 = vector.broadcast %362 : vector<2x16x1xf32> to vector<2x16x16xf32>
    %364 = vector.broadcast %cst_80 : f32 to vector<2x16x16xf32>
    %365 = arith.select %361, %363, %364 : vector<2x16x16xi1>, vector<2x16x16xf32>
    %366 = arith.addf %356, %365 : vector<2x16x16xf32>
    %c5_i32_81 = arith.constant 5 : i32
    %367 = vector.broadcast %c5_i32_81 : i32 to vector<16x16xi32>
    %368 = arith.cmpi eq, %42, %367 : vector<16x16xi32>
    %369 = vector.extract_strided_slice %316 {offsets = [0, 0, 5], sizes = [2, 16, 1], strides = [1, 1, 1]} : vector<2x16x9xf32> to vector<2x16x1xf32>
    %cst_82 = arith.constant 0.000000e+00 : f32
    %370 = vector.shape_cast %368 : vector<16x16xi1> to vector<1x16x16xi1>
    %371 = vector.broadcast %370 : vector<1x16x16xi1> to vector<2x16x16xi1>
    %372 = vector.shape_cast %369 : vector<2x16x1xf32> to vector<2x16x1xf32>
    %373 = vector.broadcast %372 : vector<2x16x1xf32> to vector<2x16x16xf32>
    %374 = vector.broadcast %cst_82 : f32 to vector<2x16x16xf32>
    %375 = arith.select %371, %373, %374 : vector<2x16x16xi1>, vector<2x16x16xf32>
    %376 = arith.addf %366, %375 : vector<2x16x16xf32>
    %c6_i32_83 = arith.constant 6 : i32
    %377 = vector.broadcast %c6_i32_83 : i32 to vector<16x16xi32>
    %378 = arith.cmpi eq, %42, %377 : vector<16x16xi32>
    %379 = vector.extract_strided_slice %316 {offsets = [0, 0, 6], sizes = [2, 16, 1], strides = [1, 1, 1]} : vector<2x16x9xf32> to vector<2x16x1xf32>
    %cst_84 = arith.constant 0.000000e+00 : f32
    %380 = vector.shape_cast %378 : vector<16x16xi1> to vector<1x16x16xi1>
    %381 = vector.broadcast %380 : vector<1x16x16xi1> to vector<2x16x16xi1>
    %382 = vector.shape_cast %379 : vector<2x16x1xf32> to vector<2x16x1xf32>
    %383 = vector.broadcast %382 : vector<2x16x1xf32> to vector<2x16x16xf32>
    %384 = vector.broadcast %cst_84 : f32 to vector<2x16x16xf32>
    %385 = arith.select %381, %383, %384 : vector<2x16x16xi1>, vector<2x16x16xf32>
    %386 = arith.addf %376, %385 : vector<2x16x16xf32>
    %c7_i32_85 = arith.constant 7 : i32
    %387 = vector.broadcast %c7_i32_85 : i32 to vector<16x16xi32>
    %388 = arith.cmpi eq, %42, %387 : vector<16x16xi32>
    %389 = vector.extract_strided_slice %316 {offsets = [0, 0, 7], sizes = [2, 16, 1], strides = [1, 1, 1]} : vector<2x16x9xf32> to vector<2x16x1xf32>
    %cst_86 = arith.constant 0.000000e+00 : f32
    %390 = vector.shape_cast %388 : vector<16x16xi1> to vector<1x16x16xi1>
    %391 = vector.broadcast %390 : vector<1x16x16xi1> to vector<2x16x16xi1>
    %392 = vector.shape_cast %389 : vector<2x16x1xf32> to vector<2x16x1xf32>
    %393 = vector.broadcast %392 : vector<2x16x1xf32> to vector<2x16x16xf32>
    %394 = vector.broadcast %cst_86 : f32 to vector<2x16x16xf32>
    %395 = arith.select %391, %393, %394 : vector<2x16x16xi1>, vector<2x16x16xf32>
    %396 = arith.addf %386, %395 : vector<2x16x16xf32>
    %c8_i32_87 = arith.constant 8 : i32
    %397 = vector.broadcast %c8_i32_87 : i32 to vector<16x16xi32>
    %398 = arith.cmpi eq, %42, %397 : vector<16x16xi32>
    %399 = vector.extract_strided_slice %316 {offsets = [0, 0, 8], sizes = [2, 16, 1], strides = [1, 1, 1]} : vector<2x16x9xf32> to vector<2x16x1xf32>
    %cst_88 = arith.constant 0.000000e+00 : f32
    %400 = vector.shape_cast %398 : vector<16x16xi1> to vector<1x16x16xi1>
    %401 = vector.broadcast %400 : vector<1x16x16xi1> to vector<2x16x16xi1>
    %402 = vector.shape_cast %399 : vector<2x16x1xf32> to vector<2x16x1xf32>
    %403 = vector.broadcast %402 : vector<2x16x1xf32> to vector<2x16x16xf32>
    %404 = vector.broadcast %cst_88 : f32 to vector<2x16x16xf32>
    %405 = arith.select %401, %403, %404 : vector<2x16x16xi1>, vector<2x16x16xf32>
    %406 = arith.addf %396, %405 : vector<2x16x16xf32>
    %cst_89 = arith.constant 0.000000e+00 : f32
    %407 = vector.broadcast %cst_89 : f32 to vector<2x16x16xf32>
    %408 = arith.cmpf ogt, %37, %407 : vector<2x16x16xf32>
    %cst_90 = arith.constant -1.000000e+04 : f32
    %409 = vector.broadcast %cst_90 : f32 to vector<2x16x16xf32>
    %410 = arith.select %408, %406, %409 : vector<2x16x16xi1>, vector<2x16x16xf32>
    %cst_91 = arith.constant dense<0xFF800000> : vector<2x16xf32>
    %411 = vector.multi_reduction <maximumf>, %410, %cst_91 [2] : vector<2x16x16xf32> to vector<2x16xf32>
    %412 = vector.shape_cast %411 : vector<2x16xf32> to vector<2x16x1xf32>
    %413 = vector.broadcast %412 : vector<2x16x1xf32> to vector<2x16x16xf32>
    %414 = arith.subf %410, %413 : vector<2x16x16xf32>
    %415 = math.exp %414 : vector<2x16x16xf32>
    %cst_92 = arith.constant dense<0.000000e+00> : vector<2x16xf32>
    %416 = vector.multi_reduction <add>, %415, %cst_92 [2] : vector<2x16x16xf32> to vector<2x16xf32>
    %417 = vector.shape_cast %416 : vector<2x16xf32> to vector<2x16x1xf32>
    %418 = vector.broadcast %417 : vector<2x16x1xf32> to vector<2x16x16xf32>
    %419 = arith.divf %415, %418 : vector<2x16x16xf32>
    %420 = arith.truncf %419 : vector<2x16x16xf32> to vector<2x16x16xbf16>
    %421 = arith.truncf %311 : vector<2x16x32xf32> to vector<2x16x32xbf16>
    "tpu.trace_start"() <{level = 10 : i32, message = "bts,bsd->btd"}> : () -> ()
    %cst_93 = arith.constant dense<0.000000e+00> : vector<2x16x32xf32>
    %422 = tpu.matmul %420, %421, %cst_93 {dimension_numbers = #tpu.dot_dimension_numbers<[2], [1], [1], [2], [0, 0, 0, 1, 1, 2], [0], [0]>} : vector<2x16x16xbf16>, vector<2x16x32xbf16>, vector<2x16x32xf32> -> vector<2x16x32xf32>
    %c0_i32_94 = arith.constant 0 : i32
    "tpu.trace_stop"() : () -> ()
    %423 = vector.broadcast %c0_i32_94 : i32 to vector<16x16xi32>
    %424 = arith.cmpi eq, %42, %423 : vector<16x16xi32>
    %cst_95 = arith.constant 0.000000e+00 : f32
    %425 = vector.shape_cast %424 : vector<16x16xi1> to vector<1x16x16xi1>
    %426 = vector.broadcast %425 : vector<1x16x16xi1> to vector<2x16x16xi1>
    %427 = vector.broadcast %cst_95 : f32 to vector<2x16x16xf32>
    %428 = arith.select %426, %419, %427 : vector<2x16x16xi1>, vector<2x16x16xf32>
    %cst_96 = arith.constant dense<0.000000e+00> : vector<2x16xf32>
    %429 = vector.multi_reduction <add>, %428, %cst_96 [2] : vector<2x16x16xf32> to vector<2x16xf32>
    %430 = vector.shape_cast %429 : vector<2x16xf32> to vector<2x16x1xf32>
    %431 = vector.extract_strided_slice %58 {offsets = [0, 0], sizes = [1, 32], strides = [1, 1]} : vector<9x32xf32> to vector<1x32xf32>
    %432 = vector.shape_cast %431 : vector<1x32xf32> to vector<1x1x32xf32>
    %433 = vector.broadcast %430 : vector<2x16x1xf32> to vector<2x16x32xf32>
    %434 = vector.broadcast %432 : vector<1x1x32xf32> to vector<2x16x32xf32>
    %435 = arith.mulf %433, %434 : vector<2x16x32xf32>
    %436 = arith.addf %422, %435 : vector<2x16x32xf32>
    %c1_i32_97 = arith.constant 1 : i32
    %437 = vector.broadcast %c1_i32_97 : i32 to vector<16x16xi32>
    %438 = arith.cmpi eq, %42, %437 : vector<16x16xi32>
    %cst_98 = arith.constant 0.000000e+00 : f32
    %439 = vector.shape_cast %438 : vector<16x16xi1> to vector<1x16x16xi1>
    %440 = vector.broadcast %439 : vector<1x16x16xi1> to vector<2x16x16xi1>
    %441 = vector.broadcast %cst_98 : f32 to vector<2x16x16xf32>
    %442 = arith.select %440, %419, %441 : vector<2x16x16xi1>, vector<2x16x16xf32>
    %cst_99 = arith.constant dense<0.000000e+00> : vector<2x16xf32>
    %443 = vector.multi_reduction <add>, %442, %cst_99 [2] : vector<2x16x16xf32> to vector<2x16xf32>
    %444 = vector.shape_cast %443 : vector<2x16xf32> to vector<2x16x1xf32>
    %445 = vector.extract_strided_slice %58 {offsets = [1, 0], sizes = [1, 32], strides = [1, 1]} : vector<9x32xf32> to vector<1x32xf32>
    %446 = vector.shape_cast %445 : vector<1x32xf32> to vector<1x1x32xf32>
    %447 = vector.broadcast %444 : vector<2x16x1xf32> to vector<2x16x32xf32>
    %448 = vector.broadcast %446 : vector<1x1x32xf32> to vector<2x16x32xf32>
    %449 = arith.mulf %447, %448 : vector<2x16x32xf32>
    %450 = arith.addf %436, %449 : vector<2x16x32xf32>
    %c2_i32_100 = arith.constant 2 : i32
    %451 = vector.broadcast %c2_i32_100 : i32 to vector<16x16xi32>
    %452 = arith.cmpi eq, %42, %451 : vector<16x16xi32>
    %cst_101 = arith.constant 0.000000e+00 : f32
    %453 = vector.shape_cast %452 : vector<16x16xi1> to vector<1x16x16xi1>
    %454 = vector.broadcast %453 : vector<1x16x16xi1> to vector<2x16x16xi1>
    %455 = vector.broadcast %cst_101 : f32 to vector<2x16x16xf32>
    %456 = arith.select %454, %419, %455 : vector<2x16x16xi1>, vector<2x16x16xf32>
    %cst_102 = arith.constant dense<0.000000e+00> : vector<2x16xf32>
    %457 = vector.multi_reduction <add>, %456, %cst_102 [2] : vector<2x16x16xf32> to vector<2x16xf32>
    %458 = vector.shape_cast %457 : vector<2x16xf32> to vector<2x16x1xf32>
    %459 = vector.extract_strided_slice %58 {offsets = [2, 0], sizes = [1, 32], strides = [1, 1]} : vector<9x32xf32> to vector<1x32xf32>
    %460 = vector.shape_cast %459 : vector<1x32xf32> to vector<1x1x32xf32>
    %461 = vector.broadcast %458 : vector<2x16x1xf32> to vector<2x16x32xf32>
    %462 = vector.broadcast %460 : vector<1x1x32xf32> to vector<2x16x32xf32>
    %463 = arith.mulf %461, %462 : vector<2x16x32xf32>
    %464 = arith.addf %450, %463 : vector<2x16x32xf32>
    %c3_i32_103 = arith.constant 3 : i32
    %465 = vector.broadcast %c3_i32_103 : i32 to vector<16x16xi32>
    %466 = arith.cmpi eq, %42, %465 : vector<16x16xi32>
    %cst_104 = arith.constant 0.000000e+00 : f32
    %467 = vector.shape_cast %466 : vector<16x16xi1> to vector<1x16x16xi1>
    %468 = vector.broadcast %467 : vector<1x16x16xi1> to vector<2x16x16xi1>
    %469 = vector.broadcast %cst_104 : f32 to vector<2x16x16xf32>
    %470 = arith.select %468, %419, %469 : vector<2x16x16xi1>, vector<2x16x16xf32>
    %cst_105 = arith.constant dense<0.000000e+00> : vector<2x16xf32>
    %471 = vector.multi_reduction <add>, %470, %cst_105 [2] : vector<2x16x16xf32> to vector<2x16xf32>
    %472 = vector.shape_cast %471 : vector<2x16xf32> to vector<2x16x1xf32>
    %473 = vector.extract_strided_slice %58 {offsets = [3, 0], sizes = [1, 32], strides = [1, 1]} : vector<9x32xf32> to vector<1x32xf32>
    %474 = vector.shape_cast %473 : vector<1x32xf32> to vector<1x1x32xf32>
    %475 = vector.broadcast %472 : vector<2x16x1xf32> to vector<2x16x32xf32>
    %476 = vector.broadcast %474 : vector<1x1x32xf32> to vector<2x16x32xf32>
    %477 = arith.mulf %475, %476 : vector<2x16x32xf32>
    %478 = arith.addf %464, %477 : vector<2x16x32xf32>
    %c4_i32_106 = arith.constant 4 : i32
    %479 = vector.broadcast %c4_i32_106 : i32 to vector<16x16xi32>
    %480 = arith.cmpi eq, %42, %479 : vector<16x16xi32>
    %cst_107 = arith.constant 0.000000e+00 : f32
    %481 = vector.shape_cast %480 : vector<16x16xi1> to vector<1x16x16xi1>
    %482 = vector.broadcast %481 : vector<1x16x16xi1> to vector<2x16x16xi1>
    %483 = vector.broadcast %cst_107 : f32 to vector<2x16x16xf32>
    %484 = arith.select %482, %419, %483 : vector<2x16x16xi1>, vector<2x16x16xf32>
    %cst_108 = arith.constant dense<0.000000e+00> : vector<2x16xf32>
    %485 = vector.multi_reduction <add>, %484, %cst_108 [2] : vector<2x16x16xf32> to vector<2x16xf32>
    %486 = vector.shape_cast %485 : vector<2x16xf32> to vector<2x16x1xf32>
    %487 = vector.extract_strided_slice %58 {offsets = [4, 0], sizes = [1, 32], strides = [1, 1]} : vector<9x32xf32> to vector<1x32xf32>
    %488 = vector.shape_cast %487 : vector<1x32xf32> to vector<1x1x32xf32>
    %489 = vector.broadcast %486 : vector<2x16x1xf32> to vector<2x16x32xf32>
    %490 = vector.broadcast %488 : vector<1x1x32xf32> to vector<2x16x32xf32>
    %491 = arith.mulf %489, %490 : vector<2x16x32xf32>
    %492 = arith.addf %478, %491 : vector<2x16x32xf32>
    %c5_i32_109 = arith.constant 5 : i32
    %493 = vector.broadcast %c5_i32_109 : i32 to vector<16x16xi32>
    %494 = arith.cmpi eq, %42, %493 : vector<16x16xi32>
    %cst_110 = arith.constant 0.000000e+00 : f32
    %495 = vector.shape_cast %494 : vector<16x16xi1> to vector<1x16x16xi1>
    %496 = vector.broadcast %495 : vector<1x16x16xi1> to vector<2x16x16xi1>
    %497 = vector.broadcast %cst_110 : f32 to vector<2x16x16xf32>
    %498 = arith.select %496, %419, %497 : vector<2x16x16xi1>, vector<2x16x16xf32>
    %cst_111 = arith.constant dense<0.000000e+00> : vector<2x16xf32>
    %499 = vector.multi_reduction <add>, %498, %cst_111 [2] : vector<2x16x16xf32> to vector<2x16xf32>
    %500 = vector.shape_cast %499 : vector<2x16xf32> to vector<2x16x1xf32>
    %501 = vector.extract_strided_slice %58 {offsets = [5, 0], sizes = [1, 32], strides = [1, 1]} : vector<9x32xf32> to vector<1x32xf32>
    %502 = vector.shape_cast %501 : vector<1x32xf32> to vector<1x1x32xf32>
    %503 = vector.broadcast %500 : vector<2x16x1xf32> to vector<2x16x32xf32>
    %504 = vector.broadcast %502 : vector<1x1x32xf32> to vector<2x16x32xf32>
    %505 = arith.mulf %503, %504 : vector<2x16x32xf32>
    %506 = arith.addf %492, %505 : vector<2x16x32xf32>
    %c6_i32_112 = arith.constant 6 : i32
    %507 = vector.broadcast %c6_i32_112 : i32 to vector<16x16xi32>
    %508 = arith.cmpi eq, %42, %507 : vector<16x16xi32>
    %cst_113 = arith.constant 0.000000e+00 : f32
    %509 = vector.shape_cast %508 : vector<16x16xi1> to vector<1x16x16xi1>
    %510 = vector.broadcast %509 : vector<1x16x16xi1> to vector<2x16x16xi1>
    %511 = vector.broadcast %cst_113 : f32 to vector<2x16x16xf32>
    %512 = arith.select %510, %419, %511 : vector<2x16x16xi1>, vector<2x16x16xf32>
    %cst_114 = arith.constant dense<0.000000e+00> : vector<2x16xf32>
    %513 = vector.multi_reduction <add>, %512, %cst_114 [2] : vector<2x16x16xf32> to vector<2x16xf32>
    %514 = vector.shape_cast %513 : vector<2x16xf32> to vector<2x16x1xf32>
    %515 = vector.extract_strided_slice %58 {offsets = [6, 0], sizes = [1, 32], strides = [1, 1]} : vector<9x32xf32> to vector<1x32xf32>
    %516 = vector.shape_cast %515 : vector<1x32xf32> to vector<1x1x32xf32>
    %517 = vector.broadcast %514 : vector<2x16x1xf32> to vector<2x16x32xf32>
    %518 = vector.broadcast %516 : vector<1x1x32xf32> to vector<2x16x32xf32>
    %519 = arith.mulf %517, %518 : vector<2x16x32xf32>
    %520 = arith.addf %506, %519 : vector<2x16x32xf32>
    %c7_i32_115 = arith.constant 7 : i32
    %521 = vector.broadcast %c7_i32_115 : i32 to vector<16x16xi32>
    %522 = arith.cmpi eq, %42, %521 : vector<16x16xi32>
    %cst_116 = arith.constant 0.000000e+00 : f32
    %523 = vector.shape_cast %522 : vector<16x16xi1> to vector<1x16x16xi1>
    %524 = vector.broadcast %523 : vector<1x16x16xi1> to vector<2x16x16xi1>
    %525 = vector.broadcast %cst_116 : f32 to vector<2x16x16xf32>
    %526 = arith.select %524, %419, %525 : vector<2x16x16xi1>, vector<2x16x16xf32>
    %cst_117 = arith.constant dense<0.000000e+00> : vector<2x16xf32>
    %527 = vector.multi_reduction <add>, %526, %cst_117 [2] : vector<2x16x16xf32> to vector<2x16xf32>
    %528 = vector.shape_cast %527 : vector<2x16xf32> to vector<2x16x1xf32>
    %529 = vector.extract_strided_slice %58 {offsets = [7, 0], sizes = [1, 32], strides = [1, 1]} : vector<9x32xf32> to vector<1x32xf32>
    %530 = vector.shape_cast %529 : vector<1x32xf32> to vector<1x1x32xf32>
    %531 = vector.broadcast %528 : vector<2x16x1xf32> to vector<2x16x32xf32>
    %532 = vector.broadcast %530 : vector<1x1x32xf32> to vector<2x16x32xf32>
    %533 = arith.mulf %531, %532 : vector<2x16x32xf32>
    %534 = arith.addf %520, %533 : vector<2x16x32xf32>
    %c8_i32_118 = arith.constant 8 : i32
    %535 = vector.broadcast %c8_i32_118 : i32 to vector<16x16xi32>
    %536 = arith.cmpi eq, %42, %535 : vector<16x16xi32>
    %cst_119 = arith.constant 0.000000e+00 : f32
    %537 = vector.shape_cast %536 : vector<16x16xi1> to vector<1x16x16xi1>
    %538 = vector.broadcast %537 : vector<1x16x16xi1> to vector<2x16x16xi1>
    %539 = vector.broadcast %cst_119 : f32 to vector<2x16x16xf32>
    %540 = arith.select %538, %419, %539 : vector<2x16x16xi1>, vector<2x16x16xf32>
    %cst_120 = arith.constant dense<0.000000e+00> : vector<2x16xf32>
    %541 = vector.multi_reduction <add>, %540, %cst_120 [2] : vector<2x16x16xf32> to vector<2x16xf32>
    %542 = vector.shape_cast %541 : vector<2x16xf32> to vector<2x16x1xf32>
    %543 = vector.extract_strided_slice %58 {offsets = [8, 0], sizes = [1, 32], strides = [1, 1]} : vector<9x32xf32> to vector<1x32xf32>
    %544 = vector.shape_cast %543 : vector<1x32xf32> to vector<1x1x32xf32>
    %545 = vector.broadcast %542 : vector<2x16x1xf32> to vector<2x16x32xf32>
    %546 = vector.broadcast %544 : vector<1x1x32xf32> to vector<2x16x32xf32>
    %547 = arith.mulf %545, %546 : vector<2x16x32xf32>
    %548 = arith.addf %534, %547 : vector<2x16x32xf32>
    %549 = tpu.concatenate %303, %548 in 2 : vector<2x16x32xf32>, vector<2x16x32xf32> -> vector<2x16x64xf32>
    %550 = vector.shape_cast %549 : vector<2x16x64xf32> to vector<32x64xf32>
    %551 = arith.truncf %550 : vector<32x64xf32> to vector<32x64xbf16>
    %c0_121 = arith.constant 0 : index
    %c0_122 = arith.constant 0 : index
    %c0_123 = arith.constant 0 : index
    %552 = vector.load %arg5[%c0_121, %c0_122, %c0_123] : memref<2x64x64xbf16, #tpu.memory_space<vmem>>, vector<1x64x64xbf16>
    %553 = vector.shape_cast %552 : vector<1x64x64xbf16> to vector<64x64xbf16>
    %cst_124 = arith.constant dense<0.000000e+00> : vector<32x64xf32>
    %554 = tpu.matmul %551, %553, %cst_124 {dimension_numbers = #tpu.dot_dimension_numbers<[1], [0], [0], [1], [0, 0, 1, 1], [], []>} : vector<32x64xbf16>, vector<64x64xbf16>, vector<32x64xf32> -> vector<32x64xf32>
    %c0_125 = arith.constant 0 : index
    %c0_126 = arith.constant 0 : index
    %c0_127 = arith.constant 0 : index
    %555 = vector.load %arg6[%c0_125, %c0_126, %c0_127] : memref<2x1x64xf32, #tpu.memory_space<vmem>>, vector<1x1x64xf32>
    %556 = vector.shape_cast %555 : vector<1x1x64xf32> to vector<1x64xf32>
    %557 = vector.broadcast %556 : vector<1x64xf32> to vector<32x64xf32>
    %558 = arith.addf %554, %557 : vector<32x64xf32>
    %559 = vector.shape_cast %558 : vector<32x64xf32> to vector<2x16x64xf32>
    %560 = arith.addf %45, %559 : vector<2x16x64xf32>
    %c0_128 = arith.constant 0 : index
    %c0_129 = arith.constant 0 : index
    %c0_130 = arith.constant 0 : index
    %561 = vector.load %arg9[%c0_128, %c0_129, %c0_130] : memref<2x1x64xf32, #tpu.memory_space<vmem>>, vector<1x1x64xf32>
    %562 = vector.shape_cast %561 : vector<1x1x64xf32> to vector<1x64xf32>
    %c0_131 = arith.constant 0 : index
    %c0_132 = arith.constant 0 : index
    %c0_133 = arith.constant 0 : index
    %563 = vector.load %arg10[%c0_131, %c0_132, %c0_133] : memref<2x1x64xf32, #tpu.memory_space<vmem>>, vector<1x1x64xf32>
    %564 = vector.shape_cast %563 : vector<1x1x64xf32> to vector<1x64xf32>
    %cst_134 = arith.constant dense<0.000000e+00> : vector<2x16xf32>
    %565 = vector.multi_reduction <add>, %560, %cst_134 [2] : vector<2x16x64xf32> to vector<2x16xf32>
    %566 = vector.shape_cast %565 : vector<2x16xf32> to vector<2x16x1xf32>
    %cst_135 = arith.constant 6.400000e+01 : f32
    %567 = vector.broadcast %cst_135 : f32 to vector<2x16x1xf32>
    %568 = arith.divf %566, %567 : vector<2x16x1xf32>
    %569 = vector.broadcast %568 : vector<2x16x1xf32> to vector<2x16x64xf32>
    %570 = arith.subf %560, %569 : vector<2x16x64xf32>
    %571 = arith.mulf %570, %570 : vector<2x16x64xf32>
    %cst_136 = arith.constant dense<0.000000e+00> : vector<2x16xf32>
    %572 = vector.multi_reduction <add>, %571, %cst_136 [2] : vector<2x16x64xf32> to vector<2x16xf32>
    %573 = vector.shape_cast %572 : vector<2x16xf32> to vector<2x16x1xf32>
    %cst_137 = arith.constant 6.400000e+01 : f32
    %574 = vector.broadcast %cst_137 : f32 to vector<2x16x1xf32>
    %575 = arith.divf %573, %574 : vector<2x16x1xf32>
    %576 = vector.broadcast %568 : vector<2x16x1xf32> to vector<2x16x64xf32>
    %577 = arith.subf %560, %576 : vector<2x16x64xf32>
    %cst_138 = arith.constant 9.99999974E-6 : f32
    %578 = vector.broadcast %cst_138 : f32 to vector<2x16x1xf32>
    %579 = arith.addf %575, %578 : vector<2x16x1xf32>
    %580 = math.rsqrt %579 : vector<2x16x1xf32>
    %581 = vector.broadcast %580 : vector<2x16x1xf32> to vector<2x16x64xf32>
    %582 = arith.mulf %577, %581 : vector<2x16x64xf32>
    %583 = vector.shape_cast %562 : vector<1x64xf32> to vector<1x1x64xf32>
    %584 = vector.broadcast %583 : vector<1x1x64xf32> to vector<2x16x64xf32>
    %585 = arith.mulf %582, %584 : vector<2x16x64xf32>
    %586 = vector.shape_cast %564 : vector<1x64xf32> to vector<1x1x64xf32>
    %587 = vector.broadcast %586 : vector<1x1x64xf32> to vector<2x16x64xf32>
    %588 = arith.addf %585, %587 : vector<2x16x64xf32>
    %589 = vector.broadcast %31 : vector<2x16x1xf32> to vector<2x16x64xf32>
    %590 = arith.mulf %588, %589 : vector<2x16x64xf32>
    %c0_139 = arith.constant 0 : index
    %c0_140 = arith.constant 0 : index
    %c0_141 = arith.constant 0 : index
    %591 = vector.load %arg11[%c0_139, %c0_140, %c0_141] : memref<2x192x128xbf16, #tpu.memory_space<vmem>>, vector<1x192x128xbf16>
    %592 = vector.shape_cast %591 : vector<1x192x128xbf16> to vector<192x128xbf16>
    %c0_142 = arith.constant 0 : index
    %c0_143 = arith.constant 0 : index
    %c0_144 = arith.constant 0 : index
    %593 = vector.load %arg12[%c0_142, %c0_143, %c0_144] : memref<2x1x128xf32, #tpu.memory_space<vmem>>, vector<1x1x128xf32>
    %594 = vector.shape_cast %593 : vector<1x1x128xf32> to vector<1x128xf32>
    %cst_145 = arith.constant 0.000000e+00 : f32
    %595 = vector.broadcast %cst_145 : f32 to vector<2x1x64xf32>
    %596 = vector.extract_strided_slice %590 {offsets = [0, 0, 0], sizes = [2, 15, 64], strides = [1, 1, 1]} : vector<2x16x64xf32> to vector<2x15x64xf32>
    %597 = tpu.concatenate %595, %596 in 1 : vector<2x1x64xf32>, vector<2x15x64xf32> -> vector<2x16x64xf32>
    %598 = vector.extract_strided_slice %590 {offsets = [0, 1, 0], sizes = [2, 15, 64], strides = [1, 1, 1]} : vector<2x16x64xf32> to vector<2x15x64xf32>
    %cst_146 = arith.constant 0.000000e+00 : f32
    %599 = vector.broadcast %cst_146 : f32 to vector<2x1x64xf32>
    %600 = tpu.concatenate %598, %599 in 1 : vector<2x15x64xf32>, vector<2x1x64xf32> -> vector<2x16x64xf32>
    %601 = tpu.concatenate %597, %590, %600 in 2 : vector<2x16x64xf32>, vector<2x16x64xf32>, vector<2x16x64xf32> -> vector<2x16x192xf32>
    %602 = vector.shape_cast %601 : vector<2x16x192xf32> to vector<32x192xf32>
    %603 = arith.truncf %602 : vector<32x192xf32> to vector<32x192xbf16>
    %cst_147 = arith.constant dense<0.000000e+00> : vector<32x128xf32>
    %604 = tpu.matmul %603, %592, %cst_147 {dimension_numbers = #tpu.dot_dimension_numbers<[1], [0], [0], [1], [0, 0, 1, 1], [], []>} : vector<32x192xbf16>, vector<192x128xbf16>, vector<32x128xf32> -> vector<32x128xf32>
    %605 = vector.broadcast %594 : vector<1x128xf32> to vector<32x128xf32>
    %606 = arith.addf %604, %605 : vector<32x128xf32>
    %607 = vector.shape_cast %606 : vector<32x128xf32> to vector<2x16x128xf32>
    %cst_148 = arith.constant 0.000000e+00 : f32
    %608 = vector.broadcast %cst_148 : f32 to vector<2x16x128xf32>
    %609 = arith.maximumf %607, %608 : vector<2x16x128xf32>
    %610 = vector.broadcast %31 : vector<2x16x1xf32> to vector<2x16x128xf32>
    %611 = arith.mulf %609, %610 : vector<2x16x128xf32>
    %c0_149 = arith.constant 0 : index
    %c0_150 = arith.constant 0 : index
    %c0_151 = arith.constant 0 : index
    %612 = vector.load %arg13[%c0_149, %c0_150, %c0_151] : memref<2x384x64xbf16, #tpu.memory_space<vmem>>, vector<1x384x64xbf16>
    %613 = vector.shape_cast %612 : vector<1x384x64xbf16> to vector<384x64xbf16>
    %c0_152 = arith.constant 0 : index
    %c0_153 = arith.constant 0 : index
    %c0_154 = arith.constant 0 : index
    %614 = vector.load %arg14[%c0_152, %c0_153, %c0_154] : memref<2x1x64xf32, #tpu.memory_space<vmem>>, vector<1x1x64xf32>
    %615 = vector.shape_cast %614 : vector<1x1x64xf32> to vector<1x64xf32>
    %cst_155 = arith.constant 0.000000e+00 : f32
    %616 = vector.broadcast %cst_155 : f32 to vector<2x1x128xf32>
    %617 = vector.extract_strided_slice %611 {offsets = [0, 0, 0], sizes = [2, 15, 128], strides = [1, 1, 1]} : vector<2x16x128xf32> to vector<2x15x128xf32>
    %618 = tpu.concatenate %616, %617 in 1 : vector<2x1x128xf32>, vector<2x15x128xf32> -> vector<2x16x128xf32>
    %619 = vector.extract_strided_slice %611 {offsets = [0, 1, 0], sizes = [2, 15, 128], strides = [1, 1, 1]} : vector<2x16x128xf32> to vector<2x15x128xf32>
    %cst_156 = arith.constant 0.000000e+00 : f32
    %620 = vector.broadcast %cst_156 : f32 to vector<2x1x128xf32>
    %621 = tpu.concatenate %619, %620 in 1 : vector<2x15x128xf32>, vector<2x1x128xf32> -> vector<2x16x128xf32>
    %622 = tpu.concatenate %618, %611, %621 in 2 : vector<2x16x128xf32>, vector<2x16x128xf32>, vector<2x16x128xf32> -> vector<2x16x384xf32>
    %623 = vector.shape_cast %622 : vector<2x16x384xf32> to vector<32x384xf32>
    %624 = arith.truncf %623 : vector<32x384xf32> to vector<32x384xbf16>
    %cst_157 = arith.constant dense<0.000000e+00> : vector<32x64xf32>
    %625 = tpu.matmul %624, %613, %cst_157 {dimension_numbers = #tpu.dot_dimension_numbers<[1], [0], [0], [1], [0, 0, 1, 1], [], []>} : vector<32x384xbf16>, vector<384x64xbf16>, vector<32x64xf32> -> vector<32x64xf32>
    %626 = vector.broadcast %615 : vector<1x64xf32> to vector<32x64xf32>
    %627 = arith.addf %625, %626 : vector<32x64xf32>
    %628 = vector.shape_cast %627 : vector<32x64xf32> to vector<2x16x64xf32>
    %629 = vector.broadcast %31 : vector<2x16x1xf32> to vector<2x16x64xf32>
    %630 = arith.mulf %628, %629 : vector<2x16x64xf32>
    %631 = arith.addf %588, %630 : vector<2x16x64xf32>
    %c0_158 = arith.constant 0 : index
    %c0_159 = arith.constant 0 : index
    %c0_160 = arith.constant 0 : index
    %632 = vector.load %arg15[%c0_158, %c0_159, %c0_160] : memref<2x1x64xf32, #tpu.memory_space<vmem>>, vector<1x1x64xf32>
    %633 = vector.shape_cast %632 : vector<1x1x64xf32> to vector<1x64xf32>
    %c0_161 = arith.constant 0 : index
    %c0_162 = arith.constant 0 : index
    %c0_163 = arith.constant 0 : index
    %634 = vector.load %arg16[%c0_161, %c0_162, %c0_163] : memref<2x1x64xf32, #tpu.memory_space<vmem>>, vector<1x1x64xf32>
    %635 = vector.shape_cast %634 : vector<1x1x64xf32> to vector<1x64xf32>
    %cst_164 = arith.constant dense<0.000000e+00> : vector<2x16xf32>
    %636 = vector.multi_reduction <add>, %631, %cst_164 [2] : vector<2x16x64xf32> to vector<2x16xf32>
    %637 = vector.shape_cast %636 : vector<2x16xf32> to vector<2x16x1xf32>
    %cst_165 = arith.constant 6.400000e+01 : f32
    %638 = vector.broadcast %cst_165 : f32 to vector<2x16x1xf32>
    %639 = arith.divf %637, %638 : vector<2x16x1xf32>
    %640 = vector.broadcast %639 : vector<2x16x1xf32> to vector<2x16x64xf32>
    %641 = arith.subf %631, %640 : vector<2x16x64xf32>
    %642 = arith.mulf %641, %641 : vector<2x16x64xf32>
    %cst_166 = arith.constant dense<0.000000e+00> : vector<2x16xf32>
    %643 = vector.multi_reduction <add>, %642, %cst_166 [2] : vector<2x16x64xf32> to vector<2x16xf32>
    %644 = vector.shape_cast %643 : vector<2x16xf32> to vector<2x16x1xf32>
    %cst_167 = arith.constant 6.400000e+01 : f32
    %645 = vector.broadcast %cst_167 : f32 to vector<2x16x1xf32>
    %646 = arith.divf %644, %645 : vector<2x16x1xf32>
    %647 = vector.broadcast %639 : vector<2x16x1xf32> to vector<2x16x64xf32>
    %648 = arith.subf %631, %647 : vector<2x16x64xf32>
    %cst_168 = arith.constant 9.99999974E-6 : f32
    %649 = vector.broadcast %cst_168 : f32 to vector<2x16x1xf32>
    %650 = arith.addf %646, %649 : vector<2x16x1xf32>
    %651 = math.rsqrt %650 : vector<2x16x1xf32>
    %652 = vector.broadcast %651 : vector<2x16x1xf32> to vector<2x16x64xf32>
    %653 = arith.mulf %648, %652 : vector<2x16x64xf32>
    %654 = vector.shape_cast %633 : vector<1x64xf32> to vector<1x1x64xf32>
    %655 = vector.broadcast %654 : vector<1x1x64xf32> to vector<2x16x64xf32>
    %656 = arith.mulf %653, %655 : vector<2x16x64xf32>
    %657 = vector.shape_cast %635 : vector<1x64xf32> to vector<1x1x64xf32>
    %658 = vector.broadcast %657 : vector<1x1x64xf32> to vector<2x16x64xf32>
    %659 = arith.addf %656, %658 : vector<2x16x64xf32>
    %660 = vector.shape_cast %659 : vector<2x16x64xf32> to vector<32x64xf32>
    %661 = arith.truncf %660 : vector<32x64xf32> to vector<32x64xbf16>
    %c1 = arith.constant 1 : index
    %c0_169 = arith.constant 0 : index
    %c0_170 = arith.constant 0 : index
    %662 = vector.load %arg3[%c1, %c0_169, %c0_170] : memref<2x64x192xbf16, #tpu.memory_space<vmem>>, vector<1x64x192xbf16>
    %663 = vector.shape_cast %662 : vector<1x64x192xbf16> to vector<64x192xbf16>
    %cst_171 = arith.constant dense<0.000000e+00> : vector<32x192xf32>
    %664 = tpu.matmul %661, %663, %cst_171 {dimension_numbers = #tpu.dot_dimension_numbers<[1], [0], [0], [1], [0, 0, 1, 1], [], []>} : vector<32x64xbf16>, vector<64x192xbf16>, vector<32x192xf32> -> vector<32x192xf32>
    %c1_172 = arith.constant 1 : index
    %c0_173 = arith.constant 0 : index
    %c0_174 = arith.constant 0 : index
    %665 = vector.load %arg4[%c1_172, %c0_173, %c0_174] : memref<2x1x192xf32, #tpu.memory_space<vmem>>, vector<1x1x192xf32>
    %666 = vector.shape_cast %665 : vector<1x1x192xf32> to vector<1x192xf32>
    %667 = vector.broadcast %666 : vector<1x192xf32> to vector<32x192xf32>
    %668 = arith.addf %664, %667 : vector<32x192xf32>
    %c1_175 = arith.constant 1 : index
    %c0_176 = arith.constant 0 : index
    %c0_177 = arith.constant 0 : index
    %669 = vector.load %arg7[%c1_175, %c0_176, %c0_177] : memref<2x32x9xf32, #tpu.memory_space<vmem>>, vector<1x32x9xf32>
    %670 = vector.shape_cast %669 : vector<1x32x9xf32> to vector<32x9xf32>
    %c1_178 = arith.constant 1 : index
    %c0_179 = arith.constant 0 : index
    %c0_180 = arith.constant 0 : index
    %671 = vector.load %arg8[%c1_178, %c0_179, %c0_180] : memref<2x9x32xf32, #tpu.memory_space<vmem>>, vector<1x9x32xf32>
    %672 = vector.shape_cast %671 : vector<1x9x32xf32> to vector<9x32xf32>
    %673 = vector.extract_strided_slice %668 {offsets = [0, 0], sizes = [32, 32], strides = [1, 1]} : vector<32x192xf32> to vector<32x32xf32>
    %cst_181 = arith.constant 0.176776692 : f32
    %674 = vector.broadcast %cst_181 : f32 to vector<32x32xf32>
    %675 = arith.mulf %673, %674 : vector<32x32xf32>
    %676 = vector.shape_cast %675 : vector<32x32xf32> to vector<2x16x32xf32>
    %677 = vector.extract_strided_slice %668 {offsets = [0, 64], sizes = [32, 32], strides = [1, 1]} : vector<32x192xf32> to vector<32x32xf32>
    %678 = vector.shape_cast %677 : vector<32x32xf32> to vector<2x16x32xf32>
    %679 = vector.extract_strided_slice %668 {offsets = [0, 128], sizes = [32, 32], strides = [1, 1]} : vector<32x192xf32> to vector<32x32xf32>
    %680 = vector.shape_cast %679 : vector<32x32xf32> to vector<2x16x32xf32>
    %681 = arith.truncf %676 : vector<2x16x32xf32> to vector<2x16x32xbf16>
    %682 = arith.truncf %678 : vector<2x16x32xf32> to vector<2x16x32xbf16>
    "tpu.trace_start"() <{level = 10 : i32, message = "btd,bsd->bts"}> : () -> ()
    %cst_182 = arith.constant dense<0.000000e+00> : vector<2x16x16xf32>
    %683 = tpu.matmul %681, %682, %cst_182 {dimension_numbers = #tpu.dot_dimension_numbers<[2], [2], [1], [1], [0, 0, 0, 1, 1, 1], [0], [0]>} : vector<2x16x32xbf16>, vector<2x16x32xbf16>, vector<2x16x16xf32> -> vector<2x16x16xf32>
    "tpu.trace_stop"() : () -> ()
    %cst_183 = arith.constant dense<0.000000e+00> : vector<32x9xf32>
    %684 = tpu.matmul %675, %670, %cst_183 {dimension_numbers = #tpu.dot_dimension_numbers<[1], [0], [0], [1], [0, 0, 1, 1], [], []>} : vector<32x32xf32>, vector<32x9xf32>, vector<32x9xf32> -> vector<32x9xf32>
    %685 = vector.shape_cast %684 : vector<32x9xf32> to vector<2x16x9xf32>
    %c0_i32_184 = arith.constant 0 : i32
    %686 = vector.broadcast %c0_i32_184 : i32 to vector<16x16xi32>
    %687 = arith.cmpi eq, %42, %686 : vector<16x16xi32>
    %688 = vector.extract_strided_slice %685 {offsets = [0, 0, 0], sizes = [2, 16, 1], strides = [1, 1, 1]} : vector<2x16x9xf32> to vector<2x16x1xf32>
    %cst_185 = arith.constant 0.000000e+00 : f32
    %689 = vector.shape_cast %687 : vector<16x16xi1> to vector<1x16x16xi1>
    %690 = vector.broadcast %689 : vector<1x16x16xi1> to vector<2x16x16xi1>
    %691 = vector.shape_cast %688 : vector<2x16x1xf32> to vector<2x16x1xf32>
    %692 = vector.broadcast %691 : vector<2x16x1xf32> to vector<2x16x16xf32>
    %693 = vector.broadcast %cst_185 : f32 to vector<2x16x16xf32>
    %694 = arith.select %690, %692, %693 : vector<2x16x16xi1>, vector<2x16x16xf32>
    %695 = arith.addf %683, %694 : vector<2x16x16xf32>
    %c1_i32_186 = arith.constant 1 : i32
    %696 = vector.broadcast %c1_i32_186 : i32 to vector<16x16xi32>
    %697 = arith.cmpi eq, %42, %696 : vector<16x16xi32>
    %698 = vector.extract_strided_slice %685 {offsets = [0, 0, 1], sizes = [2, 16, 1], strides = [1, 1, 1]} : vector<2x16x9xf32> to vector<2x16x1xf32>
    %cst_187 = arith.constant 0.000000e+00 : f32
    %699 = vector.shape_cast %697 : vector<16x16xi1> to vector<1x16x16xi1>
    %700 = vector.broadcast %699 : vector<1x16x16xi1> to vector<2x16x16xi1>
    %701 = vector.shape_cast %698 : vector<2x16x1xf32> to vector<2x16x1xf32>
    %702 = vector.broadcast %701 : vector<2x16x1xf32> to vector<2x16x16xf32>
    %703 = vector.broadcast %cst_187 : f32 to vector<2x16x16xf32>
    %704 = arith.select %700, %702, %703 : vector<2x16x16xi1>, vector<2x16x16xf32>
    %705 = arith.addf %695, %704 : vector<2x16x16xf32>
    %c2_i32_188 = arith.constant 2 : i32
    %706 = vector.broadcast %c2_i32_188 : i32 to vector<16x16xi32>
    %707 = arith.cmpi eq, %42, %706 : vector<16x16xi32>
    %708 = vector.extract_strided_slice %685 {offsets = [0, 0, 2], sizes = [2, 16, 1], strides = [1, 1, 1]} : vector<2x16x9xf32> to vector<2x16x1xf32>
    %cst_189 = arith.constant 0.000000e+00 : f32
    %709 = vector.shape_cast %707 : vector<16x16xi1> to vector<1x16x16xi1>
    %710 = vector.broadcast %709 : vector<1x16x16xi1> to vector<2x16x16xi1>
    %711 = vector.shape_cast %708 : vector<2x16x1xf32> to vector<2x16x1xf32>
    %712 = vector.broadcast %711 : vector<2x16x1xf32> to vector<2x16x16xf32>
    %713 = vector.broadcast %cst_189 : f32 to vector<2x16x16xf32>
    %714 = arith.select %710, %712, %713 : vector<2x16x16xi1>, vector<2x16x16xf32>
    %715 = arith.addf %705, %714 : vector<2x16x16xf32>
    %c3_i32_190 = arith.constant 3 : i32
    %716 = vector.broadcast %c3_i32_190 : i32 to vector<16x16xi32>
    %717 = arith.cmpi eq, %42, %716 : vector<16x16xi32>
    %718 = vector.extract_strided_slice %685 {offsets = [0, 0, 3], sizes = [2, 16, 1], strides = [1, 1, 1]} : vector<2x16x9xf32> to vector<2x16x1xf32>
    %cst_191 = arith.constant 0.000000e+00 : f32
    %719 = vector.shape_cast %717 : vector<16x16xi1> to vector<1x16x16xi1>
    %720 = vector.broadcast %719 : vector<1x16x16xi1> to vector<2x16x16xi1>
    %721 = vector.shape_cast %718 : vector<2x16x1xf32> to vector<2x16x1xf32>
    %722 = vector.broadcast %721 : vector<2x16x1xf32> to vector<2x16x16xf32>
    %723 = vector.broadcast %cst_191 : f32 to vector<2x16x16xf32>
    %724 = arith.select %720, %722, %723 : vector<2x16x16xi1>, vector<2x16x16xf32>
    %725 = arith.addf %715, %724 : vector<2x16x16xf32>
    %c4_i32_192 = arith.constant 4 : i32
    %726 = vector.broadcast %c4_i32_192 : i32 to vector<16x16xi32>
    %727 = arith.cmpi eq, %42, %726 : vector<16x16xi32>
    %728 = vector.extract_strided_slice %685 {offsets = [0, 0, 4], sizes = [2, 16, 1], strides = [1, 1, 1]} : vector<2x16x9xf32> to vector<2x16x1xf32>
    %cst_193 = arith.constant 0.000000e+00 : f32
    %729 = vector.shape_cast %727 : vector<16x16xi1> to vector<1x16x16xi1>
    %730 = vector.broadcast %729 : vector<1x16x16xi1> to vector<2x16x16xi1>
    %731 = vector.shape_cast %728 : vector<2x16x1xf32> to vector<2x16x1xf32>
    %732 = vector.broadcast %731 : vector<2x16x1xf32> to vector<2x16x16xf32>
    %733 = vector.broadcast %cst_193 : f32 to vector<2x16x16xf32>
    %734 = arith.select %730, %732, %733 : vector<2x16x16xi1>, vector<2x16x16xf32>
    %735 = arith.addf %725, %734 : vector<2x16x16xf32>
    %c5_i32_194 = arith.constant 5 : i32
    %736 = vector.broadcast %c5_i32_194 : i32 to vector<16x16xi32>
    %737 = arith.cmpi eq, %42, %736 : vector<16x16xi32>
    %738 = vector.extract_strided_slice %685 {offsets = [0, 0, 5], sizes = [2, 16, 1], strides = [1, 1, 1]} : vector<2x16x9xf32> to vector<2x16x1xf32>
    %cst_195 = arith.constant 0.000000e+00 : f32
    %739 = vector.shape_cast %737 : vector<16x16xi1> to vector<1x16x16xi1>
    %740 = vector.broadcast %739 : vector<1x16x16xi1> to vector<2x16x16xi1>
    %741 = vector.shape_cast %738 : vector<2x16x1xf32> to vector<2x16x1xf32>
    %742 = vector.broadcast %741 : vector<2x16x1xf32> to vector<2x16x16xf32>
    %743 = vector.broadcast %cst_195 : f32 to vector<2x16x16xf32>
    %744 = arith.select %740, %742, %743 : vector<2x16x16xi1>, vector<2x16x16xf32>
    %745 = arith.addf %735, %744 : vector<2x16x16xf32>
    %c6_i32_196 = arith.constant 6 : i32
    %746 = vector.broadcast %c6_i32_196 : i32 to vector<16x16xi32>
    %747 = arith.cmpi eq, %42, %746 : vector<16x16xi32>
    %748 = vector.extract_strided_slice %685 {offsets = [0, 0, 6], sizes = [2, 16, 1], strides = [1, 1, 1]} : vector<2x16x9xf32> to vector<2x16x1xf32>
    %cst_197 = arith.constant 0.000000e+00 : f32
    %749 = vector.shape_cast %747 : vector<16x16xi1> to vector<1x16x16xi1>
    %750 = vector.broadcast %749 : vector<1x16x16xi1> to vector<2x16x16xi1>
    %751 = vector.shape_cast %748 : vector<2x16x1xf32> to vector<2x16x1xf32>
    %752 = vector.broadcast %751 : vector<2x16x1xf32> to vector<2x16x16xf32>
    %753 = vector.broadcast %cst_197 : f32 to vector<2x16x16xf32>
    %754 = arith.select %750, %752, %753 : vector<2x16x16xi1>, vector<2x16x16xf32>
    %755 = arith.addf %745, %754 : vector<2x16x16xf32>
    %c7_i32_198 = arith.constant 7 : i32
    %756 = vector.broadcast %c7_i32_198 : i32 to vector<16x16xi32>
    %757 = arith.cmpi eq, %42, %756 : vector<16x16xi32>
    %758 = vector.extract_strided_slice %685 {offsets = [0, 0, 7], sizes = [2, 16, 1], strides = [1, 1, 1]} : vector<2x16x9xf32> to vector<2x16x1xf32>
    %cst_199 = arith.constant 0.000000e+00 : f32
    %759 = vector.shape_cast %757 : vector<16x16xi1> to vector<1x16x16xi1>
    %760 = vector.broadcast %759 : vector<1x16x16xi1> to vector<2x16x16xi1>
    %761 = vector.shape_cast %758 : vector<2x16x1xf32> to vector<2x16x1xf32>
    %762 = vector.broadcast %761 : vector<2x16x1xf32> to vector<2x16x16xf32>
    %763 = vector.broadcast %cst_199 : f32 to vector<2x16x16xf32>
    %764 = arith.select %760, %762, %763 : vector<2x16x16xi1>, vector<2x16x16xf32>
    %765 = arith.addf %755, %764 : vector<2x16x16xf32>
    %c8_i32_200 = arith.constant 8 : i32
    %766 = vector.broadcast %c8_i32_200 : i32 to vector<16x16xi32>
    %767 = arith.cmpi eq, %42, %766 : vector<16x16xi32>
    %768 = vector.extract_strided_slice %685 {offsets = [0, 0, 8], sizes = [2, 16, 1], strides = [1, 1, 1]} : vector<2x16x9xf32> to vector<2x16x1xf32>
    %cst_201 = arith.constant 0.000000e+00 : f32
    %769 = vector.shape_cast %767 : vector<16x16xi1> to vector<1x16x16xi1>
    %770 = vector.broadcast %769 : vector<1x16x16xi1> to vector<2x16x16xi1>
    %771 = vector.shape_cast %768 : vector<2x16x1xf32> to vector<2x16x1xf32>
    %772 = vector.broadcast %771 : vector<2x16x1xf32> to vector<2x16x16xf32>
    %773 = vector.broadcast %cst_201 : f32 to vector<2x16x16xf32>
    %774 = arith.select %770, %772, %773 : vector<2x16x16xi1>, vector<2x16x16xf32>
    %775 = arith.addf %765, %774 : vector<2x16x16xf32>
    %cst_202 = arith.constant 0.000000e+00 : f32
    %776 = vector.broadcast %cst_202 : f32 to vector<2x16x16xf32>
    %777 = arith.cmpf ogt, %37, %776 : vector<2x16x16xf32>
    %cst_203 = arith.constant -1.000000e+04 : f32
    %778 = vector.broadcast %cst_203 : f32 to vector<2x16x16xf32>
    %779 = arith.select %777, %775, %778 : vector<2x16x16xi1>, vector<2x16x16xf32>
    %cst_204 = arith.constant dense<0xFF800000> : vector<2x16xf32>
    %780 = vector.multi_reduction <maximumf>, %779, %cst_204 [2] : vector<2x16x16xf32> to vector<2x16xf32>
    %781 = vector.shape_cast %780 : vector<2x16xf32> to vector<2x16x1xf32>
    %782 = vector.broadcast %781 : vector<2x16x1xf32> to vector<2x16x16xf32>
    %783 = arith.subf %779, %782 : vector<2x16x16xf32>
    %784 = math.exp %783 : vector<2x16x16xf32>
    %cst_205 = arith.constant dense<0.000000e+00> : vector<2x16xf32>
    %785 = vector.multi_reduction <add>, %784, %cst_205 [2] : vector<2x16x16xf32> to vector<2x16xf32>
    %786 = vector.shape_cast %785 : vector<2x16xf32> to vector<2x16x1xf32>
    %787 = vector.broadcast %786 : vector<2x16x1xf32> to vector<2x16x16xf32>
    %788 = arith.divf %784, %787 : vector<2x16x16xf32>
    %789 = arith.truncf %788 : vector<2x16x16xf32> to vector<2x16x16xbf16>
    %790 = arith.truncf %680 : vector<2x16x32xf32> to vector<2x16x32xbf16>
    "tpu.trace_start"() <{level = 10 : i32, message = "bts,bsd->btd"}> : () -> ()
    %cst_206 = arith.constant dense<0.000000e+00> : vector<2x16x32xf32>
    %791 = tpu.matmul %789, %790, %cst_206 {dimension_numbers = #tpu.dot_dimension_numbers<[2], [1], [1], [2], [0, 0, 0, 1, 1, 2], [0], [0]>} : vector<2x16x16xbf16>, vector<2x16x32xbf16>, vector<2x16x32xf32> -> vector<2x16x32xf32>
    %c0_i32_207 = arith.constant 0 : i32
    "tpu.trace_stop"() : () -> ()
    %792 = vector.broadcast %c0_i32_207 : i32 to vector<16x16xi32>
    %793 = arith.cmpi eq, %42, %792 : vector<16x16xi32>
    %cst_208 = arith.constant 0.000000e+00 : f32
    %794 = vector.shape_cast %793 : vector<16x16xi1> to vector<1x16x16xi1>
    %795 = vector.broadcast %794 : vector<1x16x16xi1> to vector<2x16x16xi1>
    %796 = vector.broadcast %cst_208 : f32 to vector<2x16x16xf32>
    %797 = arith.select %795, %788, %796 : vector<2x16x16xi1>, vector<2x16x16xf32>
    %cst_209 = arith.constant dense<0.000000e+00> : vector<2x16xf32>
    %798 = vector.multi_reduction <add>, %797, %cst_209 [2] : vector<2x16x16xf32> to vector<2x16xf32>
    %799 = vector.shape_cast %798 : vector<2x16xf32> to vector<2x16x1xf32>
    %800 = vector.extract_strided_slice %672 {offsets = [0, 0], sizes = [1, 32], strides = [1, 1]} : vector<9x32xf32> to vector<1x32xf32>
    %801 = vector.shape_cast %800 : vector<1x32xf32> to vector<1x1x32xf32>
    %802 = vector.broadcast %799 : vector<2x16x1xf32> to vector<2x16x32xf32>
    %803 = vector.broadcast %801 : vector<1x1x32xf32> to vector<2x16x32xf32>
    %804 = arith.mulf %802, %803 : vector<2x16x32xf32>
    %805 = arith.addf %791, %804 : vector<2x16x32xf32>
    %c1_i32_210 = arith.constant 1 : i32
    %806 = vector.broadcast %c1_i32_210 : i32 to vector<16x16xi32>
    %807 = arith.cmpi eq, %42, %806 : vector<16x16xi32>
    %cst_211 = arith.constant 0.000000e+00 : f32
    %808 = vector.shape_cast %807 : vector<16x16xi1> to vector<1x16x16xi1>
    %809 = vector.broadcast %808 : vector<1x16x16xi1> to vector<2x16x16xi1>
    %810 = vector.broadcast %cst_211 : f32 to vector<2x16x16xf32>
    %811 = arith.select %809, %788, %810 : vector<2x16x16xi1>, vector<2x16x16xf32>
    %cst_212 = arith.constant dense<0.000000e+00> : vector<2x16xf32>
    %812 = vector.multi_reduction <add>, %811, %cst_212 [2] : vector<2x16x16xf32> to vector<2x16xf32>
    %813 = vector.shape_cast %812 : vector<2x16xf32> to vector<2x16x1xf32>
    %814 = vector.extract_strided_slice %672 {offsets = [1, 0], sizes = [1, 32], strides = [1, 1]} : vector<9x32xf32> to vector<1x32xf32>
    %815 = vector.shape_cast %814 : vector<1x32xf32> to vector<1x1x32xf32>
    %816 = vector.broadcast %813 : vector<2x16x1xf32> to vector<2x16x32xf32>
    %817 = vector.broadcast %815 : vector<1x1x32xf32> to vector<2x16x32xf32>
    %818 = arith.mulf %816, %817 : vector<2x16x32xf32>
    %819 = arith.addf %805, %818 : vector<2x16x32xf32>
    %c2_i32_213 = arith.constant 2 : i32
    %820 = vector.broadcast %c2_i32_213 : i32 to vector<16x16xi32>
    %821 = arith.cmpi eq, %42, %820 : vector<16x16xi32>
    %cst_214 = arith.constant 0.000000e+00 : f32
    %822 = vector.shape_cast %821 : vector<16x16xi1> to vector<1x16x16xi1>
    %823 = vector.broadcast %822 : vector<1x16x16xi1> to vector<2x16x16xi1>
    %824 = vector.broadcast %cst_214 : f32 to vector<2x16x16xf32>
    %825 = arith.select %823, %788, %824 : vector<2x16x16xi1>, vector<2x16x16xf32>
    %cst_215 = arith.constant dense<0.000000e+00> : vector<2x16xf32>
    %826 = vector.multi_reduction <add>, %825, %cst_215 [2] : vector<2x16x16xf32> to vector<2x16xf32>
    %827 = vector.shape_cast %826 : vector<2x16xf32> to vector<2x16x1xf32>
    %828 = vector.extract_strided_slice %672 {offsets = [2, 0], sizes = [1, 32], strides = [1, 1]} : vector<9x32xf32> to vector<1x32xf32>
    %829 = vector.shape_cast %828 : vector<1x32xf32> to vector<1x1x32xf32>
    %830 = vector.broadcast %827 : vector<2x16x1xf32> to vector<2x16x32xf32>
    %831 = vector.broadcast %829 : vector<1x1x32xf32> to vector<2x16x32xf32>
    %832 = arith.mulf %830, %831 : vector<2x16x32xf32>
    %833 = arith.addf %819, %832 : vector<2x16x32xf32>
    %c3_i32_216 = arith.constant 3 : i32
    %834 = vector.broadcast %c3_i32_216 : i32 to vector<16x16xi32>
    %835 = arith.cmpi eq, %42, %834 : vector<16x16xi32>
    %cst_217 = arith.constant 0.000000e+00 : f32
    %836 = vector.shape_cast %835 : vector<16x16xi1> to vector<1x16x16xi1>
    %837 = vector.broadcast %836 : vector<1x16x16xi1> to vector<2x16x16xi1>
    %838 = vector.broadcast %cst_217 : f32 to vector<2x16x16xf32>
    %839 = arith.select %837, %788, %838 : vector<2x16x16xi1>, vector<2x16x16xf32>
    %cst_218 = arith.constant dense<0.000000e+00> : vector<2x16xf32>
    %840 = vector.multi_reduction <add>, %839, %cst_218 [2] : vector<2x16x16xf32> to vector<2x16xf32>
    %841 = vector.shape_cast %840 : vector<2x16xf32> to vector<2x16x1xf32>
    %842 = vector.extract_strided_slice %672 {offsets = [3, 0], sizes = [1, 32], strides = [1, 1]} : vector<9x32xf32> to vector<1x32xf32>
    %843 = vector.shape_cast %842 : vector<1x32xf32> to vector<1x1x32xf32>
    %844 = vector.broadcast %841 : vector<2x16x1xf32> to vector<2x16x32xf32>
    %845 = vector.broadcast %843 : vector<1x1x32xf32> to vector<2x16x32xf32>
    %846 = arith.mulf %844, %845 : vector<2x16x32xf32>
    %847 = arith.addf %833, %846 : vector<2x16x32xf32>
    %c4_i32_219 = arith.constant 4 : i32
    %848 = vector.broadcast %c4_i32_219 : i32 to vector<16x16xi32>
    %849 = arith.cmpi eq, %42, %848 : vector<16x16xi32>
    %cst_220 = arith.constant 0.000000e+00 : f32
    %850 = vector.shape_cast %849 : vector<16x16xi1> to vector<1x16x16xi1>
    %851 = vector.broadcast %850 : vector<1x16x16xi1> to vector<2x16x16xi1>
    %852 = vector.broadcast %cst_220 : f32 to vector<2x16x16xf32>
    %853 = arith.select %851, %788, %852 : vector<2x16x16xi1>, vector<2x16x16xf32>
    %cst_221 = arith.constant dense<0.000000e+00> : vector<2x16xf32>
    %854 = vector.multi_reduction <add>, %853, %cst_221 [2] : vector<2x16x16xf32> to vector<2x16xf32>
    %855 = vector.shape_cast %854 : vector<2x16xf32> to vector<2x16x1xf32>
    %856 = vector.extract_strided_slice %672 {offsets = [4, 0], sizes = [1, 32], strides = [1, 1]} : vector<9x32xf32> to vector<1x32xf32>
    %857 = vector.shape_cast %856 : vector<1x32xf32> to vector<1x1x32xf32>
    %858 = vector.broadcast %855 : vector<2x16x1xf32> to vector<2x16x32xf32>
    %859 = vector.broadcast %857 : vector<1x1x32xf32> to vector<2x16x32xf32>
    %860 = arith.mulf %858, %859 : vector<2x16x32xf32>
    %861 = arith.addf %847, %860 : vector<2x16x32xf32>
    %c5_i32_222 = arith.constant 5 : i32
    %862 = vector.broadcast %c5_i32_222 : i32 to vector<16x16xi32>
    %863 = arith.cmpi eq, %42, %862 : vector<16x16xi32>
    %cst_223 = arith.constant 0.000000e+00 : f32
    %864 = vector.shape_cast %863 : vector<16x16xi1> to vector<1x16x16xi1>
    %865 = vector.broadcast %864 : vector<1x16x16xi1> to vector<2x16x16xi1>
    %866 = vector.broadcast %cst_223 : f32 to vector<2x16x16xf32>
    %867 = arith.select %865, %788, %866 : vector<2x16x16xi1>, vector<2x16x16xf32>
    %cst_224 = arith.constant dense<0.000000e+00> : vector<2x16xf32>
    %868 = vector.multi_reduction <add>, %867, %cst_224 [2] : vector<2x16x16xf32> to vector<2x16xf32>
    %869 = vector.shape_cast %868 : vector<2x16xf32> to vector<2x16x1xf32>
    %870 = vector.extract_strided_slice %672 {offsets = [5, 0], sizes = [1, 32], strides = [1, 1]} : vector<9x32xf32> to vector<1x32xf32>
    %871 = vector.shape_cast %870 : vector<1x32xf32> to vector<1x1x32xf32>
    %872 = vector.broadcast %869 : vector<2x16x1xf32> to vector<2x16x32xf32>
    %873 = vector.broadcast %871 : vector<1x1x32xf32> to vector<2x16x32xf32>
    %874 = arith.mulf %872, %873 : vector<2x16x32xf32>
    %875 = arith.addf %861, %874 : vector<2x16x32xf32>
    %c6_i32_225 = arith.constant 6 : i32
    %876 = vector.broadcast %c6_i32_225 : i32 to vector<16x16xi32>
    %877 = arith.cmpi eq, %42, %876 : vector<16x16xi32>
    %cst_226 = arith.constant 0.000000e+00 : f32
    %878 = vector.shape_cast %877 : vector<16x16xi1> to vector<1x16x16xi1>
    %879 = vector.broadcast %878 : vector<1x16x16xi1> to vector<2x16x16xi1>
    %880 = vector.broadcast %cst_226 : f32 to vector<2x16x16xf32>
    %881 = arith.select %879, %788, %880 : vector<2x16x16xi1>, vector<2x16x16xf32>
    %cst_227 = arith.constant dense<0.000000e+00> : vector<2x16xf32>
    %882 = vector.multi_reduction <add>, %881, %cst_227 [2] : vector<2x16x16xf32> to vector<2x16xf32>
    %883 = vector.shape_cast %882 : vector<2x16xf32> to vector<2x16x1xf32>
    %884 = vector.extract_strided_slice %672 {offsets = [6, 0], sizes = [1, 32], strides = [1, 1]} : vector<9x32xf32> to vector<1x32xf32>
    %885 = vector.shape_cast %884 : vector<1x32xf32> to vector<1x1x32xf32>
    %886 = vector.broadcast %883 : vector<2x16x1xf32> to vector<2x16x32xf32>
    %887 = vector.broadcast %885 : vector<1x1x32xf32> to vector<2x16x32xf32>
    %888 = arith.mulf %886, %887 : vector<2x16x32xf32>
    %889 = arith.addf %875, %888 : vector<2x16x32xf32>
    %c7_i32_228 = arith.constant 7 : i32
    %890 = vector.broadcast %c7_i32_228 : i32 to vector<16x16xi32>
    %891 = arith.cmpi eq, %42, %890 : vector<16x16xi32>
    %cst_229 = arith.constant 0.000000e+00 : f32
    %892 = vector.shape_cast %891 : vector<16x16xi1> to vector<1x16x16xi1>
    %893 = vector.broadcast %892 : vector<1x16x16xi1> to vector<2x16x16xi1>
    %894 = vector.broadcast %cst_229 : f32 to vector<2x16x16xf32>
    %895 = arith.select %893, %788, %894 : vector<2x16x16xi1>, vector<2x16x16xf32>
    %cst_230 = arith.constant dense<0.000000e+00> : vector<2x16xf32>
    %896 = vector.multi_reduction <add>, %895, %cst_230 [2] : vector<2x16x16xf32> to vector<2x16xf32>
    %897 = vector.shape_cast %896 : vector<2x16xf32> to vector<2x16x1xf32>
    %898 = vector.extract_strided_slice %672 {offsets = [7, 0], sizes = [1, 32], strides = [1, 1]} : vector<9x32xf32> to vector<1x32xf32>
    %899 = vector.shape_cast %898 : vector<1x32xf32> to vector<1x1x32xf32>
    %900 = vector.broadcast %897 : vector<2x16x1xf32> to vector<2x16x32xf32>
    %901 = vector.broadcast %899 : vector<1x1x32xf32> to vector<2x16x32xf32>
    %902 = arith.mulf %900, %901 : vector<2x16x32xf32>
    %903 = arith.addf %889, %902 : vector<2x16x32xf32>
    %c8_i32_231 = arith.constant 8 : i32
    %904 = vector.broadcast %c8_i32_231 : i32 to vector<16x16xi32>
    %905 = arith.cmpi eq, %42, %904 : vector<16x16xi32>
    %cst_232 = arith.constant 0.000000e+00 : f32
    %906 = vector.shape_cast %905 : vector<16x16xi1> to vector<1x16x16xi1>
    %907 = vector.broadcast %906 : vector<1x16x16xi1> to vector<2x16x16xi1>
    %908 = vector.broadcast %cst_232 : f32 to vector<2x16x16xf32>
    %909 = arith.select %907, %788, %908 : vector<2x16x16xi1>, vector<2x16x16xf32>
    %cst_233 = arith.constant dense<0.000000e+00> : vector<2x16xf32>
    %910 = vector.multi_reduction <add>, %909, %cst_233 [2] : vector<2x16x16xf32> to vector<2x16xf32>
    %911 = vector.shape_cast %910 : vector<2x16xf32> to vector<2x16x1xf32>
    %912 = vector.extract_strided_slice %672 {offsets = [8, 0], sizes = [1, 32], strides = [1, 1]} : vector<9x32xf32> to vector<1x32xf32>
    %913 = vector.shape_cast %912 : vector<1x32xf32> to vector<1x1x32xf32>
    %914 = vector.broadcast %911 : vector<2x16x1xf32> to vector<2x16x32xf32>
    %915 = vector.broadcast %913 : vector<1x1x32xf32> to vector<2x16x32xf32>
    %916 = arith.mulf %914, %915 : vector<2x16x32xf32>
    %917 = arith.addf %903, %916 : vector<2x16x32xf32>
    %918 = vector.extract_strided_slice %668 {offsets = [0, 32], sizes = [32, 32], strides = [1, 1]} : vector<32x192xf32> to vector<32x32xf32>
    %cst_234 = arith.constant 0.176776692 : f32
    %919 = vector.broadcast %cst_234 : f32 to vector<32x32xf32>
    %920 = arith.mulf %918, %919 : vector<32x32xf32>
    %921 = vector.shape_cast %920 : vector<32x32xf32> to vector<2x16x32xf32>
    %922 = vector.extract_strided_slice %668 {offsets = [0, 96], sizes = [32, 32], strides = [1, 1]} : vector<32x192xf32> to vector<32x32xf32>
    %923 = vector.shape_cast %922 : vector<32x32xf32> to vector<2x16x32xf32>
    %924 = vector.extract_strided_slice %668 {offsets = [0, 160], sizes = [32, 32], strides = [1, 1]} : vector<32x192xf32> to vector<32x32xf32>
    %925 = vector.shape_cast %924 : vector<32x32xf32> to vector<2x16x32xf32>
    %926 = arith.truncf %921 : vector<2x16x32xf32> to vector<2x16x32xbf16>
    %927 = arith.truncf %923 : vector<2x16x32xf32> to vector<2x16x32xbf16>
    "tpu.trace_start"() <{level = 10 : i32, message = "btd,bsd->bts"}> : () -> ()
    %cst_235 = arith.constant dense<0.000000e+00> : vector<2x16x16xf32>
    %928 = tpu.matmul %926, %927, %cst_235 {dimension_numbers = #tpu.dot_dimension_numbers<[2], [2], [1], [1], [0, 0, 0, 1, 1, 1], [0], [0]>} : vector<2x16x32xbf16>, vector<2x16x32xbf16>, vector<2x16x16xf32> -> vector<2x16x16xf32>
    "tpu.trace_stop"() : () -> ()
    %cst_236 = arith.constant dense<0.000000e+00> : vector<32x9xf32>
    %929 = tpu.matmul %920, %670, %cst_236 {dimension_numbers = #tpu.dot_dimension_numbers<[1], [0], [0], [1], [0, 0, 1, 1], [], []>} : vector<32x32xf32>, vector<32x9xf32>, vector<32x9xf32> -> vector<32x9xf32>
    %930 = vector.shape_cast %929 : vector<32x9xf32> to vector<2x16x9xf32>
    %c0_i32_237 = arith.constant 0 : i32
    %931 = vector.broadcast %c0_i32_237 : i32 to vector<16x16xi32>
    %932 = arith.cmpi eq, %42, %931 : vector<16x16xi32>
    %933 = vector.extract_strided_slice %930 {offsets = [0, 0, 0], sizes = [2, 16, 1], strides = [1, 1, 1]} : vector<2x16x9xf32> to vector<2x16x1xf32>
    %cst_238 = arith.constant 0.000000e+00 : f32
    %934 = vector.shape_cast %932 : vector<16x16xi1> to vector<1x16x16xi1>
    %935 = vector.broadcast %934 : vector<1x16x16xi1> to vector<2x16x16xi1>
    %936 = vector.shape_cast %933 : vector<2x16x1xf32> to vector<2x16x1xf32>
    %937 = vector.broadcast %936 : vector<2x16x1xf32> to vector<2x16x16xf32>
    %938 = vector.broadcast %cst_238 : f32 to vector<2x16x16xf32>
    %939 = arith.select %935, %937, %938 : vector<2x16x16xi1>, vector<2x16x16xf32>
    %940 = arith.addf %928, %939 : vector<2x16x16xf32>
    %c1_i32_239 = arith.constant 1 : i32
    %941 = vector.broadcast %c1_i32_239 : i32 to vector<16x16xi32>
    %942 = arith.cmpi eq, %42, %941 : vector<16x16xi32>
    %943 = vector.extract_strided_slice %930 {offsets = [0, 0, 1], sizes = [2, 16, 1], strides = [1, 1, 1]} : vector<2x16x9xf32> to vector<2x16x1xf32>
    %cst_240 = arith.constant 0.000000e+00 : f32
    %944 = vector.shape_cast %942 : vector<16x16xi1> to vector<1x16x16xi1>
    %945 = vector.broadcast %944 : vector<1x16x16xi1> to vector<2x16x16xi1>
    %946 = vector.shape_cast %943 : vector<2x16x1xf32> to vector<2x16x1xf32>
    %947 = vector.broadcast %946 : vector<2x16x1xf32> to vector<2x16x16xf32>
    %948 = vector.broadcast %cst_240 : f32 to vector<2x16x16xf32>
    %949 = arith.select %945, %947, %948 : vector<2x16x16xi1>, vector<2x16x16xf32>
    %950 = arith.addf %940, %949 : vector<2x16x16xf32>
    %c2_i32_241 = arith.constant 2 : i32
    %951 = vector.broadcast %c2_i32_241 : i32 to vector<16x16xi32>
    %952 = arith.cmpi eq, %42, %951 : vector<16x16xi32>
    %953 = vector.extract_strided_slice %930 {offsets = [0, 0, 2], sizes = [2, 16, 1], strides = [1, 1, 1]} : vector<2x16x9xf32> to vector<2x16x1xf32>
    %cst_242 = arith.constant 0.000000e+00 : f32
    %954 = vector.shape_cast %952 : vector<16x16xi1> to vector<1x16x16xi1>
    %955 = vector.broadcast %954 : vector<1x16x16xi1> to vector<2x16x16xi1>
    %956 = vector.shape_cast %953 : vector<2x16x1xf32> to vector<2x16x1xf32>
    %957 = vector.broadcast %956 : vector<2x16x1xf32> to vector<2x16x16xf32>
    %958 = vector.broadcast %cst_242 : f32 to vector<2x16x16xf32>
    %959 = arith.select %955, %957, %958 : vector<2x16x16xi1>, vector<2x16x16xf32>
    %960 = arith.addf %950, %959 : vector<2x16x16xf32>
    %c3_i32_243 = arith.constant 3 : i32
    %961 = vector.broadcast %c3_i32_243 : i32 to vector<16x16xi32>
    %962 = arith.cmpi eq, %42, %961 : vector<16x16xi32>
    %963 = vector.extract_strided_slice %930 {offsets = [0, 0, 3], sizes = [2, 16, 1], strides = [1, 1, 1]} : vector<2x16x9xf32> to vector<2x16x1xf32>
    %cst_244 = arith.constant 0.000000e+00 : f32
    %964 = vector.shape_cast %962 : vector<16x16xi1> to vector<1x16x16xi1>
    %965 = vector.broadcast %964 : vector<1x16x16xi1> to vector<2x16x16xi1>
    %966 = vector.shape_cast %963 : vector<2x16x1xf32> to vector<2x16x1xf32>
    %967 = vector.broadcast %966 : vector<2x16x1xf32> to vector<2x16x16xf32>
    %968 = vector.broadcast %cst_244 : f32 to vector<2x16x16xf32>
    %969 = arith.select %965, %967, %968 : vector<2x16x16xi1>, vector<2x16x16xf32>
    %970 = arith.addf %960, %969 : vector<2x16x16xf32>
    %c4_i32_245 = arith.constant 4 : i32
    %971 = vector.broadcast %c4_i32_245 : i32 to vector<16x16xi32>
    %972 = arith.cmpi eq, %42, %971 : vector<16x16xi32>
    %973 = vector.extract_strided_slice %930 {offsets = [0, 0, 4], sizes = [2, 16, 1], strides = [1, 1, 1]} : vector<2x16x9xf32> to vector<2x16x1xf32>
    %cst_246 = arith.constant 0.000000e+00 : f32
    %974 = vector.shape_cast %972 : vector<16x16xi1> to vector<1x16x16xi1>
    %975 = vector.broadcast %974 : vector<1x16x16xi1> to vector<2x16x16xi1>
    %976 = vector.shape_cast %973 : vector<2x16x1xf32> to vector<2x16x1xf32>
    %977 = vector.broadcast %976 : vector<2x16x1xf32> to vector<2x16x16xf32>
    %978 = vector.broadcast %cst_246 : f32 to vector<2x16x16xf32>
    %979 = arith.select %975, %977, %978 : vector<2x16x16xi1>, vector<2x16x16xf32>
    %980 = arith.addf %970, %979 : vector<2x16x16xf32>
    %c5_i32_247 = arith.constant 5 : i32
    %981 = vector.broadcast %c5_i32_247 : i32 to vector<16x16xi32>
    %982 = arith.cmpi eq, %42, %981 : vector<16x16xi32>
    %983 = vector.extract_strided_slice %930 {offsets = [0, 0, 5], sizes = [2, 16, 1], strides = [1, 1, 1]} : vector<2x16x9xf32> to vector<2x16x1xf32>
    %cst_248 = arith.constant 0.000000e+00 : f32
    %984 = vector.shape_cast %982 : vector<16x16xi1> to vector<1x16x16xi1>
    %985 = vector.broadcast %984 : vector<1x16x16xi1> to vector<2x16x16xi1>
    %986 = vector.shape_cast %983 : vector<2x16x1xf32> to vector<2x16x1xf32>
    %987 = vector.broadcast %986 : vector<2x16x1xf32> to vector<2x16x16xf32>
    %988 = vector.broadcast %cst_248 : f32 to vector<2x16x16xf32>
    %989 = arith.select %985, %987, %988 : vector<2x16x16xi1>, vector<2x16x16xf32>
    %990 = arith.addf %980, %989 : vector<2x16x16xf32>
    %c6_i32_249 = arith.constant 6 : i32
    %991 = vector.broadcast %c6_i32_249 : i32 to vector<16x16xi32>
    %992 = arith.cmpi eq, %42, %991 : vector<16x16xi32>
    %993 = vector.extract_strided_slice %930 {offsets = [0, 0, 6], sizes = [2, 16, 1], strides = [1, 1, 1]} : vector<2x16x9xf32> to vector<2x16x1xf32>
    %cst_250 = arith.constant 0.000000e+00 : f32
    %994 = vector.shape_cast %992 : vector<16x16xi1> to vector<1x16x16xi1>
    %995 = vector.broadcast %994 : vector<1x16x16xi1> to vector<2x16x16xi1>
    %996 = vector.shape_cast %993 : vector<2x16x1xf32> to vector<2x16x1xf32>
    %997 = vector.broadcast %996 : vector<2x16x1xf32> to vector<2x16x16xf32>
    %998 = vector.broadcast %cst_250 : f32 to vector<2x16x16xf32>
    %999 = arith.select %995, %997, %998 : vector<2x16x16xi1>, vector<2x16x16xf32>
    %1000 = arith.addf %990, %999 : vector<2x16x16xf32>
    %c7_i32_251 = arith.constant 7 : i32
    %1001 = vector.broadcast %c7_i32_251 : i32 to vector<16x16xi32>
    %1002 = arith.cmpi eq, %42, %1001 : vector<16x16xi32>
    %1003 = vector.extract_strided_slice %930 {offsets = [0, 0, 7], sizes = [2, 16, 1], strides = [1, 1, 1]} : vector<2x16x9xf32> to vector<2x16x1xf32>
    %cst_252 = arith.constant 0.000000e+00 : f32
    %1004 = vector.shape_cast %1002 : vector<16x16xi1> to vector<1x16x16xi1>
    %1005 = vector.broadcast %1004 : vector<1x16x16xi1> to vector<2x16x16xi1>
    %1006 = vector.shape_cast %1003 : vector<2x16x1xf32> to vector<2x16x1xf32>
    %1007 = vector.broadcast %1006 : vector<2x16x1xf32> to vector<2x16x16xf32>
    %1008 = vector.broadcast %cst_252 : f32 to vector<2x16x16xf32>
    %1009 = arith.select %1005, %1007, %1008 : vector<2x16x16xi1>, vector<2x16x16xf32>
    %1010 = arith.addf %1000, %1009 : vector<2x16x16xf32>
    %c8_i32_253 = arith.constant 8 : i32
    %1011 = vector.broadcast %c8_i32_253 : i32 to vector<16x16xi32>
    %1012 = arith.cmpi eq, %42, %1011 : vector<16x16xi32>
    %1013 = vector.extract_strided_slice %930 {offsets = [0, 0, 8], sizes = [2, 16, 1], strides = [1, 1, 1]} : vector<2x16x9xf32> to vector<2x16x1xf32>
    %cst_254 = arith.constant 0.000000e+00 : f32
    %1014 = vector.shape_cast %1012 : vector<16x16xi1> to vector<1x16x16xi1>
    %1015 = vector.broadcast %1014 : vector<1x16x16xi1> to vector<2x16x16xi1>
    %1016 = vector.shape_cast %1013 : vector<2x16x1xf32> to vector<2x16x1xf32>
    %1017 = vector.broadcast %1016 : vector<2x16x1xf32> to vector<2x16x16xf32>
    %1018 = vector.broadcast %cst_254 : f32 to vector<2x16x16xf32>
    %1019 = arith.select %1015, %1017, %1018 : vector<2x16x16xi1>, vector<2x16x16xf32>
    %1020 = arith.addf %1010, %1019 : vector<2x16x16xf32>
    %cst_255 = arith.constant 0.000000e+00 : f32
    %1021 = vector.broadcast %cst_255 : f32 to vector<2x16x16xf32>
    %1022 = arith.cmpf ogt, %37, %1021 : vector<2x16x16xf32>
    %cst_256 = arith.constant -1.000000e+04 : f32
    %1023 = vector.broadcast %cst_256 : f32 to vector<2x16x16xf32>
    %1024 = arith.select %1022, %1020, %1023 : vector<2x16x16xi1>, vector<2x16x16xf32>
    %cst_257 = arith.constant dense<0xFF800000> : vector<2x16xf32>
    %1025 = vector.multi_reduction <maximumf>, %1024, %cst_257 [2] : vector<2x16x16xf32> to vector<2x16xf32>
    %1026 = vector.shape_cast %1025 : vector<2x16xf32> to vector<2x16x1xf32>
    %1027 = vector.broadcast %1026 : vector<2x16x1xf32> to vector<2x16x16xf32>
    %1028 = arith.subf %1024, %1027 : vector<2x16x16xf32>
    %1029 = math.exp %1028 : vector<2x16x16xf32>
    %cst_258 = arith.constant dense<0.000000e+00> : vector<2x16xf32>
    %1030 = vector.multi_reduction <add>, %1029, %cst_258 [2] : vector<2x16x16xf32> to vector<2x16xf32>
    %1031 = vector.shape_cast %1030 : vector<2x16xf32> to vector<2x16x1xf32>
    %1032 = vector.broadcast %1031 : vector<2x16x1xf32> to vector<2x16x16xf32>
    %1033 = arith.divf %1029, %1032 : vector<2x16x16xf32>
    %1034 = arith.truncf %1033 : vector<2x16x16xf32> to vector<2x16x16xbf16>
    %1035 = arith.truncf %925 : vector<2x16x32xf32> to vector<2x16x32xbf16>
    "tpu.trace_start"() <{level = 10 : i32, message = "bts,bsd->btd"}> : () -> ()
    %cst_259 = arith.constant dense<0.000000e+00> : vector<2x16x32xf32>
    %1036 = tpu.matmul %1034, %1035, %cst_259 {dimension_numbers = #tpu.dot_dimension_numbers<[2], [1], [1], [2], [0, 0, 0, 1, 1, 2], [0], [0]>} : vector<2x16x16xbf16>, vector<2x16x32xbf16>, vector<2x16x32xf32> -> vector<2x16x32xf32>
    %c0_i32_260 = arith.constant 0 : i32
    "tpu.trace_stop"() : () -> ()
    %1037 = vector.broadcast %c0_i32_260 : i32 to vector<16x16xi32>
    %1038 = arith.cmpi eq, %42, %1037 : vector<16x16xi32>
    %cst_261 = arith.constant 0.000000e+00 : f32
    %1039 = vector.shape_cast %1038 : vector<16x16xi1> to vector<1x16x16xi1>
    %1040 = vector.broadcast %1039 : vector<1x16x16xi1> to vector<2x16x16xi1>
    %1041 = vector.broadcast %cst_261 : f32 to vector<2x16x16xf32>
    %1042 = arith.select %1040, %1033, %1041 : vector<2x16x16xi1>, vector<2x16x16xf32>
    %cst_262 = arith.constant dense<0.000000e+00> : vector<2x16xf32>
    %1043 = vector.multi_reduction <add>, %1042, %cst_262 [2] : vector<2x16x16xf32> to vector<2x16xf32>
    %1044 = vector.shape_cast %1043 : vector<2x16xf32> to vector<2x16x1xf32>
    %1045 = vector.extract_strided_slice %672 {offsets = [0, 0], sizes = [1, 32], strides = [1, 1]} : vector<9x32xf32> to vector<1x32xf32>
    %1046 = vector.shape_cast %1045 : vector<1x32xf32> to vector<1x1x32xf32>
    %1047 = vector.broadcast %1044 : vector<2x16x1xf32> to vector<2x16x32xf32>
    %1048 = vector.broadcast %1046 : vector<1x1x32xf32> to vector<2x16x32xf32>
    %1049 = arith.mulf %1047, %1048 : vector<2x16x32xf32>
    %1050 = arith.addf %1036, %1049 : vector<2x16x32xf32>
    %c1_i32_263 = arith.constant 1 : i32
    %1051 = vector.broadcast %c1_i32_263 : i32 to vector<16x16xi32>
    %1052 = arith.cmpi eq, %42, %1051 : vector<16x16xi32>
    %cst_264 = arith.constant 0.000000e+00 : f32
    %1053 = vector.shape_cast %1052 : vector<16x16xi1> to vector<1x16x16xi1>
    %1054 = vector.broadcast %1053 : vector<1x16x16xi1> to vector<2x16x16xi1>
    %1055 = vector.broadcast %cst_264 : f32 to vector<2x16x16xf32>
    %1056 = arith.select %1054, %1033, %1055 : vector<2x16x16xi1>, vector<2x16x16xf32>
    %cst_265 = arith.constant dense<0.000000e+00> : vector<2x16xf32>
    %1057 = vector.multi_reduction <add>, %1056, %cst_265 [2] : vector<2x16x16xf32> to vector<2x16xf32>
    %1058 = vector.shape_cast %1057 : vector<2x16xf32> to vector<2x16x1xf32>
    %1059 = vector.extract_strided_slice %672 {offsets = [1, 0], sizes = [1, 32], strides = [1, 1]} : vector<9x32xf32> to vector<1x32xf32>
    %1060 = vector.shape_cast %1059 : vector<1x32xf32> to vector<1x1x32xf32>
    %1061 = vector.broadcast %1058 : vector<2x16x1xf32> to vector<2x16x32xf32>
    %1062 = vector.broadcast %1060 : vector<1x1x32xf32> to vector<2x16x32xf32>
    %1063 = arith.mulf %1061, %1062 : vector<2x16x32xf32>
    %1064 = arith.addf %1050, %1063 : vector<2x16x32xf32>
    %c2_i32_266 = arith.constant 2 : i32
    %1065 = vector.broadcast %c2_i32_266 : i32 to vector<16x16xi32>
    %1066 = arith.cmpi eq, %42, %1065 : vector<16x16xi32>
    %cst_267 = arith.constant 0.000000e+00 : f32
    %1067 = vector.shape_cast %1066 : vector<16x16xi1> to vector<1x16x16xi1>
    %1068 = vector.broadcast %1067 : vector<1x16x16xi1> to vector<2x16x16xi1>
    %1069 = vector.broadcast %cst_267 : f32 to vector<2x16x16xf32>
    %1070 = arith.select %1068, %1033, %1069 : vector<2x16x16xi1>, vector<2x16x16xf32>
    %cst_268 = arith.constant dense<0.000000e+00> : vector<2x16xf32>
    %1071 = vector.multi_reduction <add>, %1070, %cst_268 [2] : vector<2x16x16xf32> to vector<2x16xf32>
    %1072 = vector.shape_cast %1071 : vector<2x16xf32> to vector<2x16x1xf32>
    %1073 = vector.extract_strided_slice %672 {offsets = [2, 0], sizes = [1, 32], strides = [1, 1]} : vector<9x32xf32> to vector<1x32xf32>
    %1074 = vector.shape_cast %1073 : vector<1x32xf32> to vector<1x1x32xf32>
    %1075 = vector.broadcast %1072 : vector<2x16x1xf32> to vector<2x16x32xf32>
    %1076 = vector.broadcast %1074 : vector<1x1x32xf32> to vector<2x16x32xf32>
    %1077 = arith.mulf %1075, %1076 : vector<2x16x32xf32>
    %1078 = arith.addf %1064, %1077 : vector<2x16x32xf32>
    %c3_i32_269 = arith.constant 3 : i32
    %1079 = vector.broadcast %c3_i32_269 : i32 to vector<16x16xi32>
    %1080 = arith.cmpi eq, %42, %1079 : vector<16x16xi32>
    %cst_270 = arith.constant 0.000000e+00 : f32
    %1081 = vector.shape_cast %1080 : vector<16x16xi1> to vector<1x16x16xi1>
    %1082 = vector.broadcast %1081 : vector<1x16x16xi1> to vector<2x16x16xi1>
    %1083 = vector.broadcast %cst_270 : f32 to vector<2x16x16xf32>
    %1084 = arith.select %1082, %1033, %1083 : vector<2x16x16xi1>, vector<2x16x16xf32>
    %cst_271 = arith.constant dense<0.000000e+00> : vector<2x16xf32>
    %1085 = vector.multi_reduction <add>, %1084, %cst_271 [2] : vector<2x16x16xf32> to vector<2x16xf32>
    %1086 = vector.shape_cast %1085 : vector<2x16xf32> to vector<2x16x1xf32>
    %1087 = vector.extract_strided_slice %672 {offsets = [3, 0], sizes = [1, 32], strides = [1, 1]} : vector<9x32xf32> to vector<1x32xf32>
    %1088 = vector.shape_cast %1087 : vector<1x32xf32> to vector<1x1x32xf32>
    %1089 = vector.broadcast %1086 : vector<2x16x1xf32> to vector<2x16x32xf32>
    %1090 = vector.broadcast %1088 : vector<1x1x32xf32> to vector<2x16x32xf32>
    %1091 = arith.mulf %1089, %1090 : vector<2x16x32xf32>
    %1092 = arith.addf %1078, %1091 : vector<2x16x32xf32>
    %c4_i32_272 = arith.constant 4 : i32
    %1093 = vector.broadcast %c4_i32_272 : i32 to vector<16x16xi32>
    %1094 = arith.cmpi eq, %42, %1093 : vector<16x16xi32>
    %cst_273 = arith.constant 0.000000e+00 : f32
    %1095 = vector.shape_cast %1094 : vector<16x16xi1> to vector<1x16x16xi1>
    %1096 = vector.broadcast %1095 : vector<1x16x16xi1> to vector<2x16x16xi1>
    %1097 = vector.broadcast %cst_273 : f32 to vector<2x16x16xf32>
    %1098 = arith.select %1096, %1033, %1097 : vector<2x16x16xi1>, vector<2x16x16xf32>
    %cst_274 = arith.constant dense<0.000000e+00> : vector<2x16xf32>
    %1099 = vector.multi_reduction <add>, %1098, %cst_274 [2] : vector<2x16x16xf32> to vector<2x16xf32>
    %1100 = vector.shape_cast %1099 : vector<2x16xf32> to vector<2x16x1xf32>
    %1101 = vector.extract_strided_slice %672 {offsets = [4, 0], sizes = [1, 32], strides = [1, 1]} : vector<9x32xf32> to vector<1x32xf32>
    %1102 = vector.shape_cast %1101 : vector<1x32xf32> to vector<1x1x32xf32>
    %1103 = vector.broadcast %1100 : vector<2x16x1xf32> to vector<2x16x32xf32>
    %1104 = vector.broadcast %1102 : vector<1x1x32xf32> to vector<2x16x32xf32>
    %1105 = arith.mulf %1103, %1104 : vector<2x16x32xf32>
    %1106 = arith.addf %1092, %1105 : vector<2x16x32xf32>
    %c5_i32_275 = arith.constant 5 : i32
    %1107 = vector.broadcast %c5_i32_275 : i32 to vector<16x16xi32>
    %1108 = arith.cmpi eq, %42, %1107 : vector<16x16xi32>
    %cst_276 = arith.constant 0.000000e+00 : f32
    %1109 = vector.shape_cast %1108 : vector<16x16xi1> to vector<1x16x16xi1>
    %1110 = vector.broadcast %1109 : vector<1x16x16xi1> to vector<2x16x16xi1>
    %1111 = vector.broadcast %cst_276 : f32 to vector<2x16x16xf32>
    %1112 = arith.select %1110, %1033, %1111 : vector<2x16x16xi1>, vector<2x16x16xf32>
    %cst_277 = arith.constant dense<0.000000e+00> : vector<2x16xf32>
    %1113 = vector.multi_reduction <add>, %1112, %cst_277 [2] : vector<2x16x16xf32> to vector<2x16xf32>
    %1114 = vector.shape_cast %1113 : vector<2x16xf32> to vector<2x16x1xf32>
    %1115 = vector.extract_strided_slice %672 {offsets = [5, 0], sizes = [1, 32], strides = [1, 1]} : vector<9x32xf32> to vector<1x32xf32>
    %1116 = vector.shape_cast %1115 : vector<1x32xf32> to vector<1x1x32xf32>
    %1117 = vector.broadcast %1114 : vector<2x16x1xf32> to vector<2x16x32xf32>
    %1118 = vector.broadcast %1116 : vector<1x1x32xf32> to vector<2x16x32xf32>
    %1119 = arith.mulf %1117, %1118 : vector<2x16x32xf32>
    %1120 = arith.addf %1106, %1119 : vector<2x16x32xf32>
    %c6_i32_278 = arith.constant 6 : i32
    %1121 = vector.broadcast %c6_i32_278 : i32 to vector<16x16xi32>
    %1122 = arith.cmpi eq, %42, %1121 : vector<16x16xi32>
    %cst_279 = arith.constant 0.000000e+00 : f32
    %1123 = vector.shape_cast %1122 : vector<16x16xi1> to vector<1x16x16xi1>
    %1124 = vector.broadcast %1123 : vector<1x16x16xi1> to vector<2x16x16xi1>
    %1125 = vector.broadcast %cst_279 : f32 to vector<2x16x16xf32>
    %1126 = arith.select %1124, %1033, %1125 : vector<2x16x16xi1>, vector<2x16x16xf32>
    %cst_280 = arith.constant dense<0.000000e+00> : vector<2x16xf32>
    %1127 = vector.multi_reduction <add>, %1126, %cst_280 [2] : vector<2x16x16xf32> to vector<2x16xf32>
    %1128 = vector.shape_cast %1127 : vector<2x16xf32> to vector<2x16x1xf32>
    %1129 = vector.extract_strided_slice %672 {offsets = [6, 0], sizes = [1, 32], strides = [1, 1]} : vector<9x32xf32> to vector<1x32xf32>
    %1130 = vector.shape_cast %1129 : vector<1x32xf32> to vector<1x1x32xf32>
    %1131 = vector.broadcast %1128 : vector<2x16x1xf32> to vector<2x16x32xf32>
    %1132 = vector.broadcast %1130 : vector<1x1x32xf32> to vector<2x16x32xf32>
    %1133 = arith.mulf %1131, %1132 : vector<2x16x32xf32>
    %1134 = arith.addf %1120, %1133 : vector<2x16x32xf32>
    %c7_i32_281 = arith.constant 7 : i32
    %1135 = vector.broadcast %c7_i32_281 : i32 to vector<16x16xi32>
    %1136 = arith.cmpi eq, %42, %1135 : vector<16x16xi32>
    %cst_282 = arith.constant 0.000000e+00 : f32
    %1137 = vector.shape_cast %1136 : vector<16x16xi1> to vector<1x16x16xi1>
    %1138 = vector.broadcast %1137 : vector<1x16x16xi1> to vector<2x16x16xi1>
    %1139 = vector.broadcast %cst_282 : f32 to vector<2x16x16xf32>
    %1140 = arith.select %1138, %1033, %1139 : vector<2x16x16xi1>, vector<2x16x16xf32>
    %cst_283 = arith.constant dense<0.000000e+00> : vector<2x16xf32>
    %1141 = vector.multi_reduction <add>, %1140, %cst_283 [2] : vector<2x16x16xf32> to vector<2x16xf32>
    %1142 = vector.shape_cast %1141 : vector<2x16xf32> to vector<2x16x1xf32>
    %1143 = vector.extract_strided_slice %672 {offsets = [7, 0], sizes = [1, 32], strides = [1, 1]} : vector<9x32xf32> to vector<1x32xf32>
    %1144 = vector.shape_cast %1143 : vector<1x32xf32> to vector<1x1x32xf32>
    %1145 = vector.broadcast %1142 : vector<2x16x1xf32> to vector<2x16x32xf32>
    %1146 = vector.broadcast %1144 : vector<1x1x32xf32> to vector<2x16x32xf32>
    %1147 = arith.mulf %1145, %1146 : vector<2x16x32xf32>
    %1148 = arith.addf %1134, %1147 : vector<2x16x32xf32>
    %c8_i32_284 = arith.constant 8 : i32
    %1149 = vector.broadcast %c8_i32_284 : i32 to vector<16x16xi32>
    %1150 = arith.cmpi eq, %42, %1149 : vector<16x16xi32>
    %cst_285 = arith.constant 0.000000e+00 : f32
    %1151 = vector.shape_cast %1150 : vector<16x16xi1> to vector<1x16x16xi1>
    %1152 = vector.broadcast %1151 : vector<1x16x16xi1> to vector<2x16x16xi1>
    %1153 = vector.broadcast %cst_285 : f32 to vector<2x16x16xf32>
    %1154 = arith.select %1152, %1033, %1153 : vector<2x16x16xi1>, vector<2x16x16xf32>
    %cst_286 = arith.constant dense<0.000000e+00> : vector<2x16xf32>
    %1155 = vector.multi_reduction <add>, %1154, %cst_286 [2] : vector<2x16x16xf32> to vector<2x16xf32>
    %1156 = vector.shape_cast %1155 : vector<2x16xf32> to vector<2x16x1xf32>
    %1157 = vector.extract_strided_slice %672 {offsets = [8, 0], sizes = [1, 32], strides = [1, 1]} : vector<9x32xf32> to vector<1x32xf32>
    %1158 = vector.shape_cast %1157 : vector<1x32xf32> to vector<1x1x32xf32>
    %1159 = vector.broadcast %1156 : vector<2x16x1xf32> to vector<2x16x32xf32>
    %1160 = vector.broadcast %1158 : vector<1x1x32xf32> to vector<2x16x32xf32>
    %1161 = arith.mulf %1159, %1160 : vector<2x16x32xf32>
    %1162 = arith.addf %1148, %1161 : vector<2x16x32xf32>
    %1163 = tpu.concatenate %917, %1162 in 2 : vector<2x16x32xf32>, vector<2x16x32xf32> -> vector<2x16x64xf32>
    %1164 = vector.shape_cast %1163 : vector<2x16x64xf32> to vector<32x64xf32>
    %1165 = arith.truncf %1164 : vector<32x64xf32> to vector<32x64xbf16>
    %c1_287 = arith.constant 1 : index
    %c0_288 = arith.constant 0 : index
    %c0_289 = arith.constant 0 : index
    %1166 = vector.load %arg5[%c1_287, %c0_288, %c0_289] : memref<2x64x64xbf16, #tpu.memory_space<vmem>>, vector<1x64x64xbf16>
    %1167 = vector.shape_cast %1166 : vector<1x64x64xbf16> to vector<64x64xbf16>
    %cst_290 = arith.constant dense<0.000000e+00> : vector<32x64xf32>
    %1168 = tpu.matmul %1165, %1167, %cst_290 {dimension_numbers = #tpu.dot_dimension_numbers<[1], [0], [0], [1], [0, 0, 1, 1], [], []>} : vector<32x64xbf16>, vector<64x64xbf16>, vector<32x64xf32> -> vector<32x64xf32>
    %c1_291 = arith.constant 1 : index
    %c0_292 = arith.constant 0 : index
    %c0_293 = arith.constant 0 : index
    %1169 = vector.load %arg6[%c1_291, %c0_292, %c0_293] : memref<2x1x64xf32, #tpu.memory_space<vmem>>, vector<1x1x64xf32>
    %1170 = vector.shape_cast %1169 : vector<1x1x64xf32> to vector<1x64xf32>
    %1171 = vector.broadcast %1170 : vector<1x64xf32> to vector<32x64xf32>
    %1172 = arith.addf %1168, %1171 : vector<32x64xf32>
    %1173 = vector.shape_cast %1172 : vector<32x64xf32> to vector<2x16x64xf32>
    %1174 = arith.addf %659, %1173 : vector<2x16x64xf32>
    %c1_294 = arith.constant 1 : index
    %c0_295 = arith.constant 0 : index
    %c0_296 = arith.constant 0 : index
    %1175 = vector.load %arg9[%c1_294, %c0_295, %c0_296] : memref<2x1x64xf32, #tpu.memory_space<vmem>>, vector<1x1x64xf32>
    %1176 = vector.shape_cast %1175 : vector<1x1x64xf32> to vector<1x64xf32>
    %c1_297 = arith.constant 1 : index
    %c0_298 = arith.constant 0 : index
    %c0_299 = arith.constant 0 : index
    %1177 = vector.load %arg10[%c1_297, %c0_298, %c0_299] : memref<2x1x64xf32, #tpu.memory_space<vmem>>, vector<1x1x64xf32>
    %1178 = vector.shape_cast %1177 : vector<1x1x64xf32> to vector<1x64xf32>
    %cst_300 = arith.constant dense<0.000000e+00> : vector<2x16xf32>
    %1179 = vector.multi_reduction <add>, %1174, %cst_300 [2] : vector<2x16x64xf32> to vector<2x16xf32>
    %1180 = vector.shape_cast %1179 : vector<2x16xf32> to vector<2x16x1xf32>
    %cst_301 = arith.constant 6.400000e+01 : f32
    %1181 = vector.broadcast %cst_301 : f32 to vector<2x16x1xf32>
    %1182 = arith.divf %1180, %1181 : vector<2x16x1xf32>
    %1183 = vector.broadcast %1182 : vector<2x16x1xf32> to vector<2x16x64xf32>
    %1184 = arith.subf %1174, %1183 : vector<2x16x64xf32>
    %1185 = arith.mulf %1184, %1184 : vector<2x16x64xf32>
    %cst_302 = arith.constant dense<0.000000e+00> : vector<2x16xf32>
    %1186 = vector.multi_reduction <add>, %1185, %cst_302 [2] : vector<2x16x64xf32> to vector<2x16xf32>
    %1187 = vector.shape_cast %1186 : vector<2x16xf32> to vector<2x16x1xf32>
    %cst_303 = arith.constant 6.400000e+01 : f32
    %1188 = vector.broadcast %cst_303 : f32 to vector<2x16x1xf32>
    %1189 = arith.divf %1187, %1188 : vector<2x16x1xf32>
    %1190 = vector.broadcast %1182 : vector<2x16x1xf32> to vector<2x16x64xf32>
    %1191 = arith.subf %1174, %1190 : vector<2x16x64xf32>
    %cst_304 = arith.constant 9.99999974E-6 : f32
    %1192 = vector.broadcast %cst_304 : f32 to vector<2x16x1xf32>
    %1193 = arith.addf %1189, %1192 : vector<2x16x1xf32>
    %1194 = math.rsqrt %1193 : vector<2x16x1xf32>
    %1195 = vector.broadcast %1194 : vector<2x16x1xf32> to vector<2x16x64xf32>
    %1196 = arith.mulf %1191, %1195 : vector<2x16x64xf32>
    %1197 = vector.shape_cast %1176 : vector<1x64xf32> to vector<1x1x64xf32>
    %1198 = vector.broadcast %1197 : vector<1x1x64xf32> to vector<2x16x64xf32>
    %1199 = arith.mulf %1196, %1198 : vector<2x16x64xf32>
    %1200 = vector.shape_cast %1178 : vector<1x64xf32> to vector<1x1x64xf32>
    %1201 = vector.broadcast %1200 : vector<1x1x64xf32> to vector<2x16x64xf32>
    %1202 = arith.addf %1199, %1201 : vector<2x16x64xf32>
    %1203 = vector.broadcast %31 : vector<2x16x1xf32> to vector<2x16x64xf32>
    %1204 = arith.mulf %1202, %1203 : vector<2x16x64xf32>
    %c1_305 = arith.constant 1 : index
    %c0_306 = arith.constant 0 : index
    %c0_307 = arith.constant 0 : index
    %1205 = vector.load %arg11[%c1_305, %c0_306, %c0_307] : memref<2x192x128xbf16, #tpu.memory_space<vmem>>, vector<1x192x128xbf16>
    %1206 = vector.shape_cast %1205 : vector<1x192x128xbf16> to vector<192x128xbf16>
    %c1_308 = arith.constant 1 : index
    %c0_309 = arith.constant 0 : index
    %c0_310 = arith.constant 0 : index
    %1207 = vector.load %arg12[%c1_308, %c0_309, %c0_310] : memref<2x1x128xf32, #tpu.memory_space<vmem>>, vector<1x1x128xf32>
    %1208 = vector.shape_cast %1207 : vector<1x1x128xf32> to vector<1x128xf32>
    %cst_311 = arith.constant 0.000000e+00 : f32
    %1209 = vector.broadcast %cst_311 : f32 to vector<2x1x64xf32>
    %1210 = vector.extract_strided_slice %1204 {offsets = [0, 0, 0], sizes = [2, 15, 64], strides = [1, 1, 1]} : vector<2x16x64xf32> to vector<2x15x64xf32>
    %1211 = tpu.concatenate %1209, %1210 in 1 : vector<2x1x64xf32>, vector<2x15x64xf32> -> vector<2x16x64xf32>
    %1212 = vector.extract_strided_slice %1204 {offsets = [0, 1, 0], sizes = [2, 15, 64], strides = [1, 1, 1]} : vector<2x16x64xf32> to vector<2x15x64xf32>
    %cst_312 = arith.constant 0.000000e+00 : f32
    %1213 = vector.broadcast %cst_312 : f32 to vector<2x1x64xf32>
    %1214 = tpu.concatenate %1212, %1213 in 1 : vector<2x15x64xf32>, vector<2x1x64xf32> -> vector<2x16x64xf32>
    %1215 = tpu.concatenate %1211, %1204, %1214 in 2 : vector<2x16x64xf32>, vector<2x16x64xf32>, vector<2x16x64xf32> -> vector<2x16x192xf32>
    %1216 = vector.shape_cast %1215 : vector<2x16x192xf32> to vector<32x192xf32>
    %1217 = arith.truncf %1216 : vector<32x192xf32> to vector<32x192xbf16>
    %cst_313 = arith.constant dense<0.000000e+00> : vector<32x128xf32>
    %1218 = tpu.matmul %1217, %1206, %cst_313 {dimension_numbers = #tpu.dot_dimension_numbers<[1], [0], [0], [1], [0, 0, 1, 1], [], []>} : vector<32x192xbf16>, vector<192x128xbf16>, vector<32x128xf32> -> vector<32x128xf32>
    %1219 = vector.broadcast %1208 : vector<1x128xf32> to vector<32x128xf32>
    %1220 = arith.addf %1218, %1219 : vector<32x128xf32>
    %1221 = vector.shape_cast %1220 : vector<32x128xf32> to vector<2x16x128xf32>
    %cst_314 = arith.constant 0.000000e+00 : f32
    %1222 = vector.broadcast %cst_314 : f32 to vector<2x16x128xf32>
    %1223 = arith.maximumf %1221, %1222 : vector<2x16x128xf32>
    %1224 = vector.broadcast %31 : vector<2x16x1xf32> to vector<2x16x128xf32>
    %1225 = arith.mulf %1223, %1224 : vector<2x16x128xf32>
    %c1_315 = arith.constant 1 : index
    %c0_316 = arith.constant 0 : index
    %c0_317 = arith.constant 0 : index
    %1226 = vector.load %arg13[%c1_315, %c0_316, %c0_317] : memref<2x384x64xbf16, #tpu.memory_space<vmem>>, vector<1x384x64xbf16>
    %1227 = vector.shape_cast %1226 : vector<1x384x64xbf16> to vector<384x64xbf16>
    %c1_318 = arith.constant 1 : index
    %c0_319 = arith.constant 0 : index
    %c0_320 = arith.constant 0 : index
    %1228 = vector.load %arg14[%c1_318, %c0_319, %c0_320] : memref<2x1x64xf32, #tpu.memory_space<vmem>>, vector<1x1x64xf32>
    %1229 = vector.shape_cast %1228 : vector<1x1x64xf32> to vector<1x64xf32>
    %cst_321 = arith.constant 0.000000e+00 : f32
    %1230 = vector.broadcast %cst_321 : f32 to vector<2x1x128xf32>
    %1231 = vector.extract_strided_slice %1225 {offsets = [0, 0, 0], sizes = [2, 15, 128], strides = [1, 1, 1]} : vector<2x16x128xf32> to vector<2x15x128xf32>
    %1232 = tpu.concatenate %1230, %1231 in 1 : vector<2x1x128xf32>, vector<2x15x128xf32> -> vector<2x16x128xf32>
    %1233 = vector.extract_strided_slice %1225 {offsets = [0, 1, 0], sizes = [2, 15, 128], strides = [1, 1, 1]} : vector<2x16x128xf32> to vector<2x15x128xf32>
    %cst_322 = arith.constant 0.000000e+00 : f32
    %1234 = vector.broadcast %cst_322 : f32 to vector<2x1x128xf32>
    %1235 = tpu.concatenate %1233, %1234 in 1 : vector<2x15x128xf32>, vector<2x1x128xf32> -> vector<2x16x128xf32>
    %1236 = tpu.concatenate %1232, %1225, %1235 in 2 : vector<2x16x128xf32>, vector<2x16x128xf32>, vector<2x16x128xf32> -> vector<2x16x384xf32>
    %1237 = vector.shape_cast %1236 : vector<2x16x384xf32> to vector<32x384xf32>
    %1238 = arith.truncf %1237 : vector<32x384xf32> to vector<32x384xbf16>
    %cst_323 = arith.constant dense<0.000000e+00> : vector<32x64xf32>
    %1239 = tpu.matmul %1238, %1227, %cst_323 {dimension_numbers = #tpu.dot_dimension_numbers<[1], [0], [0], [1], [0, 0, 1, 1], [], []>} : vector<32x384xbf16>, vector<384x64xbf16>, vector<32x64xf32> -> vector<32x64xf32>
    %1240 = vector.broadcast %1229 : vector<1x64xf32> to vector<32x64xf32>
    %1241 = arith.addf %1239, %1240 : vector<32x64xf32>
    %1242 = vector.shape_cast %1241 : vector<32x64xf32> to vector<2x16x64xf32>
    %1243 = vector.broadcast %31 : vector<2x16x1xf32> to vector<2x16x64xf32>
    %1244 = arith.mulf %1242, %1243 : vector<2x16x64xf32>
    %1245 = arith.addf %1202, %1244 : vector<2x16x64xf32>
    %c1_324 = arith.constant 1 : index
    %c0_325 = arith.constant 0 : index
    %c0_326 = arith.constant 0 : index
    %1246 = vector.load %arg15[%c1_324, %c0_325, %c0_326] : memref<2x1x64xf32, #tpu.memory_space<vmem>>, vector<1x1x64xf32>
    %1247 = vector.shape_cast %1246 : vector<1x1x64xf32> to vector<1x64xf32>
    %c1_327 = arith.constant 1 : index
    %c0_328 = arith.constant 0 : index
    %c0_329 = arith.constant 0 : index
    %1248 = vector.load %arg16[%c1_327, %c0_328, %c0_329] : memref<2x1x64xf32, #tpu.memory_space<vmem>>, vector<1x1x64xf32>
    %1249 = vector.shape_cast %1248 : vector<1x1x64xf32> to vector<1x64xf32>
    %cst_330 = arith.constant dense<0.000000e+00> : vector<2x16xf32>
    %1250 = vector.multi_reduction <add>, %1245, %cst_330 [2] : vector<2x16x64xf32> to vector<2x16xf32>
    %1251 = vector.shape_cast %1250 : vector<2x16xf32> to vector<2x16x1xf32>
    %cst_331 = arith.constant 6.400000e+01 : f32
    %1252 = vector.broadcast %cst_331 : f32 to vector<2x16x1xf32>
    %1253 = arith.divf %1251, %1252 : vector<2x16x1xf32>
    %1254 = vector.broadcast %1253 : vector<2x16x1xf32> to vector<2x16x64xf32>
    %1255 = arith.subf %1245, %1254 : vector<2x16x64xf32>
    %1256 = arith.mulf %1255, %1255 : vector<2x16x64xf32>
    %cst_332 = arith.constant dense<0.000000e+00> : vector<2x16xf32>
    %1257 = vector.multi_reduction <add>, %1256, %cst_332 [2] : vector<2x16x64xf32> to vector<2x16xf32>
    %1258 = vector.shape_cast %1257 : vector<2x16xf32> to vector<2x16x1xf32>
    %cst_333 = arith.constant 6.400000e+01 : f32
    %1259 = vector.broadcast %cst_333 : f32 to vector<2x16x1xf32>
    %1260 = arith.divf %1258, %1259 : vector<2x16x1xf32>
    %1261 = vector.broadcast %1253 : vector<2x16x1xf32> to vector<2x16x64xf32>
    %1262 = arith.subf %1245, %1261 : vector<2x16x64xf32>
    %cst_334 = arith.constant 9.99999974E-6 : f32
    %1263 = vector.broadcast %cst_334 : f32 to vector<2x16x1xf32>
    %1264 = arith.addf %1260, %1263 : vector<2x16x1xf32>
    %1265 = math.rsqrt %1264 : vector<2x16x1xf32>
    %1266 = vector.broadcast %1265 : vector<2x16x1xf32> to vector<2x16x64xf32>
    %1267 = arith.mulf %1262, %1266 : vector<2x16x64xf32>
    %1268 = vector.shape_cast %1247 : vector<1x64xf32> to vector<1x1x64xf32>
    %1269 = vector.broadcast %1268 : vector<1x1x64xf32> to vector<2x16x64xf32>
    %1270 = arith.mulf %1267, %1269 : vector<2x16x64xf32>
    %1271 = vector.shape_cast %1249 : vector<1x64xf32> to vector<1x1x64xf32>
    %1272 = vector.broadcast %1271 : vector<1x1x64xf32> to vector<2x16x64xf32>
    %1273 = arith.addf %1270, %1272 : vector<2x16x64xf32>
    %1274 = vector.broadcast %31 : vector<2x16x1xf32> to vector<2x16x64xf32>
    %1275 = arith.mulf %1273, %1274 : vector<2x16x64xf32>
    %c0_335 = arith.constant 0 : index
    %c0_336 = arith.constant 0 : index
    %c0_337 = arith.constant 0 : index
    %1276 = vector.load %arg17[%c0_335, %c0_336, %c0_337] : memref<2x16x64xf32, #tpu.memory_space<vmem>>, vector<2x16x64xf32>
    tpu.vector_store %arg17[%c0_335, %c0_336, %c0_337], %1275 {strides = array<i32>} : memref<2x16x64xf32, #tpu.memory_space<vmem>>, vector<2x16x64xf32>,
    return
  }
  func.func @transform_0(%arg0: i32, %arg1: memref<2xi32, #tpu.memory_space<smem>>) -> (i32, i32, i32) {
    %c0_i32 = arith.constant 0 : i32
    %c0_i32_0 = arith.constant 0 : i32
    %c0_i32_1 = arith.constant 0 : i32
    return %arg0, %c0_i32, %c0_i32_0 : i32, i32, i32
  }
  func.func @transform_1(%arg0: i32, %arg1: memref<2xi32, #tpu.memory_space<smem>>) -> (i32, i32, i32) {
    %c0_i32 = arith.constant 0 : i32
    %c0_i32_0 = arith.constant 0 : i32
    %c0_i32_1 = arith.constant 0 : i32
    %c0_i32_2 = arith.constant 0 : i32
    return %c0_i32, %c0_i32_0, %c0_i32_1 : i32, i32, i32
  }
  func.func @transform_2(%arg0: i32, %arg1: memref<2xi32, #tpu.memory_space<smem>>) -> (i32, i32, i32) {
    %c0_i32 = arith.constant 0 : i32
    %c0_i32_0 = arith.constant 0 : i32
    %c0_i32_1 = arith.constant 0 : i32
    %c0_i32_2 = arith.constant 0 : i32
    return %c0_i32, %c0_i32_0, %c0_i32_1 : i32, i32, i32
  }
  func.func @transform_3(%arg0: i32, %arg1: memref<2xi32, #tpu.memory_space<smem>>) -> (i32, i32, i32) {
    %c0_i32 = arith.constant 0 : i32
    %c0_i32_0 = arith.constant 0 : i32
    %c0_i32_1 = arith.constant 0 : i32
    %c0_i32_2 = arith.constant 0 : i32
    return %c0_i32, %c0_i32_0, %c0_i32_1 : i32, i32, i32
  }
  func.func @transform_4(%arg0: i32, %arg1: memref<2xi32, #tpu.memory_space<smem>>) -> (i32, i32, i32) {
    %c0_i32 = arith.constant 0 : i32
    %c0_i32_0 = arith.constant 0 : i32
    %c0_i32_1 = arith.constant 0 : i32
    %c0_i32_2 = arith.constant 0 : i32
    return %c0_i32, %c0_i32_0, %c0_i32_1 : i32, i32, i32
  }
  func.func @transform_5(%arg0: i32, %arg1: memref<2xi32, #tpu.memory_space<smem>>) -> (i32, i32, i32) {
    %c0_i32 = arith.constant 0 : i32
    %c0_i32_0 = arith.constant 0 : i32
    %c0_i32_1 = arith.constant 0 : i32
    %c0_i32_2 = arith.constant 0 : i32
    return %c0_i32, %c0_i32_0, %c0_i32_1 : i32, i32, i32
  }
  func.func @transform_6(%arg0: i32, %arg1: memref<2xi32, #tpu.memory_space<smem>>) -> (i32, i32, i32) {
    %c0_i32 = arith.constant 0 : i32
    %c0_i32_0 = arith.constant 0 : i32
    %c0_i32_1 = arith.constant 0 : i32
    %c0_i32_2 = arith.constant 0 : i32
    return %c0_i32, %c0_i32_0, %c0_i32_1 : i32, i32, i32
  }
  func.func @transform_7(%arg0: i32, %arg1: memref<2xi32, #tpu.memory_space<smem>>) -> (i32, i32, i32) {
    %c0_i32 = arith.constant 0 : i32
    %c0_i32_0 = arith.constant 0 : i32
    %c0_i32_1 = arith.constant 0 : i32
    %c0_i32_2 = arith.constant 0 : i32
    return %c0_i32, %c0_i32_0, %c0_i32_1 : i32, i32, i32
  }
  func.func @transform_8(%arg0: i32, %arg1: memref<2xi32, #tpu.memory_space<smem>>) -> (i32, i32, i32) {
    %c0_i32 = arith.constant 0 : i32
    %c0_i32_0 = arith.constant 0 : i32
    %c0_i32_1 = arith.constant 0 : i32
    %c0_i32_2 = arith.constant 0 : i32
    return %c0_i32, %c0_i32_0, %c0_i32_1 : i32, i32, i32
  }
  func.func @transform_9(%arg0: i32, %arg1: memref<2xi32, #tpu.memory_space<smem>>) -> (i32, i32, i32) {
    %c0_i32 = arith.constant 0 : i32
    %c0_i32_0 = arith.constant 0 : i32
    %c0_i32_1 = arith.constant 0 : i32
    %c0_i32_2 = arith.constant 0 : i32
    return %c0_i32, %c0_i32_0, %c0_i32_1 : i32, i32, i32
  }
  func.func @transform_10(%arg0: i32, %arg1: memref<2xi32, #tpu.memory_space<smem>>) -> (i32, i32, i32) {
    %c0_i32 = arith.constant 0 : i32
    %c0_i32_0 = arith.constant 0 : i32
    %c0_i32_1 = arith.constant 0 : i32
    %c0_i32_2 = arith.constant 0 : i32
    return %c0_i32, %c0_i32_0, %c0_i32_1 : i32, i32, i32
  }
  func.func @transform_11(%arg0: i32, %arg1: memref<2xi32, #tpu.memory_space<smem>>) -> (i32, i32, i32) {
    %c0_i32 = arith.constant 0 : i32
    %c0_i32_0 = arith.constant 0 : i32
    %c0_i32_1 = arith.constant 0 : i32
    %c0_i32_2 = arith.constant 0 : i32
    return %c0_i32, %c0_i32_0, %c0_i32_1 : i32, i32, i32
  }
  func.func @transform_12(%arg0: i32, %arg1: memref<2xi32, #tpu.memory_space<smem>>) -> (i32, i32, i32) {
    %c0_i32 = arith.constant 0 : i32
    %c0_i32_0 = arith.constant 0 : i32
    %c0_i32_1 = arith.constant 0 : i32
    %c0_i32_2 = arith.constant 0 : i32
    return %c0_i32, %c0_i32_0, %c0_i32_1 : i32, i32, i32
  }
  func.func @transform_13(%arg0: i32, %arg1: memref<2xi32, #tpu.memory_space<smem>>) -> (i32, i32, i32) {
    %c0_i32 = arith.constant 0 : i32
    %c0_i32_0 = arith.constant 0 : i32
    %c0_i32_1 = arith.constant 0 : i32
    %c0_i32_2 = arith.constant 0 : i32
    return %c0_i32, %c0_i32_0, %c0_i32_1 : i32, i32, i32
  }
  func.func @transform_14(%arg0: i32, %arg1: memref<2xi32, #tpu.memory_space<smem>>) -> (i32, i32, i32) {
    %c0_i32 = arith.constant 0 : i32
    %c0_i32_0 = arith.constant 0 : i32
    %c0_i32_1 = arith.constant 0 : i32
    %c0_i32_2 = arith.constant 0 : i32
    return %c0_i32, %c0_i32_0, %c0_i32_1 : i32, i32, i32
  }
  func.func @transform_15(%arg0: i32, %arg1: memref<2xi32, #tpu.memory_space<smem>>) -> (i32, i32, i32) {
    %c0_i32 = arith.constant 0 : i32
    %c0_i32_0 = arith.constant 0 : i32
    %c0_i32_1 = arith.constant 0 : i32
    return %arg0, %c0_i32, %c0_i32_0 : i32, i32, i32
  }
}

</mosaic_0001>

<llo_original>
// kernel: _lambda_.1
$region0: #{_lambda_.1}
  #allocation0 [shape = 'u32[]', space=smem, size = 0x4, offset = 0x4, fixed_abs, tag = 'smem constant byte address 0x4 - core index']
  #allocation1 [shape = 'u32[144,128]{1,0:T(1,128)}', space=vmem, size = 0x12000, scoped, tag = 'internal scratch']
  #allocation2 [shape = 's32[1]{0}', space=sflag, size = 0x4, scoped, tag = 'scoped memory for _lambda_.1']
  #allocation3 [shape = 'u8[512]{0}', space=smem, size = 0x200, scoped, tag = 'prefetched SMEM operand 0']
  %s0 = inlined_call_operand.vmem [shape: s32[2], index: 0, kind: input, shape index: {}]
  %s1 = inlined_call_operand.vmem [shape: f32[2,16,64], index: 1, kind: input, shape index: {}]
  %s2 = inlined_call_operand.vmem [shape: bf16[2,64,192], index: 2, kind: input, shape index: {}]
  %s3 = inlined_call_operand.vmem [shape: f32[2,1,192], index: 3, kind: input, shape index: {}]
  %s4 = inlined_call_operand.vmem [shape: bf16[2,64,64], index: 4, kind: input, shape index: {}]
  %s5 = inlined_call_operand.vmem [shape: f32[2,1,64], index: 5, kind: input, shape index: {}, may-alias: {5,9,13,15}]
  %s6 = inlined_call_operand.vmem [shape: f32[2,32,9], index: 6, kind: input, shape index: {}]
  %s7 = inlined_call_operand.vmem [shape: f32[2,9,32], index: 7, kind: input, shape index: {}]
  %s8 = inlined_call_operand.vmem [shape: f32[2,1,64], index: 8, kind: input, shape index: {}, may-alias: {8,14}]
  %s9 = inlined_call_operand.vmem [shape: f32[2,1,64], index: 9, kind: input, shape index: {}, may-alias: {5,9,13,15}]
  %s10 = inlined_call_operand.vmem [shape: bf16[2,192,128], index: 10, kind: input, shape index: {}]
  %s11 = inlined_call_operand.vmem [shape: f32[2,1,128], index: 11, kind: input, shape index: {}]
  %s12 = inlined_call_operand.vmem [shape: bf16[2,384,64], index: 12, kind: input, shape index: {}]
  %s13 = inlined_call_operand.vmem [shape: f32[2,1,64], index: 13, kind: input, shape index: {}, may-alias: {5,9,13,15}]
  %s14 = inlined_call_operand.vmem [shape: f32[2,1,64], index: 14, kind: input, shape index: {}, may-alias: {8,14}]
  %s15 = inlined_call_operand.vmem [shape: f32[2,1,64], index: 15, kind: input, shape index: {}, may-alias: {5,9,13,15}]
  %s16 = inlined_call_operand.vmem [shape: f32[2,16,64], index: 16, kind: output, shape index: {}]
  %s17 = sld [smem:[#allocation0]]
  $region70: #{_lambda_.1} parent=0
    _
  %s19 = ssub.s32 1, %s17
  %s20 = scalar_select 0, %s19, %s17
  %s21 = sshll.u32 %s0, 4
  %s22 = int_to_ptr.vmem [resolvable:$true] %s21
  %24 = dma.vmem_to_smem %s22, 16, [#allocation3], [#allocation2]
  %25 = dma.done [#allocation2], 16
  %26 = sfence
  // Predicated region
  $region2: #{_lambda_.1} parent=0 // pred_check
    _
  $region3: #{_lambda_.1} parent=0 // pred_check_branch
    %28 = sbr.rel (0) target = $region5
  $region4: #{_lambda_.1} parent=0 // pred_region
    _
  $region5: #{_lambda_.1} parent=0 // pred_fallthru
    _
  // Predicated region
  $region6: #{_lambda_.1} parent=0 // pred_check
    _
  $region7: #{_lambda_.1} parent=0 // pred_check_branch
    %30 = sbr.rel (0) target = $region9
  $region8: #{_lambda_.1} parent=0 // pred_region
    _
  $region9: #{_lambda_.1} parent=0 // pred_fallthru
    _
  // Predicated region
  $region10: #{_lambda_.1} parent=0 // pred_check
    _
  $region11: #{_lambda_.1} parent=0 // pred_check_branch
    %32 = sbr.rel (0) target = $region13
  $region12: #{_lambda_.1} parent=0 // pred_region
    _
  $region13: #{_lambda_.1} parent=0 // pred_fallthru
    _
  // Predicated region
  $region14: #{_lambda_.1} parent=0 // pred_check
    _
  $region15: #{_lambda_.1} parent=0 // pred_check_branch
    %34 = sbr.rel (0) target = $region17
  $region16: #{_lambda_.1} parent=0 // pred_region
    _
  $region17: #{_lambda_.1} parent=0 // pred_fallthru
    _
  // Predicated region
  $region18: #{_lambda_.1} parent=0 // pred_check
    _
  $region19: #{_lambda_.1} parent=0 // pred_check_branch
    %36 = sbr.rel (0) target = $region21
  $region20: #{_lambda_.1} parent=0 // pred_region
    _
  $region21: #{_lambda_.1} parent=0 // pred_fallthru
    _
  // Predicated region
  $region22: #{_lambda_.1} parent=0 // pred_check
    _
  $region23: #{_lambda_.1} parent=0 // pred_check_branch
    %38 = sbr.rel (0) target = $region25
  $region24: #{_lambda_.1} parent=0 // pred_region
    _
  $region25: #{_lambda_.1} parent=0 // pred_fallthru
    _
  // Predicated region
  $region26: #{_lambda_.1} parent=0 // pred_check
    _
  $region27: #{_lambda_.1} parent=0 // pred_check_branch
    %40 = sbr.rel (0) target = $region29
  $region28: #{_lambda_.1} parent=0 // pred_region
    _
  $region29: #{_lambda_.1} parent=0 // pred_fallthru
    _
  // Predicated region
  $region30: #{_lambda_.1} parent=0 // pred_check
    _
  $region31: #{_lambda_.1} parent=0 // pred_check_branch
    %42 = sbr.rel (0) target = $region33
  $region32: #{_lambda_.1} parent=0 // pred_region
    _
  $region33: #{_lambda_.1} parent=0 // pred_fallthru
    _
  // Predicated region
  $region34: #{_lambda_.1} parent=0 // pred_check
    _
  $region35: #{_lambda_.1} parent=0 // pred_check_branch
    %44 = sbr.rel (0) target = $region37
  $region36: #{_lambda_.1} parent=0 // pred_region
    _
  $region37: #{_lambda_.1} parent=0 // pred_fallthru
    _
  // Predicated region
  $region38: #{_lambda_.1} parent=0 // pred_check
    _
  $region39: #{_lambda_.1} parent=0 // pred_check_branch
    %46 = sbr.rel (0) target = $region41
  $region40: #{_lambda_.1} parent=0 // pred_region
    _
  $region41: #{_lambda_.1} parent=0 // pred_fallthru
    _
  // Predicated region
  $region42: #{_lambda_.1} parent=0 // pred_check
    _
  $region43: #{_lambda_.1} parent=0 // pred_check_branch
    %48 = sbr.rel (0) target = $region45
  $region44: #{_lambda_.1} parent=0 // pred_region
    _
  $region45: #{_lambda_.1} parent=0 // pred_fallthru
    _
  // Predicated region
  $region46: #{_lambda_.1} parent=0 // pred_check
    _
  $region47: #{_lambda_.1} parent=0 // pred_check_branch
    %50 = sbr.rel (0) target = $region49
  $region48: #{_lambda_.1} parent=0 // pred_region
    _
  $region49: #{_lambda_.1} parent=0 // pred_fallthru
    _
  // Predicated region
  $region50: #{_lambda_.1} parent=0 // pred_check
    _
  $region51: #{_lambda_.1} parent=0 // pred_check_branch
    %52 = sbr.rel (0) target = $region53
  $region52: #{_lambda_.1} parent=0 // pred_region
    _
  $region53: #{_lambda_.1} parent=0 // pred_fallthru
    _
  // Predicated region
  $region54: #{_lambda_.1} parent=0 // pred_check
    _
  $region55: #{_lambda_.1} parent=0 // pred_check_branch
    %54 = sbr.rel (0) target = $region57
  $region56: #{_lambda_.1} parent=0 // pred_region
    _
  $region57: #{_lambda_.1} parent=0 // pred_fallthru
    _
  // Predicated region
  $region58: #{_lambda_.1} parent=0 // pred_check
    _
  $region59: #{_lambda_.1} parent=0 // pred_check_branch
    %56 = sbr.rel (0) target = $region61
  $region60: #{_lambda_.1} parent=0 // pred_region
    _
  $region61: #{_lambda_.1} parent=0 // pred_fallthru
    _
  %s58 = smul.u32 0, 2
  %v59 = vlaneseq
  %v60 = vshrl.u32 %v59, 7
  %v61 = vadd.s32 %v60, 8
  %v62 = vlaneseq
  %v63 = vand.u32 %v62, 127
  %s64 = sld [smem:[#allocation3 + %s58]]
  %v65 = vstv %s64
  %s66 = sadd.s32 %s58, 1
  %s67 = sld [smem:[#allocation3 + %s66]]
  %v68 = vstv %s67
  %vm69 = vcmp.lt.s32.totalorder %v60, %v65
  %vm70 = vcmp.lt.s32.totalorder %v61, %v65
  %vm71 = vcmp.lt.s32.totalorder %v60, %v68
  %vm72 = vcmp.lt.s32.totalorder %v61, %v68
  %v73 = vsel %vm69, 1, 0
  %v74 = vsel %vm70, 1, 0
  %v75 = vsel %vm71, 1, 0
  %v76 = vsel %vm72, 1, 0
  %v77 = vcvt.s32.f32 %v73
  %v78 = vcvt.s32.f32 %v74
  %v79 = vcvt.s32.f32 %v75
  %v80 = vcvt.s32.f32 %v76
  %vm81 = vcmp.lt.s32.totalorder %v63, %v65
  %vm82 = vcmp.lt.s32.totalorder %v63, %v68
  %v83 = vsel %vm81, 1, 0
  %v84 = vsel %vm82, 1, 0
  %v85 = vcvt.s32.f32 %v83
  %v86 = vcvt.s32.f32 %v84
  %v87 = vmul.f32 %v77, %v85
  %v88 = vmul.f32 %v78, %v85
  %v89 = vmul.f32 %v79, %v86
  %v90 = vmul.f32 %v80, %v86
  %v91 = vsub.s32 %v63, %v60
  %v92 = vsub.s32 %v63, %v61
  %v93 = vadd.s32 %v91, 4
  %v94 = vadd.s32 %v92, 4
  %v95 = vld [vmem:[%s1] sm:$0xff]
  %v96 = vld [vmem:[%s1 + $0x8] sm:$0xff]
  %v97 = vld [vmem:[%s1 + $0x10] sm:$0xff]
  %v98 = vld [vmem:[%s1 + $0x18] sm:$0xff]
  %v99 = vmul.f32 %v95, %v77
  %v100 = vmul.f32 %v96, %v78
  %v101 = vmul.f32 %v97, %v79
  %v102 = vmul.f32 %v98, %v80
  %v103 = vpack.c.bf16 %v100, %v99
  %v104 = vpack.c.bf16 %v102, %v101
  %v105 = vld [vmem:[%s2] sm:$0xff]
  %v106 = vld [vmem:[%s2 + $0x8] sm:$0xff]
  %v107 = vld [vmem:[%s2 + $0x10] sm:$0xff]
  %v108 = vld [vmem:[%s2 + $0x18] sm:$0xff]
  %v109 = vld [vmem:[%s2 + $0x20] sm:$0xff]
  %v110 = vld [vmem:[%s2 + $0x28] sm:$0xff]
  %v111 = vld [vmem:[%s2 + $0x30] sm:$0xff]
  %v112 = vld [vmem:[%s2 + $0x38] sm:$0xff]
  %v113 = vld [vmem:[%s3] sm:$0x3]
  %v115 = vlaneseq
  %v116 = vshrl.u32 %v115, 7
  %v117 = vsub.s32 0, %v116
  %v118 = vrot.slane %v113, %v117
  %v119 = vlaneseq
  %v120 = vshrl.u32 %v119, 7
  %v121 = vsub.s32 1, %v120
  %v122 = vrot.slane %v113, %v121
  %v133 = vunpack.c.l.b16 %v105
  %v134 = vunpack.c.h.b16 %v105
  %v135 = vunpack.c.l.b16 %v106
  %v136 = vunpack.c.h.b16 %v106
  %v137 = vunpack.c.l.b16 %v107
  %v138 = vunpack.c.h.b16 %v107
  %v139 = vunpack.c.l.b16 %v108
  %v140 = vunpack.c.h.b16 %v108
  %v141 = vunpack.c.l.b16 %v109
  %v142 = vunpack.c.h.b16 %v109
  %v143 = vunpack.c.l.b16 %v110
  %v144 = vunpack.c.h.b16 %v110
  %v145 = vunpack.c.l.b16 %v111
  %v146 = vunpack.c.h.b16 %v111
  %v147 = vunpack.c.l.b16 %v112
  %v148 = vunpack.c.h.b16 %v112
  %v149 = vpack.c.b16 %v135, %v133
  %v150 = vpack.c.b16 %v136, %v134
  %v151 = vpack.c.b16 %v139, %v137
  %v152 = vpack.c.b16 %v140, %v138
  %v153 = vpack.c.b16 %v143, %v141
  %v154 = vpack.c.b16 %v144, %v142
  %v155 = vpack.c.b16 %v147, %v145
  %v156 = vpack.c.b16 %v148, %v146
  %vm165 = vcmask 523264
  %v167 = vsel %vm165, %v103, 0
  %v170 = vsel %vm165, %v104, 0
  %172 = vmatprep.subr.bf16.mxu0 0
  %173 = vmatpush1.bf16.msra.mxu0 0
  %174 = vmatprep.subr.bf16.mxu0 0
  %175 = vmatpush1.bf16.msra.mxu0 0
  %176 = vmatprep.subr.bf16.mxu0 0
  %177 = vmatpush1.bf16.msra.mxu0 0
  %178 = vmatprep.subr.bf16.mxu0 0
  %179 = vmatpush1.bf16.msra.mxu0 0
  %180 = vmatprep.subr.bf16.mxu0 %v156
  %181 = vmatpush1.bf16.msra.mxu0 %v155
  %182 = vmatprep.subr.bf16.mxu0 %v154
  %183 = vmatpush1.bf16.msra.mxu0 %v153
  %184 = vmatprep.subr.bf16.mxu0 %v152
  %185 = vmatpush1.bf16.msra.mxu0 %v151
  %186 = vmatprep.subr.bf16.mxu0 %v150
  %187 = vmatpush1.bf16.msra.mxu0 %v149
  %188 = vmatprep.subr.bf16.mxu0 0
  %189 = vmatpush2.bf16.msra.mxu0 0
  %190 = vmatprep.subr.bf16.mxu0 0
  %191 = vmatpush2.bf16.msra.mxu0 0
  %192 = vmatprep.subr.bf16.mxu0 0
  %193 = vmatpush2.bf16.msra.mxu0 0
  %194 = vmatprep.subr.bf16.mxu0 0
  %195 = vmatpush2.bf16.msra.mxu0 0
  %196 = vmatprep.subr.bf16.mxu0 0
  %197 = vmatpush2.bf16.msra.mxu0 0
  %198 = vmatprep.subr.bf16.mxu0 0
  %199 = vmatpush2.bf16.msra.mxu0 0
  %200 = vmatprep.subr.bf16.mxu0 0
  %201 = vmatpush2.bf16.msra.mxu0 0
  %202 = vmatprep.subr.bf16.mxu0 0
  %203 = vmatpush2.bf16.msra.mxu0 0
  %204 = vmatprep.mubr.bf16.mxu0 0
  %205 = vmatmul.mubr.bf16.gmra.mxu0 %v167
  %v206 = vpop.f32.mrf.mxu0
  %v207 = vadd.f32 %v118, %v206
  %v208 = vpop.f32.mrf.mxu0
  %v209 = vadd.f32 %v122, %v208
  %v210 = vpop.f32.mrf.mxu0
  %v211 = vadd.f32 %v118, %v210
  %v212 = vpop.f32.mrf.mxu0
  %v213 = vadd.f32 %v122, %v212
  %214 = vmatprep.mubr.bf16.mxu0 0
  %215 = vmatmul.mubr.bf16.gmra.mxu0 %v170
  %v216 = vpop.f32.mrf.mxu0
  %v217 = vadd.f32 %v118, %v216
  %v218 = vpop.f32.mrf.mxu0
  %v219 = vadd.f32 %v122, %v218
  %v220 = vpop.f32.mrf.mxu0
  %v221 = vadd.f32 %v118, %v220
  %v222 = vpop.f32.mrf.mxu0
  %v223 = vadd.f32 %v122, %v222
  %224 = vdwg.mxu0
  %v225 = vld [vmem:[%s6] sm:$0xff]
  %v226 = vld [vmem:[%s6 + $0x8] sm:$0xff]
  %v227 = vld [vmem:[%s6 + $0x10] sm:$0xff]
  %v228 = vld [vmem:[%s6 + $0x18] sm:$0xff]
  %v229 = vld [vmem:[%s7] sm:$0xff]
  %v230 = vld [vmem:[%s7 + $0x8] sm:$0x1]
  %v231 = vmul.f32 %v207, 0.17677669
  %v232 = vmul.f32 %v211, 0.17677669
  %v233 = vmul.f32 %v217, 0.17677669
  %v234 = vmul.f32 %v221, 0.17677669
  %v235 = vpack.c.bf16 %v232, %v231
  %v236 = vpack.c.bf16 %v234, %v233
  %v237 = vpack.c.bf16 %v211, %v207
  %v238 = vpack.c.bf16 %v221, %v217
  %vm239 = vcmask 261120
  %v241 = vsel %vm239, %v231, 0
  %v244 = vsel %vm239, %v232, 0
  %v247 = vsel %vm239, %v233, 0
  %v250 = vsel %vm239, %v234, 0
  %252 = vmatprep.subr.mxu0 0.0
  %253 = vmatpush1.msra.mxu0 0.0
  %254 = vmatprep.subr.mxu0 0.0
  %255 = vmatpush1.msra.mxu0 0.0
  %256 = vmatprep.subr.mxu0 0.0
  %257 = vmatpush1.msra.mxu0 0.0
  %258 = vmatprep.subr.mxu0 0.0
  %259 = vmatpush1.msra.mxu0 0.0
  %260 = vmatprep.subr.mxu0 0.0
  %261 = vmatpush1.msra.mxu0 0.0
  %262 = vmatprep.subr.mxu0 0.0
  %263 = vmatpush1.msra.mxu0 0.0
  %264 = vmatprep.subr.mxu0 0.0
  %265 = vmatpush1.msra.mxu0 0.0
  %266 = vmatprep.subr.mxu0 0.0
  %267 = vmatpush1.msra.mxu0 0.0
  %268 = vmatprep.subr.mxu0 0.0
  %269 = vmatpush1.msra.mxu0 0.0
  %270 = vmatprep.subr.mxu0 0.0
  %271 = vmatpush1.msra.mxu0 0.0
  %272 = vmatprep.subr.mxu0 0.0
  %273 = vmatpush1.msra.mxu0 0.0
  %274 = vmatprep.subr.mxu0 0.0
  %275 = vmatpush1.msra.mxu0 0.0
  %276 = vmatprep.subr.mxu0 0.0
  %277 = vmatpush1.msra.mxu0 %v228
  %278 = vmatprep.subr.mxu0 0.0
  %279 = vmatpush1.msra.mxu0 %v227
  %280 = vmatprep.subr.mxu0 0.0
  %281 = vmatpush1.msra.mxu0 %v226
  %282 = vmatprep.subr.mxu0 0.0
  %283 = vmatpush1.msra.mxu0 %v225
  %284 = vmatprep.subr.mxu0 0.0
  %285 = vmatpush2.msra.mxu0 0.0
  %286 = vmatprep.subr.mxu0 0.0
  %287 = vmatpush2.msra.mxu0 0.0
  %288 = vmatprep.subr.mxu0 0.0
  %289 = vmatpush2.msra.mxu0 0.0
  %290 = vmatprep.subr.mxu0 0.0
  %291 = vmatpush2.msra.mxu0 0.0
  %292 = vmatprep.subr.mxu0 0.0
  %293 = vmatpush2.msra.mxu0 0.0
  %294 = vmatprep.subr.mxu0 0.0
  %295 = vmatpush2.msra.mxu0 0.0
  %296 = vmatprep.subr.mxu0 0.0
  %297 = vmatpush2.msra.mxu0 0.0
  %298 = vmatprep.subr.mxu0 0.0
  %299 = vmatpush2.msra.mxu0 0.0
  %300 = vmatprep.subr.mxu0 0.0
  %301 = vmatpush2.msra.mxu0 0.0
  %302 = vmatprep.subr.mxu0 0.0
  %303 = vmatpush2.msra.mxu0 0.0
  %304 = vmatprep.subr.mxu0 0.0
  %305 = vmatpush2.msra.mxu0 0.0
  %306 = vmatprep.subr.mxu0 0.0
  %307 = vmatpush2.msra.mxu0 0.0
  %308 = vmatprep.subr.mxu0 0.0
  %309 = vmatpush2.msra.mxu0 0.0
  %310 = vmatprep.subr.mxu0 0.0
  %311 = vmatpush2.msra.mxu0 0.0
  %312 = vmatprep.subr.mxu0 0.0
  %313 = vmatpush2.msra.mxu0 0.0
  %314 = vmatprep.subr.mxu0 0.0
  %315 = vmatpush2.msra.mxu0 0.0
  %316 = vmatprep.mubr.f32.mxu0 0.0
  %317 = vmatmul.mubr.f32.gmra.mxu0 %v241
  %v318 = vpop.f32.mrf.mxu0
  %v319 = vadd.f32 0.0, %v318
  %v320 = vpop.f32.mrf.mxu0
  %321 = vmatprep.mubr.f32.mxu0 0.0
  %322 = vmatmul.mubr.f32.gmra.mxu0 %v244
  %v323 = vpop.f32.mrf.mxu0
  %v324 = vadd.f32 0.0, %v323
  %v325 = vpop.f32.mrf.mxu0
  %326 = vmatprep.mubr.f32.mxu0 0.0
  %327 = vmatmul.mubr.f32.gmra.mxu0 %v247
  %v328 = vpop.f32.mrf.mxu0
  %v329 = vadd.f32 0.0, %v328
  %v330 = vpop.f32.mrf.mxu0
  %331 = vmatprep.mubr.f32.mxu0 0.0
  %332 = vmatmul.mubr.f32.gmra.mxu0 %v250
  %v333 = vpop.f32.mrf.mxu0
  %v334 = vadd.f32 0.0, %v333
  %v335 = vpop.f32.mrf.mxu0
  %336 = vdwg.mxu0
  %vm337 = vcmp.eq.s32.totalorder %v93, 0
  %vm338 = vcmp.eq.s32.totalorder %v94, 0
  %v339 = vsel %vm337, 1, 0
  %v340 = vsel %vm338, 1, 0
  %vm341 = vcmp.eq.s32.totalorder %v339, 1
  %vm342 = vcmp.eq.s32.totalorder %v340, 1
  %344 = vset.pattern.permute.xlu0 0
  %345 = vperm.xlu0 %344, %v319
  %v346 = vpop.permute.xlu0 %345
  %349 = vset.pattern.permute.xlu0 0
  %350 = vperm.xlu0 %349, %v324
  %v351 = vpop.permute.xlu0 %350
  %354 = vset.pattern.permute.xlu0 0
  %355 = vperm.xlu0 %354, %v329
  %v356 = vpop.permute.xlu0 %355
  %359 = vset.pattern.permute.xlu0 0
  %360 = vperm.xlu0 %359, %v334
  %v361 = vpop.permute.xlu0 %360
  %v363 = vsel %vm341, %v346, 0.0
  %v364 = vsel %vm342, %v351, 0.0
  %v365 = vsel %vm341, %v356, 0.0
  %v366 = vsel %vm342, %v361, 0.0
  %368 = vrot.lane.b32.xlu0 %v237, 64
  %v369 = vpop.permute.xlu0 %368
  %v371 = vsel %vm239, %v235, 0
  %v374 = vsel %vm239, %v369, 0
  %376 = vmatprep.subr.bf16.mxu0 0
  %377 = vmatpush1.bf16.xpose.msra.mxu0 0
  %378 = vmatprep.subr.bf16.mxu0 0
  %379 = vmatpush1.bf16.xpose.msra.mxu0 0
  %380 = vmatprep.subr.bf16.mxu0 0
  %381 = vmatpush1.bf16.xpose.msra.mxu0 0
  %382 = vmatprep.subr.bf16.mxu0 0
  %383 = vmatpush1.bf16.xpose.msra.mxu0 0
  %384 = vmatprep.subr.bf16.mxu0 0
  %385 = vmatpush1.bf16.xpose.msra.mxu0 0
  %386 = vmatprep.subr.bf16.mxu0 0
  %387 = vmatpush1.bf16.xpose.msra.mxu0 0
  %388 = vmatprep.subr.bf16.mxu0 0
  %389 = vmatpush1.bf16.xpose.msra.mxu0 0
  %390 = vmatprep.subr.bf16.mxu0 0
  %391 = vmatpush1.bf16.xpose.msra.mxu0 %v374
  %392 = vmatprep.subr.bf16.mxu0 0
  %393 = vmatpush2.bf16.xpose.msra.mxu0 0
  %394 = vmatprep.subr.bf16.mxu0 0
  %395 = vmatpush2.bf16.xpose.msra.mxu0 0
  %396 = vmatprep.subr.bf16.mxu0 0
  %397 = vmatpush2.bf16.xpose.msra.mxu0 0
  %398 = vmatprep.subr.bf16.mxu0 0
  %399 = vmatpush2.bf16.xpose.msra.mxu0 0
  %400 = vmatprep.subr.bf16.mxu0 0
  %401 = vmatpush2.bf16.xpose.msra.mxu0 0
  %402 = vmatprep.subr.bf16.mxu0 0
  %403 = vmatpush2.bf16.xpose.msra.mxu0 0
  %404 = vmatprep.subr.bf16.mxu0 0
  %405 = vmatpush2.bf16.xpose.msra.mxu0 0
  %406 = vmatprep.subr.bf16.mxu0 0
  %407 = vmatpush2.bf16.xpose.msra.mxu0 0
  %408 = vmatprep.mubr.bf16.mxu0 0
  %409 = vmatmul.mubr.bf16.gmra.mxu0 %v371
  %v410 = vpop.f32.mrf.mxu0
  %v411 = vadd.f32 %v363, %v410
  %v412 = vpop.f32.mrf.mxu0
  %v413 = vpop.f32.mrf.mxu0
  %v414 = vadd.f32 %v364, %v413
  %v415 = vpop.f32.mrf.mxu0
  %416 = vdwg.mxu0
  %418 = vrot.lane.b32.xlu0 %v238, 64
  %v419 = vpop.permute.xlu0 %418
  %v421 = vsel %vm239, %v236, 0
  %v424 = vsel %vm239, %v419, 0
  %426 = vmatprep.subr.bf16.mxu0 0
  %427 = vmatpush1.bf16.xpose.msra.mxu0 0
  %428 = vmatprep.subr.bf16.mxu0 0
  %429 = vmatpush1.bf16.xpose.msra.mxu0 0
  %430 = vmatprep.subr.bf16.mxu0 0
  %431 = vmatpush1.bf16.xpose.msra.mxu0 0
  %432 = vmatprep.subr.bf16.mxu0 0
  %433 = vmatpush1.bf16.xpose.msra.mxu0 0
  %434 = vmatprep.subr.bf16.mxu0 0
  %435 = vmatpush1.bf16.xpose.msra.mxu0 0
  %436 = vmatprep.subr.bf16.mxu0 0
  %437 = vmatpush1.bf16.xpose.msra.mxu0 0
  %438 = vmatprep.subr.bf16.mxu0 0
  %439 = vmatpush1.bf16.xpose.msra.mxu0 0
  %440 = vmatprep.subr.bf16.mxu0 0
  %441 = vmatpush1.bf16.xpose.msra.mxu0 %v424
  %442 = vmatprep.subr.bf16.mxu0 0
  %443 = vmatpush2.bf16.xpose.msra.mxu0 0
  %444 = vmatprep.subr.bf16.mxu0 0
  %445 = vmatpush2.bf16.xpose.msra.mxu0 0
  %446 = vmatprep.subr.bf16.mxu0 0
  %447 = vmatpush2.bf16.xpose.msra.mxu0 0
  %448 = vmatprep.subr.bf16.mxu0 0
  %449 = vmatpush2.bf16.xpose.msra.mxu0 0
  %450 = vmatprep.subr.bf16.mxu0 0
  %451 = vmatpush2.bf16.xpose.msra.mxu0 0
  %452 = vmatprep.subr.bf16.mxu0 0
  %453 = vmatpush2.bf16.xpose.msra.mxu0 0
  %454 = vmatprep.subr.bf16.mxu0 0
  %455 = vmatpush2.bf16.xpose.msra.mxu0 0
  %456 = vmatprep.subr.bf16.mxu0 0
  %457 = vmatpush2.bf16.xpose.msra.mxu0 0
  %458 = vmatprep.mubr.bf16.mxu0 0
  %459 = vmatmul.mubr.bf16.gmra.mxu0 %v421
  %v460 = vpop.f32.mrf.mxu0
  %v461 = vadd.f32 %v365, %v460
  %v462 = vpop.f32.mrf.mxu0
  %v463 = vpop.f32.mrf.mxu0
  %v464 = vadd.f32 %v366, %v463
  %v465 = vpop.f32.mrf.mxu0
  %466 = vdwg.mxu0
  %vm467 = vcmp.eq.s32.totalorder %v93, 1
  %vm468 = vcmp.eq.s32.totalorder %v94, 1
  %v469 = vsel %vm467, 1, 0
  %v470 = vsel %vm468, 1, 0
  %vm471 = vcmp.eq.s32.totalorder %v469, 1
  %vm472 = vcmp.eq.s32.totalorder %v470, 1
  %473 = vset.pattern.permute.xlu0 1
  %474 = vperm.xlu0 %473, %v319
  %v475 = vpop.permute.xlu0 %474
  %477 = vset.pattern.permute.xlu0 1
  %478 = vperm.xlu0 %477, %v324
  %v479 = vpop.permute.xlu0 %478
  %481 = vset.pattern.permute.xlu0 1
  %482 = vperm.xlu0 %481, %v329
  %v483 = vpop.permute.xlu0 %482
  %485 = vset.pattern.permute.xlu0 1
  %486 = vperm.xlu0 %485, %v334
  %v487 = vpop.permute.xlu0 %486
  %v489 = vsel %vm471, %v475, 0.0
  %v490 = vsel %vm472, %v479, 0.0
  %v491 = vsel %vm471, %v483, 0.0
  %v492 = vsel %vm472, %v487, 0.0
  %v493 = vadd.f32 %v411, %v489
  %v494 = vadd.f32 %v414, %v490
  %v495 = vadd.f32 %v461, %v491
  %v496 = vadd.f32 %v464, %v492
  %vm497 = vcmp.eq.s32.totalorder %v93, 2
  %vm498 = vcmp.eq.s32.totalorder %v94, 2
  %v499 = vsel %vm497, 1, 0
  %v500 = vsel %vm498, 1, 0
  %vm501 = vcmp.eq.s32.totalorder %v499, 1
  %vm502 = vcmp.eq.s32.totalorder %v500, 1
  %503 = vset.pattern.permute.xlu0 2
  %504 = vperm.xlu0 %503, %v319
  %v505 = vpop.permute.xlu0 %504
  %507 = vset.pattern.permute.xlu0 2
  %508 = vperm.xlu0 %507, %v324
  %v509 = vpop.permute.xlu0 %508
  %511 = vset.pattern.permute.xlu0 2
  %512 = vperm.xlu0 %511, %v329
  %v513 = vpop.permute.xlu0 %512
  %515 = vset.pattern.permute.xlu0 2
  %516 = vperm.xlu0 %515, %v334
  %v517 = vpop.permute.xlu0 %516
  %v519 = vsel %vm501, %v505, 0.0
  %v520 = vsel %vm502, %v509, 0.0
  %v521 = vsel %vm501, %v513, 0.0
  %v522 = vsel %vm502, %v517, 0.0
  %v523 = vadd.f32 %v493, %v519
  %v524 = vadd.f32 %v494, %v520
  %v525 = vadd.f32 %v495, %v521
  %v526 = vadd.f32 %v496, %v522
  %vm527 = vcmp.eq.s32.totalorder %v93, 3
  %vm528 = vcmp.eq.s32.totalorder %v94, 3
  %v529 = vsel %vm527, 1, 0
  %v530 = vsel %vm528, 1, 0
  %vm531 = vcmp.eq.s32.totalorder %v529, 1
  %vm532 = vcmp.eq.s32.totalorder %v530, 1
  %533 = vset.pattern.permute.xlu0 3
  %534 = vperm.xlu0 %533, %v319
  %v535 = vpop.permute.xlu0 %534
  %537 = vset.pattern.permute.xlu0 3
  %538 = vperm.xlu0 %537, %v324
  %v539 = vpop.permute.xlu0 %538
  %541 = vset.pattern.permute.xlu0 3
  %542 = vperm.xlu0 %541, %v329
  %v543 = vpop.permute.xlu0 %542
  %545 = vset.pattern.permute.xlu0 3
  %546 = vperm.xlu0 %545, %v334
  %v547 = vpop.permute.xlu0 %546
  %v549 = vsel %vm531, %v535, 0.0
  %v550 = vsel %vm532, %v539, 0.0
  %v551 = vsel %vm531, %v543, 0.0
  %v552 = vsel %vm532, %v547, 0.0
  %v553 = vadd.f32 %v523, %v549
  %v554 = vadd.f32 %v524, %v550
  %v555 = vadd.f32 %v525, %v551
  %v556 = vadd.f32 %v526, %v552
  %vm557 = vcmp.eq.s32.totalorder %v93, 4
  %vm558 = vcmp.eq.s32.totalorder %v94, 4
  %v559 = vsel %vm557, 1, 0
  %v560 = vsel %vm558, 1, 0
  %vm561 = vcmp.eq.s32.totalorder %v559, 1
  %vm562 = vcmp.eq.s32.totalorder %v560, 1
  %563 = vset.pattern.permute.xlu0 4
  %564 = vperm.xlu0 %563, %v319
  %v565 = vpop.permute.xlu0 %564
  %567 = vset.pattern.permute.xlu0 4
  %568 = vperm.xlu0 %567, %v324
  %v569 = vpop.permute.xlu0 %568
  %571 = vset.pattern.permute.xlu0 4
  %572 = vperm.xlu0 %571, %v329
  %v573 = vpop.permute.xlu0 %572
  %575 = vset.pattern.permute.xlu0 4
  %576 = vperm.xlu0 %575, %v334
  %v577 = vpop.permute.xlu0 %576
  %v579 = vsel %vm561, %v565, 0.0
  %v580 = vsel %vm562, %v569, 0.0
  %v581 = vsel %vm561, %v573, 0.0
  %v582 = vsel %vm562, %v577, 0.0
  %v583 = vadd.f32 %v553, %v579
  %v584 = vadd.f32 %v554, %v580
  %v585 = vadd.f32 %v555, %v581
  %v586 = vadd.f32 %v556, %v582
  %vm587 = vcmp.eq.s32.totalorder %v93, 5
  %vm588 = vcmp.eq.s32.totalorder %v94, 5
  %v589 = vsel %vm587, 1, 0
  %v590 = vsel %vm588, 1, 0
  %vm591 = vcmp.eq.s32.totalorder %v589, 1
  %vm592 = vcmp.eq.s32.totalorder %v590, 1
  %593 = vset.pattern.permute.xlu0 5
  %594 = vperm.xlu0 %593, %v319
  %v595 = vpop.permute.xlu0 %594
  %597 = vset.pattern.permute.xlu0 5
  %598 = vperm.xlu0 %597, %v324
  %v599 = vpop.permute.xlu0 %598
  %601 = vset.pattern.permute.xlu0 5
  %602 = vperm.xlu0 %601, %v329
  %v603 = vpop.permute.xlu0 %602
  %605 = vset.pattern.permute.xlu0 5
  %606 = vperm.xlu0 %605, %v334
  %v607 = vpop.permute.xlu0 %606
  %v609 = vsel %vm591, %v595, 0.0
  %v610 = vsel %vm592, %v599, 0.0
  %v611 = vsel %vm591, %v603, 0.0
  %v612 = vsel %vm592, %v607, 0.0
  %v613 = vadd.f32 %v583, %v609
  %v614 = vadd.f32 %v584, %v610
  %v615 = vadd.f32 %v585, %v611
  %v616 = vadd.f32 %v586, %v612
  %vm617 = vcmp.eq.s32.totalorder %v93, 6
  %vm618 = vcmp.eq.s32.totalorder %v94, 6
  %v619 = vsel %vm617, 1, 0
  %v620 = vsel %vm618, 1, 0
  %vm621 = vcmp.eq.s32.totalorder %v619, 1
  %vm622 = vcmp.eq.s32.totalorder %v620, 1
  %623 = vset.pattern.permute.xlu0 6
  %624 = vperm.xlu0 %623, %v319
  %v625 = vpop.permute.xlu0 %624
  %627 = vset.pattern.permute.xlu0 6
  %628 = vperm.xlu0 %627, %v324
  %v629 = vpop.permute.xlu0 %628
  %631 = vset.pattern.permute.xlu0 6
  %632 = vperm.xlu0 %631, %v329
  %v633 = vpop.permute.xlu0 %632
  %635 = vset.pattern.permute.xlu0 6
  %636 = vperm.xlu0 %635, %v334
  %v637 = vpop.permute.xlu0 %636
  %v639 = vsel %vm621, %v625, 0.0
  %v640 = vsel %vm622, %v629, 0.0
  %v641 = vsel %vm621, %v633, 0.0
  %v642 = vsel %vm622, %v637, 0.0
  %v643 = vadd.f32 %v613, %v639
  %v644 = vadd.f32 %v614, %v640
  %v645 = vadd.f32 %v615, %v641
  %v646 = vadd.f32 %v616, %v642
  %vm647 = vcmp.eq.s32.totalorder %v93, 7
  %vm648 = vcmp.eq.s32.totalorder %v94, 7
  %v649 = vsel %vm647, 1, 0
  %v650 = vsel %vm648, 1, 0
  %vm651 = vcmp.eq.s32.totalorder %v649, 1
  %vm652 = vcmp.eq.s32.totalorder %v650, 1
  %653 = vset.pattern.permute.xlu0 7
  %654 = vperm.xlu0 %653, %v319
  %v655 = vpop.permute.xlu0 %654
  %657 = vset.pattern.permute.xlu0 7
  %658 = vperm.xlu0 %657, %v324
  %v659 = vpop.permute.xlu0 %658
  %661 = vset.pattern.permute.xlu0 7
  %662 = vperm.xlu0 %661, %v329
  %v663 = vpop.permute.xlu0 %662
  %665 = vset.pattern.permute.xlu0 7
  %666 = vperm.xlu0 %665, %v334
  %v667 = vpop.permute.xlu0 %666
  %v669 = vsel %vm651, %v655, 0.0
  %v670 = vsel %vm652, %v659, 0.0
  %v671 = vsel %vm651, %v663, 0.0
  %v672 = vsel %vm652, %v667, 0.0
  %v673 = vadd.f32 %v643, %v669
  %v674 = vadd.f32 %v644, %v670
  %v675 = vadd.f32 %v645, %v671
  %v676 = vadd.f32 %v646, %v672
  %vm677 = vcmp.eq.s32.totalorder %v93, 8
  %vm678 = vcmp.eq.s32.totalorder %v94, 8
  %v679 = vsel %vm677, 1, 0
  %v680 = vsel %vm678, 1, 0
  %vm681 = vcmp.eq.s32.totalorder %v679, 1
  %vm682 = vcmp.eq.s32.totalorder %v680, 1
  %683 = vset.pattern.permute.xlu0 8
  %684 = vperm.xlu0 %683, %v319
  %v685 = vpop.permute.xlu0 %684
  %687 = vset.pattern.permute.xlu0 8
  %688 = vperm.xlu0 %687, %v324
  %v689 = vpop.permute.xlu0 %688
  %691 = vset.pattern.permute.xlu0 8
  %692 = vperm.xlu0 %691, %v329
  %v693 = vpop.permute.xlu0 %692
  %695 = vset.pattern.permute.xlu0 8
  %696 = vperm.xlu0 %695, %v334
  %v697 = vpop.permute.xlu0 %696
  %v699 = vsel %vm681, %v685, 0.0
  %v700 = vsel %vm682, %v689, 0.0
  %v701 = vsel %vm681, %v693, 0.0
  %v702 = vsel %vm682, %v697, 0.0
  %v703 = vadd.f32 %v673, %v699
  %v704 = vadd.f32 %v674, %v700
  %v705 = vadd.f32 %v675, %v701
  %v706 = vadd.f32 %v676, %v702
  %vm707 = vcmp.gt.f32.partialorder %v87, 0.0
  %vm708 = vcmp.gt.f32.partialorder %v88, 0.0
  %vm709 = vcmp.gt.f32.partialorder %v89, 0.0
  %vm710 = vcmp.gt.f32.partialorder %v90, 0.0
  %v711 = vsel %vm707, %v703, -10000.0
  %v712 = vsel %vm708, %v704, -10000.0
  %v713 = vsel %vm709, %v705, -10000.0
  %v714 = vsel %vm710, %v706, -10000.0
  %vm715 = vcmask 130048
  %v716 = vsel %vm715, %v711, -inf
  %717 = vmax.xlane.f32.xlu0 %v716
  %v718 = vpop.xlane.xlu0 %717
  %v719 = vsel %vm715, %v712, -inf
  %720 = vmax.xlane.f32.xlu0 %v719
  %v721 = vpop.xlane.xlu0 %720
  %v722 = vsel %vm715, %v713, -inf
  %723 = vmax.xlane.f32.xlu0 %v722
  %v724 = vpop.xlane.xlu0 %723
  %v725 = vsel %vm715, %v714, -inf
  %726 = vmax.xlane.f32.xlu0 %v725
  %v727 = vpop.xlane.xlu0 %726
  %v728 = vsub.f32 %v711, %v718
  %v729 = vsub.f32 %v712, %v721
  %v730 = vsub.f32 %v713, %v724
  %v731 = vsub.f32 %v714, %v727
  %v732 = vmul.f32 %v728, 1.442695
  %v733 = vpow.pop %v732
  %v734 = vmul.f32 %v729, 1.442695
  %v735 = vpow.pop %v734
  %v736 = vmul.f32 %v730, 1.442695
  %v737 = vpow.pop %v736
  %v738 = vmul.f32 %v731, 1.442695
  %v739 = vpow.pop %v738
  %v740 = vsel %vm715, %v733, 0.0
  %741 = vadd.xlane.f32.xlu0 %v740
  %v742 = vpop.xlane.xlu0 %741
  %v743 = vsel %vm715, %v735, 0.0
  %744 = vadd.xlane.f32.xlu0 %v743
  %v745 = vpop.xlane.xlu0 %744
  %v746 = vsel %vm715, %v737, 0.0
  %747 = vadd.xlane.f32.xlu0 %v746
  %v748 = vpop.xlane.xlu0 %747
  %v749 = vsel %vm715, %v739, 0.0
  %750 = vadd.xlane.f32.xlu0 %v749
  %v751 = vpop.xlane.xlu0 %750
  %v752 = vrcp.pop %v742
  %v753 = vmul.f32 %v733, %v752
  %v754 = vrcp.pop %v745
  %v755 = vmul.f32 %v735, %v754
  %v756 = vrcp.pop %v748
  %v757 = vmul.f32 %v737, %v756
  %v758 = vrcp.pop %v751
  %v759 = vmul.f32 %v739, %v758
  %v760 = vpack.c.bf16 %v755, %v753
  %v761 = vpack.c.bf16 %v759, %v757
  %v762 = vpack.c.bf16 %v213, %v209
  %v763 = vpack.c.bf16 %v223, %v219
  %v764 = vsel %vm341, %v753, 0.0
  %v765 = vsel %vm342, %v755, 0.0
  %v766 = vsel %vm341, %v757, 0.0
  %v767 = vsel %vm342, %v759, 0.0
  %v768 = vsel %vm715, %v764, 0.0
  %769 = vadd.xlane.f32.xlu0 %v768
  %v770 = vpop.xlane.xlu0 %769
  %v771 = vsel %vm715, %v765, 0.0
  %772 = vadd.xlane.f32.xlu0 %v771
  %v773 = vpop.xlane.xlu0 %772
  %v774 = vsel %vm715, %v766, 0.0
  %775 = vadd.xlane.f32.xlu0 %v774
  %v776 = vpop.xlane.xlu0 %775
  %v777 = vsel %vm715, %v767, 0.0
  %778 = vadd.xlane.f32.xlu0 %v777
  %v779 = vpop.xlane.xlu0 %778
  %v780 = vlaneseq
  %v781 = vshrl.u32 %v780, 7
  %v782 = vsub.s32 0, %v781
  %v783 = vrot.slane %v229, %v782
  %v784 = vmul.f32 %v770, %v783
  %v785 = vmul.f32 %v773, %v783
  %v786 = vmul.f32 %v776, %v783
  %v787 = vmul.f32 %v779, %v783
  %v789 = vsel %vm715, %v760, 0
  %791 = vmatprep.subr.bf16.mxu0 0
  %792 = vmatpush1.bf16.msra.mxu0 0
  %793 = vmatprep.subr.bf16.mxu0 0
  %794 = vmatpush1.bf16.msra.mxu0 0
  %795 = vmatprep.subr.bf16.mxu0 0
  %796 = vmatpush1.bf16.msra.mxu0 0
  %797 = vmatprep.subr.bf16.mxu0 0
  %798 = vmatpush1.bf16.msra.mxu0 0
  %799 = vmatprep.subr.bf16.mxu0 0
  %800 = vmatpush1.bf16.msra.mxu0 0
  %801 = vmatprep.subr.bf16.mxu0 0
  %802 = vmatpush1.bf16.msra.mxu0 0
  %803 = vmatprep.subr.bf16.mxu0 0
  %804 = vmatpush1.bf16.msra.mxu0 0
  %805 = vmatprep.subr.bf16.mxu0 0
  %806 = vmatpush1.bf16.msra.mxu0 %v762
  %807 = vmatprep.subr.bf16.mxu0 0
  %808 = vmatpush2.bf16.msra.mxu0 0
  %809 = vmatprep.subr.bf16.mxu0 0
  %810 = vmatpush2.bf16.msra.mxu0 0
  %811 = vmatprep.subr.bf16.mxu0 0
  %812 = vmatpush2.bf16.msra.mxu0 0
  %813 = vmatprep.subr.bf16.mxu0 0
  %814 = vmatpush2.bf16.msra.mxu0 0
  %815 = vmatprep.subr.bf16.mxu0 0
  %816 = vmatpush2.bf16.msra.mxu0 0
  %817 = vmatprep.subr.bf16.mxu0 0
  %818 = vmatpush2.bf16.msra.mxu0 0
  %819 = vmatprep.subr.bf16.mxu0 0
  %820 = vmatpush2.bf16.msra.mxu0 0
  %821 = vmatprep.subr.bf16.mxu0 0
  %822 = vmatpush2.bf16.msra.mxu0 0
  %823 = vmatprep.mubr.bf16.mxu0 0
  %824 = vmatmul.mubr.bf16.gmra.mxu0 %v789
  %v825 = vpop.f32.mrf.mxu0
  %v826 = vadd.f32 %v784, %v825
  %v827 = vpop.f32.mrf.mxu0
  %v828 = vpop.f32.mrf.mxu0
  %v829 = vadd.f32 %v785, %v828
  %v830 = vpop.f32.mrf.mxu0
  %831 = vdwg.mxu0
  %v833 = vsel %vm715, %v761, 0
  %835 = vmatprep.subr.bf16.mxu0 0
  %836 = vmatpush1.bf16.msra.mxu0 0
  %837 = vmatprep.subr.bf16.mxu0 0
  %838 = vmatpush1.bf16.msra.mxu0 0
  %839 = vmatprep.subr.bf16.mxu0 0
  %840 = vmatpush1.bf16.msra.mxu0 0
  %841 = vmatprep.subr.bf16.mxu0 0
  %842 = vmatpush1.bf16.msra.mxu0 0
  %843 = vmatprep.subr.bf16.mxu0 0
  %844 = vmatpush1.bf16.msra.mxu0 0
  %845 = vmatprep.subr.bf16.mxu0 0
  %846 = vmatpush1.bf16.msra.mxu0 0
  %847 = vmatprep.subr.bf16.mxu0 0
  %848 = vmatpush1.bf16.msra.mxu0 0
  %849 = vmatprep.subr.bf16.mxu0 0
  %850 = vmatpush1.bf16.msra.mxu0 %v763
  %851 = vmatprep.subr.bf16.mxu0 0
  %852 = vmatpush2.bf16.msra.mxu0 0
  %853 = vmatprep.subr.bf16.mxu0 0
  %854 = vmatpush2.bf16.msra.mxu0 0
  %855 = vmatprep.subr.bf16.mxu0 0
  %856 = vmatpush2.bf16.msra.mxu0 0
  %857 = vmatprep.subr.bf16.mxu0 0
  %858 = vmatpush2.bf16.msra.mxu0 0
  %859 = vmatprep.subr.bf16.mxu0 0
  %860 = vmatpush2.bf16.msra.mxu0 0
  %861 = vmatprep.subr.bf16.mxu0 0
  %862 = vmatpush2.bf16.msra.mxu0 0
  %863 = vmatprep.subr.bf16.mxu0 0
  %864 = vmatpush2.bf16.msra.mxu0 0
  %865 = vmatprep.subr.bf16.mxu0 0
  %866 = vmatpush2.bf16.msra.mxu0 0
  %867 = vmatprep.mubr.bf16.mxu0 0
  %868 = vmatmul.mubr.bf16.gmra.mxu0 %v833
  %v869 = vpop.f32.mrf.mxu0
  %v870 = vadd.f32 %v786, %v869
  %v871 = vpop.f32.mrf.mxu0
  %v872 = vpop.f32.mrf.mxu0
  %v873 = vadd.f32 %v787, %v872
  %v874 = vpop.f32.mrf.mxu0
  %875 = vdwg.mxu0
  %v876 = vsel %vm471, %v753, 0.0
  %v877 = vsel %vm472, %v755, 0.0
  %v878 = vsel %vm471, %v757, 0.0
  %v879 = vsel %vm472, %v759, 0.0
  %v880 = vsel %vm715, %v876, 0.0
  %881 = vadd.xlane.f32.xlu0 %v880
  %v882 = vpop.xlane.xlu0 %881
  %v883 = vsel %vm715, %v877, 0.0
  %884 = vadd.xlane.f32.xlu0 %v883
  %v885 = vpop.xlane.xlu0 %884
  %v886 = vsel %vm715, %v878, 0.0
  %887 = vadd.xlane.f32.xlu0 %v886
  %v888 = vpop.xlane.xlu0 %887
  %v889 = vsel %vm715, %v879, 0.0
  %890 = vadd.xlane.f32.xlu0 %v889
  %v891 = vpop.xlane.xlu0 %890
  %v892 = vlaneseq
  %v893 = vshrl.u32 %v892, 7
  %v894 = vsub.s32 1, %v893
  %v895 = vrot.slane %v229, %v894
  %v896 = vmul.f32 %v882, %v895
  %v897 = vmul.f32 %v885, %v895
  %v898 = vmul.f32 %v888, %v895
  %v899 = vmul.f32 %v891, %v895
  %v900 = vadd.f32 %v826, %v896
  %v901 = vadd.f32 %v829, %v897
  %v902 = vadd.f32 %v870, %v898
  %v903 = vadd.f32 %v873, %v899
  %v904 = vsel %vm501, %v753, 0.0
  %v905 = vsel %vm502, %v755, 0.0
  %v906 = vsel %vm501, %v757, 0.0
  %v907 = vsel %vm502, %v759, 0.0
  %v908 = vsel %vm715, %v904, 0.0
  %909 = vadd.xlane.f32.xlu0 %v908
  %v910 = vpop.xlane.xlu0 %909
  %v911 = vsel %vm715, %v905, 0.0
  %912 = vadd.xlane.f32.xlu0 %v911
  %v913 = vpop.xlane.xlu0 %912
  %v914 = vsel %vm715, %v906, 0.0
  %915 = vadd.xlane.f32.xlu0 %v914
  %v916 = vpop.xlane.xlu0 %915
  %v917 = vsel %vm715, %v907, 0.0
  %918 = vadd.xlane.f32.xlu0 %v917
  %v919 = vpop.xlane.xlu0 %918
  %v920 = vlaneseq
  %v921 = vshrl.u32 %v920, 7
  %v922 = vsub.s32 2, %v921
  %v923 = vrot.slane %v229, %v922
  %v924 = vmul.f32 %v910, %v923
  %v925 = vmul.f32 %v913, %v923
  %v926 = vmul.f32 %v916, %v923
  %v927 = vmul.f32 %v919, %v923
  %v928 = vadd.f32 %v900, %v924
  %v929 = vadd.f32 %v901, %v925
  %v930 = vadd.f32 %v902, %v926
  %v931 = vadd.f32 %v903, %v927
  %v932 = vsel %vm531, %v753, 0.0
  %v933 = vsel %vm532, %v755, 0.0
  %v934 = vsel %vm531, %v757, 0.0
  %v935 = vsel %vm532, %v759, 0.0
  %v936 = vsel %vm715, %v932, 0.0
  %937 = vadd.xlane.f32.xlu0 %v936
  %v938 = vpop.xlane.xlu0 %937
  %v939 = vsel %vm715, %v933, 0.0
  %940 = vadd.xlane.f32.xlu0 %v939
  %v941 = vpop.xlane.xlu0 %940
  %v942 = vsel %vm715, %v934, 0.0
  %943 = vadd.xlane.f32.xlu0 %v942
  %v944 = vpop.xlane.xlu0 %943
  %v945 = vsel %vm715, %v935, 0.0
  %946 = vadd.xlane.f32.xlu0 %v945
  %v947 = vpop.xlane.xlu0 %946
  %v948 = vlaneseq
  %v949 = vshrl.u32 %v948, 7
  %v950 = vsub.s32 3, %v949
  %v951 = vrot.slane %v229, %v950
  %v952 = vmul.f32 %v938, %v951
  %v953 = vmul.f32 %v941, %v951
  %v954 = vmul.f32 %v944, %v951
  %v955 = vmul.f32 %v947, %v951
  %v956 = vadd.f32 %v928, %v952
  %v957 = vadd.f32 %v929, %v953
  %v958 = vadd.f32 %v930, %v954
  %v959 = vadd.f32 %v931, %v955
  %v960 = vsel %vm561, %v753, 0.0
  %v961 = vsel %vm562, %v755, 0.0
  %v962 = vsel %vm561, %v757, 0.0
  %v963 = vsel %vm562, %v759, 0.0
  %v964 = vsel %vm715, %v960, 0.0
  %965 = vadd.xlane.f32.xlu0 %v964
  %v966 = vpop.xlane.xlu0 %965
  %v967 = vsel %vm715, %v961, 0.0
  %968 = vadd.xlane.f32.xlu0 %v967
  %v969 = vpop.xlane.xlu0 %968
  %v970 = vsel %vm715, %v962, 0.0
  %971 = vadd.xlane.f32.xlu0 %v970
  %v972 = vpop.xlane.xlu0 %971
  %v973 = vsel %vm715, %v963, 0.0
  %974 = vadd.xlane.f32.xlu0 %v973
  %v975 = vpop.xlane.xlu0 %974
  %v976 = vlaneseq
  %v977 = vshrl.u32 %v976, 7
  %v978 = vsub.s32 4, %v977
  %v979 = vrot.slane %v229, %v978
  %v980 = vmul.f32 %v966, %v979
  %v981 = vmul.f32 %v969, %v979
  %v982 = vmul.f32 %v972, %v979
  %v983 = vmul.f32 %v975, %v979
  %v984 = vadd.f32 %v956, %v980
  %v985 = vadd.f32 %v957, %v981
  %v986 = vadd.f32 %v958, %v982
  %v987 = vadd.f32 %v959, %v983
  %v988 = vsel %vm591, %v753, 0.0
  %v989 = vsel %vm592, %v755, 0.0
  %v990 = vsel %vm591, %v757, 0.0
  %v991 = vsel %vm592, %v759, 0.0
  %v992 = vsel %vm715, %v988, 0.0
  %993 = vadd.xlane.f32.xlu0 %v992
  %v994 = vpop.xlane.xlu0 %993
  %v995 = vsel %vm715, %v989, 0.0
  %996 = vadd.xlane.f32.xlu0 %v995
  %v997 = vpop.xlane.xlu0 %996
  %v998 = vsel %vm715, %v990, 0.0
  %999 = vadd.xlane.f32.xlu0 %v998
  %v1000 = vpop.xlane.xlu0 %999
  %v1001 = vsel %vm715, %v991, 0.0
  %1002 = vadd.xlane.f32.xlu0 %v1001
  %v1003 = vpop.xlane.xlu0 %1002
  %v1004 = vlaneseq
  %v1005 = vshrl.u32 %v1004, 7
  %v1006 = vsub.s32 5, %v1005
  %v1007 = vrot.slane %v229, %v1006
  %v1008 = vmul.f32 %v994, %v1007
  %v1009 = vmul.f32 %v997, %v1007
  %v1010 = vmul.f32 %v1000, %v1007
  %v1011 = vmul.f32 %v1003, %v1007
  %v1012 = vadd.f32 %v984, %v1008
  %v1013 = vadd.f32 %v985, %v1009
  %v1014 = vadd.f32 %v986, %v1010
  %v1015 = vadd.f32 %v987, %v1011
  %v1016 = vsel %vm621, %v753, 0.0
  %v1017 = vsel %vm622, %v755, 0.0
  %v1018 = vsel %vm621, %v757, 0.0
  %v1019 = vsel %vm622, %v759, 0.0
  %v1020 = vsel %vm715, %v1016, 0.0
  %1021 = vadd.xlane.f32.xlu0 %v1020
  %v1022 = vpop.xlane.xlu0 %1021
  %v1023 = vsel %vm715, %v1017, 0.0
  %1024 = vadd.xlane.f32.xlu0 %v1023
  %v1025 = vpop.xlane.xlu0 %1024
  %v1026 = vsel %vm715, %v1018, 0.0
  %1027 = vadd.xlane.f32.xlu0 %v1026
  %v1028 = vpop.xlane.xlu0 %1027
  %v1029 = vsel %vm715, %v1019, 0.0
  %1030 = vadd.xlane.f32.xlu0 %v1029
  %v1031 = vpop.xlane.xlu0 %1030
  %v1032 = vlaneseq
  %v1033 = vshrl.u32 %v1032, 7
  %v1034 = vsub.s32 6, %v1033
  %v1035 = vrot.slane %v229, %v1034
  %v1036 = vmul.f32 %v1022, %v1035
  %v1037 = vmul.f32 %v1025, %v1035
  %v1038 = vmul.f32 %v1028, %v1035
  %v1039 = vmul.f32 %v1031, %v1035
  %v1040 = vadd.f32 %v1012, %v1036
  %v1041 = vadd.f32 %v1013, %v1037
  %v1042 = vadd.f32 %v1014, %v1038
  %v1043 = vadd.f32 %v1015, %v1039
  %v1044 = vsel %vm651, %v753, 0.0
  %v1045 = vsel %vm652, %v755, 0.0
  %v1046 = vsel %vm651, %v757, 0.0
  %v1047 = vsel %vm652, %v759, 0.0
  %v1048 = vsel %vm715, %v1044, 0.0
  %1049 = vadd.xlane.f32.xlu0 %v1048
  %v1050 = vpop.xlane.xlu0 %1049
  %v1051 = vsel %vm715, %v1045, 0.0
  %1052 = vadd.xlane.f32.xlu0 %v1051
  %v1053 = vpop.xlane.xlu0 %1052
  %v1054 = vsel %vm715, %v1046, 0.0
  %1055 = vadd.xlane.f32.xlu0 %v1054
  %v1056 = vpop.xlane.xlu0 %1055
  %v1057 = vsel %vm715, %v1047, 0.0
  %1058 = vadd.xlane.f32.xlu0 %v1057
  %v1059 = vpop.xlane.xlu0 %1058
  %v1060 = vlaneseq
  %v1061 = vshrl.u32 %v1060, 7
  %v1062 = vsub.s32 7, %v1061
  %v1063 = vrot.slane %v229, %v1062
  %v1064 = vmul.f32 %v1050, %v1063
  %v1065 = vmul.f32 %v1053, %v1063
  %v1066 = vmul.f32 %v1056, %v1063
  %v1067 = vmul.f32 %v1059, %v1063
  %v1068 = vadd.f32 %v1040, %v1064
  %v1069 = vadd.f32 %v1041, %v1065
  %v1070 = vadd.f32 %v1042, %v1066
  %v1071 = vadd.f32 %v1043, %v1067
  %v1072 = vsel %vm681, %v753, 0.0
  %v1073 = vsel %vm682, %v755, 0.0
  %v1074 = vsel %vm681, %v757, 0.0
  %v1075 = vsel %vm682, %v759, 0.0
  %v1076 = vsel %vm715, %v1072, 0.0
  %1077 = vadd.xlane.f32.xlu0 %v1076
  %v1078 = vpop.xlane.xlu0 %1077
  %v1079 = vsel %vm715, %v1073, 0.0
  %1080 = vadd.xlane.f32.xlu0 %v1079
  %v1081 = vpop.xlane.xlu0 %1080
  %v1082 = vsel %vm715, %v1074, 0.0
  %1083 = vadd.xlane.f32.xlu0 %v1082
  %v1084 = vpop.xlane.xlu0 %1083
  %v1085 = vsel %vm715, %v1075, 0.0
  %1086 = vadd.xlane.f32.xlu0 %v1085
  %v1087 = vpop.xlane.xlu0 %1086
  %v1088 = vlaneseq
  %v1089 = vshrl.u32 %v1088, 7
  %v1090 = vsub.s32 0, %v1089
  %v1091 = vrot.slane %v230, %v1090
  %v1092 = vmul.f32 %v1078, %v1091
  %v1093 = vmul.f32 %v1081, %v1091
  %v1094 = vmul.f32 %v1084, %v1091
  %v1095 = vmul.f32 %v1087, %v1091
  %v1096 = vadd.f32 %v1068, %v1092
  %v1097 = vadd.f32 %v1069, %v1093
  %v1098 = vadd.f32 %v1070, %v1094
  %v1099 = vadd.f32 %v1071, %v1095
  %1100 = vrot.lane.b32.xlu0 %v231, 96
  %v1101 = vpop.permute.xlu0 %1100
  %1102 = vrot.lane.b32.xlu0 %v232, 96
  %v1103 = vpop.permute.xlu0 %1102
  %1104 = vrot.lane.b32.xlu0 %v233, 96
  %v1105 = vpop.permute.xlu0 %1104
  %1106 = vrot.lane.b32.xlu0 %v234, 96
  %v1107 = vpop.permute.xlu0 %1106
  %v1108 = vsel %vm239, %v1101, 0
  %v1110 = vsel %vm239, %v1103, 0
  %v1112 = vsel %vm239, %v1105, 0
  %v1114 = vsel %vm239, %v1107, 0
  %1116 = vmatprep.subr.mxu0 0.0
  %1117 = vmatpush1.msra.mxu0 0.0
  %1118 = vmatprep.subr.mxu0 0.0
  %1119 = vmatpush1.msra.mxu0 0.0
  %1120 = vmatprep.subr.mxu0 0.0
  %1121 = vmatpush1.msra.mxu0 0.0
  %1122 = vmatprep.subr.mxu0 0.0
  %1123 = vmatpush1.msra.mxu0 0.0
  %1124 = vmatprep.subr.mxu0 0.0
  %1125 = vmatpush1.msra.mxu0 0.0
  %1126 = vmatprep.subr.mxu0 0.0
  %1127 = vmatpush1.msra.mxu0 0.0
  %1128 = vmatprep.subr.mxu0 0.0
  %1129 = vmatpush1.msra.mxu0 0.0
  %1130 = vmatprep.subr.mxu0 0.0
  %1131 = vmatpush1.msra.mxu0 0.0
  %1132 = vmatprep.subr.mxu0 0.0
  %1133 = vmatpush1.msra.mxu0 0.0
  %1134 = vmatprep.subr.mxu0 0.0
  %1135 = vmatpush1.msra.mxu0 0.0
  %1136 = vmatprep.subr.mxu0 0.0
  %1137 = vmatpush1.msra.mxu0 0.0
  %1138 = vmatprep.subr.mxu0 0.0
  %1139 = vmatpush1.msra.mxu0 0.0
  %1140 = vmatprep.subr.mxu0 0.0
  %1141 = vmatpush1.msra.mxu0 %v228
  %1142 = vmatprep.subr.mxu0 0.0
  %1143 = vmatpush1.msra.mxu0 %v227
  %1144 = vmatprep.subr.mxu0 0.0
  %1145 = vmatpush1.msra.mxu0 %v226
  %1146 = vmatprep.subr.mxu0 0.0
  %1147 = vmatpush1.msra.mxu0 %v225
  %1148 = vmatprep.subr.mxu0 0.0
  %1149 = vmatpush2.msra.mxu0 0.0
  %1150 = vmatprep.subr.mxu0 0.0
  %1151 = vmatpush2.msra.mxu0 0.0
  %1152 = vmatprep.subr.mxu0 0.0
  %1153 = vmatpush2.msra.mxu0 0.0
  %1154 = vmatprep.subr.mxu0 0.0
  %1155 = vmatpush2.msra.mxu0 0.0
  %1156 = vmatprep.subr.mxu0 0.0
  %1157 = vmatpush2.msra.mxu0 0.0
  %1158 = vmatprep.subr.mxu0 0.0
  %1159 = vmatpush2.msra.mxu0 0.0
  %1160 = vmatprep.subr.mxu0 0.0
  %1161 = vmatpush2.msra.mxu0 0.0
  %1162 = vmatprep.subr.mxu0 0.0
  %1163 = vmatpush2.msra.mxu0 0.0
  %1164 = vmatprep.subr.mxu0 0.0
  %1165 = vmatpush2.msra.mxu0 0.0
  %1166 = vmatprep.subr.mxu0 0.0
  %1167 = vmatpush2.msra.mxu0 0.0
  %1168 = vmatprep.subr.mxu0 0.0
  %1169 = vmatpush2.msra.mxu0 0.0
  %1170 = vmatprep.subr.mxu0 0.0
  %1171 = vmatpush2.msra.mxu0 0.0
  %1172 = vmatprep.subr.mxu0 0.0
  %1173 = vmatpush2.msra.mxu0 0.0
  %1174 = vmatprep.subr.mxu0 0.0
  %1175 = vmatpush2.msra.mxu0 0.0
  %1176 = vmatprep.subr.mxu0 0.0
  %1177 = vmatpush2.msra.mxu0 0.0
  %1178 = vmatprep.subr.mxu0 0.0
  %1179 = vmatpush2.msra.mxu0 0.0
  %1180 = vmatprep.mubr.f32.mxu0 0.0
  %1181 = vmatmul.mubr.f32.gmra.mxu0 %v1108
  %v1182 = vpop.f32.mrf.mxu0
  %v1183 = vadd.f32 0.0, %v1182
  %v1184 = vpop.f32.mrf.mxu0
  %1185 = vmatprep.mubr.f32.mxu0 0.0
  %1186 = vmatmul.mubr.f32.gmra.mxu0 %v1110
  %v1187 = vpop.f32.mrf.mxu0
  %v1188 = vadd.f32 0.0, %v1187
  %v1189 = vpop.f32.mrf.mxu0
  %1190 = vmatprep.mubr.f32.mxu0 0.0
  %1191 = vmatmul.mubr.f32.gmra.mxu0 %v1112
  %v1192 = vpop.f32.mrf.mxu0
  %v1193 = vadd.f32 0.0, %v1192
  %v1194 = vpop.f32.mrf.mxu0
  %1195 = vmatprep.mubr.f32.mxu0 0.0
  %1196 = vmatmul.mubr.f32.gmra.mxu0 %v1114
  %v1197 = vpop.f32.mrf.mxu0
  %v1198 = vadd.f32 0.0, %v1197
  %v1199 = vpop.f32.mrf.mxu0
  %1200 = vdwg.mxu0
  %1202 = vset.pattern.permute.xlu0 0
  %1203 = vperm.xlu0 %1202, %v1183
  %v1204 = vpop.permute.xlu0 %1203
  %1207 = vset.pattern.permute.xlu0 0
  %1208 = vperm.xlu0 %1207, %v1188
  %v1209 = vpop.permute.xlu0 %1208
  %1212 = vset.pattern.permute.xlu0 0
  %1213 = vperm.xlu0 %1212, %v1193
  %v1214 = vpop.permute.xlu0 %1213
  %1217 = vset.pattern.permute.xlu0 0
  %1218 = vperm.xlu0 %1217, %v1198
  %v1219 = vpop.permute.xlu0 %1218
  %v1221 = vsel %vm341, %v1204, 0.0
  %v1222 = vsel %vm342, %v1209, 0.0
  %v1223 = vsel %vm341, %v1214, 0.0
  %v1224 = vsel %vm342, %v1219, 0.0
  %1226 = vrot.lane.b32.xlu0 %v235, 96
  %v1227 = vpop.permute.xlu0 %1226
  %1228 = vrot.lane.b32.xlu0 %v237, 32
  %v1229 = vpop.permute.xlu0 %1228
  %v1231 = vsel %vm239, %v1227, 0
  %v1234 = vsel %vm239, %v1229, 0
  %1236 = vmatprep.subr.bf16.mxu0 0
  %1237 = vmatpush1.bf16.xpose.msra.mxu0 0
  %1238 = vmatprep.subr.bf16.mxu0 0
  %1239 = vmatpush1.bf16.xpose.msra.mxu0 0
  %1240 = vmatprep.subr.bf16.mxu0 0
  %1241 = vmatpush1.bf16.xpose.msra.mxu0 0
  %1242 = vmatprep.subr.bf16.mxu0 0
  %1243 = vmatpush1.bf16.xpose.msra.mxu0 0
  %1244 = vmatprep.subr.bf16.mxu0 0
  %1245 = vmatpush1.bf16.xpose.msra.mxu0 0
  %1246 = vmatprep.subr.bf16.mxu0 0
  %1247 = vmatpush1.bf16.xpose.msra.mxu0 0
  %1248 = vmatprep.subr.bf16.mxu0 0
  %1249 = vmatpush1.bf16.xpose.msra.mxu0 0
  %1250 = vmatprep.subr.bf16.mxu0 0
  %1251 = vmatpush1.bf16.xpose.msra.mxu0 %v1234
  %1252 = vmatprep.subr.bf16.mxu0 0
  %1253 = vmatpush2.bf16.xpose.msra.mxu0 0
  %1254 = vmatprep.subr.bf16.mxu0 0
  %1255 = vmatpush2.bf16.xpose.msra.mxu0 0
  %1256 = vmatprep.subr.bf16.mxu0 0
  %1257 = vmatpush2.bf16.xpose.msra.mxu0 0
  %1258 = vmatprep.subr.bf16.mxu0 0
  %1259 = vmatpush2.bf16.xpose.msra.mxu0 0
  %1260 = vmatprep.subr.bf16.mxu0 0
  %1261 = vmatpush2.bf16.xpose.msra.mxu0 0
  %1262 = vmatprep.subr.bf16.mxu0 0
  %1263 = vmatpush2.bf16.xpose.msra.mxu0 0
  %1264 = vmatprep.subr.bf16.mxu0 0
  %1265 = vmatpush2.bf16.xpose.msra.mxu0 0
  %1266 = vmatprep.subr.bf16.mxu0 0
  %1267 = vmatpush2.bf16.xpose.msra.mxu0 0
  %1268 = vmatprep.mubr.bf16.mxu0 0
  %1269 = vmatmul.mubr.bf16.gmra.mxu0 %v1231
  %v1270 = vpop.f32.mrf.mxu0
  %v1271 = vadd.f32 %v1221, %v1270
  %v1272 = vpop.f32.mrf.mxu0
  %v1273 = vpop.f32.mrf.mxu0
  %v1274 = vadd.f32 %v1222, %v1273
  %v1275 = vpop.f32.mrf.mxu0
  %1276 = vdwg.mxu0
  %1278 = vrot.lane.b32.xlu0 %v236, 96
  %v1279 = vpop.permute.xlu0 %1278
  %1280 = vrot.lane.b32.xlu0 %v238, 32
  %v1281 = vpop.permute.xlu0 %1280
  %v1283 = vsel %vm239, %v1279, 0
  %v1286 = vsel %vm239, %v1281, 0
  %1288 = vmatprep.subr.bf16.mxu0 0
  %1289 = vmatpush1.bf16.xpose.msra.mxu0 0
  %1290 = vmatprep.subr.bf16.mxu0 0
  %1291 = vmatpush1.bf16.xpose.msra.mxu0 0
  %1292 = vmatprep.subr.bf16.mxu0 0
  %1293 = vmatpush1.bf16.xpose.msra.mxu0 0
  %1294 = vmatprep.subr.bf16.mxu0 0
  %1295 = vmatpush1.bf16.xpose.msra.mxu0 0
  %1296 = vmatprep.subr.bf16.mxu0 0
  %1297 = vmatpush1.bf16.xpose.msra.mxu0 0
  %1298 = vmatprep.subr.bf16.mxu0 0
  %1299 = vmatpush1.bf16.xpose.msra.mxu0 0
  %1300 = vmatprep.subr.bf16.mxu0 0
  %1301 = vmatpush1.bf16.xpose.msra.mxu0 0
  %1302 = vmatprep.subr.bf16.mxu0 0
  %1303 = vmatpush1.bf16.xpose.msra.mxu0 %v1286
  %1304 = vmatprep.subr.bf16.mxu0 0
  %1305 = vmatpush2.bf16.xpose.msra.mxu0 0
  %1306 = vmatprep.subr.bf16.mxu0 0
  %1307 = vmatpush2.bf16.xpose.msra.mxu0 0
  %1308 = vmatprep.subr.bf16.mxu0 0
  %1309 = vmatpush2.bf16.xpose.msra.mxu0 0
  %1310 = vmatprep.subr.bf16.mxu0 0
  %1311 = vmatpush2.bf16.xpose.msra.mxu0 0
  %1312 = vmatprep.subr.bf16.mxu0 0
  %1313 = vmatpush2.bf16.xpose.msra.mxu0 0
  %1314 = vmatprep.subr.bf16.mxu0 0
  %1315 = vmatpush2.bf16.xpose.msra.mxu0 0
  %1316 = vmatprep.subr.bf16.mxu0 0
  %1317 = vmatpush2.bf16.xpose.msra.mxu0 0
  %1318 = vmatprep.subr.bf16.mxu0 0
  %1319 = vmatpush2.bf16.xpose.msra.mxu0 0
  %1320 = vmatprep.mubr.bf16.mxu0 0
  %1321 = vmatmul.mubr.bf16.gmra.mxu0 %v1283
  %v1322 = vpop.f32.mrf.mxu0
  %v1323 = vadd.f32 %v1223, %v1322
  %v1324 = vpop.f32.mrf.mxu0
  %v1325 = vpop.f32.mrf.mxu0
  %v1326 = vadd.f32 %v1224, %v1325
  %v1327 = vpop.f32.mrf.mxu0
  %1328 = vdwg.mxu0
  %1329 = vset.pattern.permute.xlu0 1
  %1330 = vperm.xlu0 %1329, %v1183
  %v1331 = vpop.permute.xlu0 %1330
  %1333 = vset.pattern.permute.xlu0 1
  %1334 = vperm.xlu0 %1333, %v1188
  %v1335 = vpop.permute.xlu0 %1334
  %1337 = vset.pattern.permute.xlu0 1
  %1338 = vperm.xlu0 %1337, %v1193
  %v1339 = vpop.permute.xlu0 %1338
  %1341 = vset.pattern.permute.xlu0 1
  %1342 = vperm.xlu0 %1341, %v1198
  %v1343 = vpop.permute.xlu0 %1342
  %v1345 = vsel %vm471, %v1331, 0.0
  %v1346 = vsel %vm472, %v1335, 0.0
  %v1347 = vsel %vm471, %v1339, 0.0
  %v1348 = vsel %vm472, %v1343, 0.0
  %v1349 = vadd.f32 %v1271, %v1345
  %v1350 = vadd.f32 %v1274, %v1346
  %v1351 = vadd.f32 %v1323, %v1347
  %v1352 = vadd.f32 %v1326, %v1348
  %1353 = vset.pattern.permute.xlu0 2
  %1354 = vperm.xlu0 %1353, %v1183
  %v1355 = vpop.permute.xlu0 %1354
  %1357 = vset.pattern.permute.xlu0 2
  %1358 = vperm.xlu0 %1357, %v1188
  %v1359 = vpop.permute.xlu0 %1358
  %1361 = vset.pattern.permute.xlu0 2
  %1362 = vperm.xlu0 %1361, %v1193
  %v1363 = vpop.permute.xlu0 %1362
  %1365 = vset.pattern.permute.xlu0 2
  %1366 = vperm.xlu0 %1365, %v1198
  %v1367 = vpop.permute.xlu0 %1366
  %v1369 = vsel %vm501, %v1355, 0.0
  %v1370 = vsel %vm502, %v1359, 0.0
  %v1371 = vsel %vm501, %v1363, 0.0
  %v1372 = vsel %vm502, %v1367, 0.0
  %v1373 = vadd.f32 %v1349, %v1369
  %v1374 = vadd.f32 %v1350, %v1370
  %v1375 = vadd.f32 %v1351, %v1371
  %v1376 = vadd.f32 %v1352, %v1372
  %1377 = vset.pattern.permute.xlu0 3
  %1378 = vperm.xlu0 %1377, %v1183
  %v1379 = vpop.permute.xlu0 %1378
  %1381 = vset.pattern.permute.xlu0 3
  %1382 = vperm.xlu0 %1381, %v1188
  %v1383 = vpop.permute.xlu0 %1382
  %1385 = vset.pattern.permute.xlu0 3
  %1386 = vperm.xlu0 %1385, %v1193
  %v1387 = vpop.permute.xlu0 %1386
  %1389 = vset.pattern.permute.xlu0 3
  %1390 = vperm.xlu0 %1389, %v1198
  %v1391 = vpop.permute.xlu0 %1390
  %v1393 = vsel %vm531, %v1379, 0.0
  %v1394 = vsel %vm532, %v1383, 0.0
  %v1395 = vsel %vm531, %v1387, 0.0
  %v1396 = vsel %vm532, %v1391, 0.0
  %v1397 = vadd.f32 %v1373, %v1393
  %v1398 = vadd.f32 %v1374, %v1394
  %v1399 = vadd.f32 %v1375, %v1395
  %v1400 = vadd.f32 %v1376, %v1396
  %1401 = vset.pattern.permute.xlu0 4
  %1402 = vperm.xlu0 %1401, %v1183
  %v1403 = vpop.permute.xlu0 %1402
  %1405 = vset.pattern.permute.xlu0 4
  %1406 = vperm.xlu0 %1405, %v1188
  %v1407 = vpop.permute.xlu0 %1406
  %1409 = vset.pattern.permute.xlu0 4
  %1410 = vperm.xlu0 %1409, %v1193
  %v1411 = vpop.permute.xlu0 %1410
  %1413 = vset.pattern.permute.xlu0 4
  %1414 = vperm.xlu0 %1413, %v1198
  %v1415 = vpop.permute.xlu0 %1414
  %v1417 = vsel %vm561, %v1403, 0.0
  %v1418 = vsel %vm562, %v1407, 0.0
  %v1419 = vsel %vm561, %v1411, 0.0
  %v1420 = vsel %vm562, %v1415, 0.0
  %v1421 = vadd.f32 %v1397, %v1417
  %v1422 = vadd.f32 %v1398, %v1418
  %v1423 = vadd.f32 %v1399, %v1419
  %v1424 = vadd.f32 %v1400, %v1420
  %1425 = vset.pattern.permute.xlu0 5
  %1426 = vperm.xlu0 %1425, %v1183
  %v1427 = vpop.permute.xlu0 %1426
  %1429 = vset.pattern.permute.xlu0 5
  %1430 = vperm.xlu0 %1429, %v1188
  %v1431 = vpop.permute.xlu0 %1430
  %1433 = vset.pattern.permute.xlu0 5
  %1434 = vperm.xlu0 %1433, %v1193
  %v1435 = vpop.permute.xlu0 %1434
  %1437 = vset.pattern.permute.xlu0 5
  %1438 = vperm.xlu0 %1437, %v1198
  %v1439 = vpop.permute.xlu0 %1438
  %v1441 = vsel %vm591, %v1427, 0.0
  %v1442 = vsel %vm592, %v1431, 0.0
  %v1443 = vsel %vm591, %v1435, 0.0
  %v1444 = vsel %vm592, %v1439, 0.0
  %v1445 = vadd.f32 %v1421, %v1441
  %v1446 = vadd.f32 %v1422, %v1442
  %v1447 = vadd.f32 %v1423, %v1443
  %v1448 = vadd.f32 %v1424, %v1444
  %1449 = vset.pattern.permute.xlu0 6
  %1450 = vperm.xlu0 %1449, %v1183
  %v1451 = vpop.permute.xlu0 %1450
  %1453 = vset.pattern.permute.xlu0 6
  %1454 = vperm.xlu0 %1453, %v1188
  %v1455 = vpop.permute.xlu0 %1454
  %1457 = vset.pattern.permute.xlu0 6
  %1458 = vperm.xlu0 %1457, %v1193
  %v1459 = vpop.permute.xlu0 %1458
  %1461 = vset.pattern.permute.xlu0 6
  %1462 = vperm.xlu0 %1461, %v1198
  %v1463 = vpop.permute.xlu0 %1462
  %v1465 = vsel %vm621, %v1451, 0.0
  %v1466 = vsel %vm622, %v1455, 0.0
  %v1467 = vsel %vm621, %v1459, 0.0
  %v1468 = vsel %vm622, %v1463, 0.0
  %v1469 = vadd.f32 %v1445, %v1465
  %v1470 = vadd.f32 %v1446, %v1466
  %v1471 = vadd.f32 %v1447, %v1467
  %v1472 = vadd.f32 %v1448, %v1468
  %1473 = vset.pattern.permute.xlu0 7
  %1474 = vperm.xlu0 %1473, %v1183
  %v1475 = vpop.permute.xlu0 %1474
  %1477 = vset.pattern.permute.xlu0 7
  %1478 = vperm.xlu0 %1477, %v1188
  %v1479 = vpop.permute.xlu0 %1478
  %1481 = vset.pattern.permute.xlu0 7
  %1482 = vperm.xlu0 %1481, %v1193
  %v1483 = vpop.permute.xlu0 %1482
  %1485 = vset.pattern.permute.xlu0 7
  %1486 = vperm.xlu0 %1485, %v1198
  %v1487 = vpop.permute.xlu0 %1486
  %v1489 = vsel %vm651, %v1475, 0.0
  %v1490 = vsel %vm652, %v1479, 0.0
  %v1491 = vsel %vm651, %v1483, 0.0
  %v1492 = vsel %vm652, %v1487, 0.0
  %v1493 = vadd.f32 %v1469, %v1489
  %v1494 = vadd.f32 %v1470, %v1490
  %v1495 = vadd.f32 %v1471, %v1491
  %v1496 = vadd.f32 %v1472, %v1492
  %1497 = vset.pattern.permute.xlu0 8
  %1498 = vperm.xlu0 %1497, %v1183
  %v1499 = vpop.permute.xlu0 %1498
  %1501 = vset.pattern.permute.xlu0 8
  %1502 = vperm.xlu0 %1501, %v1188
  %v1503 = vpop.permute.xlu0 %1502
  %1505 = vset.pattern.permute.xlu0 8
  %1506 = vperm.xlu0 %1505, %v1193
  %v1507 = vpop.permute.xlu0 %1506
  %1509 = vset.pattern.permute.xlu0 8
  %1510 = vperm.xlu0 %1509, %v1198
  %v1511 = vpop.permute.xlu0 %1510
  %v1513 = vsel %vm681, %v1499, 0.0
  %v1514 = vsel %vm682, %v1503, 0.0
  %v1515 = vsel %vm681, %v1507, 0.0
  %v1516 = vsel %vm682, %v1511, 0.0
  %v1517 = vadd.f32 %v1493, %v1513
  %v1518 = vadd.f32 %v1494, %v1514
  %v1519 = vadd.f32 %v1495, %v1515
  %v1520 = vadd.f32 %v1496, %v1516
  %v1521 = vsel %vm707, %v1517, -10000.0
  %v1522 = vsel %vm708, %v1518, -10000.0
  %v1523 = vsel %vm709, %v1519, -10000.0
  %v1524 = vsel %vm710, %v1520, -10000.0
  %v1525 = vsel %vm715, %v1521, -inf
  %1526 = vmax.xlane.f32.xlu0 %v1525
  %v1527 = vpop.xlane.xlu0 %1526
  %v1528 = vsel %vm715, %v1522, -inf
  %1529 = vmax.xlane.f32.xlu0 %v1528
  %v1530 = vpop.xlane.xlu0 %1529
  %v1531 = vsel %vm715, %v1523, -inf
  %1532 = vmax.xlane.f32.xlu0 %v1531
  %v1533 = vpop.xlane.xlu0 %1532
  %v1534 = vsel %vm715, %v1524, -inf
  %1535 = vmax.xlane.f32.xlu0 %v1534
  %v1536 = vpop.xlane.xlu0 %1535
  %v1537 = vsub.f32 %v1521, %v1527
  %v1538 = vsub.f32 %v1522, %v1530
  %v1539 = vsub.f32 %v1523, %v1533
  %v1540 = vsub.f32 %v1524, %v1536
  %v1541 = vmul.f32 %v1537, 1.442695
  %v1542 = vpow.pop %v1541
  %v1543 = vmul.f32 %v1538, 1.442695
  %v1544 = vpow.pop %v1543
  %v1545 = vmul.f32 %v1539, 1.442695
  %v1546 = vpow.pop %v1545
  %v1547 = vmul.f32 %v1540, 1.442695
  %v1548 = vpow.pop %v1547
  %v1549 = vsel %vm715, %v1542, 0.0
  %1550 = vadd.xlane.f32.xlu0 %v1549
  %v1551 = vpop.xlane.xlu0 %1550
  %v1552 = vsel %vm715, %v1544, 0.0
  %1553 = vadd.xlane.f32.xlu0 %v1552
  %v1554 = vpop.xlane.xlu0 %1553
  %v1555 = vsel %vm715, %v1546, 0.0
  %1556 = vadd.xlane.f32.xlu0 %v1555
  %v1557 = vpop.xlane.xlu0 %1556
  %v1558 = vsel %vm715, %v1548, 0.0
  %1559 = vadd.xlane.f32.xlu0 %v1558
  %v1560 = vpop.xlane.xlu0 %1559
  %v1561 = vrcp.pop %v1551
  %v1562 = vmul.f32 %v1542, %v1561
  %v1563 = vrcp.pop %v1554
  %v1564 = vmul.f32 %v1544, %v1563
  %v1565 = vrcp.pop %v1557
  %v1566 = vmul.f32 %v1546, %v1565
  %v1567 = vrcp.pop %v1560
  %v1568 = vmul.f32 %v1548, %v1567
  %v1569 = vpack.c.bf16 %v1564, %v1562
  %v1570 = vpack.c.bf16 %v1568, %v1566
  %v1571 = vsel %vm341, %v1562, 0.0
  %v1572 = vsel %vm342, %v1564, 0.0
  %v1573 = vsel %vm341, %v1566, 0.0
  %v1574 = vsel %vm342, %v1568, 0.0
  %v1575 = vsel %vm715, %v1571, 0.0
  %1576 = vadd.xlane.f32.xlu0 %v1575
  %v1577 = vpop.xlane.xlu0 %1576
  %v1578 = vsel %vm715, %v1572, 0.0
  %1579 = vadd.xlane.f32.xlu0 %v1578
  %v1580 = vpop.xlane.xlu0 %1579
  %v1581 = vsel %vm715, %v1573, 0.0
  %1582 = vadd.xlane.f32.xlu0 %v1581
  %v1583 = vpop.xlane.xlu0 %1582
  %v1584 = vsel %vm715, %v1574, 0.0
  %1585 = vadd.xlane.f32.xlu0 %v1584
  %v1586 = vpop.xlane.xlu0 %1585
  %v1587 = vmul.f32 %v1577, %v783
  %v1588 = vmul.f32 %v1580, %v783
  %v1589 = vmul.f32 %v1583, %v783
  %v1590 = vmul.f32 %v1586, %v783
  %1592 = vrot.lane.b32.xlu0 %v762, 96
  %v1593 = vpop.permute.xlu0 %1592
  %v1596 = vsel %vm715, %v1569, 0
  %1598 = vmatprep.subr.bf16.mxu0 0
  %1599 = vmatpush1.bf16.msra.mxu0 0
  %1600 = vmatprep.subr.bf16.mxu0 0
  %1601 = vmatpush1.bf16.msra.mxu0 0
  %1602 = vmatprep.subr.bf16.mxu0 0
  %1603 = vmatpush1.bf16.msra.mxu0 0
  %1604 = vmatprep.subr.bf16.mxu0 0
  %1605 = vmatpush1.bf16.msra.mxu0 0
  %1606 = vmatprep.subr.bf16.mxu0 0
  %1607 = vmatpush1.bf16.msra.mxu0 0
  %1608 = vmatprep.subr.bf16.mxu0 0
  %1609 = vmatpush1.bf16.msra.mxu0 0
  %1610 = vmatprep.subr.bf16.mxu0 0
  %1611 = vmatpush1.bf16.msra.mxu0 0
  %1612 = vmatprep.subr.bf16.mxu0 0
  %1613 = vmatpush1.bf16.msra.mxu0 %v1593
  %1614 = vmatprep.subr.bf16.mxu0 0
  %1615 = vmatpush2.bf16.msra.mxu0 0
  %1616 = vmatprep.subr.bf16.mxu0 0
  %1617 = vmatpush2.bf16.msra.mxu0 0
  %1618 = vmatprep.subr.bf16.mxu0 0
  %1619 = vmatpush2.bf16.msra.mxu0 0
  %1620 = vmatprep.subr.bf16.mxu0 0
  %1621 = vmatpush2.bf16.msra.mxu0 0
  %1622 = vmatprep.subr.bf16.mxu0 0
  %1623 = vmatpush2.bf16.msra.mxu0 0
  %1624 = vmatprep.subr.bf16.mxu0 0
  %1625 = vmatpush2.bf16.msra.mxu0 0
  %1626 = vmatprep.subr.bf16.mxu0 0
  %1627 = vmatpush2.bf16.msra.mxu0 0
  %1628 = vmatprep.subr.bf16.mxu0 0
  %1629 = vmatpush2.bf16.msra.mxu0 0
  %1630 = vmatprep.mubr.bf16.mxu0 0
  %1631 = vmatmul.mubr.bf16.gmra.mxu0 %v1596
  %v1632 = vpop.f32.mrf.mxu0
  %v1633 = vadd.f32 %v1587, %v1632
  %v1634 = vpop.f32.mrf.mxu0
  %v1635 = vpop.f32.mrf.mxu0
  %v1636 = vadd.f32 %v1588, %v1635
  %v1637 = vpop.f32.mrf.mxu0
  %1638 = vdwg.mxu0
  %1640 = vrot.lane.b32.xlu0 %v763, 96
  %v1641 = vpop.permute.xlu0 %1640
  %v1644 = vsel %vm715, %v1570, 0
  %1646 = vmatprep.subr.bf16.mxu0 0
  %1647 = vmatpush1.bf16.msra.mxu0 0
  %1648 = vmatprep.subr.bf16.mxu0 0
  %1649 = vmatpush1.bf16.msra.mxu0 0
  %1650 = vmatprep.subr.bf16.mxu0 0
  %1651 = vmatpush1.bf16.msra.mxu0 0
  %1652 = vmatprep.subr.bf16.mxu0 0
  %1653 = vmatpush1.bf16.msra.mxu0 0
  %1654 = vmatprep.subr.bf16.mxu0 0
  %1655 = vmatpush1.bf16.msra.mxu0 0
  %1656 = vmatprep.subr.bf16.mxu0 0
  %1657 = vmatpush1.bf16.msra.mxu0 0
  %1658 = vmatprep.subr.bf16.mxu0 0
  %1659 = vmatpush1.bf16.msra.mxu0 0
  %1660 = vmatprep.subr.bf16.mxu0 0
  %1661 = vmatpush1.bf16.msra.mxu0 %v1641
  %1662 = vmatprep.subr.bf16.mxu0 0
  %1663 = vmatpush2.bf16.msra.mxu0 0
  %1664 = vmatprep.subr.bf16.mxu0 0
  %1665 = vmatpush2.bf16.msra.mxu0 0
  %1666 = vmatprep.subr.bf16.mxu0 0
  %1667 = vmatpush2.bf16.msra.mxu0 0
  %1668 = vmatprep.subr.bf16.mxu0 0
  %1669 = vmatpush2.bf16.msra.mxu0 0
  %1670 = vmatprep.subr.bf16.mxu0 0
  %1671 = vmatpush2.bf16.msra.mxu0 0
  %1672 = vmatprep.subr.bf16.mxu0 0
  %1673 = vmatpush2.bf16.msra.mxu0 0
  %1674 = vmatprep.subr.bf16.mxu0 0
  %1675 = vmatpush2.bf16.msra.mxu0 0
  %1676 = vmatprep.subr.bf16.mxu0 0
  %1677 = vmatpush2.bf16.msra.mxu0 0
  %1678 = vmatprep.mubr.bf16.mxu0 0
  %1679 = vmatmul.mubr.bf16.gmra.mxu0 %v1644
  %v1680 = vpop.f32.mrf.mxu0
  %v1681 = vadd.f32 %v1589, %v1680
  %v1682 = vpop.f32.mrf.mxu0
  %v1683 = vpop.f32.mrf.mxu0
  %v1684 = vadd.f32 %v1590, %v1683
  %v1685 = vpop.f32.mrf.mxu0
  %1686 = vdwg.mxu0
  %v1687 = vsel %vm471, %v1562, 0.0
  %v1688 = vsel %vm472, %v1564, 0.0
  %v1689 = vsel %vm471, %v1566, 0.0
  %v1690 = vsel %vm472, %v1568, 0.0
  %v1691 = vsel %vm715, %v1687, 0.0
  %1692 = vadd.xlane.f32.xlu0 %v1691
  %v1693 = vpop.xlane.xlu0 %1692
  %v1694 = vsel %vm715, %v1688, 0.0
  %1695 = vadd.xlane.f32.xlu0 %v1694
  %v1696 = vpop.xlane.xlu0 %1695
  %v1697 = vsel %vm715, %v1689, 0.0
  %1698 = vadd.xlane.f32.xlu0 %v1697
  %v1699 = vpop.xlane.xlu0 %1698
  %v1700 = vsel %vm715, %v1690, 0.0
  %1701 = vadd.xlane.f32.xlu0 %v1700
  %v1702 = vpop.xlane.xlu0 %1701
  %v1703 = vmul.f32 %v1693, %v895
  %v1704 = vmul.f32 %v1696, %v895
  %v1705 = vmul.f32 %v1699, %v895
  %v1706 = vmul.f32 %v1702, %v895
  %v1707 = vadd.f32 %v1633, %v1703
  %v1708 = vadd.f32 %v1636, %v1704
  %v1709 = vadd.f32 %v1681, %v1705
  %v1710 = vadd.f32 %v1684, %v1706
  %v1711 = vsel %vm501, %v1562, 0.0
  %v1712 = vsel %vm502, %v1564, 0.0
  %v1713 = vsel %vm501, %v1566, 0.0
  %v1714 = vsel %vm502, %v1568, 0.0
  %v1715 = vsel %vm715, %v1711, 0.0
  %1716 = vadd.xlane.f32.xlu0 %v1715
  %v1717 = vpop.xlane.xlu0 %1716
  %v1718 = vsel %vm715, %v1712, 0.0
  %1719 = vadd.xlane.f32.xlu0 %v1718
  %v1720 = vpop.xlane.xlu0 %1719
  %v1721 = vsel %vm715, %v1713, 0.0
  %1722 = vadd.xlane.f32.xlu0 %v1721
  %v1723 = vpop.xlane.xlu0 %1722
  %v1724 = vsel %vm715, %v1714, 0.0
  %1725 = vadd.xlane.f32.xlu0 %v1724
  %v1726 = vpop.xlane.xlu0 %1725
  %v1727 = vmul.f32 %v1717, %v923
  %v1728 = vmul.f32 %v1720, %v923
  %v1729 = vmul.f32 %v1723, %v923
  %v1730 = vmul.f32 %v1726, %v923
  %v1731 = vadd.f32 %v1707, %v1727
  %v1732 = vadd.f32 %v1708, %v1728
  %v1733 = vadd.f32 %v1709, %v1729
  %v1734 = vadd.f32 %v1710, %v1730
  %v1735 = vsel %vm531, %v1562, 0.0
  %v1736 = vsel %vm532, %v1564, 0.0
  %v1737 = vsel %vm531, %v1566, 0.0
  %v1738 = vsel %vm532, %v1568, 0.0
  %v1739 = vsel %vm715, %v1735, 0.0
  %1740 = vadd.xlane.f32.xlu0 %v1739
  %v1741 = vpop.xlane.xlu0 %1740
  %v1742 = vsel %vm715, %v1736, 0.0
  %1743 = vadd.xlane.f32.xlu0 %v1742
  %v1744 = vpop.xlane.xlu0 %1743
  %v1745 = vsel %vm715, %v1737, 0.0
  %1746 = vadd.xlane.f32.xlu0 %v1745
  %v1747 = vpop.xlane.xlu0 %1746
  %v1748 = vsel %vm715, %v1738, 0.0
  %1749 = vadd.xlane.f32.xlu0 %v1748
  %v1750 = vpop.xlane.xlu0 %1749
  %v1751 = vmul.f32 %v1741, %v951
  %v1752 = vmul.f32 %v1744, %v951
  %v1753 = vmul.f32 %v1747, %v951
  %v1754 = vmul.f32 %v1750, %v951
  %v1755 = vadd.f32 %v1731, %v1751
  %v1756 = vadd.f32 %v1732, %v1752
  %v1757 = vadd.f32 %v1733, %v1753
  %v1758 = vadd.f32 %v1734, %v1754
  %v1759 = vsel %vm561, %v1562, 0.0
  %v1760 = vsel %vm562, %v1564, 0.0
  %v1761 = vsel %vm561, %v1566, 0.0
  %v1762 = vsel %vm562, %v1568, 0.0
  %v1763 = vsel %vm715, %v1759, 0.0
  %1764 = vadd.xlane.f32.xlu0 %v1763
  %v1765 = vpop.xlane.xlu0 %1764
  %v1766 = vsel %vm715, %v1760, 0.0
  %1767 = vadd.xlane.f32.xlu0 %v1766
  %v1768 = vpop.xlane.xlu0 %1767
  %v1769 = vsel %vm715, %v1761, 0.0
  %1770 = vadd.xlane.f32.xlu0 %v1769
  %v1771 = vpop.xlane.xlu0 %1770
  %v1772 = vsel %vm715, %v1762, 0.0
  %1773 = vadd.xlane.f32.xlu0 %v1772
  %v1774 = vpop.xlane.xlu0 %1773
  %v1775 = vmul.f32 %v1765, %v979
  %v1776 = vmul.f32 %v1768, %v979
  %v1777 = vmul.f32 %v1771, %v979
  %v1778 = vmul.f32 %v1774, %v979
  %v1779 = vadd.f32 %v1755, %v1775
  %v1780 = vadd.f32 %v1756, %v1776
  %v1781 = vadd.f32 %v1757, %v1777
  %v1782 = vadd.f32 %v1758, %v1778
  %v1783 = vsel %vm591, %v1562, 0.0
  %v1784 = vsel %vm592, %v1564, 0.0
  %v1785 = vsel %vm591, %v1566, 0.0
  %v1786 = vsel %vm592, %v1568, 0.0
  %v1787 = vsel %vm715, %v1783, 0.0
  %1788 = vadd.xlane.f32.xlu0 %v1787
  %v1789 = vpop.xlane.xlu0 %1788
  %v1790 = vsel %vm715, %v1784, 0.0
  %1791 = vadd.xlane.f32.xlu0 %v1790
  %v1792 = vpop.xlane.xlu0 %1791
  %v1793 = vsel %vm715, %v1785, 0.0
  %1794 = vadd.xlane.f32.xlu0 %v1793
  %v1795 = vpop.xlane.xlu0 %1794
  %v1796 = vsel %vm715, %v1786, 0.0
  %1797 = vadd.xlane.f32.xlu0 %v1796
  %v1798 = vpop.xlane.xlu0 %1797
  %v1799 = vmul.f32 %v1789, %v1007
  %v1800 = vmul.f32 %v1792, %v1007
  %v1801 = vmul.f32 %v1795, %v1007
  %v1802 = vmul.f32 %v1798, %v1007
  %v1803 = vadd.f32 %v1779, %v1799
  %v1804 = vadd.f32 %v1780, %v1800
  %v1805 = vadd.f32 %v1781, %v1801
  %v1806 = vadd.f32 %v1782, %v1802
  %v1807 = vsel %vm621, %v1562, 0.0
  %v1808 = vsel %vm622, %v1564, 0.0
  %v1809 = vsel %vm621, %v1566, 0.0
  %v1810 = vsel %vm622, %v1568, 0.0
  %v1811 = vsel %vm715, %v1807, 0.0
  %1812 = vadd.xlane.f32.xlu0 %v1811
  %v1813 = vpop.xlane.xlu0 %1812
  %v1814 = vsel %vm715, %v1808, 0.0
  %1815 = vadd.xlane.f32.xlu0 %v1814
  %v1816 = vpop.xlane.xlu0 %1815
  %v1817 = vsel %vm715, %v1809, 0.0
  %1818 = vadd.xlane.f32.xlu0 %v1817
  %v1819 = vpop.xlane.xlu0 %1818
  %v1820 = vsel %vm715, %v1810, 0.0
  %1821 = vadd.xlane.f32.xlu0 %v1820
  %v1822 = vpop.xlane.xlu0 %1821
  %v1823 = vmul.f32 %v1813, %v1035
  %v1824 = vmul.f32 %v1816, %v1035
  %v1825 = vmul.f32 %v1819, %v1035
  %v1826 = vmul.f32 %v1822, %v1035
  %v1827 = vadd.f32 %v1803, %v1823
  %v1828 = vadd.f32 %v1804, %v1824
  %v1829 = vadd.f32 %v1805, %v1825
  %v1830 = vadd.f32 %v1806, %v1826
  %v1831 = vsel %vm651, %v1562, 0.0
  %v1832 = vsel %vm652, %v1564, 0.0
  %v1833 = vsel %vm651, %v1566, 0.0
  %v1834 = vsel %vm652, %v1568, 0.0
  %v1835 = vsel %vm715, %v1831, 0.0
  %1836 = vadd.xlane.f32.xlu0 %v1835
  %v1837 = vpop.xlane.xlu0 %1836
  %v1838 = vsel %vm715, %v1832, 0.0
  %1839 = vadd.xlane.f32.xlu0 %v1838
  %v1840 = vpop.xlane.xlu0 %1839
  %v1841 = vsel %vm715, %v1833, 0.0
  %1842 = vadd.xlane.f32.xlu0 %v1841
  %v1843 = vpop.xlane.xlu0 %1842
  %v1844 = vsel %vm715, %v1834, 0.0
  %1845 = vadd.xlane.f32.xlu0 %v1844
  %v1846 = vpop.xlane.xlu0 %1845
  %v1847 = vmul.f32 %v1837, %v1063
  %v1848 = vmul.f32 %v1840, %v1063
  %v1849 = vmul.f32 %v1843, %v1063
  %v1850 = vmul.f32 %v1846, %v1063
  %v1851 = vadd.f32 %v1827, %v1847
  %v1852 = vadd.f32 %v1828, %v1848
  %v1853 = vadd.f32 %v1829, %v1849
  %v1854 = vadd.f32 %v1830, %v1850
  %v1855 = vsel %vm681, %v1562, 0.0
  %v1856 = vsel %vm682, %v1564, 0.0
  %v1857 = vsel %vm681, %v1566, 0.0
  %v1858 = vsel %vm682, %v1568, 0.0
  %v1859 = vsel %vm715, %v1855, 0.0
  %1860 = vadd.xlane.f32.xlu0 %v1859
  %v1861 = vpop.xlane.xlu0 %1860
  %v1862 = vsel %vm715, %v1856, 0.0
  %1863 = vadd.xlane.f32.xlu0 %v1862
  %v1864 = vpop.xlane.xlu0 %1863
  %v1865 = vsel %vm715, %v1857, 0.0
  %1866 = vadd.xlane.f32.xlu0 %v1865
  %v1867 = vpop.xlane.xlu0 %1866
  %v1868 = vsel %vm715, %v1858, 0.0
  %1869 = vadd.xlane.f32.xlu0 %v1868
  %v1870 = vpop.xlane.xlu0 %1869
  %v1871 = vmul.f32 %v1861, %v1091
  %v1872 = vmul.f32 %v1864, %v1091
  %v1873 = vmul.f32 %v1867, %v1091
  %v1874 = vmul.f32 %v1870, %v1091
  %v1875 = vadd.f32 %v1851, %v1871
  %v1876 = vadd.f32 %v1852, %v1872
  %v1877 = vadd.f32 %v1853, %v1873
  %v1878 = vadd.f32 %v1854, %v1874
  %1883 = vrot.lane.b32.xlu0 %v1875, 32
  %v1884 = vpop.permute.xlu0 %1883
  %1885 = vrot.lane.b32.xlu0 %v1876, 32
  %v1886 = vpop.permute.xlu0 %1885
  %1887 = vrot.lane.b32.xlu0 %v1877, 32
  %v1888 = vpop.permute.xlu0 %1887
  %1889 = vrot.lane.b32.xlu0 %v1878, 32
  %v1890 = vpop.permute.xlu0 %1889
  %v1895 = vsel %vm239, %v1096, %v1884
  %v1896 = vsel %vm239, %v1097, %v1886
  %v1897 = vsel %vm239, %v1098, %v1888
  %v1898 = vsel %vm239, %v1099, %v1890
  %v1899 = vpack.c.bf16 %v1896, %v1895
  %v1900 = vpack.c.bf16 %v1898, %v1897
  %v1901 = vld [vmem:[%s4] sm:$0xf]
  %v1902 = vld [vmem:[%s4 + $0x4] sm:$0xf]
  %v1903 = vld [vmem:[%s4 + $0x8] sm:$0xf]
  %v1904 = vld [vmem:[%s4 + $0xc] sm:$0xf]
  %v1905 = vld [vmem:[%s4 + $0x10] sm:$0xf]
  %v1906 = vld [vmem:[%s4 + $0x14] sm:$0xf]
  %v1907 = vld [vmem:[%s4 + $0x18] sm:$0xf]
  %v1908 = vld [vmem:[%s4 + $0x1c] sm:$0xf]
  %v1909 = vld [vmem:[%s5] sm:$0x1]
  %v1911 = vlaneseq
  %v1912 = vshrl.u32 %v1911, 7
  %v1913 = vsub.s32 0, %v1912
  %v1914 = vrot.slane %v1909, %v1913
  %v1924 = vunpack.c.l.b16 %v1901
  %v1925 = vunpack.c.l.b16 %v1902
  %v1926 = vunpack.c.l.b16 %v1903
  %v1927 = vunpack.c.l.b16 %v1904
  %v1928 = vunpack.c.l.b16 %v1905
  %v1929 = vunpack.c.l.b16 %v1906
  %v1930 = vunpack.c.l.b16 %v1907
  %v1931 = vunpack.c.l.b16 %v1908
  %v1932 = vpack.c.b16 %v1925, %v1924
  %v1933 = vpack.c.b16 %v1927, %v1926
  %v1934 = vpack.c.b16 %v1929, %v1928
  %v1935 = vpack.c.b16 %v1931, %v1930
  %v1941 = vsel %vm165, %v1899, 0
  %v1944 = vsel %vm165, %v1900, 0
  %1946 = vmatprep.subr.bf16.mxu0 0
  %1947 = vmatpush1.bf16.msra.mxu0 0
  %1948 = vmatprep.subr.bf16.mxu0 0
  %1949 = vmatpush1.bf16.msra.mxu0 0
  %1950 = vmatprep.subr.bf16.mxu0 0
  %1951 = vmatpush1.bf16.msra.mxu0 0
  %1952 = vmatprep.subr.bf16.mxu0 0
  %1953 = vmatpush1.bf16.msra.mxu0 0
  %1954 = vmatprep.subr.bf16.mxu0 0
  %1955 = vmatpush1.bf16.msra.mxu0 %v1935
  %1956 = vmatprep.subr.bf16.mxu0 0
  %1957 = vmatpush1.bf16.msra.mxu0 %v1934
  %1958 = vmatprep.subr.bf16.mxu0 0
  %1959 = vmatpush1.bf16.msra.mxu0 %v1933
  %1960 = vmatprep.subr.bf16.mxu0 0
  %1961 = vmatpush1.bf16.msra.mxu0 %v1932
  %1962 = vmatprep.subr.bf16.mxu0 0
  %1963 = vmatpush2.bf16.msra.mxu0 0
  %1964 = vmatprep.subr.bf16.mxu0 0
  %1965 = vmatpush2.bf16.msra.mxu0 0
  %1966 = vmatprep.subr.bf16.mxu0 0
  %1967 = vmatpush2.bf16.msra.mxu0 0
  %1968 = vmatprep.subr.bf16.mxu0 0
  %1969 = vmatpush2.bf16.msra.mxu0 0
  %1970 = vmatprep.subr.bf16.mxu0 0
  %1971 = vmatpush2.bf16.msra.mxu0 0
  %1972 = vmatprep.subr.bf16.mxu0 0
  %1973 = vmatpush2.bf16.msra.mxu0 0
  %1974 = vmatprep.subr.bf16.mxu0 0
  %1975 = vmatpush2.bf16.msra.mxu0 0
  %1976 = vmatprep.subr.bf16.mxu0 0
  %1977 = vmatpush2.bf16.msra.mxu0 0
  %1978 = vmatprep.mubr.bf16.mxu0 0
  %1979 = vmatmul.mubr.bf16.gmra.mxu0 %v1941
  %v1980 = vpop.f32.mrf.mxu0
  %v1981 = vadd.f32 %v1914, %v1980
  %v1982 = vpop.f32.mrf.mxu0
  %v1983 = vpop.f32.mrf.mxu0
  %v1984 = vadd.f32 %v1914, %v1983
  %v1985 = vpop.f32.mrf.mxu0
  %1986 = vmatprep.mubr.bf16.mxu0 0
  %1987 = vmatmul.mubr.bf16.gmra.mxu0 %v1944
  %v1988 = vpop.f32.mrf.mxu0
  %v1989 = vadd.f32 %v1914, %v1988
  %v1990 = vpop.f32.mrf.mxu0
  %v1991 = vpop.f32.mrf.mxu0
  %v1992 = vadd.f32 %v1914, %v1991
  %v1993 = vpop.f32.mrf.mxu0
  %1994 = vdwg.mxu0
  %v1995 = vadd.f32 %v99, %v1981
  %v1996 = vadd.f32 %v100, %v1984
  %v1997 = vadd.f32 %v101, %v1989
  %v1998 = vadd.f32 %v102, %v1992
  %v1999 = vld [vmem:[%s8] sm:$0x1]
  %v2000 = vld [vmem:[%s9] sm:$0x1]
  %v2001 = vsel %vm165, %v1995, 0.0
  %2002 = vadd.xlane.f32.xlu0 %v2001
  %v2003 = vpop.xlane.xlu0 %2002
  %v2004 = vsel %vm165, %v1996, 0.0
  %2005 = vadd.xlane.f32.xlu0 %v2004
  %v2006 = vpop.xlane.xlu0 %2005
  %v2007 = vsel %vm165, %v1997, 0.0
  %2008 = vadd.xlane.f32.xlu0 %v2007
  %v2009 = vpop.xlane.xlu0 %2008
  %v2010 = vsel %vm165, %v1998, 0.0
  %2011 = vadd.xlane.f32.xlu0 %v2010
  %v2012 = vpop.xlane.xlu0 %2011
  %v2013 = vrcp.pop 64.0
  %v2014 = vmul.f32 %v2003, %v2013
  %v2015 = vmul.f32 %v2006, %v2013
  %v2016 = vmul.f32 %v2009, %v2013
  %v2017 = vmul.f32 %v2012, %v2013
  %v2018 = vsub.f32 %v1995, %v2014
  %v2019 = vsub.f32 %v1996, %v2015
  %v2020 = vsub.f32 %v1997, %v2016
  %v2021 = vsub.f32 %v1998, %v2017
  %v2022 = vmul.f32 %v2018, %v2018
  %v2023 = vmul.f32 %v2019, %v2019
  %v2024 = vmul.f32 %v2020, %v2020
  %v2025 = vmul.f32 %v2021, %v2021
  %v2026 = vsel %vm165, %v2022, 0.0
  %2027 = vadd.xlane.f32.xlu0 %v2026
  %v2028 = vpop.xlane.xlu0 %2027
  %v2029 = vsel %vm165, %v2023, 0.0
  %2030 = vadd.xlane.f32.xlu0 %v2029
  %v2031 = vpop.xlane.xlu0 %2030
  %v2032 = vsel %vm165, %v2024, 0.0
  %2033 = vadd.xlane.f32.xlu0 %v2032
  %v2034 = vpop.xlane.xlu0 %2033
  %v2035 = vsel %vm165, %v2025, 0.0
  %2036 = vadd.xlane.f32.xlu0 %v2035
  %v2037 = vpop.xlane.xlu0 %2036
  %v2038 = vmul.f32 %v2028, %v2013
  %v2039 = vmul.f32 %v2031, %v2013
  %v2040 = vmul.f32 %v2034, %v2013
  %v2041 = vmul.f32 %v2037, %v2013
  %v2042 = vadd.f32 %v2038, 1e-05
  %v2043 = vadd.f32 %v2039, 1e-05
  %v2044 = vadd.f32 %v2040, 1e-05
  %v2045 = vadd.f32 %v2041, 1e-05
  %v2046 = vrsqrt.pop %v2042
  %v2047 = vrsqrt.pop %v2043
  %v2048 = vrsqrt.pop %v2044
  %v2049 = vrsqrt.pop %v2045
  %v2050 = vmul.f32 %v2018, %v2046
  %v2051 = vmul.f32 %v2019, %v2047
  %v2052 = vmul.f32 %v2020, %v2048
  %v2053 = vmul.f32 %v2021, %v2049
  %v2055 = vlaneseq
  %v2056 = vshrl.u32 %v2055, 7
  %v2057 = vsub.s32 0, %v2056
  %v2058 = vrot.slane %v1999, %v2057
  %v2060 = vmul.f32 %v2050, %v2058
  %v2061 = vmul.f32 %v2051, %v2058
  %v2062 = vmul.f32 %v2052, %v2058
  %v2063 = vmul.f32 %v2053, %v2058
  %v2065 = vlaneseq
  %v2066 = vshrl.u32 %v2065, 7
  %v2067 = vsub.s32 0, %v2066
  %v2068 = vrot.slane %v2000, %v2067
  %v2070 = vadd.f32 %v2060, %v2068
  %v2071 = vadd.f32 %v2061, %v2068
  %v2072 = vadd.f32 %v2062, %v2068
  %v2073 = vadd.f32 %v2063, %v2068
  %v2074 = vmul.f32 %v2070, %v77
  %v2075 = vmul.f32 %v2071, %v78
  %v2076 = vmul.f32 %v2072, %v79
  %v2077 = vmul.f32 %v2073, %v80
  %v2078 = vld [vmem:[%s10] sm:$0xf]
  %v2079 = vld [vmem:[%s10 + $0x4] sm:$0xf]
  %v2080 = vld [vmem:[%s10 + $0x8] sm:$0xf]
  %v2081 = vld [vmem:[%s10 + $0xc] sm:$0xf]
  %v2082 = vld [vmem:[%s10 + $0x10] sm:$0xf]
  %v2083 = vld [vmem:[%s10 + $0x14] sm:$0xf]
  %v2084 = vld [vmem:[%s10 + $0x18] sm:$0xf]
  %v2085 = vld [vmem:[%s10 + $0x1c] sm:$0xf]
  %v2086 = vld [vmem:[%s10 + $0x20] sm:$0xf]
  %v2087 = vld [vmem:[%s10 + $0x24] sm:$0xf]
  %v2088 = vld [vmem:[%s10 + $0x28] sm:$0xf]
  %v2089 = vld [vmem:[%s10 + $0x2c] sm:$0xf]
  %v2090 = vld [vmem:[%s10 + $0x30] sm:$0xf]
  %v2091 = vld [vmem:[%s10 + $0x34] sm:$0xf]
  %v2092 = vld [vmem:[%s10 + $0x38] sm:$0xf]
  %v2093 = vld [vmem:[%s10 + $0x3c] sm:$0xf]
  %v2094 = vld [vmem:[%s10 + $0x40] sm:$0xf]
  %v2095 = vld [vmem:[%s10 + $0x44] sm:$0xf]
  %v2096 = vld [vmem:[%s10 + $0x48] sm:$0xf]
  %v2097 = vld [vmem:[%s10 + $0x4c] sm:$0xf]
  %v2098 = vld [vmem:[%s10 + $0x50] sm:$0xf]
  %v2099 = vld [vmem:[%s10 + $0x54] sm:$0xf]
  %v2100 = vld [vmem:[%s10 + $0x58] sm:$0xf]
  %v2101 = vld [vmem:[%s10 + $0x5c] sm:$0xf]
  %v2102 = vld [vmem:[%s11] sm:$0x1]
  %vm2107 = vcmask 1040384
  %v2108 = vrot.slane %v2074, 7
  %v2109 = vrot.slane %v2075, 7
  %v2110 = vsel %vm2107, %v2108, %v2109
  %v2111 = vrot.slane %v2076, 7
  %v2112 = vrot.slane %v2077, 7
  %v2113 = vsel %vm2107, %v2111, %v2112
  %v2118 = vsel %vm2107, 0.0, %v2108
  %v2119 = vsel %vm2107, 0.0, %v2111
  %vm2120 = vcmask 1046528
  %v2121 = vrot.slane %v2074, 1
  %v2122 = vrot.slane %v2075, 1
  %v2123 = vsel %vm2120, %v2121, %v2122
  %v2124 = vrot.slane %v2076, 1
  %v2125 = vrot.slane %v2077, 1
  %v2126 = vsel %vm2120, %v2124, %v2125
  %v2131 = vsel %vm2120, %v2122, 0.0
  %v2132 = vsel %vm2120, %v2125, 0.0
  %2133 = vrot.lane.b32.xlu0 %v2074, 64
  %v2134 = vpop.permute.xlu0 %2133
  %2135 = vrot.lane.b32.xlu0 %v2075, 64
  %v2136 = vpop.permute.xlu0 %2135
  %2137 = vrot.lane.b32.xlu0 %v2076, 64
  %v2138 = vpop.permute.xlu0 %2137
  %2139 = vrot.lane.b32.xlu0 %v2077, 64
  %v2140 = vpop.permute.xlu0 %2139
  %v2145 = vsel %vm165, %v2118, %v2134
  %v2146 = vsel %vm165, %v2110, %v2136
  %v2147 = vsel %vm165, %v2119, %v2138
  %v2148 = vsel %vm165, %v2113, %v2140
  %v2149 = vpack.c.bf16 %v2146, %v2145
  %v2150 = vpack.c.bf16 %v2131, %v2123
  %v2151 = vpack.c.bf16 %v2148, %v2147
  %v2152 = vpack.c.bf16 %v2132, %v2126
  %v2154 = vlaneseq
  %v2155 = vshrl.u32 %v2154, 7
  %v2156 = vsub.s32 0, %v2155
  %v2157 = vrot.slane %v2102, %v2156
  %v2183 = vunpack.c.l.b16 %v2078
  %v2184 = vunpack.c.l.b16 %v2079
  %v2185 = vunpack.c.l.b16 %v2080
  %v2186 = vunpack.c.l.b16 %v2081
  %v2187 = vunpack.c.l.b16 %v2082
  %v2188 = vunpack.c.l.b16 %v2083
  %v2189 = vunpack.c.l.b16 %v2084
  %v2190 = vunpack.c.l.b16 %v2085
  %v2191 = vunpack.c.l.b16 %v2086
  %v2192 = vunpack.c.l.b16 %v2087
  %v2193 = vunpack.c.l.b16 %v2088
  %v2194 = vunpack.c.l.b16 %v2089
  %v2195 = vunpack.c.l.b16 %v2090
  %v2196 = vunpack.c.l.b16 %v2091
  %v2197 = vunpack.c.l.b16 %v2092
  %v2198 = vunpack.c.l.b16 %v2093
  %v2199 = vunpack.c.l.b16 %v2094
  %v2200 = vunpack.c.l.b16 %v2095
  %v2201 = vunpack.c.l.b16 %v2096
  %v2202 = vunpack.c.l.b16 %v2097
  %v2203 = vunpack.c.l.b16 %v2098
  %v2204 = vunpack.c.l.b16 %v2099
  %v2205 = vunpack.c.l.b16 %v2100
  %v2206 = vunpack.c.l.b16 %v2101
  %v2207 = vpack.c.b16 %v2184, %v2183
  %v2208 = vpack.c.b16 %v2186, %v2185
  %v2209 = vpack.c.b16 %v2188, %v2187
  %v2210 = vpack.c.b16 %v2190, %v2189
  %v2211 = vpack.c.b16 %v2192, %v2191
  %v2212 = vpack.c.b16 %v2194, %v2193
  %v2213 = vpack.c.b16 %v2196, %v2195
  %v2214 = vpack.c.b16 %v2198, %v2197
  %v2215 = vpack.c.b16 %v2200, %v2199
  %v2216 = vpack.c.b16 %v2202, %v2201
  %v2217 = vpack.c.b16 %v2204, %v2203
  %v2218 = vpack.c.b16 %v2206, %v2205
  %v2232 = vsel %vm165, %v2150, 0
  %v2235 = vsel %vm165, %v2152, 0
  %2237 = vmatprep.subr.bf16.mxu0 0
  %2238 = vmatpush1.bf16.msra.mxu0 %v2214
  %2239 = vmatprep.subr.bf16.mxu0 0
  %2240 = vmatpush1.bf16.msra.mxu0 %v2213
  %2241 = vmatprep.subr.bf16.mxu0 0
  %2242 = vmatpush1.bf16.msra.mxu0 %v2212
  %2243 = vmatprep.subr.bf16.mxu0 0
  %2244 = vmatpush1.bf16.msra.mxu0 %v2211
  %2245 = vmatprep.subr.bf16.mxu0 0
  %2246 = vmatpush1.bf16.msra.mxu0 %v2210
  %2247 = vmatprep.subr.bf16.mxu0 0
  %2248 = vmatpush1.bf16.msra.mxu0 %v2209
  %2249 = vmatprep.subr.bf16.mxu0 0
  %2250 = vmatpush1.bf16.msra.mxu0 %v2208
  %2251 = vmatprep.subr.bf16.mxu0 0
  %2252 = vmatpush1.bf16.msra.mxu0 %v2207
  %2253 = vmatprep.subr.bf16.mxu0 0
  %2254 = vmatpush2.bf16.msra.mxu0 0
  %2255 = vmatprep.subr.bf16.mxu0 0
  %2256 = vmatpush2.bf16.msra.mxu0 0
  %2257 = vmatprep.subr.bf16.mxu0 0
  %2258 = vmatpush2.bf16.msra.mxu0 0
  %2259 = vmatprep.subr.bf16.mxu0 0
  %2260 = vmatpush2.bf16.msra.mxu0 0
  %2261 = vmatprep.subr.bf16.mxu0 0
  %2262 = vmatpush2.bf16.msra.mxu0 %v2218
  %2263 = vmatprep.subr.bf16.mxu0 0
  %2264 = vmatpush2.bf16.msra.mxu0 %v2217
  %2265 = vmatprep.subr.bf16.mxu0 0
  %2266 = vmatpush2.bf16.msra.mxu0 %v2216
  %2267 = vmatprep.subr.bf16.mxu0 0
  %2268 = vmatpush2.bf16.msra.mxu0 %v2215
  %2269 = vmatprep.mubr.bf16.mxu0 %v2232
  %2270 = vmatmul.mubr.bf16.gmra.mxu0 %v2149
  %v2271 = vpop.f32.mrf.mxu0
  %v2272 = vadd.f32 %v2157, %v2271
  %v2273 = vpop.f32.mrf.mxu0
  %v2274 = vpop.f32.mrf.mxu0
  %v2275 = vadd.f32 %v2157, %v2274
  %v2276 = vpop.f32.mrf.mxu0
  %2277 = vmatprep.mubr.bf16.mxu0 %v2235
  %2278 = vmatmul.mubr.bf16.gmra.mxu0 %v2151
  %v2279 = vpop.f32.mrf.mxu0
  %v2280 = vadd.f32 %v2157, %v2279
  %v2281 = vpop.f32.mrf.mxu0
  %v2282 = vpop.f32.mrf.mxu0
  %v2283 = vadd.f32 %v2157, %v2282
  %v2284 = vpop.f32.mrf.mxu0
  %2285 = vdwg.mxu0
  %v2286 = vmax.f32 %v2272, 0.0
  %v2287 = vmax.f32 %v2275, 0.0
  %v2288 = vmax.f32 %v2280, 0.0
  %v2289 = vmax.f32 %v2283, 0.0
  %v2290 = vmul.f32 %v2286, %v77
  %v2291 = vmul.f32 %v2287, %v78
  %v2292 = vmul.f32 %v2288, %v79
  %v2293 = vmul.f32 %v2289, %v80
  %v2294 = vld [vmem:[%s12] sm:$0xf]
  %v2295 = vld [vmem:[%s12 + $0x4] sm:$0xf]
  %v2296 = vld [vmem:[%s12 + $0x8] sm:$0xf]
  %v2297 = vld [vmem:[%s12 + $0xc] sm:$0xf]
  %v2298 = vld [vmem:[%s12 + $0x10] sm:$0xf]
  %v2299 = vld [vmem:[%s12 + $0x14] sm:$0xf]
  %v2300 = vld [vmem:[%s12 + $0x18] sm:$0xf]
  %v2301 = vld [vmem:[%s12 + $0x1c] sm:$0xf]
  %v2302 = vld [vmem:[%s12 + $0x20] sm:$0xf]
  %v2303 = vld [vmem:[%s12 + $0x24] sm:$0xf]
  %v2304 = vld [vmem:[%s12 + $0x28] sm:$0xf]
  %v2305 = vld [vmem:[%s12 + $0x2c] sm:$0xf]
  %v2306 = vld [vmem:[%s12 + $0x30] sm:$0xf]
  %v2307 = vld [vmem:[%s12 + $0x34] sm:$0xf]
  %v2308 = vld [vmem:[%s12 + $0x38] sm:$0xf]
  %v2309 = vld [vmem:[%s12 + $0x3c] sm:$0xf]
  %v2310 = vld [vmem:[%s12 + $0x40] sm:$0xf]
  %v2311 = vld [vmem:[%s12 + $0x44] sm:$0xf]
  %v2312 = vld [vmem:[%s12 + $0x48] sm:$0xf]
  %v2313 = vld [vmem:[%s12 + $0x4c] sm:$0xf]
  %v2314 = vld [vmem:[%s12 + $0x50] sm:$0xf]
  %v2315 = vld [vmem:[%s12 + $0x54] sm:$0xf]
  %v2316 = vld [vmem:[%s12 + $0x58] sm:$0xf]
  %v2317 = vld [vmem:[%s12 + $0x5c] sm:$0xf]
  %v2318 = vld [vmem:[%s12 + $0x60] sm:$0xf]
  %v2319 = vld [vmem:[%s12 + $0x64] sm:$0xf]
  %v2320 = vld [vmem:[%s12 + $0x68] sm:$0xf]
  %v2321 = vld [vmem:[%s12 + $0x6c] sm:$0xf]
  %v2322 = vld [vmem:[%s12 + $0x70] sm:$0xf]
  %v2323 = vld [vmem:[%s12 + $0x74] sm:$0xf]
  %v2324 = vld [vmem:[%s12 + $0x78] sm:$0xf]
  %v2325 = vld [vmem:[%s12 + $0x7c] sm:$0xf]
  %v2326 = vld [vmem:[%s12 + $0x80] sm:$0xf]
  %v2327 = vld [vmem:[%s12 + $0x84] sm:$0xf]
  %v2328 = vld [vmem:[%s12 + $0x88] sm:$0xf]
  %v2329 = vld [vmem:[%s12 + $0x8c] sm:$0xf]
  %v2330 = vld [vmem:[%s12 + $0x90] sm:$0xf]
  %v2331 = vld [vmem:[%s12 + $0x94] sm:$0xf]
  %v2332 = vld [vmem:[%s12 + $0x98] sm:$0xf]
  %v2333 = vld [vmem:[%s12 + $0x9c] sm:$0xf]
  %v2334 = vld [vmem:[%s12 + $0xa0] sm:$0xf]
  %v2335 = vld [vmem:[%s12 + $0xa4] sm:$0xf]
  %v2336 = vld [vmem:[%s12 + $0xa8] sm:$0xf]
  %v2337 = vld [vmem:[%s12 + $0xac] sm:$0xf]
  %v2338 = vld [vmem:[%s12 + $0xb0] sm:$0xf]
  %v2339 = vld [vmem:[%s12 + $0xb4] sm:$0xf]
  %v2340 = vld [vmem:[%s12 + $0xb8] sm:$0xf]
  %v2341 = vld [vmem:[%s12 + $0xbc] sm:$0xf]
  %v2342 = vld [vmem:[%s13] sm:$0x1]
  %v2347 = vrot.slane %v2290, 7
  %v2348 = vrot.slane %v2291, 7
  %v2349 = vsel %vm2107, %v2347, %v2348
  %v2350 = vrot.slane %v2292, 7
  %v2351 = vrot.slane %v2293, 7
  %v2352 = vsel %vm2107, %v2350, %v2351
  %v2357 = vsel %vm2107, 0.0, %v2347
  %v2358 = vsel %vm2107, 0.0, %v2350
  %v2359 = vrot.slane %v2290, 1
  %v2360 = vrot.slane %v2291, 1
  %v2361 = vsel %vm2120, %v2359, %v2360
  %v2362 = vrot.slane %v2292, 1
  %v2363 = vrot.slane %v2293, 1
  %v2364 = vsel %vm2120, %v2362, %v2363
  %v2369 = vsel %vm2120, %v2360, 0.0
  %v2370 = vsel %vm2120, %v2363, 0.0
  %v2371 = vpack.c.bf16 %v2349, %v2357
  %v2372 = vpack.c.bf16 %v2291, %v2290
  %v2373 = vpack.c.bf16 %v2369, %v2361
  %v2374 = vpack.c.bf16 %v2352, %v2358
  %v2375 = vpack.c.bf16 %v2293, %v2292
  %v2376 = vpack.c.bf16 %v2370, %v2364
  %v2378 = vlaneseq
  %v2379 = vshrl.u32 %v2378, 7
  %v2380 = vsub.s32 0, %v2379
  %v2381 = vrot.slane %v2342, %v2380
  %v2431 = vunpack.c.l.b16 %v2294
  %v2432 = vunpack.c.l.b16 %v2295
  %v2433 = vunpack.c.l.b16 %v2296
  %v2434 = vunpack.c.l.b16 %v2297
  %v2435 = vunpack.c.l.b16 %v2298
  %v2436 = vunpack.c.l.b16 %v2299
  %v2437 = vunpack.c.l.b16 %v2300
  %v2438 = vunpack.c.l.b16 %v2301
  %v2439 = vunpack.c.l.b16 %v2302
  %v2440 = vunpack.c.l.b16 %v2303
  %v2441 = vunpack.c.l.b16 %v2304
  %v2442 = vunpack.c.l.b16 %v2305
  %v2443 = vunpack.c.l.b16 %v2306
  %v2444 = vunpack.c.l.b16 %v2307
  %v2445 = vunpack.c.l.b16 %v2308
  %v2446 = vunpack.c.l.b16 %v2309
  %v2447 = vunpack.c.l.b16 %v2310
  %v2448 = vunpack.c.l.b16 %v2311
  %v2449 = vunpack.c.l.b16 %v2312
  %v2450 = vunpack.c.l.b16 %v2313
  %v2451 = vunpack.c.l.b16 %v2314
  %v2452 = vunpack.c.l.b16 %v2315
  %v2453 = vunpack.c.l.b16 %v2316
  %v2454 = vunpack.c.l.b16 %v2317
  %v2455 = vunpack.c.l.b16 %v2318
  %v2456 = vunpack.c.l.b16 %v2319
  %v2457 = vunpack.c.l.b16 %v2320
  %v2458 = vunpack.c.l.b16 %v2321
  %v2459 = vunpack.c.l.b16 %v2322
  %v2460 = vunpack.c.l.b16 %v2323
  %v2461 = vunpack.c.l.b16 %v2324
  %v2462 = vunpack.c.l.b16 %v2325
  %v2463 = vunpack.c.l.b16 %v2326
  %v2464 = vunpack.c.l.b16 %v2327
  %v2465 = vunpack.c.l.b16 %v2328
  %v2466 = vunpack.c.l.b16 %v2329
  %v2467 = vunpack.c.l.b16 %v2330
  %v2468 = vunpack.c.l.b16 %v2331
  %v2469 = vunpack.c.l.b16 %v2332
  %v2470 = vunpack.c.l.b16 %v2333
  %v2471 = vunpack.c.l.b16 %v2334
  %v2472 = vunpack.c.l.b16 %v2335
  %v2473 = vunpack.c.l.b16 %v2336
  %v2474 = vunpack.c.l.b16 %v2337
  %v2475 = vunpack.c.l.b16 %v2338
  %v2476 = vunpack.c.l.b16 %v2339
  %v2477 = vunpack.c.l.b16 %v2340
  %v2478 = vunpack.c.l.b16 %v2341
  %v2479 = vpack.c.b16 %v2432, %v2431
  %v2480 = vpack.c.b16 %v2434, %v2433
  %v2481 = vpack.c.b16 %v2436, %v2435
  %v2482 = vpack.c.b16 %v2438, %v2437
  %v2483 = vpack.c.b16 %v2440, %v2439
  %v2484 = vpack.c.b16 %v2442, %v2441
  %v2485 = vpack.c.b16 %v2444, %v2443
  %v2486 = vpack.c.b16 %v2446, %v2445
  %v2487 = vpack.c.b16 %v2448, %v2447
  %v2488 = vpack.c.b16 %v2450, %v2449
  %v2489 = vpack.c.b16 %v2452, %v2451
  %v2490 = vpack.c.b16 %v2454, %v2453
  %v2491 = vpack.c.b16 %v2456, %v2455
  %v2492 = vpack.c.b16 %v2458, %v2457
  %v2493 = vpack.c.b16 %v2460, %v2459
  %v2494 = vpack.c.b16 %v2462, %v2461
  %v2495 = vpack.c.b16 %v2464, %v2463
  %v2496 = vpack.c.b16 %v2466, %v2465
  %v2497 = vpack.c.b16 %v2468, %v2467
  %v2498 = vpack.c.b16 %v2470, %v2469
  %v2499 = vpack.c.b16 %v2472, %v2471
  %v2500 = vpack.c.b16 %v2474, %v2473
  %v2501 = vpack.c.b16 %v2476, %v2475
  %v2502 = vpack.c.b16 %v2478, %v2477
  %2527 = vmatprep.subr.bf16.mxu0 0
  %2528 = vmatpush1.bf16.msra.mxu0 %v2486
  %2529 = vmatprep.subr.bf16.mxu0 0
  %2530 = vmatpush1.bf16.msra.mxu0 %v2485
  %2531 = vmatprep.subr.bf16.mxu0 0
  %2532 = vmatpush1.bf16.msra.mxu0 %v2484
  %2533 = vmatprep.subr.bf16.mxu0 0
  %2534 = vmatpush1.bf16.msra.mxu0 %v2483
  %2535 = vmatprep.subr.bf16.mxu0 0
  %2536 = vmatpush1.bf16.msra.mxu0 %v2482
  %2537 = vmatprep.subr.bf16.mxu0 0
  %2538 = vmatpush1.bf16.msra.mxu0 %v2481
  %2539 = vmatprep.subr.bf16.mxu0 0
  %2540 = vmatpush1.bf16.msra.mxu0 %v2480
  %2541 = vmatprep.subr.bf16.mxu0 0
  %2542 = vmatpush1.bf16.msra.mxu0 %v2479
  %2543 = vmatprep.subr.bf16.mxu0 0
  %2544 = vmatpush2.bf16.msra.mxu0 %v2494
  %2545 = vmatprep.subr.bf16.mxu0 0
  %2546 = vmatpush2.bf16.msra.mxu0 %v2493
  %2547 = vmatprep.subr.bf16.mxu0 0
  %2548 = vmatpush2.bf16.msra.mxu0 %v2492
  %2549 = vmatprep.subr.bf16.mxu0 0
  %2550 = vmatpush2.bf16.msra.mxu0 %v2491
  %2551 = vmatprep.subr.bf16.mxu0 0
  %2552 = vmatpush2.bf16.msra.mxu0 %v2490
  %2553 = vmatprep.subr.bf16.mxu0 0
  %2554 = vmatpush2.bf16.msra.mxu0 %v2489
  %2555 = vmatprep.subr.bf16.mxu0 0
  %2556 = vmatpush2.bf16.msra.mxu0 %v2488
  %2557 = vmatprep.subr.bf16.mxu0 0
  %2558 = vmatpush2.bf16.msra.mxu0 %v2487
  %2559 = vmatprep.mubr.bf16.mxu0 %v2372
  %2560 = vmatmul.mubr.bf16.gmra.mxu0 %v2371
  %v2561 = vpop.f32.mrf.mxu0
  %v2562 = vadd.f32 %v2381, %v2561
  %v2563 = vpop.f32.mrf.mxu0
  %v2564 = vpop.f32.mrf.mxu0
  %v2565 = vadd.f32 %v2381, %v2564
  %v2566 = vpop.f32.mrf.mxu0
  %2567 = vmatprep.mubr.bf16.mxu0 %v2375
  %2568 = vmatmul.mubr.bf16.gmra.mxu0 %v2374
  %v2569 = vpop.f32.mrf.mxu0
  %v2570 = vadd.f32 %v2381, %v2569
  %v2571 = vpop.f32.mrf.mxu0
  %v2572 = vpop.f32.mrf.mxu0
  %v2573 = vadd.f32 %v2381, %v2572
  %v2574 = vpop.f32.mrf.mxu0
  %2575 = vdwg.mxu0
  %2576 = vmatprep.subr.bf16.mxu0 0
  %2577 = vmatpush1.bf16.msra.mxu0 %v2502
  %2578 = vmatprep.subr.bf16.mxu0 0
  %2579 = vmatpush1.bf16.msra.mxu0 %v2501
  %2580 = vmatprep.subr.bf16.mxu0 0
  %2581 = vmatpush1.bf16.msra.mxu0 %v2500
  %2582 = vmatprep.subr.bf16.mxu0 0
  %2583 = vmatpush1.bf16.msra.mxu0 %v2499
  %2584 = vmatprep.subr.bf16.mxu0 0
  %2585 = vmatpush1.bf16.msra.mxu0 %v2498
  %2586 = vmatprep.subr.bf16.mxu0 0
  %2587 = vmatpush1.bf16.msra.mxu0 %v2497
  %2588 = vmatprep.subr.bf16.mxu0 0
  %2589 = vmatpush1.bf16.msra.mxu0 %v2496
  %2590 = vmatprep.subr.bf16.mxu0 0
  %2591 = vmatpush1.bf16.msra.mxu0 %v2495
  %2592 = vmatprep.subr.bf16.mxu0 0
  %2593 = vmatpush2.bf16.msra.mxu0 0
  %2594 = vmatprep.subr.bf16.mxu0 0
  %2595 = vmatpush2.bf16.msra.mxu0 0
  %2596 = vmatprep.subr.bf16.mxu0 0
  %2597 = vmatpush2.bf16.msra.mxu0 0
  %2598 = vmatprep.subr.bf16.mxu0 0
  %2599 = vmatpush2.bf16.msra.mxu0 0
  %2600 = vmatprep.subr.bf16.mxu0 0
  %2601 = vmatpush2.bf16.msra.mxu0 0
  %2602 = vmatprep.subr.bf16.mxu0 0
  %2603 = vmatpush2.bf16.msra.mxu0 0
  %2604 = vmatprep.subr.bf16.mxu0 0
  %2605 = vmatpush2.bf16.msra.mxu0 0
  %2606 = vmatprep.subr.bf16.mxu0 0
  %2607 = vmatpush2.bf16.msra.mxu0 0
  %2608 = vmatprep.mubr.bf16.mxu0 0
  %2609 = vmatmul.mubr.bf16.gmra.mxu0 %v2373
  %v2610 = vpop.f32.mrf.mxu0
  %v2611 = vadd.f32 %v2562, %v2610
  %v2612 = vpop.f32.mrf.mxu0
  %v2613 = vpop.f32.mrf.mxu0
  %v2614 = vadd.f32 %v2565, %v2613
  %v2615 = vpop.f32.mrf.mxu0
  %2616 = vmatprep.mubr.bf16.mxu0 0
  %2617 = vmatmul.mubr.bf16.gmra.mxu0 %v2376
  %v2618 = vpop.f32.mrf.mxu0
  %v2619 = vadd.f32 %v2570, %v2618
  %v2620 = vpop.f32.mrf.mxu0
  %v2621 = vpop.f32.mrf.mxu0
  %v2622 = vadd.f32 %v2573, %v2621
  %v2623 = vpop.f32.mrf.mxu0
  %2624 = vdwg.mxu0
  %v2625 = vmul.f32 %v2611, %v77
  %v2626 = vmul.f32 %v2614, %v78
  %v2627 = vmul.f32 %v2619, %v79
  %v2628 = vmul.f32 %v2622, %v80
  %v2629 = vadd.f32 %v2070, %v2625
  %v2630 = vadd.f32 %v2071, %v2626
  %v2631 = vadd.f32 %v2072, %v2627
  %v2632 = vadd.f32 %v2073, %v2628
  %v2633 = vld [vmem:[%s14] sm:$0x1]
  %v2634 = vld [vmem:[%s15] sm:$0x1]
  %v2635 = vsel %vm165, %v2629, 0.0
  %2636 = vadd.xlane.f32.xlu0 %v2635
  %v2637 = vpop.xlane.xlu0 %2636
  %v2638 = vsel %vm165, %v2630, 0.0
  %2639 = vadd.xlane.f32.xlu0 %v2638
  %v2640 = vpop.xlane.xlu0 %2639
  %v2641 = vsel %vm165, %v2631, 0.0
  %2642 = vadd.xlane.f32.xlu0 %v2641
  %v2643 = vpop.xlane.xlu0 %2642
  %v2644 = vsel %vm165, %v2632, 0.0
  %2645 = vadd.xlane.f32.xlu0 %v2644
  %v2646 = vpop.xlane.xlu0 %2645
  %v2647 = vmul.f32 %v2637, %v2013
  %v2648 = vmul.f32 %v2640, %v2013
  %v2649 = vmul.f32 %v2643, %v2013
  %v2650 = vmul.f32 %v2646, %v2013
  %v2651 = vsub.f32 %v2629, %v2647
  %v2652 = vsub.f32 %v2630, %v2648
  %v2653 = vsub.f32 %v2631, %v2649
  %v2654 = vsub.f32 %v2632, %v2650
  %v2655 = vmul.f32 %v2651, %v2651
  %v2656 = vmul.f32 %v2652, %v2652
  %v2657 = vmul.f32 %v2653, %v2653
  %v2658 = vmul.f32 %v2654, %v2654
  %v2659 = vsel %vm165, %v2655, 0.0
  %2660 = vadd.xlane.f32.xlu0 %v2659
  %v2661 = vpop.xlane.xlu0 %2660
  %v2662 = vsel %vm165, %v2656, 0.0
  %2663 = vadd.xlane.f32.xlu0 %v2662
  %v2664 = vpop.xlane.xlu0 %2663
  %v2665 = vsel %vm165, %v2657, 0.0
  %2666 = vadd.xlane.f32.xlu0 %v2665
  %v2667 = vpop.xlane.xlu0 %2666
  %v2668 = vsel %vm165, %v2658, 0.0
  %2669 = vadd.xlane.f32.xlu0 %v2668
  %v2670 = vpop.xlane.xlu0 %2669
  %v2671 = vmul.f32 %v2661, %v2013
  %v2672 = vmul.f32 %v2664, %v2013
  %v2673 = vmul.f32 %v2667, %v2013
  %v2674 = vmul.f32 %v2670, %v2013
  %v2675 = vadd.f32 %v2671, 1e-05
  %v2676 = vadd.f32 %v2672, 1e-05
  %v2677 = vadd.f32 %v2673, 1e-05
  %v2678 = vadd.f32 %v2674, 1e-05
  %v2679 = vrsqrt.pop %v2675
  %v2680 = vrsqrt.pop %v2676
  %v2681 = vrsqrt.pop %v2677
  %v2682 = vrsqrt.pop %v2678
  %v2683 = vmul.f32 %v2651, %v2679
  %v2684 = vmul.f32 %v2652, %v2680
  %v2685 = vmul.f32 %v2653, %v2681
  %v2686 = vmul.f32 %v2654, %v2682
  %v2688 = vlaneseq
  %v2689 = vshrl.u32 %v2688, 7
  %v2690 = vsub.s32 0, %v2689
  %v2691 = vrot.slane %v2633, %v2690
  %v2693 = vmul.f32 %v2683, %v2691
  %v2694 = vmul.f32 %v2684, %v2691
  %v2695 = vmul.f32 %v2685, %v2691
  %v2696 = vmul.f32 %v2686, %v2691
  %v2698 = vlaneseq
  %v2699 = vshrl.u32 %v2698, 7
  %v2700 = vsub.s32 0, %v2699
  %v2701 = vrot.slane %v2634, %v2700
  %v2703 = vadd.f32 %v2693, %v2701
  %v2704 = vadd.f32 %v2694, %v2701
  %v2705 = vadd.f32 %v2695, %v2701
  %v2706 = vadd.f32 %v2696, %v2701
  %v2707 = vpack.c.bf16 %v2704, %v2703
  %v2708 = vpack.c.bf16 %v2706, %v2705
  %s2709 = scalar_lea.vmem %s2, 64
  %v2710 = vld [vmem:[%s2709] sm:$0xff]
  %v2711 = vld [vmem:[%s2709 + $0x8] sm:$0xff]
  %v2712 = vld [vmem:[%s2709 + $0x10] sm:$0xff]
  %v2713 = vld [vmem:[%s2709 + $0x18] sm:$0xff]
  %v2714 = vld [vmem:[%s2709 + $0x20] sm:$0xff]
  %v2715 = vld [vmem:[%s2709 + $0x28] sm:$0xff]
  %v2716 = vld [vmem:[%s2709 + $0x30] sm:$0xff]
  %v2717 = vld [vmem:[%s2709 + $0x38] sm:$0xff]
  %s2718 = scalar_lea.vmem %s3, 2
  %v2719 = vld [vmem:[%s2718] sm:$0x3]
  %v2721 = vlaneseq
  %v2722 = vshrl.u32 %v2721, 7
  %v2723 = vsub.s32 0, %v2722
  %v2724 = vrot.slane %v2719, %v2723
  %v2725 = vlaneseq
  %v2726 = vshrl.u32 %v2725, 7
  %v2727 = vsub.s32 1, %v2726
  %v2728 = vrot.slane %v2719, %v2727
  %v2739 = vunpack.c.l.b16 %v2710
  %v2740 = vunpack.c.h.b16 %v2710
  %v2741 = vunpack.c.l.b16 %v2711
  %v2742 = vunpack.c.h.b16 %v2711
  %v2743 = vunpack.c.l.b16 %v2712
  %v2744 = vunpack.c.h.b16 %v2712
  %v2745 = vunpack.c.l.b16 %v2713
  %v2746 = vunpack.c.h.b16 %v2713
  %v2747 = vunpack.c.l.b16 %v2714
  %v2748 = vunpack.c.h.b16 %v2714
  %v2749 = vunpack.c.l.b16 %v2715
  %v2750 = vunpack.c.h.b16 %v2715
  %v2751 = vunpack.c.l.b16 %v2716
  %v2752 = vunpack.c.h.b16 %v2716
  %v2753 = vunpack.c.l.b16 %v2717
  %v2754 = vunpack.c.h.b16 %v2717
  %v2755 = vpack.c.b16 %v2741, %v2739
  %v2756 = vpack.c.b16 %v2742, %v2740
  %v2757 = vpack.c.b16 %v2745, %v2743
  %v2758 = vpack.c.b16 %v2746, %v2744
  %v2759 = vpack.c.b16 %v2749, %v2747
  %v2760 = vpack.c.b16 %v2750, %v2748
  %v2761 = vpack.c.b16 %v2753, %v2751
  %v2762 = vpack.c.b16 %v2754, %v2752
  %v2772 = vsel %vm165, %v2707, 0
  %v2775 = vsel %vm165, %v2708, 0
  %2777 = vmatprep.subr.bf16.mxu0 0
  %2778 = vmatpush1.bf16.msra.mxu0 0
  %2779 = vmatprep.subr.bf16.mxu0 0
  %2780 = vmatpush1.bf16.msra.mxu0 0
  %2781 = vmatprep.subr.bf16.mxu0 0
  %2782 = vmatpush1.bf16.msra.mxu0 0
  %2783 = vmatprep.subr.bf16.mxu0 0
  %2784 = vmatpush1.bf16.msra.mxu0 0
  %2785 = vmatprep.subr.bf16.mxu0 %v2762
  %2786 = vmatpush1.bf16.msra.mxu0 %v2761
  %2787 = vmatprep.subr.bf16.mxu0 %v2760
  %2788 = vmatpush1.bf16.msra.mxu0 %v2759
  %2789 = vmatprep.subr.bf16.mxu0 %v2758
  %2790 = vmatpush1.bf16.msra.mxu0 %v2757
  %2791 = vmatprep.subr.bf16.mxu0 %v2756
  %2792 = vmatpush1.bf16.msra.mxu0 %v2755
  %2793 = vmatprep.subr.bf16.mxu0 0
  %2794 = vmatpush2.bf16.msra.mxu0 0
  %2795 = vmatprep.subr.bf16.mxu0 0
  %2796 = vmatpush2.bf16.msra.mxu0 0
  %2797 = vmatprep.subr.bf16.mxu0 0
  %2798 = vmatpush2.bf16.msra.mxu0 0
  %2799 = vmatprep.subr.bf16.mxu0 0
  %2800 = vmatpush2.bf16.msra.mxu0 0
  %2801 = vmatprep.subr.bf16.mxu0 0
  %2802 = vmatpush2.bf16.msra.mxu0 0
  %2803 = vmatprep.subr.bf16.mxu0 0
  %2804 = vmatpush2.bf16.msra.mxu0 0
  %2805 = vmatprep.subr.bf16.mxu0 0
  %2806 = vmatpush2.bf16.msra.mxu0 0
  %2807 = vmatprep.subr.bf16.mxu0 0
  %2808 = vmatpush2.bf16.msra.mxu0 0
  %2809 = vmatprep.mubr.bf16.mxu0 0
  %2810 = vmatmul.mubr.bf16.gmra.mxu0 %v2772
  %v2811 = vpop.f32.mrf.mxu0
  %v2812 = vadd.f32 %v2724, %v2811
  %v2813 = vpop.f32.mrf.mxu0
  %v2814 = vadd.f32 %v2728, %v2813
  %v2815 = vpop.f32.mrf.mxu0
  %v2816 = vadd.f32 %v2724, %v2815
  %v2817 = vpop.f32.mrf.mxu0
  %v2818 = vadd.f32 %v2728, %v2817
  %2819 = vmatprep.mubr.bf16.mxu0 0
  %2820 = vmatmul.mubr.bf16.gmra.mxu0 %v2775
  %v2821 = vpop.f32.mrf.mxu0
  %v2822 = vadd.f32 %v2724, %v2821
  %v2823 = vpop.f32.mrf.mxu0
  %v2824 = vadd.f32 %v2728, %v2823
  %v2825 = vpop.f32.mrf.mxu0
  %v2826 = vadd.f32 %v2724, %v2825
  %v2827 = vpop.f32.mrf.mxu0
  %v2828 = vadd.f32 %v2728, %v2827
  %2829 = vdwg.mxu0
  %s2830 = scalar_lea.vmem %s6, 32
  %v2831 = vld [vmem:[%s2830] sm:$0xff]
  %v2832 = vld [vmem:[%s2830 + $0x8] sm:$0xff]
  %v2833 = vld [vmem:[%s2830 + $0x10] sm:$0xff]
  %v2834 = vld [vmem:[%s2830 + $0x18] sm:$0xff]
  %s2835 = scalar_lea.vmem %s7, 16
  %v2836 = vld [vmem:[%s2835] sm:$0xff]
  %v2837 = vld [vmem:[%s2835 + $0x8] sm:$0x1]
  %v2838 = vmul.f32 %v2812, 0.17677669
  %v2839 = vmul.f32 %v2816, 0.17677669
  %v2840 = vmul.f32 %v2822, 0.17677669
  %v2841 = vmul.f32 %v2826, 0.17677669
  %v2842 = vpack.c.bf16 %v2839, %v2838
  %v2843 = vpack.c.bf16 %v2841, %v2840
  %v2844 = vpack.c.bf16 %v2816, %v2812
  %v2845 = vpack.c.bf16 %v2826, %v2822
  %v2847 = vsel %vm239, %v2838, 0
  %v2850 = vsel %vm239, %v2839, 0
  %v2853 = vsel %vm239, %v2840, 0
  %v2856 = vsel %vm239, %v2841, 0
  %2858 = vmatprep.subr.mxu0 0.0
  %2859 = vmatpush1.msra.mxu0 0.0
  %2860 = vmatprep.subr.mxu0 0.0
  %2861 = vmatpush1.msra.mxu0 0.0
  %2862 = vmatprep.subr.mxu0 0.0
  %2863 = vmatpush1.msra.mxu0 0.0
  %2864 = vmatprep.subr.mxu0 0.0
  %2865 = vmatpush1.msra.mxu0 0.0
  %2866 = vmatprep.subr.mxu0 0.0
  %2867 = vmatpush1.msra.mxu0 0.0
  %2868 = vmatprep.subr.mxu0 0.0
  %2869 = vmatpush1.msra.mxu0 0.0
  %2870 = vmatprep.subr.mxu0 0.0
  %2871 = vmatpush1.msra.mxu0 0.0
  %2872 = vmatprep.subr.mxu0 0.0
  %2873 = vmatpush1.msra.mxu0 0.0
  %2874 = vmatprep.subr.mxu0 0.0
  %2875 = vmatpush1.msra.mxu0 0.0
  %2876 = vmatprep.subr.mxu0 0.0
  %2877 = vmatpush1.msra.mxu0 0.0
  %2878 = vmatprep.subr.mxu0 0.0
  %2879 = vmatpush1.msra.mxu0 0.0
  %2880 = vmatprep.subr.mxu0 0.0
  %2881 = vmatpush1.msra.mxu0 0.0
  %2882 = vmatprep.subr.mxu0 0.0
  %2883 = vmatpush1.msra.mxu0 %v2834
  %2884 = vmatprep.subr.mxu0 0.0
  %2885 = vmatpush1.msra.mxu0 %v2833
  %2886 = vmatprep.subr.mxu0 0.0
  %2887 = vmatpush1.msra.mxu0 %v2832
  %2888 = vmatprep.subr.mxu0 0.0
  %2889 = vmatpush1.msra.mxu0 %v2831
  %2890 = vmatprep.subr.mxu0 0.0
  %2891 = vmatpush2.msra.mxu0 0.0
  %2892 = vmatprep.subr.mxu0 0.0
  %2893 = vmatpush2.msra.mxu0 0.0
  %2894 = vmatprep.subr.mxu0 0.0
  %2895 = vmatpush2.msra.mxu0 0.0
  %2896 = vmatprep.subr.mxu0 0.0
  %2897 = vmatpush2.msra.mxu0 0.0
  %2898 = vmatprep.subr.mxu0 0.0
  %2899 = vmatpush2.msra.mxu0 0.0
  %2900 = vmatprep.subr.mxu0 0.0
  %2901 = vmatpush2.msra.mxu0 0.0
  %2902 = vmatprep.subr.mxu0 0.0
  %2903 = vmatpush2.msra.mxu0 0.0
  %2904 = vmatprep.subr.mxu0 0.0
  %2905 = vmatpush2.msra.mxu0 0.0
  %2906 = vmatprep.subr.mxu0 0.0
  %2907 = vmatpush2.msra.mxu0 0.0
  %2908 = vmatprep.subr.mxu0 0.0
  %2909 = vmatpush2.msra.mxu0 0.0
  %2910 = vmatprep.subr.mxu0 0.0
  %2911 = vmatpush2.msra.mxu0 0.0
  %2912 = vmatprep.subr.mxu0 0.0
  %2913 = vmatpush2.msra.mxu0 0.0
  %2914 = vmatprep.subr.mxu0 0.0
  %2915 = vmatpush2.msra.mxu0 0.0
  %2916 = vmatprep.subr.mxu0 0.0
  %2917 = vmatpush2.msra.mxu0 0.0
  %2918 = vmatprep.subr.mxu0 0.0
  %2919 = vmatpush2.msra.mxu0 0.0
  %2920 = vmatprep.subr.mxu0 0.0
  %2921 = vmatpush2.msra.mxu0 0.0
  %2922 = vmatprep.mubr.f32.mxu0 0.0
  %2923 = vmatmul.mubr.f32.gmra.mxu0 %v2847
  %v2924 = vpop.f32.mrf.mxu0
  %v2925 = vadd.f32 0.0, %v2924
  %v2926 = vpop.f32.mrf.mxu0
  %2927 = vmatprep.mubr.f32.mxu0 0.0
  %2928 = vmatmul.mubr.f32.gmra.mxu0 %v2850
  %v2929 = vpop.f32.mrf.mxu0
  %v2930 = vadd.f32 0.0, %v2929
  %v2931 = vpop.f32.mrf.mxu0
  %2932 = vmatprep.mubr.f32.mxu0 0.0
  %2933 = vmatmul.mubr.f32.gmra.mxu0 %v2853
  %v2934 = vpop.f32.mrf.mxu0
  %v2935 = vadd.f32 0.0, %v2934
  %v2936 = vpop.f32.mrf.mxu0
  %2937 = vmatprep.mubr.f32.mxu0 0.0
  %2938 = vmatmul.mubr.f32.gmra.mxu0 %v2856
  %v2939 = vpop.f32.mrf.mxu0
  %v2940 = vadd.f32 0.0, %v2939
  %v2941 = vpop.f32.mrf.mxu0
  %2942 = vdwg.mxu0
  %2944 = vset.pattern.permute.xlu0 0
  %2945 = vperm.xlu0 %2944, %v2925
  %v2946 = vpop.permute.xlu0 %2945
  %2949 = vset.pattern.permute.xlu0 0
  %2950 = vperm.xlu0 %2949, %v2930
  %v2951 = vpop.permute.xlu0 %2950
  %2954 = vset.pattern.permute.xlu0 0
  %2955 = vperm.xlu0 %2954, %v2935
  %v2956 = vpop.permute.xlu0 %2955
  %2959 = vset.pattern.permute.xlu0 0
  %2960 = vperm.xlu0 %2959, %v2940
  %v2961 = vpop.permute.xlu0 %2960
  %v2963 = vsel %vm341, %v2946, 0.0
  %v2964 = vsel %vm342, %v2951, 0.0
  %v2965 = vsel %vm341, %v2956, 0.0
  %v2966 = vsel %vm342, %v2961, 0.0
  %2968 = vrot.lane.b32.xlu0 %v2844, 64
  %v2969 = vpop.permute.xlu0 %2968
  %v2971 = vsel %vm239, %v2842, 0
  %v2974 = vsel %vm239, %v2969, 0
  %2976 = vmatprep.subr.bf16.mxu0 0
  %2977 = vmatpush1.bf16.xpose.msra.mxu0 0
  %2978 = vmatprep.subr.bf16.mxu0 0
  %2979 = vmatpush1.bf16.xpose.msra.mxu0 0
  %2980 = vmatprep.subr.bf16.mxu0 0
  %2981 = vmatpush1.bf16.xpose.msra.mxu0 0
  %2982 = vmatprep.subr.bf16.mxu0 0
  %2983 = vmatpush1.bf16.xpose.msra.mxu0 0
  %2984 = vmatprep.subr.bf16.mxu0 0
  %2985 = vmatpush1.bf16.xpose.msra.mxu0 0
  %2986 = vmatprep.subr.bf16.mxu0 0
  %2987 = vmatpush1.bf16.xpose.msra.mxu0 0
  %2988 = vmatprep.subr.bf16.mxu0 0
  %2989 = vmatpush1.bf16.xpose.msra.mxu0 0
  %2990 = vmatprep.subr.bf16.mxu0 0
  %2991 = vmatpush1.bf16.xpose.msra.mxu0 %v2974
  %2992 = vmatprep.subr.bf16.mxu0 0
  %2993 = vmatpush2.bf16.xpose.msra.mxu0 0
  %2994 = vmatprep.subr.bf16.mxu0 0
  %2995 = vmatpush2.bf16.xpose.msra.mxu0 0
  %2996 = vmatprep.subr.bf16.mxu0 0
  %2997 = vmatpush2.bf16.xpose.msra.mxu0 0
  %2998 = vmatprep.subr.bf16.mxu0 0
  %2999 = vmatpush2.bf16.xpose.msra.mxu0 0
  %3000 = vmatprep.subr.bf16.mxu0 0
  %3001 = vmatpush2.bf16.xpose.msra.mxu0 0
  %3002 = vmatprep.subr.bf16.mxu0 0
  %3003 = vmatpush2.bf16.xpose.msra.mxu0 0
  %3004 = vmatprep.subr.bf16.mxu0 0
  %3005 = vmatpush2.bf16.xpose.msra.mxu0 0
  %3006 = vmatprep.subr.bf16.mxu0 0
  %3007 = vmatpush2.bf16.xpose.msra.mxu0 0
  %3008 = vmatprep.mubr.bf16.mxu0 0
  %3009 = vmatmul.mubr.bf16.gmra.mxu0 %v2971
  %v3010 = vpop.f32.mrf.mxu0
  %v3011 = vadd.f32 %v2963, %v3010
  %v3012 = vpop.f32.mrf.mxu0
  %v3013 = vpop.f32.mrf.mxu0
  %v3014 = vadd.f32 %v2964, %v3013
  %v3015 = vpop.f32.mrf.mxu0
  %3016 = vdwg.mxu0
  %3018 = vrot.lane.b32.xlu0 %v2845, 64
  %v3019 = vpop.permute.xlu0 %3018
  %v3021 = vsel %vm239, %v2843, 0
  %v3024 = vsel %vm239, %v3019, 0
  %3026 = vmatprep.subr.bf16.mxu0 0
  %3027 = vmatpush1.bf16.xpose.msra.mxu0 0
  %3028 = vmatprep.subr.bf16.mxu0 0
  %3029 = vmatpush1.bf16.xpose.msra.mxu0 0
  %3030 = vmatprep.subr.bf16.mxu0 0
  %3031 = vmatpush1.bf16.xpose.msra.mxu0 0
  %3032 = vmatprep.subr.bf16.mxu0 0
  %3033 = vmatpush1.bf16.xpose.msra.mxu0 0
  %3034 = vmatprep.subr.bf16.mxu0 0
  %3035 = vmatpush1.bf16.xpose.msra.mxu0 0
  %3036 = vmatprep.subr.bf16.mxu0 0
  %3037 = vmatpush1.bf16.xpose.msra.mxu0 0
  %3038 = vmatprep.subr.bf16.mxu0 0
  %3039 = vmatpush1.bf16.xpose.msra.mxu0 0
  %3040 = vmatprep.subr.bf16.mxu0 0
  %3041 = vmatpush1.bf16.xpose.msra.mxu0 %v3024
  %3042 = vmatprep.subr.bf16.mxu0 0
  %3043 = vmatpush2.bf16.xpose.msra.mxu0 0
  %3044 = vmatprep.subr.bf16.mxu0 0
  %3045 = vmatpush2.bf16.xpose.msra.mxu0 0
  %3046 = vmatprep.subr.bf16.mxu0 0
  %3047 = vmatpush2.bf16.xpose.msra.mxu0 0
  %3048 = vmatprep.subr.bf16.mxu0 0
  %3049 = vmatpush2.bf16.xpose.msra.mxu0 0
  %3050 = vmatprep.subr.bf16.mxu0 0
  %3051 = vmatpush2.bf16.xpose.msra.mxu0 0
  %3052 = vmatprep.subr.bf16.mxu0 0
  %3053 = vmatpush2.bf16.xpose.msra.mxu0 0
  %3054 = vmatprep.subr.bf16.mxu0 0
  %3055 = vmatpush2.bf16.xpose.msra.mxu0 0
  %3056 = vmatprep.subr.bf16.mxu0 0
  %3057 = vmatpush2.bf16.xpose.msra.mxu0 0
  %3058 = vmatprep.mubr.bf16.mxu0 0
  %3059 = vmatmul.mubr.bf16.gmra.mxu0 %v3021
  %v3060 = vpop.f32.mrf.mxu0
  %v3061 = vadd.f32 %v2965, %v3060
  %v3062 = vpop.f32.mrf.mxu0
  %v3063 = vpop.f32.mrf.mxu0
  %v3064 = vadd.f32 %v2966, %v3063
  %v3065 = vpop.f32.mrf.mxu0
  %3066 = vdwg.mxu0
  %3067 = vset.pattern.permute.xlu0 1
  %3068 = vperm.xlu0 %3067, %v2925
  %v3069 = vpop.permute.xlu0 %3068
  %3071 = vset.pattern.permute.xlu0 1
  %3072 = vperm.xlu0 %3071, %v2930
  %v3073 = vpop.permute.xlu0 %3072
  %3075 = vset.pattern.permute.xlu0 1
  %3076 = vperm.xlu0 %3075, %v2935
  %v3077 = vpop.permute.xlu0 %3076
  %3079 = vset.pattern.permute.xlu0 1
  %3080 = vperm.xlu0 %3079, %v2940
  %v3081 = vpop.permute.xlu0 %3080
  %v3083 = vsel %vm471, %v3069, 0.0
  %v3084 = vsel %vm472, %v3073, 0.0
  %v3085 = vsel %vm471, %v3077, 0.0
  %v3086 = vsel %vm472, %v3081, 0.0
  %v3087 = vadd.f32 %v3011, %v3083
  %v3088 = vadd.f32 %v3014, %v3084
  %v3089 = vadd.f32 %v3061, %v3085
  %v3090 = vadd.f32 %v3064, %v3086
  %3091 = vset.pattern.permute.xlu0 2
  %3092 = vperm.xlu0 %3091, %v2925
  %v3093 = vpop.permute.xlu0 %3092
  %3095 = vset.pattern.permute.xlu0 2
  %3096 = vperm.xlu0 %3095, %v2930
  %v3097 = vpop.permute.xlu0 %3096
  %3099 = vset.pattern.permute.xlu0 2
  %3100 = vperm.xlu0 %3099, %v2935
  %v3101 = vpop.permute.xlu0 %3100
  %3103 = vset.pattern.permute.xlu0 2
  %3104 = vperm.xlu0 %3103, %v2940
  %v3105 = vpop.permute.xlu0 %3104
  %v3107 = vsel %vm501, %v3093, 0.0
  %v3108 = vsel %vm502, %v3097, 0.0
  %v3109 = vsel %vm501, %v3101, 0.0
  %v3110 = vsel %vm502, %v3105, 0.0
  %v3111 = vadd.f32 %v3087, %v3107
  %v3112 = vadd.f32 %v3088, %v3108
  %v3113 = vadd.f32 %v3089, %v3109
  %v3114 = vadd.f32 %v3090, %v3110
  %3115 = vset.pattern.permute.xlu0 3
  %3116 = vperm.xlu0 %3115, %v2925
  %v3117 = vpop.permute.xlu0 %3116
  %3119 = vset.pattern.permute.xlu0 3
  %3120 = vperm.xlu0 %3119, %v2930
  %v3121 = vpop.permute.xlu0 %3120
  %3123 = vset.pattern.permute.xlu0 3
  %3124 = vperm.xlu0 %3123, %v2935
  %v3125 = vpop.permute.xlu0 %3124
  %3127 = vset.pattern.permute.xlu0 3
  %3128 = vperm.xlu0 %3127, %v2940
  %v3129 = vpop.permute.xlu0 %3128
  %v3131 = vsel %vm531, %v3117, 0.0
  %v3132 = vsel %vm532, %v3121, 0.0
  %v3133 = vsel %vm531, %v3125, 0.0
  %v3134 = vsel %vm532, %v3129, 0.0
  %v3135 = vadd.f32 %v3111, %v3131
  %v3136 = vadd.f32 %v3112, %v3132
  %v3137 = vadd.f32 %v3113, %v3133
  %v3138 = vadd.f32 %v3114, %v3134
  %3139 = vset.pattern.permute.xlu0 4
  %3140 = vperm.xlu0 %3139, %v2925
  %v3141 = vpop.permute.xlu0 %3140
  %3143 = vset.pattern.permute.xlu0 4
  %3144 = vperm.xlu0 %3143, %v2930
  %v3145 = vpop.permute.xlu0 %3144
  %3147 = vset.pattern.permute.xlu0 4
  %3148 = vperm.xlu0 %3147, %v2935
  %v3149 = vpop.permute.xlu0 %3148
  %3151 = vset.pattern.permute.xlu0 4
  %3152 = vperm.xlu0 %3151, %v2940
  %v3153 = vpop.permute.xlu0 %3152
  %v3155 = vsel %vm561, %v3141, 0.0
  %v3156 = vsel %vm562, %v3145, 0.0
  %v3157 = vsel %vm561, %v3149, 0.0
  %v3158 = vsel %vm562, %v3153, 0.0
  %v3159 = vadd.f32 %v3135, %v3155
  %v3160 = vadd.f32 %v3136, %v3156
  %v3161 = vadd.f32 %v3137, %v3157
  %v3162 = vadd.f32 %v3138, %v3158
  %3163 = vset.pattern.permute.xlu0 5
  %3164 = vperm.xlu0 %3163, %v2925
  %v3165 = vpop.permute.xlu0 %3164
  %3167 = vset.pattern.permute.xlu0 5
  %3168 = vperm.xlu0 %3167, %v2930
  %v3169 = vpop.permute.xlu0 %3168
  %3171 = vset.pattern.permute.xlu0 5
  %3172 = vperm.xlu0 %3171, %v2935
  %v3173 = vpop.permute.xlu0 %3172
  %3175 = vset.pattern.permute.xlu0 5
  %3176 = vperm.xlu0 %3175, %v2940
  %v3177 = vpop.permute.xlu0 %3176
  %v3179 = vsel %vm591, %v3165, 0.0
  %v3180 = vsel %vm592, %v3169, 0.0
  %v3181 = vsel %vm591, %v3173, 0.0
  %v3182 = vsel %vm592, %v3177, 0.0
  %v3183 = vadd.f32 %v3159, %v3179
  %v3184 = vadd.f32 %v3160, %v3180
  %v3185 = vadd.f32 %v3161, %v3181
  %v3186 = vadd.f32 %v3162, %v3182
  %3187 = vset.pattern.permute.xlu0 6
  %3188 = vperm.xlu0 %3187, %v2925
  %v3189 = vpop.permute.xlu0 %3188
  %3191 = vset.pattern.permute.xlu0 6
  %3192 = vperm.xlu0 %3191, %v2930
  %v3193 = vpop.permute.xlu0 %3192
  %3195 = vset.pattern.permute.xlu0 6
  %3196 = vperm.xlu0 %3195, %v2935
  %v3197 = vpop.permute.xlu0 %3196
  %3199 = vset.pattern.permute.xlu0 6
  %3200 = vperm.xlu0 %3199, %v2940
  %v3201 = vpop.permute.xlu0 %3200
  %v3203 = vsel %vm621, %v3189, 0.0
  %v3204 = vsel %vm622, %v3193, 0.0
  %v3205 = vsel %vm621, %v3197, 0.0
  %v3206 = vsel %vm622, %v3201, 0.0
  %v3207 = vadd.f32 %v3183, %v3203
  %v3208 = vadd.f32 %v3184, %v3204
  %v3209 = vadd.f32 %v3185, %v3205
  %v3210 = vadd.f32 %v3186, %v3206
  %3211 = vset.pattern.permute.xlu0 7
  %3212 = vperm.xlu0 %3211, %v2925
  %v3213 = vpop.permute.xlu0 %3212
  %3215 = vset.pattern.permute.xlu0 7
  %3216 = vperm.xlu0 %3215, %v2930
  %v3217 = vpop.permute.xlu0 %3216
  %3219 = vset.pattern.permute.xlu0 7
  %3220 = vperm.xlu0 %3219, %v2935
  %v3221 = vpop.permute.xlu0 %3220
  %3223 = vset.pattern.permute.xlu0 7
  %3224 = vperm.xlu0 %3223, %v2940
  %v3225 = vpop.permute.xlu0 %3224
  %v3227 = vsel %vm651, %v3213, 0.0
  %v3228 = vsel %vm652, %v3217, 0.0
  %v3229 = vsel %vm651, %v3221, 0.0
  %v3230 = vsel %vm652, %v3225, 0.0
  %v3231 = vadd.f32 %v3207, %v3227
  %v3232 = vadd.f32 %v3208, %v3228
  %v3233 = vadd.f32 %v3209, %v3229
  %v3234 = vadd.f32 %v3210, %v3230
  %3235 = vset.pattern.permute.xlu0 8
  %3236 = vperm.xlu0 %3235, %v2925
  %v3237 = vpop.permute.xlu0 %3236
  %3239 = vset.pattern.permute.xlu0 8
  %3240 = vperm.xlu0 %3239, %v2930
  %v3241 = vpop.permute.xlu0 %3240
  %3243 = vset.pattern.permute.xlu0 8
  %3244 = vperm.xlu0 %3243, %v2935
  %v3245 = vpop.permute.xlu0 %3244
  %3247 = vset.pattern.permute.xlu0 8
  %3248 = vperm.xlu0 %3247, %v2940
  %v3249 = vpop.permute.xlu0 %3248
  %v3251 = vsel %vm681, %v3237, 0.0
  %v3252 = vsel %vm682, %v3241, 0.0
  %v3253 = vsel %vm681, %v3245, 0.0
  %v3254 = vsel %vm682, %v3249, 0.0
  %v3255 = vadd.f32 %v3231, %v3251
  %v3256 = vadd.f32 %v3232, %v3252
  %v3257 = vadd.f32 %v3233, %v3253
  %v3258 = vadd.f32 %v3234, %v3254
  %v3259 = vsel %vm707, %v3255, -10000.0
  %v3260 = vsel %vm708, %v3256, -10000.0
  %v3261 = vsel %vm709, %v3257, -10000.0
  %v3262 = vsel %vm710, %v3258, -10000.0
  %v3263 = vsel %vm715, %v3259, -inf
  %3264 = vmax.xlane.f32.xlu0 %v3263
  %v3265 = vpop.xlane.xlu0 %3264
  %v3266 = vsel %vm715, %v3260, -inf
  %3267 = vmax.xlane.f32.xlu0 %v3266
  %v3268 = vpop.xlane.xlu0 %3267
  %v3269 = vsel %vm715, %v3261, -inf
  %3270 = vmax.xlane.f32.xlu0 %v3269
  %v3271 = vpop.xlane.xlu0 %3270
  %v3272 = vsel %vm715, %v3262, -inf
  %3273 = vmax.xlane.f32.xlu0 %v3272
  %v3274 = vpop.xlane.xlu0 %3273
  %v3275 = vsub.f32 %v3259, %v3265
  %v3276 = vsub.f32 %v3260, %v3268
  %v3277 = vsub.f32 %v3261, %v3271
  %v3278 = vsub.f32 %v3262, %v3274
  %v3279 = vmul.f32 %v3275, 1.442695
  %v3280 = vpow.pop %v3279
  %v3281 = vmul.f32 %v3276, 1.442695
  %v3282 = vpow.pop %v3281
  %v3283 = vmul.f32 %v3277, 1.442695
  %v3284 = vpow.pop %v3283
  %v3285 = vmul.f32 %v3278, 1.442695
  %v3286 = vpow.pop %v3285
  %v3287 = vsel %vm715, %v3280, 0.0
  %3288 = vadd.xlane.f32.xlu0 %v3287
  %v3289 = vpop.xlane.xlu0 %3288
  %v3290 = vsel %vm715, %v3282, 0.0
  %3291 = vadd.xlane.f32.xlu0 %v3290
  %v3292 = vpop.xlane.xlu0 %3291
  %v3293 = vsel %vm715, %v3284, 0.0
  %3294 = vadd.xlane.f32.xlu0 %v3293
  %v3295 = vpop.xlane.xlu0 %3294
  %v3296 = vsel %vm715, %v3286, 0.0
  %3297 = vadd.xlane.f32.xlu0 %v3296
  %v3298 = vpop.xlane.xlu0 %3297
  %v3299 = vrcp.pop %v3289
  %v3300 = vmul.f32 %v3280, %v3299
  %v3301 = vrcp.pop %v3292
  %v3302 = vmul.f32 %v3282, %v3301
  %v3303 = vrcp.pop %v3295
  %v3304 = vmul.f32 %v3284, %v3303
  %v3305 = vrcp.pop %v3298
  %v3306 = vmul.f32 %v3286, %v3305
  %v3307 = vpack.c.bf16 %v3302, %v3300
  %v3308 = vpack.c.bf16 %v3306, %v3304
  %v3309 = vpack.c.bf16 %v2818, %v2814
  %v3310 = vpack.c.bf16 %v2828, %v2824
  %v3311 = vsel %vm341, %v3300, 0.0
  %v3312 = vsel %vm342, %v3302, 0.0
  %v3313 = vsel %vm341, %v3304, 0.0
  %v3314 = vsel %vm342, %v3306, 0.0
  %v3315 = vsel %vm715, %v3311, 0.0
  %3316 = vadd.xlane.f32.xlu0 %v3315
  %v3317 = vpop.xlane.xlu0 %3316
  %v3318 = vsel %vm715, %v3312, 0.0
  %3319 = vadd.xlane.f32.xlu0 %v3318
  %v3320 = vpop.xlane.xlu0 %3319
  %v3321 = vsel %vm715, %v3313, 0.0
  %3322 = vadd.xlane.f32.xlu0 %v3321
  %v3323 = vpop.xlane.xlu0 %3322
  %v3324 = vsel %vm715, %v3314, 0.0
  %3325 = vadd.xlane.f32.xlu0 %v3324
  %v3326 = vpop.xlane.xlu0 %3325
  %v3327 = vlaneseq
  %v3328 = vshrl.u32 %v3327, 7
  %v3329 = vsub.s32 0, %v3328
  %v3330 = vrot.slane %v2836, %v3329
  %v3331 = vmul.f32 %v3317, %v3330
  %v3332 = vmul.f32 %v3320, %v3330
  %v3333 = vmul.f32 %v3323, %v3330
  %v3334 = vmul.f32 %v3326, %v3330
  %v3336 = vsel %vm715, %v3307, 0
  %3338 = vmatprep.subr.bf16.mxu0 0
  %3339 = vmatpush1.bf16.msra.mxu0 0
  %3340 = vmatprep.subr.bf16.mxu0 0
  %3341 = vmatpush1.bf16.msra.mxu0 0
  %3342 = vmatprep.subr.bf16.mxu0 0
  %3343 = vmatpush1.bf16.msra.mxu0 0
  %3344 = vmatprep.subr.bf16.mxu0 0
  %3345 = vmatpush1.bf16.msra.mxu0 0
  %3346 = vmatprep.subr.bf16.mxu0 0
  %3347 = vmatpush1.bf16.msra.mxu0 0
  %3348 = vmatprep.subr.bf16.mxu0 0
  %3349 = vmatpush1.bf16.msra.mxu0 0
  %3350 = vmatprep.subr.bf16.mxu0 0
  %3351 = vmatpush1.bf16.msra.mxu0 0
  %3352 = vmatprep.subr.bf16.mxu0 0
  %3353 = vmatpush1.bf16.msra.mxu0 %v3309
  %3354 = vmatprep.subr.bf16.mxu0 0
  %3355 = vmatpush2.bf16.msra.mxu0 0
  %3356 = vmatprep.subr.bf16.mxu0 0
  %3357 = vmatpush2.bf16.msra.mxu0 0
  %3358 = vmatprep.subr.bf16.mxu0 0
  %3359 = vmatpush2.bf16.msra.mxu0 0
  %3360 = vmatprep.subr.bf16.mxu0 0
  %3361 = vmatpush2.bf16.msra.mxu0 0
  %3362 = vmatprep.subr.bf16.mxu0 0
  %3363 = vmatpush2.bf16.msra.mxu0 0
  %3364 = vmatprep.subr.bf16.mxu0 0
  %3365 = vmatpush2.bf16.msra.mxu0 0
  %3366 = vmatprep.subr.bf16.mxu0 0
  %3367 = vmatpush2.bf16.msra.mxu0 0
  %3368 = vmatprep.subr.bf16.mxu0 0
  %3369 = vmatpush2.bf16.msra.mxu0 0
  %3370 = vmatprep.mubr.bf16.mxu0 0
  %3371 = vmatmul.mubr.bf16.gmra.mxu0 %v3336
  %v3372 = vpop.f32.mrf.mxu0
  %v3373 = vadd.f32 %v3331, %v3372
  %v3374 = vpop.f32.mrf.mxu0
  %v3375 = vpop.f32.mrf.mxu0
  %v3376 = vadd.f32 %v3332, %v3375
  %v3377 = vpop.f32.mrf.mxu0
  %3378 = vdwg.mxu0
  %v3380 = vsel %vm715, %v3308, 0
  %3382 = vmatprep.subr.bf16.mxu0 0
  %3383 = vmatpush1.bf16.msra.mxu0 0
  %3384 = vmatprep.subr.bf16.mxu0 0
  %3385 = vmatpush1.bf16.msra.mxu0 0
  %3386 = vmatprep.subr.bf16.mxu0 0
  %3387 = vmatpush1.bf16.msra.mxu0 0
  %3388 = vmatprep.subr.bf16.mxu0 0
  %3389 = vmatpush1.bf16.msra.mxu0 0
  %3390 = vmatprep.subr.bf16.mxu0 0
  %3391 = vmatpush1.bf16.msra.mxu0 0
  %3392 = vmatprep.subr.bf16.mxu0 0
  %3393 = vmatpush1.bf16.msra.mxu0 0
  %3394 = vmatprep.subr.bf16.mxu0 0
  %3395 = vmatpush1.bf16.msra.mxu0 0
  %3396 = vmatprep.subr.bf16.mxu0 0
  %3397 = vmatpush1.bf16.msra.mxu0 %v3310
  %3398 = vmatprep.subr.bf16.mxu0 0
  %3399 = vmatpush2.bf16.msra.mxu0 0
  %3400 = vmatprep.subr.bf16.mxu0 0
  %3401 = vmatpush2.bf16.msra.mxu0 0
  %3402 = vmatprep.subr.bf16.mxu0 0
  %3403 = vmatpush2.bf16.msra.mxu0 0
  %3404 = vmatprep.subr.bf16.mxu0 0
  %3405 = vmatpush2.bf16.msra.mxu0 0
  %3406 = vmatprep.subr.bf16.mxu0 0
  %3407 = vmatpush2.bf16.msra.mxu0 0
  %3408 = vmatprep.subr.bf16.mxu0 0
  %3409 = vmatpush2.bf16.msra.mxu0 0
  %3410 = vmatprep.subr.bf16.mxu0 0
  %3411 = vmatpush2.bf16.msra.mxu0 0
  %3412 = vmatprep.subr.bf16.mxu0 0
  %3413 = vmatpush2.bf16.msra.mxu0 0
  %3414 = vmatprep.mubr.bf16.mxu0 0
  %3415 = vmatmul.mubr.bf16.gmra.mxu0 %v3380
  %v3416 = vpop.f32.mrf.mxu0
  %v3417 = vadd.f32 %v3333, %v3416
  %v3418 = vpop.f32.mrf.mxu0
  %v3419 = vpop.f32.mrf.mxu0
  %v3420 = vadd.f32 %v3334, %v3419
  %v3421 = vpop.f32.mrf.mxu0
  %3422 = vdwg.mxu0
  %v3423 = vsel %vm471, %v3300, 0.0
  %v3424 = vsel %vm472, %v3302, 0.0
  %v3425 = vsel %vm471, %v3304, 0.0
  %v3426 = vsel %vm472, %v3306, 0.0
  %v3427 = vsel %vm715, %v3423, 0.0
  %3428 = vadd.xlane.f32.xlu0 %v3427
  %v3429 = vpop.xlane.xlu0 %3428
  %v3430 = vsel %vm715, %v3424, 0.0
  %3431 = vadd.xlane.f32.xlu0 %v3430
  %v3432 = vpop.xlane.xlu0 %3431
  %v3433 = vsel %vm715, %v3425, 0.0
  %3434 = vadd.xlane.f32.xlu0 %v3433
  %v3435 = vpop.xlane.xlu0 %3434
  %v3436 = vsel %vm715, %v3426, 0.0
  %3437 = vadd.xlane.f32.xlu0 %v3436
  %v3438 = vpop.xlane.xlu0 %3437
  %v3439 = vlaneseq
  %v3440 = vshrl.u32 %v3439, 7
  %v3441 = vsub.s32 1, %v3440
  %v3442 = vrot.slane %v2836, %v3441
  %v3443 = vmul.f32 %v3429, %v3442
  %v3444 = vmul.f32 %v3432, %v3442
  %v3445 = vmul.f32 %v3435, %v3442
  %v3446 = vmul.f32 %v3438, %v3442
  %v3447 = vadd.f32 %v3373, %v3443
  %v3448 = vadd.f32 %v3376, %v3444
  %v3449 = vadd.f32 %v3417, %v3445
  %v3450 = vadd.f32 %v3420, %v3446
  %v3451 = vsel %vm501, %v3300, 0.0
  %v3452 = vsel %vm502, %v3302, 0.0
  %v3453 = vsel %vm501, %v3304, 0.0
  %v3454 = vsel %vm502, %v3306, 0.0
  %v3455 = vsel %vm715, %v3451, 0.0
  %3456 = vadd.xlane.f32.xlu0 %v3455
  %v3457 = vpop.xlane.xlu0 %3456
  %v3458 = vsel %vm715, %v3452, 0.0
  %3459 = vadd.xlane.f32.xlu0 %v3458
  %v3460 = vpop.xlane.xlu0 %3459
  %v3461 = vsel %vm715, %v3453, 0.0
  %3462 = vadd.xlane.f32.xlu0 %v3461
  %v3463 = vpop.xlane.xlu0 %3462
  %v3464 = vsel %vm715, %v3454, 0.0
  %3465 = vadd.xlane.f32.xlu0 %v3464
  %v3466 = vpop.xlane.xlu0 %3465
  %v3467 = vlaneseq
  %v3468 = vshrl.u32 %v3467, 7
  %v3469 = vsub.s32 2, %v3468
  %v3470 = vrot.slane %v2836, %v3469
  %v3471 = vmul.f32 %v3457, %v3470
  %v3472 = vmul.f32 %v3460, %v3470
  %v3473 = vmul.f32 %v3463, %v3470
  %v3474 = vmul.f32 %v3466, %v3470
  %v3475 = vadd.f32 %v3447, %v3471
  %v3476 = vadd.f32 %v3448, %v3472
  %v3477 = vadd.f32 %v3449, %v3473
  %v3478 = vadd.f32 %v3450, %v3474
  %v3479 = vsel %vm531, %v3300, 0.0
  %v3480 = vsel %vm532, %v3302, 0.0
  %v3481 = vsel %vm531, %v3304, 0.0
  %v3482 = vsel %vm532, %v3306, 0.0
  %v3483 = vsel %vm715, %v3479, 0.0
  %3484 = vadd.xlane.f32.xlu0 %v3483
  %v3485 = vpop.xlane.xlu0 %3484
  %v3486 = vsel %vm715, %v3480, 0.0
  %3487 = vadd.xlane.f32.xlu0 %v3486
  %v3488 = vpop.xlane.xlu0 %3487
  %v3489 = vsel %vm715, %v3481, 0.0
  %3490 = vadd.xlane.f32.xlu0 %v3489
  %v3491 = vpop.xlane.xlu0 %3490
  %v3492 = vsel %vm715, %v3482, 0.0
  %3493 = vadd.xlane.f32.xlu0 %v3492
  %v3494 = vpop.xlane.xlu0 %3493
  %v3495 = vlaneseq
  %v3496 = vshrl.u32 %v3495, 7
  %v3497 = vsub.s32 3, %v3496
  %v3498 = vrot.slane %v2836, %v3497
  %v3499 = vmul.f32 %v3485, %v3498
  %v3500 = vmul.f32 %v3488, %v3498
  %v3501 = vmul.f32 %v3491, %v3498
  %v3502 = vmul.f32 %v3494, %v3498
  %v3503 = vadd.f32 %v3475, %v3499
  %v3504 = vadd.f32 %v3476, %v3500
  %v3505 = vadd.f32 %v3477, %v3501
  %v3506 = vadd.f32 %v3478, %v3502
  %v3507 = vsel %vm561, %v3300, 0.0
  %v3508 = vsel %vm562, %v3302, 0.0
  %v3509 = vsel %vm561, %v3304, 0.0
  %v3510 = vsel %vm562, %v3306, 0.0
  %v3511 = vsel %vm715, %v3507, 0.0
  %3512 = vadd.xlane.f32.xlu0 %v3511
  %v3513 = vpop.xlane.xlu0 %3512
  %v3514 = vsel %vm715, %v3508, 0.0
  %3515 = vadd.xlane.f32.xlu0 %v3514
  %v3516 = vpop.xlane.xlu0 %3515
  %v3517 = vsel %vm715, %v3509, 0.0
  %3518 = vadd.xlane.f32.xlu0 %v3517
  %v3519 = vpop.xlane.xlu0 %3518
  %v3520 = vsel %vm715, %v3510, 0.0
  %3521 = vadd.xlane.f32.xlu0 %v3520
  %v3522 = vpop.xlane.xlu0 %3521
  %v3523 = vlaneseq
  %v3524 = vshrl.u32 %v3523, 7
  %v3525 = vsub.s32 4, %v3524
  %v3526 = vrot.slane %v2836, %v3525
  %v3527 = vmul.f32 %v3513, %v3526
  %v3528 = vmul.f32 %v3516, %v3526
  %v3529 = vmul.f32 %v3519, %v3526
  %v3530 = vmul.f32 %v3522, %v3526
  %v3531 = vadd.f32 %v3503, %v3527
  %v3532 = vadd.f32 %v3504, %v3528
  %v3533 = vadd.f32 %v3505, %v3529
  %v3534 = vadd.f32 %v3506, %v3530
  %v3535 = vsel %vm591, %v3300, 0.0
  %v3536 = vsel %vm592, %v3302, 0.0
  %v3537 = vsel %vm591, %v3304, 0.0
  %v3538 = vsel %vm592, %v3306, 0.0
  %v3539 = vsel %vm715, %v3535, 0.0
  %3540 = vadd.xlane.f32.xlu0 %v3539
  %v3541 = vpop.xlane.xlu0 %3540
  %v3542 = vsel %vm715, %v3536, 0.0
  %3543 = vadd.xlane.f32.xlu0 %v3542
  %v3544 = vpop.xlane.xlu0 %3543
  %v3545 = vsel %vm715, %v3537, 0.0
  %3546 = vadd.xlane.f32.xlu0 %v3545
  %v3547 = vpop.xlane.xlu0 %3546
  %v3548 = vsel %vm715, %v3538, 0.0
  %3549 = vadd.xlane.f32.xlu0 %v3548
  %v3550 = vpop.xlane.xlu0 %3549
  %v3551 = vlaneseq
  %v3552 = vshrl.u32 %v3551, 7
  %v3553 = vsub.s32 5, %v3552
  %v3554 = vrot.slane %v2836, %v3553
  %v3555 = vmul.f32 %v3541, %v3554
  %v3556 = vmul.f32 %v3544, %v3554
  %v3557 = vmul.f32 %v3547, %v3554
  %v3558 = vmul.f32 %v3550, %v3554
  %v3559 = vadd.f32 %v3531, %v3555
  %v3560 = vadd.f32 %v3532, %v3556
  %v3561 = vadd.f32 %v3533, %v3557
  %v3562 = vadd.f32 %v3534, %v3558
  %v3563 = vsel %vm621, %v3300, 0.0
  %v3564 = vsel %vm622, %v3302, 0.0
  %v3565 = vsel %vm621, %v3304, 0.0
  %v3566 = vsel %vm622, %v3306, 0.0
  %v3567 = vsel %vm715, %v3563, 0.0
  %3568 = vadd.xlane.f32.xlu0 %v3567
  %v3569 = vpop.xlane.xlu0 %3568
  %v3570 = vsel %vm715, %v3564, 0.0
  %3571 = vadd.xlane.f32.xlu0 %v3570
  %v3572 = vpop.xlane.xlu0 %3571
  %v3573 = vsel %vm715, %v3565, 0.0
  %3574 = vadd.xlane.f32.xlu0 %v3573
  %v3575 = vpop.xlane.xlu0 %3574
  %v3576 = vsel %vm715, %v3566, 0.0
  %3577 = vadd.xlane.f32.xlu0 %v3576
  %v3578 = vpop.xlane.xlu0 %3577
  %v3579 = vlaneseq
  %v3580 = vshrl.u32 %v3579, 7
  %v3581 = vsub.s32 6, %v3580
  %v3582 = vrot.slane %v2836, %v3581
  %v3583 = vmul.f32 %v3569, %v3582
  %v3584 = vmul.f32 %v3572, %v3582
  %v3585 = vmul.f32 %v3575, %v3582
  %v3586 = vmul.f32 %v3578, %v3582
  %v3587 = vadd.f32 %v3559, %v3583
  %v3588 = vadd.f32 %v3560, %v3584
  %v3589 = vadd.f32 %v3561, %v3585
  %v3590 = vadd.f32 %v3562, %v3586
  %v3591 = vsel %vm651, %v3300, 0.0
  %v3592 = vsel %vm652, %v3302, 0.0
  %v3593 = vsel %vm651, %v3304, 0.0
  %v3594 = vsel %vm652, %v3306, 0.0
  %v3595 = vsel %vm715, %v3591, 0.0
  %3596 = vadd.xlane.f32.xlu0 %v3595
  %v3597 = vpop.xlane.xlu0 %3596
  %v3598 = vsel %vm715, %v3592, 0.0
  %3599 = vadd.xlane.f32.xlu0 %v3598
  %v3600 = vpop.xlane.xlu0 %3599
  %v3601 = vsel %vm715, %v3593, 0.0
  %3602 = vadd.xlane.f32.xlu0 %v3601
  %v3603 = vpop.xlane.xlu0 %3602
  %v3604 = vsel %vm715, %v3594, 0.0
  %3605 = vadd.xlane.f32.xlu0 %v3604
  %v3606 = vpop.xlane.xlu0 %3605
  %v3607 = vlaneseq
  %v3608 = vshrl.u32 %v3607, 7
  %v3609 = vsub.s32 7, %v3608
  %v3610 = vrot.slane %v2836, %v3609
  %v3611 = vmul.f32 %v3597, %v3610
  %v3612 = vmul.f32 %v3600, %v3610
  %v3613 = vmul.f32 %v3603, %v3610
  %v3614 = vmul.f32 %v3606, %v3610
  %v3615 = vadd.f32 %v3587, %v3611
  %v3616 = vadd.f32 %v3588, %v3612
  %v3617 = vadd.f32 %v3589, %v3613
  %v3618 = vadd.f32 %v3590, %v3614
  %v3619 = vsel %vm681, %v3300, 0.0
  %v3620 = vsel %vm682, %v3302, 0.0
  %v3621 = vsel %vm681, %v3304, 0.0
  %v3622 = vsel %vm682, %v3306, 0.0
  %v3623 = vsel %vm715, %v3619, 0.0
  %3624 = vadd.xlane.f32.xlu0 %v3623
  %v3625 = vpop.xlane.xlu0 %3624
  %v3626 = vsel %vm715, %v3620, 0.0
  %3627 = vadd.xlane.f32.xlu0 %v3626
  %v3628 = vpop.xlane.xlu0 %3627
  %v3629 = vsel %vm715, %v3621, 0.0
  %3630 = vadd.xlane.f32.xlu0 %v3629
  %v3631 = vpop.xlane.xlu0 %3630
  %v3632 = vsel %vm715, %v3622, 0.0
  %3633 = vadd.xlane.f32.xlu0 %v3632
  %v3634 = vpop.xlane.xlu0 %3633
  %v3635 = vlaneseq
  %v3636 = vshrl.u32 %v3635, 7
  %v3637 = vsub.s32 0, %v3636
  %v3638 = vrot.slane %v2837, %v3637
  %v3639 = vmul.f32 %v3625, %v3638
  %v3640 = vmul.f32 %v3628, %v3638
  %v3641 = vmul.f32 %v3631, %v3638
  %v3642 = vmul.f32 %v3634, %v3638
  %v3643 = vadd.f32 %v3615, %v3639
  %v3644 = vadd.f32 %v3616, %v3640
  %v3645 = vadd.f32 %v3617, %v3641
  %v3646 = vadd.f32 %v3618, %v3642
  %3647 = vrot.lane.b32.xlu0 %v2838, 96
  %v3648 = vpop.permute.xlu0 %3647
  %3649 = vrot.lane.b32.xlu0 %v2839, 96
  %v3650 = vpop.permute.xlu0 %3649
  %3651 = vrot.lane.b32.xlu0 %v2840, 96
  %v3652 = vpop.permute.xlu0 %3651
  %3653 = vrot.lane.b32.xlu0 %v2841, 96
  %v3654 = vpop.permute.xlu0 %3653
  %v3655 = vsel %vm239, %v3648, 0
  %v3657 = vsel %vm239, %v3650, 0
  %v3659 = vsel %vm239, %v3652, 0
  %v3661 = vsel %vm239, %v3654, 0
  %3663 = vmatprep.subr.mxu0 0.0
  %3664 = vmatpush1.msra.mxu0 0.0
  %3665 = vmatprep.subr.mxu0 0.0
  %3666 = vmatpush1.msra.mxu0 0.0
  %3667 = vmatprep.subr.mxu0 0.0
  %3668 = vmatpush1.msra.mxu0 0.0
  %3669 = vmatprep.subr.mxu0 0.0
  %3670 = vmatpush1.msra.mxu0 0.0
  %3671 = vmatprep.subr.mxu0 0.0
  %3672 = vmatpush1.msra.mxu0 0.0
  %3673 = vmatprep.subr.mxu0 0.0
  %3674 = vmatpush1.msra.mxu0 0.0
  %3675 = vmatprep.subr.mxu0 0.0
  %3676 = vmatpush1.msra.mxu0 0.0
  %3677 = vmatprep.subr.mxu0 0.0
  %3678 = vmatpush1.msra.mxu0 0.0
  %3679 = vmatprep.subr.mxu0 0.0
  %3680 = vmatpush1.msra.mxu0 0.0
  %3681 = vmatprep.subr.mxu0 0.0
  %3682 = vmatpush1.msra.mxu0 0.0
  %3683 = vmatprep.subr.mxu0 0.0
  %3684 = vmatpush1.msra.mxu0 0.0
  %3685 = vmatprep.subr.mxu0 0.0
  %3686 = vmatpush1.msra.mxu0 0.0
  %3687 = vmatprep.subr.mxu0 0.0
  %3688 = vmatpush1.msra.mxu0 %v2834
  %3689 = vmatprep.subr.mxu0 0.0
  %3690 = vmatpush1.msra.mxu0 %v2833
  %3691 = vmatprep.subr.mxu0 0.0
  %3692 = vmatpush1.msra.mxu0 %v2832
  %3693 = vmatprep.subr.mxu0 0.0
  %3694 = vmatpush1.msra.mxu0 %v2831
  %3695 = vmatprep.subr.mxu0 0.0
  %3696 = vmatpush2.msra.mxu0 0.0
  %3697 = vmatprep.subr.mxu0 0.0
  %3698 = vmatpush2.msra.mxu0 0.0
  %3699 = vmatprep.subr.mxu0 0.0
  %3700 = vmatpush2.msra.mxu0 0.0
  %3701 = vmatprep.subr.mxu0 0.0
  %3702 = vmatpush2.msra.mxu0 0.0
  %3703 = vmatprep.subr.mxu0 0.0
  %3704 = vmatpush2.msra.mxu0 0.0
  %3705 = vmatprep.subr.mxu0 0.0
  %3706 = vmatpush2.msra.mxu0 0.0
  %3707 = vmatprep.subr.mxu0 0.0
  %3708 = vmatpush2.msra.mxu0 0.0
  %3709 = vmatprep.subr.mxu0 0.0
  %3710 = vmatpush2.msra.mxu0 0.0
  %3711 = vmatprep.subr.mxu0 0.0
  %3712 = vmatpush2.msra.mxu0 0.0
  %3713 = vmatprep.subr.mxu0 0.0
  %3714 = vmatpush2.msra.mxu0 0.0
  %3715 = vmatprep.subr.mxu0 0.0
  %3716 = vmatpush2.msra.mxu0 0.0
  %3717 = vmatprep.subr.mxu0 0.0
  %3718 = vmatpush2.msra.mxu0 0.0
  %3719 = vmatprep.subr.mxu0 0.0
  %3720 = vmatpush2.msra.mxu0 0.0
  %3721 = vmatprep.subr.mxu0 0.0
  %3722 = vmatpush2.msra.mxu0 0.0
  %3723 = vmatprep.subr.mxu0 0.0
  %3724 = vmatpush2.msra.mxu0 0.0
  %3725 = vmatprep.subr.mxu0 0.0
  %3726 = vmatpush2.msra.mxu0 0.0
  %3727 = vmatprep.mubr.f32.mxu0 0.0
  %3728 = vmatmul.mubr.f32.gmra.mxu0 %v3655
  %v3729 = vpop.f32.mrf.mxu0
  %v3730 = vadd.f32 0.0, %v3729
  %v3731 = vpop.f32.mrf.mxu0
  %3732 = vmatprep.mubr.f32.mxu0 0.0
  %3733 = vmatmul.mubr.f32.gmra.mxu0 %v3657
  %v3734 = vpop.f32.mrf.mxu0
  %v3735 = vadd.f32 0.0, %v3734
  %v3736 = vpop.f32.mrf.mxu0
  %3737 = vmatprep.mubr.f32.mxu0 0.0
  %3738 = vmatmul.mubr.f32.gmra.mxu0 %v3659
  %v3739 = vpop.f32.mrf.mxu0
  %v3740 = vadd.f32 0.0, %v3739
  %v3741 = vpop.f32.mrf.mxu0
  %3742 = vmatprep.mubr.f32.mxu0 0.0
  %3743 = vmatmul.mubr.f32.gmra.mxu0 %v3661
  %v3744 = vpop.f32.mrf.mxu0
  %v3745 = vadd.f32 0.0, %v3744
  %v3746 = vpop.f32.mrf.mxu0
  %3747 = vdwg.mxu0
  %3749 = vset.pattern.permute.xlu0 0
  %3750 = vperm.xlu0 %3749, %v3730
  %v3751 = vpop.permute.xlu0 %3750
  %3754 = vset.pattern.permute.xlu0 0
  %3755 = vperm.xlu0 %3754, %v3735
  %v3756 = vpop.permute.xlu0 %3755
  %3759 = vset.pattern.permute.xlu0 0
  %3760 = vperm.xlu0 %3759, %v3740
  %v3761 = vpop.permute.xlu0 %3760
  %3764 = vset.pattern.permute.xlu0 0
  %3765 = vperm.xlu0 %3764, %v3745
  %v3766 = vpop.permute.xlu0 %3765
  %v3768 = vsel %vm341, %v3751, 0.0
  %v3769 = vsel %vm342, %v3756, 0.0
  %v3770 = vsel %vm341, %v3761, 0.0
  %v3771 = vsel %vm342, %v3766, 0.0
  %3773 = vrot.lane.b32.xlu0 %v2842, 96
  %v3774 = vpop.permute.xlu0 %3773
  %3775 = vrot.lane.b32.xlu0 %v2844, 32
  %v3776 = vpop.permute.xlu0 %3775
  %v3778 = vsel %vm239, %v3774, 0
  %v3781 = vsel %vm239, %v3776, 0
  %3783 = vmatprep.subr.bf16.mxu0 0
  %3784 = vmatpush1.bf16.xpose.msra.mxu0 0
  %3785 = vmatprep.subr.bf16.mxu0 0
  %3786 = vmatpush1.bf16.xpose.msra.mxu0 0
  %3787 = vmatprep.subr.bf16.mxu0 0
  %3788 = vmatpush1.bf16.xpose.msra.mxu0 0
  %3789 = vmatprep.subr.bf16.mxu0 0
  %3790 = vmatpush1.bf16.xpose.msra.mxu0 0
  %3791 = vmatprep.subr.bf16.mxu0 0
  %3792 = vmatpush1.bf16.xpose.msra.mxu0 0
  %3793 = vmatprep.subr.bf16.mxu0 0
  %3794 = vmatpush1.bf16.xpose.msra.mxu0 0
  %3795 = vmatprep.subr.bf16.mxu0 0
  %3796 = vmatpush1.bf16.xpose.msra.mxu0 0
  %3797 = vmatprep.subr.bf16.mxu0 0
  %3798 = vmatpush1.bf16.xpose.msra.mxu0 %v3781
  %3799 = vmatprep.subr.bf16.mxu0 0
  %3800 = vmatpush2.bf16.xpose.msra.mxu0 0
  %3801 = vmatprep.subr.bf16.mxu0 0
  %3802 = vmatpush2.bf16.xpose.msra.mxu0 0
  %3803 = vmatprep.subr.bf16.mxu0 0
  %3804 = vmatpush2.bf16.xpose.msra.mxu0 0
  %3805 = vmatprep.subr.bf16.mxu0 0
  %3806 = vmatpush2.bf16.xpose.msra.mxu0 0
  %3807 = vmatprep.subr.bf16.mxu0 0
  %3808 = vmatpush2.bf16.xpose.msra.mxu0 0
  %3809 = vmatprep.subr.bf16.mxu0 0
  %3810 = vmatpush2.bf16.xpose.msra.mxu0 0
  %3811 = vmatprep.subr.bf16.mxu0 0
  %3812 = vmatpush2.bf16.xpose.msra.mxu0 0
  %3813 = vmatprep.subr.bf16.mxu0 0
  %3814 = vmatpush2.bf16.xpose.msra.mxu0 0
  %3815 = vmatprep.mubr.bf16.mxu0 0
  %3816 = vmatmul.mubr.bf16.gmra.mxu0 %v3778
  %v3817 = vpop.f32.mrf.mxu0
  %v3818 = vadd.f32 %v3768, %v3817
  %v3819 = vpop.f32.mrf.mxu0
  %v3820 = vpop.f32.mrf.mxu0
  %v3821 = vadd.f32 %v3769, %v3820
  %v3822 = vpop.f32.mrf.mxu0
  %3823 = vdwg.mxu0
  %3825 = vrot.lane.b32.xlu0 %v2843, 96
  %v3826 = vpop.permute.xlu0 %3825
  %3827 = vrot.lane.b32.xlu0 %v2845, 32
  %v3828 = vpop.permute.xlu0 %3827
  %v3830 = vsel %vm239, %v3826, 0
  %v3833 = vsel %vm239, %v3828, 0
  %3835 = vmatprep.subr.bf16.mxu0 0
  %3836 = vmatpush1.bf16.xpose.msra.mxu0 0
  %3837 = vmatprep.subr.bf16.mxu0 0
  %3838 = vmatpush1.bf16.xpose.msra.mxu0 0
  %3839 = vmatprep.subr.bf16.mxu0 0
  %3840 = vmatpush1.bf16.xpose.msra.mxu0 0
  %3841 = vmatprep.subr.bf16.mxu0 0
  %3842 = vmatpush1.bf16.xpose.msra.mxu0 0
  %3843 = vmatprep.subr.bf16.mxu0 0
  %3844 = vmatpush1.bf16.xpose.msra.mxu0 0
  %3845 = vmatprep.subr.bf16.mxu0 0
  %3846 = vmatpush1.bf16.xpose.msra.mxu0 0
  %3847 = vmatprep.subr.bf16.mxu0 0
  %3848 = vmatpush1.bf16.xpose.msra.mxu0 0
  %3849 = vmatprep.subr.bf16.mxu0 0
  %3850 = vmatpush1.bf16.xpose.msra.mxu0 %v3833
  %3851 = vmatprep.subr.bf16.mxu0 0
  %3852 = vmatpush2.bf16.xpose.msra.mxu0 0
  %3853 = vmatprep.subr.bf16.mxu0 0
  %3854 = vmatpush2.bf16.xpose.msra.mxu0 0
  %3855 = vmatprep.subr.bf16.mxu0 0
  %3856 = vmatpush2.bf16.xpose.msra.mxu0 0
  %3857 = vmatprep.subr.bf16.mxu0 0
  %3858 = vmatpush2.bf16.xpose.msra.mxu0 0
  %3859 = vmatprep.subr.bf16.mxu0 0
  %3860 = vmatpush2.bf16.xpose.msra.mxu0 0
  %3861 = vmatprep.subr.bf16.mxu0 0
  %3862 = vmatpush2.bf16.xpose.msra.mxu0 0
  %3863 = vmatprep.subr.bf16.mxu0 0
  %3864 = vmatpush2.bf16.xpose.msra.mxu0 0
  %3865 = vmatprep.subr.bf16.mxu0 0
  %3866 = vmatpush2.bf16.xpose.msra.mxu0 0
  %3867 = vmatprep.mubr.bf16.mxu0 0
  %3868 = vmatmul.mubr.bf16.gmra.mxu0 %v3830
  %v3869 = vpop.f32.mrf.mxu0
  %v3870 = vadd.f32 %v3770, %v3869
  %v3871 = vpop.f32.mrf.mxu0
  %v3872 = vpop.f32.mrf.mxu0
  %v3873 = vadd.f32 %v3771, %v3872
  %v3874 = vpop.f32.mrf.mxu0
  %3875 = vdwg.mxu0
  %3876 = vset.pattern.permute.xlu0 1
  %3877 = vperm.xlu0 %3876, %v3730
  %v3878 = vpop.permute.xlu0 %3877
  %3880 = vset.pattern.permute.xlu0 1
  %3881 = vperm.xlu0 %3880, %v3735
  %v3882 = vpop.permute.xlu0 %3881
  %3884 = vset.pattern.permute.xlu0 1
  %3885 = vperm.xlu0 %3884, %v3740
  %v3886 = vpop.permute.xlu0 %3885
  %3888 = vset.pattern.permute.xlu0 1
  %3889 = vperm.xlu0 %3888, %v3745
  %v3890 = vpop.permute.xlu0 %3889
  %v3892 = vsel %vm471, %v3878, 0.0
  %v3893 = vsel %vm472, %v3882, 0.0
  %v3894 = vsel %vm471, %v3886, 0.0
  %v3895 = vsel %vm472, %v3890, 0.0
  %v3896 = vadd.f32 %v3818, %v3892
  %v3897 = vadd.f32 %v3821, %v3893
  %v3898 = vadd.f32 %v3870, %v3894
  %v3899 = vadd.f32 %v3873, %v3895
  %3900 = vset.pattern.permute.xlu0 2
  %3901 = vperm.xlu0 %3900, %v3730
  %v3902 = vpop.permute.xlu0 %3901
  %3904 = vset.pattern.permute.xlu0 2
  %3905 = vperm.xlu0 %3904, %v3735
  %v3906 = vpop.permute.xlu0 %3905
  %3908 = vset.pattern.permute.xlu0 2
  %3909 = vperm.xlu0 %3908, %v3740
  %v3910 = vpop.permute.xlu0 %3909
  %3912 = vset.pattern.permute.xlu0 2
  %3913 = vperm.xlu0 %3912, %v3745
  %v3914 = vpop.permute.xlu0 %3913
  %v3916 = vsel %vm501, %v3902, 0.0
  %v3917 = vsel %vm502, %v3906, 0.0
  %v3918 = vsel %vm501, %v3910, 0.0
  %v3919 = vsel %vm502, %v3914, 0.0
  %v3920 = vadd.f32 %v3896, %v3916
  %v3921 = vadd.f32 %v3897, %v3917
  %v3922 = vadd.f32 %v3898, %v3918
  %v3923 = vadd.f32 %v3899, %v3919
  %3924 = vset.pattern.permute.xlu0 3
  %3925 = vperm.xlu0 %3924, %v3730
  %v3926 = vpop.permute.xlu0 %3925
  %3928 = vset.pattern.permute.xlu0 3
  %3929 = vperm.xlu0 %3928, %v3735
  %v3930 = vpop.permute.xlu0 %3929
  %3932 = vset.pattern.permute.xlu0 3
  %3933 = vperm.xlu0 %3932, %v3740
  %v3934 = vpop.permute.xlu0 %3933
  %3936 = vset.pattern.permute.xlu0 3
  %3937 = vperm.xlu0 %3936, %v3745
  %v3938 = vpop.permute.xlu0 %3937
  %v3940 = vsel %vm531, %v3926, 0.0
  %v3941 = vsel %vm532, %v3930, 0.0
  %v3942 = vsel %vm531, %v3934, 0.0
  %v3943 = vsel %vm532, %v3938, 0.0
  %v3944 = vadd.f32 %v3920, %v3940
  %v3945 = vadd.f32 %v3921, %v3941
  %v3946 = vadd.f32 %v3922, %v3942
  %v3947 = vadd.f32 %v3923, %v3943
  %3948 = vset.pattern.permute.xlu0 4
  %3949 = vperm.xlu0 %3948, %v3730
  %v3950 = vpop.permute.xlu0 %3949
  %3952 = vset.pattern.permute.xlu0 4
  %3953 = vperm.xlu0 %3952, %v3735
  %v3954 = vpop.permute.xlu0 %3953
  %3956 = vset.pattern.permute.xlu0 4
  %3957 = vperm.xlu0 %3956, %v3740
  %v3958 = vpop.permute.xlu0 %3957
  %3960 = vset.pattern.permute.xlu0 4
  %3961 = vperm.xlu0 %3960, %v3745
  %v3962 = vpop.permute.xlu0 %3961
  %v3964 = vsel %vm561, %v3950, 0.0
  %v3965 = vsel %vm562, %v3954, 0.0
  %v3966 = vsel %vm561, %v3958, 0.0
  %v3967 = vsel %vm562, %v3962, 0.0
  %v3968 = vadd.f32 %v3944, %v3964
  %v3969 = vadd.f32 %v3945, %v3965
  %v3970 = vadd.f32 %v3946, %v3966
  %v3971 = vadd.f32 %v3947, %v3967
  %3972 = vset.pattern.permute.xlu0 5
  %3973 = vperm.xlu0 %3972, %v3730
  %v3974 = vpop.permute.xlu0 %3973
  %3976 = vset.pattern.permute.xlu0 5
  %3977 = vperm.xlu0 %3976, %v3735
  %v3978 = vpop.permute.xlu0 %3977
  %3980 = vset.pattern.permute.xlu0 5
  %3981 = vperm.xlu0 %3980, %v3740
  %v3982 = vpop.permute.xlu0 %3981
  %3984 = vset.pattern.permute.xlu0 5
  %3985 = vperm.xlu0 %3984, %v3745
  %v3986 = vpop.permute.xlu0 %3985
  %v3988 = vsel %vm591, %v3974, 0.0
  %v3989 = vsel %vm592, %v3978, 0.0
  %v3990 = vsel %vm591, %v3982, 0.0
  %v3991 = vsel %vm592, %v3986, 0.0
  %v3992 = vadd.f32 %v3968, %v3988
  %v3993 = vadd.f32 %v3969, %v3989
  %v3994 = vadd.f32 %v3970, %v3990
  %v3995 = vadd.f32 %v3971, %v3991
  %3996 = vset.pattern.permute.xlu0 6
  %3997 = vperm.xlu0 %3996, %v3730
  %v3998 = vpop.permute.xlu0 %3997
  %4000 = vset.pattern.permute.xlu0 6
  %4001 = vperm.xlu0 %4000, %v3735
  %v4002 = vpop.permute.xlu0 %4001
  %4004 = vset.pattern.permute.xlu0 6
  %4005 = vperm.xlu0 %4004, %v3740
  %v4006 = vpop.permute.xlu0 %4005
  %4008 = vset.pattern.permute.xlu0 6
  %4009 = vperm.xlu0 %4008, %v3745
  %v4010 = vpop.permute.xlu0 %4009
  %v4012 = vsel %vm621, %v3998, 0.0
  %v4013 = vsel %vm622, %v4002, 0.0
  %v4014 = vsel %vm621, %v4006, 0.0
  %v4015 = vsel %vm622, %v4010, 0.0
  %v4016 = vadd.f32 %v3992, %v4012
  %v4017 = vadd.f32 %v3993, %v4013
  %v4018 = vadd.f32 %v3994, %v4014
  %v4019 = vadd.f32 %v3995, %v4015
  %4020 = vset.pattern.permute.xlu0 7
  %4021 = vperm.xlu0 %4020, %v3730
  %v4022 = vpop.permute.xlu0 %4021
  %4024 = vset.pattern.permute.xlu0 7
  %4025 = vperm.xlu0 %4024, %v3735
  %v4026 = vpop.permute.xlu0 %4025
  %4028 = vset.pattern.permute.xlu0 7
  %4029 = vperm.xlu0 %4028, %v3740
  %v4030 = vpop.permute.xlu0 %4029
  %4032 = vset.pattern.permute.xlu0 7
  %4033 = vperm.xlu0 %4032, %v3745
  %v4034 = vpop.permute.xlu0 %4033
  %v4036 = vsel %vm651, %v4022, 0.0
  %v4037 = vsel %vm652, %v4026, 0.0
  %v4038 = vsel %vm651, %v4030, 0.0
  %v4039 = vsel %vm652, %v4034, 0.0
  %v4040 = vadd.f32 %v4016, %v4036
  %v4041 = vadd.f32 %v4017, %v4037
  %v4042 = vadd.f32 %v4018, %v4038
  %v4043 = vadd.f32 %v4019, %v4039
  %4044 = vset.pattern.permute.xlu0 8
  %4045 = vperm.xlu0 %4044, %v3730
  %v4046 = vpop.permute.xlu0 %4045
  %4048 = vset.pattern.permute.xlu0 8
  %4049 = vperm.xlu0 %4048, %v3735
  %v4050 = vpop.permute.xlu0 %4049
  %4052 = vset.pattern.permute.xlu0 8
  %4053 = vperm.xlu0 %4052, %v3740
  %v4054 = vpop.permute.xlu0 %4053
  %4056 = vset.pattern.permute.xlu0 8
  %4057 = vperm.xlu0 %4056, %v3745
  %v4058 = vpop.permute.xlu0 %4057
  %v4060 = vsel %vm681, %v4046, 0.0
  %v4061 = vsel %vm682, %v4050, 0.0
  %v4062 = vsel %vm681, %v4054, 0.0
  %v4063 = vsel %vm682, %v4058, 0.0
  %v4064 = vadd.f32 %v4040, %v4060
  %v4065 = vadd.f32 %v4041, %v4061
  %v4066 = vadd.f32 %v4042, %v4062
  %v4067 = vadd.f32 %v4043, %v4063
  %v4068 = vsel %vm707, %v4064, -10000.0
  %v4069 = vsel %vm708, %v4065, -10000.0
  %v4070 = vsel %vm709, %v4066, -10000.0
  %v4071 = vsel %vm710, %v4067, -10000.0
  %v4072 = vsel %vm715, %v4068, -inf
  %4073 = vmax.xlane.f32.xlu0 %v4072
  %v4074 = vpop.xlane.xlu0 %4073
  %v4075 = vsel %vm715, %v4069, -inf
  %4076 = vmax.xlane.f32.xlu0 %v4075
  %v4077 = vpop.xlane.xlu0 %4076
  %v4078 = vsel %vm715, %v4070, -inf
  %4079 = vmax.xlane.f32.xlu0 %v4078
  %v4080 = vpop.xlane.xlu0 %4079
  %v4081 = vsel %vm715, %v4071, -inf
  %4082 = vmax.xlane.f32.xlu0 %v4081
  %v4083 = vpop.xlane.xlu0 %4082
  %v4084 = vsub.f32 %v4068, %v4074
  %v4085 = vsub.f32 %v4069, %v4077
  %v4086 = vsub.f32 %v4070, %v4080
  %v4087 = vsub.f32 %v4071, %v4083
  %v4088 = vmul.f32 %v4084, 1.442695
  %v4089 = vpow.pop %v4088
  %v4090 = vmul.f32 %v4085, 1.442695
  %v4091 = vpow.pop %v4090
  %v4092 = vmul.f32 %v4086, 1.442695
  %v4093 = vpow.pop %v4092
  %v4094 = vmul.f32 %v4087, 1.442695
  %v4095 = vpow.pop %v4094
  %v4096 = vsel %vm715, %v4089, 0.0
  %4097 = vadd.xlane.f32.xlu0 %v4096
  %v4098 = vpop.xlane.xlu0 %4097
  %v4099 = vsel %vm715, %v4091, 0.0
  %4100 = vadd.xlane.f32.xlu0 %v4099
  %v4101 = vpop.xlane.xlu0 %4100
  %v4102 = vsel %vm715, %v4093, 0.0
  %4103 = vadd.xlane.f32.xlu0 %v4102
  %v4104 = vpop.xlane.xlu0 %4103
  %v4105 = vsel %vm715, %v4095, 0.0
  %4106 = vadd.xlane.f32.xlu0 %v4105
  %v4107 = vpop.xlane.xlu0 %4106
  %v4108 = vrcp.pop %v4098
  %v4109 = vmul.f32 %v4089, %v4108
  %v4110 = vrcp.pop %v4101
  %v4111 = vmul.f32 %v4091, %v4110
  %v4112 = vrcp.pop %v4104
  %v4113 = vmul.f32 %v4093, %v4112
  %v4114 = vrcp.pop %v4107
  %v4115 = vmul.f32 %v4095, %v4114
  %v4116 = vpack.c.bf16 %v4111, %v4109
  %v4117 = vpack.c.bf16 %v4115, %v4113
  %v4118 = vsel %vm341, %v4109, 0.0
  %v4119 = vsel %vm342, %v4111, 0.0
  %v4120 = vsel %vm341, %v4113, 0.0
  %v4121 = vsel %vm342, %v4115, 0.0
  %v4122 = vsel %vm715, %v4118, 0.0
  %4123 = vadd.xlane.f32.xlu0 %v4122
  %v4124 = vpop.xlane.xlu0 %4123
  %v4125 = vsel %vm715, %v4119, 0.0
  %4126 = vadd.xlane.f32.xlu0 %v4125
  %v4127 = vpop.xlane.xlu0 %4126
  %v4128 = vsel %vm715, %v4120, 0.0
  %4129 = vadd.xlane.f32.xlu0 %v4128
  %v4130 = vpop.xlane.xlu0 %4129
  %v4131 = vsel %vm715, %v4121, 0.0
  %4132 = vadd.xlane.f32.xlu0 %v4131
  %v4133 = vpop.xlane.xlu0 %4132
  %v4134 = vmul.f32 %v4124, %v3330
  %v4135 = vmul.f32 %v4127, %v3330
  %v4136 = vmul.f32 %v4130, %v3330
  %v4137 = vmul.f32 %v4133, %v3330
  %4139 = vrot.lane.b32.xlu0 %v3309, 96
  %v4140 = vpop.permute.xlu0 %4139
  %v4143 = vsel %vm715, %v4116, 0
  %4145 = vmatprep.subr.bf16.mxu0 0
  %4146 = vmatpush1.bf16.msra.mxu0 0
  %4147 = vmatprep.subr.bf16.mxu0 0
  %4148 = vmatpush1.bf16.msra.mxu0 0
  %4149 = vmatprep.subr.bf16.mxu0 0
  %4150 = vmatpush1.bf16.msra.mxu0 0
  %4151 = vmatprep.subr.bf16.mxu0 0
  %4152 = vmatpush1.bf16.msra.mxu0 0
  %4153 = vmatprep.subr.bf16.mxu0 0
  %4154 = vmatpush1.bf16.msra.mxu0 0
  %4155 = vmatprep.subr.bf16.mxu0 0
  %4156 = vmatpush1.bf16.msra.mxu0 0
  %4157 = vmatprep.subr.bf16.mxu0 0
  %4158 = vmatpush1.bf16.msra.mxu0 0
  %4159 = vmatprep.subr.bf16.mxu0 0
  %4160 = vmatpush1.bf16.msra.mxu0 %v4140
  %4161 = vmatprep.subr.bf16.mxu0 0
  %4162 = vmatpush2.bf16.msra.mxu0 0
  %4163 = vmatprep.subr.bf16.mxu0 0
  %4164 = vmatpush2.bf16.msra.mxu0 0
  %4165 = vmatprep.subr.bf16.mxu0 0
  %4166 = vmatpush2.bf16.msra.mxu0 0
  %4167 = vmatprep.subr.bf16.mxu0 0
  %4168 = vmatpush2.bf16.msra.mxu0 0
  %4169 = vmatprep.subr.bf16.mxu0 0
  %4170 = vmatpush2.bf16.msra.mxu0 0
  %4171 = vmatprep.subr.bf16.mxu0 0
  %4172 = vmatpush2.bf16.msra.mxu0 0
  %4173 = vmatprep.subr.bf16.mxu0 0
  %4174 = vmatpush2.bf16.msra.mxu0 0
  %4175 = vmatprep.subr.bf16.mxu0 0
  %4176 = vmatpush2.bf16.msra.mxu0 0
  %4177 = vmatprep.mubr.bf16.mxu0 0
  %4178 = vmatmul.mubr.bf16.gmra.mxu0 %v4143
  %v4179 = vpop.f32.mrf.mxu0
  %v4180 = vadd.f32 %v4134, %v4179
  %v4181 = vpop.f32.mrf.mxu0
  %v4182 = vpop.f32.mrf.mxu0
  %v4183 = vadd.f32 %v4135, %v4182
  %v4184 = vpop.f32.mrf.mxu0
  %4185 = vdwg.mxu0
  %4187 = vrot.lane.b32.xlu0 %v3310, 96
  %v4188 = vpop.permute.xlu0 %4187
  %v4191 = vsel %vm715, %v4117, 0
  %4193 = vmatprep.subr.bf16.mxu0 0
  %4194 = vmatpush1.bf16.msra.mxu0 0
  %4195 = vmatprep.subr.bf16.mxu0 0
  %4196 = vmatpush1.bf16.msra.mxu0 0
  %4197 = vmatprep.subr.bf16.mxu0 0
  %4198 = vmatpush1.bf16.msra.mxu0 0
  %4199 = vmatprep.subr.bf16.mxu0 0
  %4200 = vmatpush1.bf16.msra.mxu0 0
  %4201 = vmatprep.subr.bf16.mxu0 0
  %4202 = vmatpush1.bf16.msra.mxu0 0
  %4203 = vmatprep.subr.bf16.mxu0 0
  %4204 = vmatpush1.bf16.msra.mxu0 0
  %4205 = vmatprep.subr.bf16.mxu0 0
  %4206 = vmatpush1.bf16.msra.mxu0 0
  %4207 = vmatprep.subr.bf16.mxu0 0
  %4208 = vmatpush1.bf16.msra.mxu0 %v4188
  %4209 = vmatprep.subr.bf16.mxu0 0
  %4210 = vmatpush2.bf16.msra.mxu0 0
  %4211 = vmatprep.subr.bf16.mxu0 0
  %4212 = vmatpush2.bf16.msra.mxu0 0
  %4213 = vmatprep.subr.bf16.mxu0 0
  %4214 = vmatpush2.bf16.msra.mxu0 0
  %4215 = vmatprep.subr.bf16.mxu0 0
  %4216 = vmatpush2.bf16.msra.mxu0 0
  %4217 = vmatprep.subr.bf16.mxu0 0
  %4218 = vmatpush2.bf16.msra.mxu0 0
  %4219 = vmatprep.subr.bf16.mxu0 0
  %4220 = vmatpush2.bf16.msra.mxu0 0
  %4221 = vmatprep.subr.bf16.mxu0 0
  %4222 = vmatpush2.bf16.msra.mxu0 0
  %4223 = vmatprep.subr.bf16.mxu0 0
  %4224 = vmatpush2.bf16.msra.mxu0 0
  %4225 = vmatprep.mubr.bf16.mxu0 0
  %4226 = vmatmul.mubr.bf16.gmra.mxu0 %v4191
  %v4227 = vpop.f32.mrf.mxu0
  %v4228 = vadd.f32 %v4136, %v4227
  %v4229 = vpop.f32.mrf.mxu0
  %v4230 = vpop.f32.mrf.mxu0
  %v4231 = vadd.f32 %v4137, %v4230
  %v4232 = vpop.f32.mrf.mxu0
  %4233 = vdwg.mxu0
  %v4234 = vsel %vm471, %v4109, 0.0
  %v4235 = vsel %vm472, %v4111, 0.0
  %v4236 = vsel %vm471, %v4113, 0.0
  %v4237 = vsel %vm472, %v4115, 0.0
  %v4238 = vsel %vm715, %v4234, 0.0
  %4239 = vadd.xlane.f32.xlu0 %v4238
  %v4240 = vpop.xlane.xlu0 %4239
  %v4241 = vsel %vm715, %v4235, 0.0
  %4242 = vadd.xlane.f32.xlu0 %v4241
  %v4243 = vpop.xlane.xlu0 %4242
  %v4244 = vsel %vm715, %v4236, 0.0
  %4245 = vadd.xlane.f32.xlu0 %v4244
  %v4246 = vpop.xlane.xlu0 %4245
  %v4247 = vsel %vm715, %v4237, 0.0
  %4248 = vadd.xlane.f32.xlu0 %v4247
  %v4249 = vpop.xlane.xlu0 %4248
  %v4250 = vmul.f32 %v4240, %v3442
  %v4251 = vmul.f32 %v4243, %v3442
  %v4252 = vmul.f32 %v4246, %v3442
  %v4253 = vmul.f32 %v4249, %v3442
  %v4254 = vadd.f32 %v4180, %v4250
  %v4255 = vadd.f32 %v4183, %v4251
  %v4256 = vadd.f32 %v4228, %v4252
  %v4257 = vadd.f32 %v4231, %v4253
  %v4258 = vsel %vm501, %v4109, 0.0
  %v4259 = vsel %vm502, %v4111, 0.0
  %v4260 = vsel %vm501, %v4113, 0.0
  %v4261 = vsel %vm502, %v4115, 0.0
  %v4262 = vsel %vm715, %v4258, 0.0
  %4263 = vadd.xlane.f32.xlu0 %v4262
  %v4264 = vpop.xlane.xlu0 %4263
  %v4265 = vsel %vm715, %v4259, 0.0
  %4266 = vadd.xlane.f32.xlu0 %v4265
  %v4267 = vpop.xlane.xlu0 %4266
  %v4268 = vsel %vm715, %v4260, 0.0
  %4269 = vadd.xlane.f32.xlu0 %v4268
  %v4270 = vpop.xlane.xlu0 %4269
  %v4271 = vsel %vm715, %v4261, 0.0
  %4272 = vadd.xlane.f32.xlu0 %v4271
  %v4273 = vpop.xlane.xlu0 %4272
  %v4274 = vmul.f32 %v4264, %v3470
  %v4275 = vmul.f32 %v4267, %v3470
  %v4276 = vmul.f32 %v4270, %v3470
  %v4277 = vmul.f32 %v4273, %v3470
  %v4278 = vadd.f32 %v4254, %v4274
  %v4279 = vadd.f32 %v4255, %v4275
  %v4280 = vadd.f32 %v4256, %v4276
  %v4281 = vadd.f32 %v4257, %v4277
  %v4282 = vsel %vm531, %v4109, 0.0
  %v4283 = vsel %vm532, %v4111, 0.0
  %v4284 = vsel %vm531, %v4113, 0.0
  %v4285 = vsel %vm532, %v4115, 0.0
  %v4286 = vsel %vm715, %v4282, 0.0
  %4287 = vadd.xlane.f32.xlu0 %v4286
  %v4288 = vpop.xlane.xlu0 %4287
  %v4289 = vsel %vm715, %v4283, 0.0
  %4290 = vadd.xlane.f32.xlu0 %v4289
  %v4291 = vpop.xlane.xlu0 %4290
  %v4292 = vsel %vm715, %v4284, 0.0
  %4293 = vadd.xlane.f32.xlu0 %v4292
  %v4294 = vpop.xlane.xlu0 %4293
  %v4295 = vsel %vm715, %v4285, 0.0
  %4296 = vadd.xlane.f32.xlu0 %v4295
  %v4297 = vpop.xlane.xlu0 %4296
  %v4298 = vmul.f32 %v4288, %v3498
  %v4299 = vmul.f32 %v4291, %v3498
  %v4300 = vmul.f32 %v4294, %v3498
  %v4301 = vmul.f32 %v4297, %v3498
  %v4302 = vadd.f32 %v4278, %v4298
  %v4303 = vadd.f32 %v4279, %v4299
  %v4304 = vadd.f32 %v4280, %v4300
  %v4305 = vadd.f32 %v4281, %v4301
  %v4306 = vsel %vm561, %v4109, 0.0
  %v4307 = vsel %vm562, %v4111, 0.0
  %v4308 = vsel %vm561, %v4113, 0.0
  %v4309 = vsel %vm562, %v4115, 0.0
  %v4310 = vsel %vm715, %v4306, 0.0
  %4311 = vadd.xlane.f32.xlu0 %v4310
  %v4312 = vpop.xlane.xlu0 %4311
  %v4313 = vsel %vm715, %v4307, 0.0
  %4314 = vadd.xlane.f32.xlu0 %v4313
  %v4315 = vpop.xlane.xlu0 %4314
  %v4316 = vsel %vm715, %v4308, 0.0
  %4317 = vadd.xlane.f32.xlu0 %v4316
  %v4318 = vpop.xlane.xlu0 %4317
  %v4319 = vsel %vm715, %v4309, 0.0
  %4320 = vadd.xlane.f32.xlu0 %v4319
  %v4321 = vpop.xlane.xlu0 %4320
  %v4322 = vmul.f32 %v4312, %v3526
  %v4323 = vmul.f32 %v4315, %v3526
  %v4324 = vmul.f32 %v4318, %v3526
  %v4325 = vmul.f32 %v4321, %v3526
  %v4326 = vadd.f32 %v4302, %v4322
  %v4327 = vadd.f32 %v4303, %v4323
  %v4328 = vadd.f32 %v4304, %v4324
  %v4329 = vadd.f32 %v4305, %v4325
  %v4330 = vsel %vm591, %v4109, 0.0
  %v4331 = vsel %vm592, %v4111, 0.0
  %v4332 = vsel %vm591, %v4113, 0.0
  %v4333 = vsel %vm592, %v4115, 0.0
  %v4334 = vsel %vm715, %v4330, 0.0
  %4335 = vadd.xlane.f32.xlu0 %v4334
  %v4336 = vpop.xlane.xlu0 %4335
  %v4337 = vsel %vm715, %v4331, 0.0
  %4338 = vadd.xlane.f32.xlu0 %v4337
  %v4339 = vpop.xlane.xlu0 %4338
  %v4340 = vsel %vm715, %v4332, 0.0
  %4341 = vadd.xlane.f32.xlu0 %v4340
  %v4342 = vpop.xlane.xlu0 %4341
  %v4343 = vsel %vm715, %v4333, 0.0
  %4344 = vadd.xlane.f32.xlu0 %v4343
  %v4345 = vpop.xlane.xlu0 %4344
  %v4346 = vmul.f32 %v4336, %v3554
  %v4347 = vmul.f32 %v4339, %v3554
  %v4348 = vmul.f32 %v4342, %v3554
  %v4349 = vmul.f32 %v4345, %v3554
  %v4350 = vadd.f32 %v4326, %v4346
  %v4351 = vadd.f32 %v4327, %v4347
  %v4352 = vadd.f32 %v4328, %v4348
  %v4353 = vadd.f32 %v4329, %v4349
  %v4354 = vsel %vm621, %v4109, 0.0
  %v4355 = vsel %vm622, %v4111, 0.0
  %v4356 = vsel %vm621, %v4113, 0.0
  %v4357 = vsel %vm622, %v4115, 0.0
  %v4358 = vsel %vm715, %v4354, 0.0
  %4359 = vadd.xlane.f32.xlu0 %v4358
  %v4360 = vpop.xlane.xlu0 %4359
  %v4361 = vsel %vm715, %v4355, 0.0
  %4362 = vadd.xlane.f32.xlu0 %v4361
  %v4363 = vpop.xlane.xlu0 %4362
  %v4364 = vsel %vm715, %v4356, 0.0
  %4365 = vadd.xlane.f32.xlu0 %v4364
  %v4366 = vpop.xlane.xlu0 %4365
  %v4367 = vsel %vm715, %v4357, 0.0
  %4368 = vadd.xlane.f32.xlu0 %v4367
  %v4369 = vpop.xlane.xlu0 %4368
  %v4370 = vmul.f32 %v4360, %v3582
  %v4371 = vmul.f32 %v4363, %v3582
  %v4372 = vmul.f32 %v4366, %v3582
  %v4373 = vmul.f32 %v4369, %v3582
  %v4374 = vadd.f32 %v4350, %v4370
  %v4375 = vadd.f32 %v4351, %v4371
  %v4376 = vadd.f32 %v4352, %v4372
  %v4377 = vadd.f32 %v4353, %v4373
  %v4378 = vsel %vm651, %v4109, 0.0
  %v4379 = vsel %vm652, %v4111, 0.0
  %v4380 = vsel %vm651, %v4113, 0.0
  %v4381 = vsel %vm652, %v4115, 0.0
  %v4382 = vsel %vm715, %v4378, 0.0
  %4383 = vadd.xlane.f32.xlu0 %v4382
  %v4384 = vpop.xlane.xlu0 %4383
  %v4385 = vsel %vm715, %v4379, 0.0
  %4386 = vadd.xlane.f32.xlu0 %v4385
  %v4387 = vpop.xlane.xlu0 %4386
  %v4388 = vsel %vm715, %v4380, 0.0
  %4389 = vadd.xlane.f32.xlu0 %v4388
  %v4390 = vpop.xlane.xlu0 %4389
  %v4391 = vsel %vm715, %v4381, 0.0
  %4392 = vadd.xlane.f32.xlu0 %v4391
  %v4393 = vpop.xlane.xlu0 %4392
  %v4394 = vmul.f32 %v4384, %v3610
  %v4395 = vmul.f32 %v4387, %v3610
  %v4396 = vmul.f32 %v4390, %v3610
  %v4397 = vmul.f32 %v4393, %v3610
  %v4398 = vadd.f32 %v4374, %v4394
  %v4399 = vadd.f32 %v4375, %v4395
  %v4400 = vadd.f32 %v4376, %v4396
  %v4401 = vadd.f32 %v4377, %v4397
  %v4402 = vsel %vm681, %v4109, 0.0
  %v4403 = vsel %vm682, %v4111, 0.0
  %v4404 = vsel %vm681, %v4113, 0.0
  %v4405 = vsel %vm682, %v4115, 0.0
  %v4406 = vsel %vm715, %v4402, 0.0
  %4407 = vadd.xlane.f32.xlu0 %v4406
  %v4408 = vpop.xlane.xlu0 %4407
  %v4409 = vsel %vm715, %v4403, 0.0
  %4410 = vadd.xlane.f32.xlu0 %v4409
  %v4411 = vpop.xlane.xlu0 %4410
  %v4412 = vsel %vm715, %v4404, 0.0
  %4413 = vadd.xlane.f32.xlu0 %v4412
  %v4414 = vpop.xlane.xlu0 %4413
  %v4415 = vsel %vm715, %v4405, 0.0
  %4416 = vadd.xlane.f32.xlu0 %v4415
  %v4417 = vpop.xlane.xlu0 %4416
  %v4418 = vmul.f32 %v4408, %v3638
  %v4419 = vmul.f32 %v4411, %v3638
  %v4420 = vmul.f32 %v4414, %v3638
  %v4421 = vmul.f32 %v4417, %v3638
  %v4422 = vadd.f32 %v4398, %v4418
  %v4423 = vadd.f32 %v4399, %v4419
  %v4424 = vadd.f32 %v4400, %v4420
  %v4425 = vadd.f32 %v4401, %v4421
  %4430 = vrot.lane.b32.xlu0 %v4422, 32
  %v4431 = vpop.permute.xlu0 %4430
  %4432 = vrot.lane.b32.xlu0 %v4423, 32
  %v4433 = vpop.permute.xlu0 %4432
  %4434 = vrot.lane.b32.xlu0 %v4424, 32
  %v4435 = vpop.permute.xlu0 %4434
  %4436 = vrot.lane.b32.xlu0 %v4425, 32
  %v4437 = vpop.permute.xlu0 %4436
  %v4442 = vsel %vm239, %v3643, %v4431
  %v4443 = vsel %vm239, %v3644, %v4433
  %v4444 = vsel %vm239, %v3645, %v4435
  %v4445 = vsel %vm239, %v3646, %v4437
  %v4446 = vpack.c.bf16 %v4443, %v4442
  %v4447 = vpack.c.bf16 %v4445, %v4444
  %s4448 = scalar_lea.vmem %s4, 32
  %v4449 = vld [vmem:[%s4448] sm:$0xf]
  %v4450 = vld [vmem:[%s4448 + $0x4] sm:$0xf]
  %v4451 = vld [vmem:[%s4448 + $0x8] sm:$0xf]
  %v4452 = vld [vmem:[%s4448 + $0xc] sm:$0xf]
  %v4453 = vld [vmem:[%s4448 + $0x10] sm:$0xf]
  %v4454 = vld [vmem:[%s4448 + $0x14] sm:$0xf]
  %v4455 = vld [vmem:[%s4448 + $0x18] sm:$0xf]
  %v4456 = vld [vmem:[%s4448 + $0x1c] sm:$0xf]
  %s4457 = scalar_lea.vmem %s5, 1
  %v4458 = vld [vmem:[%s4457] sm:$0x1]
  %v4460 = vlaneseq
  %v4461 = vshrl.u32 %v4460, 7
  %v4462 = vsub.s32 0, %v4461
  %v4463 = vrot.slane %v4458, %v4462
  %v4473 = vunpack.c.l.b16 %v4449
  %v4474 = vunpack.c.l.b16 %v4450
  %v4475 = vunpack.c.l.b16 %v4451
  %v4476 = vunpack.c.l.b16 %v4452
  %v4477 = vunpack.c.l.b16 %v4453
  %v4478 = vunpack.c.l.b16 %v4454
  %v4479 = vunpack.c.l.b16 %v4455
  %v4480 = vunpack.c.l.b16 %v4456
  %v4481 = vpack.c.b16 %v4474, %v4473
  %v4482 = vpack.c.b16 %v4476, %v4475
  %v4483 = vpack.c.b16 %v4478, %v4477
  %v4484 = vpack.c.b16 %v4480, %v4479
  %v4490 = vsel %vm165, %v4446, 0
  %v4493 = vsel %vm165, %v4447, 0
  %4495 = vmatprep.subr.bf16.mxu0 0
  %4496 = vmatpush1.bf16.msra.mxu0 0
  %4497 = vmatprep.subr.bf16.mxu0 0
  %4498 = vmatpush1.bf16.msra.mxu0 0
  %4499 = vmatprep.subr.bf16.mxu0 0
  %4500 = vmatpush1.bf16.msra.mxu0 0
  %4501 = vmatprep.subr.bf16.mxu0 0
  %4502 = vmatpush1.bf16.msra.mxu0 0
  %4503 = vmatprep.subr.bf16.mxu0 0
  %4504 = vmatpush1.bf16.msra.mxu0 %v4484
  %4505 = vmatprep.subr.bf16.mxu0 0
  %4506 = vmatpush1.bf16.msra.mxu0 %v4483
  %4507 = vmatprep.subr.bf16.mxu0 0
  %4508 = vmatpush1.bf16.msra.mxu0 %v4482
  %4509 = vmatprep.subr.bf16.mxu0 0
  %4510 = vmatpush1.bf16.msra.mxu0 %v4481
  %4511 = vmatprep.subr.bf16.mxu0 0
  %4512 = vmatpush2.bf16.msra.mxu0 0
  %4513 = vmatprep.subr.bf16.mxu0 0
  %4514 = vmatpush2.bf16.msra.mxu0 0
  %4515 = vmatprep.subr.bf16.mxu0 0
  %4516 = vmatpush2.bf16.msra.mxu0 0
  %4517 = vmatprep.subr.bf16.mxu0 0
  %4518 = vmatpush2.bf16.msra.mxu0 0
  %4519 = vmatprep.subr.bf16.mxu0 0
  %4520 = vmatpush2.bf16.msra.mxu0 0
  %4521 = vmatprep.subr.bf16.mxu0 0
  %4522 = vmatpush2.bf16.msra.mxu0 0
  %4523 = vmatprep.subr.bf16.mxu0 0
  %4524 = vmatpush2.bf16.msra.mxu0 0
  %4525 = vmatprep.subr.bf16.mxu0 0
  %4526 = vmatpush2.bf16.msra.mxu0 0
  %4527 = vmatprep.mubr.bf16.mxu0 0
  %4528 = vmatmul.mubr.bf16.gmra.mxu0 %v4490
  %v4529 = vpop.f32.mrf.mxu0
  %v4530 = vadd.f32 %v4463, %v4529
  %v4531 = vpop.f32.mrf.mxu0
  %v4532 = vpop.f32.mrf.mxu0
  %v4533 = vadd.f32 %v4463, %v4532
  %v4534 = vpop.f32.mrf.mxu0
  %4535 = vmatprep.mubr.bf16.mxu0 0
  %4536 = vmatmul.mubr.bf16.gmra.mxu0 %v4493
  %v4537 = vpop.f32.mrf.mxu0
  %v4538 = vadd.f32 %v4463, %v4537
  %v4539 = vpop.f32.mrf.mxu0
  %v4540 = vpop.f32.mrf.mxu0
  %v4541 = vadd.f32 %v4463, %v4540
  %v4542 = vpop.f32.mrf.mxu0
  %4543 = vdwg.mxu0
  %v4544 = vadd.f32 %v2703, %v4530
  %v4545 = vadd.f32 %v2704, %v4533
  %v4546 = vadd.f32 %v2705, %v4538
  %v4547 = vadd.f32 %v2706, %v4541
  %s4548 = scalar_lea.vmem %s8, 1
  %v4549 = vld [vmem:[%s4548] sm:$0x1]
  %s4550 = scalar_lea.vmem %s9, 1
  %v4551 = vld [vmem:[%s4550] sm:$0x1]
  %v4552 = vsel %vm165, %v4544, 0.0
  %4553 = vadd.xlane.f32.xlu0 %v4552
  %v4554 = vpop.xlane.xlu0 %4553
  %v4555 = vsel %vm165, %v4545, 0.0
  %4556 = vadd.xlane.f32.xlu0 %v4555
  %v4557 = vpop.xlane.xlu0 %4556
  %v4558 = vsel %vm165, %v4546, 0.0
  %4559 = vadd.xlane.f32.xlu0 %v4558
  %v4560 = vpop.xlane.xlu0 %4559
  %v4561 = vsel %vm165, %v4547, 0.0
  %4562 = vadd.xlane.f32.xlu0 %v4561
  %v4563 = vpop.xlane.xlu0 %4562
  %v4564 = vmul.f32 %v4554, %v2013
  %v4565 = vmul.f32 %v4557, %v2013
  %v4566 = vmul.f32 %v4560, %v2013
  %v4567 = vmul.f32 %v4563, %v2013
  %v4568 = vsub.f32 %v4544, %v4564
  %v4569 = vsub.f32 %v4545, %v4565
  %v4570 = vsub.f32 %v4546, %v4566
  %v4571 = vsub.f32 %v4547, %v4567
  %v4572 = vmul.f32 %v4568, %v4568
  %v4573 = vmul.f32 %v4569, %v4569
  %v4574 = vmul.f32 %v4570, %v4570
  %v4575 = vmul.f32 %v4571, %v4571
  %v4576 = vsel %vm165, %v4572, 0.0
  %4577 = vadd.xlane.f32.xlu0 %v4576
  %v4578 = vpop.xlane.xlu0 %4577
  %v4579 = vsel %vm165, %v4573, 0.0
  %4580 = vadd.xlane.f32.xlu0 %v4579
  %v4581 = vpop.xlane.xlu0 %4580
  %v4582 = vsel %vm165, %v4574, 0.0
  %4583 = vadd.xlane.f32.xlu0 %v4582
  %v4584 = vpop.xlane.xlu0 %4583
  %v4585 = vsel %vm165, %v4575, 0.0
  %4586 = vadd.xlane.f32.xlu0 %v4585
  %v4587 = vpop.xlane.xlu0 %4586
  %v4588 = vmul.f32 %v4578, %v2013
  %v4589 = vmul.f32 %v4581, %v2013
  %v4590 = vmul.f32 %v4584, %v2013
  %v4591 = vmul.f32 %v4587, %v2013
  %v4592 = vadd.f32 %v4588, 1e-05
  %v4593 = vadd.f32 %v4589, 1e-05
  %v4594 = vadd.f32 %v4590, 1e-05
  %v4595 = vadd.f32 %v4591, 1e-05
  %v4596 = vrsqrt.pop %v4592
  %v4597 = vrsqrt.pop %v4593
  %v4598 = vrsqrt.pop %v4594
  %v4599 = vrsqrt.pop %v4595
  %v4600 = vmul.f32 %v4568, %v4596
  %v4601 = vmul.f32 %v4569, %v4597
  %v4602 = vmul.f32 %v4570, %v4598
  %v4603 = vmul.f32 %v4571, %v4599
  %v4605 = vlaneseq
  %v4606 = vshrl.u32 %v4605, 7
  %v4607 = vsub.s32 0, %v4606
  %v4608 = vrot.slane %v4549, %v4607
  %v4610 = vmul.f32 %v4600, %v4608
  %v4611 = vmul.f32 %v4601, %v4608
  %v4612 = vmul.f32 %v4602, %v4608
  %v4613 = vmul.f32 %v4603, %v4608
  %v4615 = vlaneseq
  %v4616 = vshrl.u32 %v4615, 7
  %v4617 = vsub.s32 0, %v4616
  %v4618 = vrot.slane %v4551, %v4617
  %v4620 = vadd.f32 %v4610, %v4618
  %v4621 = vadd.f32 %v4611, %v4618
  %v4622 = vadd.f32 %v4612, %v4618
  %v4623 = vadd.f32 %v4613, %v4618
  %v4624 = vmul.f32 %v4620, %v77
  %v4625 = vmul.f32 %v4621, %v78
  %v4626 = vmul.f32 %v4622, %v79
  %v4627 = vmul.f32 %v4623, %v80
  %s4628 = scalar_lea.vmem %s10, 96
  %v4629 = vld [vmem:[%s4628] sm:$0xf]
  %v4630 = vld [vmem:[%s4628 + $0x4] sm:$0xf]
  %v4631 = vld [vmem:[%s4628 + $0x8] sm:$0xf]
  %v4632 = vld [vmem:[%s4628 + $0xc] sm:$0xf]
  %v4633 = vld [vmem:[%s4628 + $0x10] sm:$0xf]
  %v4634 = vld [vmem:[%s4628 + $0x14] sm:$0xf]
  %v4635 = vld [vmem:[%s4628 + $0x18] sm:$0xf]
  %v4636 = vld [vmem:[%s4628 + $0x1c] sm:$0xf]
  %v4637 = vld [vmem:[%s4628 + $0x20] sm:$0xf]
  %v4638 = vld [vmem:[%s4628 + $0x24] sm:$0xf]
  %v4639 = vld [vmem:[%s4628 + $0x28] sm:$0xf]
  %v4640 = vld [vmem:[%s4628 + $0x2c] sm:$0xf]
  %v4641 = vld [vmem:[%s4628 + $0x30] sm:$0xf]
  %v4642 = vld [vmem:[%s4628 + $0x34] sm:$0xf]
  %v4643 = vld [vmem:[%s4628 + $0x38] sm:$0xf]
  %v4644 = vld [vmem:[%s4628 + $0x3c] sm:$0xf]
  %v4645 = vld [vmem:[%s4628 + $0x40] sm:$0xf]
  %v4646 = vld [vmem:[%s4628 + $0x44] sm:$0xf]
  %v4647 = vld [vmem:[%s4628 + $0x48] sm:$0xf]
  %v4648 = vld [vmem:[%s4628 + $0x4c] sm:$0xf]
  %v4649 = vld [vmem:[%s4628 + $0x50] sm:$0xf]
  %v4650 = vld [vmem:[%s4628 + $0x54] sm:$0xf]
  %v4651 = vld [vmem:[%s4628 + $0x58] sm:$0xf]
  %v4652 = vld [vmem:[%s4628 + $0x5c] sm:$0xf]
  %s4653 = scalar_lea.vmem %s11, 1
  %v4654 = vld [vmem:[%s4653] sm:$0x1]
  %v4659 = vrot.slane %v4624, 7
  %v4660 = vrot.slane %v4625, 7
  %v4661 = vsel %vm2107, %v4659, %v4660
  %v4662 = vrot.slane %v4626, 7
  %v4663 = vrot.slane %v4627, 7
  %v4664 = vsel %vm2107, %v4662, %v4663
  %v4669 = vsel %vm2107, 0.0, %v4659
  %v4670 = vsel %vm2107, 0.0, %v4662
  %v4671 = vrot.slane %v4624, 1
  %v4672 = vrot.slane %v4625, 1
  %v4673 = vsel %vm2120, %v4671, %v4672
  %v4674 = vrot.slane %v4626, 1
  %v4675 = vrot.slane %v4627, 1
  %v4676 = vsel %vm2120, %v4674, %v4675
  %v4681 = vsel %vm2120, %v4672, 0.0
  %v4682 = vsel %vm2120, %v4675, 0.0
  %4683 = vrot.lane.b32.xlu0 %v4624, 64
  %v4684 = vpop.permute.xlu0 %4683
  %4685 = vrot.lane.b32.xlu0 %v4625, 64
  %v4686 = vpop.permute.xlu0 %4685
  %4687 = vrot.lane.b32.xlu0 %v4626, 64
  %v4688 = vpop.permute.xlu0 %4687
  %4689 = vrot.lane.b32.xlu0 %v4627, 64
  %v4690 = vpop.permute.xlu0 %4689
  %v4695 = vsel %vm165, %v4669, %v4684
  %v4696 = vsel %vm165, %v4661, %v4686
  %v4697 = vsel %vm165, %v4670, %v4688
  %v4698 = vsel %vm165, %v4664, %v4690
  %v4699 = vpack.c.bf16 %v4696, %v4695
  %v4700 = vpack.c.bf16 %v4681, %v4673
  %v4701 = vpack.c.bf16 %v4698, %v4697
  %v4702 = vpack.c.bf16 %v4682, %v4676
  %v4704 = vlaneseq
  %v4705 = vshrl.u32 %v4704, 7
  %v4706 = vsub.s32 0, %v4705
  %v4707 = vrot.slane %v4654, %v4706
  %v4733 = vunpack.c.l.b16 %v4629
  %v4734 = vunpack.c.l.b16 %v4630
  %v4735 = vunpack.c.l.b16 %v4631
  %v4736 = vunpack.c.l.b16 %v4632
  %v4737 = vunpack.c.l.b16 %v4633
  %v4738 = vunpack.c.l.b16 %v4634
  %v4739 = vunpack.c.l.b16 %v4635
  %v4740 = vunpack.c.l.b16 %v4636
  %v4741 = vunpack.c.l.b16 %v4637
  %v4742 = vunpack.c.l.b16 %v4638
  %v4743 = vunpack.c.l.b16 %v4639
  %v4744 = vunpack.c.l.b16 %v4640
  %v4745 = vunpack.c.l.b16 %v4641
  %v4746 = vunpack.c.l.b16 %v4642
  %v4747 = vunpack.c.l.b16 %v4643
  %v4748 = vunpack.c.l.b16 %v4644
  %v4749 = vunpack.c.l.b16 %v4645
  %v4750 = vunpack.c.l.b16 %v4646
  %v4751 = vunpack.c.l.b16 %v4647
  %v4752 = vunpack.c.l.b16 %v4648
  %v4753 = vunpack.c.l.b16 %v4649
  %v4754 = vunpack.c.l.b16 %v4650
  %v4755 = vunpack.c.l.b16 %v4651
  %v4756 = vunpack.c.l.b16 %v4652
  %v4757 = vpack.c.b16 %v4734, %v4733
  %v4758 = vpack.c.b16 %v4736, %v4735
  %v4759 = vpack.c.b16 %v4738, %v4737
  %v4760 = vpack.c.b16 %v4740, %v4739
  %v4761 = vpack.c.b16 %v4742, %v4741
  %v4762 = vpack.c.b16 %v4744, %v4743
  %v4763 = vpack.c.b16 %v4746, %v4745
  %v4764 = vpack.c.b16 %v4748, %v4747
  %v4765 = vpack.c.b16 %v4750, %v4749
  %v4766 = vpack.c.b16 %v4752, %v4751
  %v4767 = vpack.c.b16 %v4754, %v4753
  %v4768 = vpack.c.b16 %v4756, %v4755
  %v4782 = vsel %vm165, %v4700, 0
  %v4785 = vsel %vm165, %v4702, 0
  %4787 = vmatprep.subr.bf16.mxu0 0
  %4788 = vmatpush1.bf16.msra.mxu0 %v4764
  %4789 = vmatprep.subr.bf16.mxu0 0
  %4790 = vmatpush1.bf16.msra.mxu0 %v4763
  %4791 = vmatprep.subr.bf16.mxu0 0
  %4792 = vmatpush1.bf16.msra.mxu0 %v4762
  %4793 = vmatprep.subr.bf16.mxu0 0
  %4794 = vmatpush1.bf16.msra.mxu0 %v4761
  %4795 = vmatprep.subr.bf16.mxu0 0
  %4796 = vmatpush1.bf16.msra.mxu0 %v4760
  %4797 = vmatprep.subr.bf16.mxu0 0
  %4798 = vmatpush1.bf16.msra.mxu0 %v4759
  %4799 = vmatprep.subr.bf16.mxu0 0
  %4800 = vmatpush1.bf16.msra.mxu0 %v4758
  %4801 = vmatprep.subr.bf16.mxu0 0
  %4802 = vmatpush1.bf16.msra.mxu0 %v4757
  %4803 = vmatprep.subr.bf16.mxu0 0
  %4804 = vmatpush2.bf16.msra.mxu0 0
  %4805 = vmatprep.subr.bf16.mxu0 0
  %4806 = vmatpush2.bf16.msra.mxu0 0
  %4807 = vmatprep.subr.bf16.mxu0 0
  %4808 = vmatpush2.bf16.msra.mxu0 0
  %4809 = vmatprep.subr.bf16.mxu0 0
  %4810 = vmatpush2.bf16.msra.mxu0 0
  %4811 = vmatprep.subr.bf16.mxu0 0
  %4812 = vmatpush2.bf16.msra.mxu0 %v4768
  %4813 = vmatprep.subr.bf16.mxu0 0
  %4814 = vmatpush2.bf16.msra.mxu0 %v4767
  %4815 = vmatprep.subr.bf16.mxu0 0
  %4816 = vmatpush2.bf16.msra.mxu0 %v4766
  %4817 = vmatprep.subr.bf16.mxu0 0
  %4818 = vmatpush2.bf16.msra.mxu0 %v4765
  %4819 = vmatprep.mubr.bf16.mxu0 %v4782
  %4820 = vmatmul.mubr.bf16.gmra.mxu0 %v4699
  %v4821 = vpop.f32.mrf.mxu0
  %v4822 = vadd.f32 %v4707, %v4821
  %v4823 = vpop.f32.mrf.mxu0
  %v4824 = vpop.f32.mrf.mxu0
  %v4825 = vadd.f32 %v4707, %v4824
  %v4826 = vpop.f32.mrf.mxu0
  %4827 = vmatprep.mubr.bf16.mxu0 %v4785
  %4828 = vmatmul.mubr.bf16.gmra.mxu0 %v4701
  %v4829 = vpop.f32.mrf.mxu0
  %v4830 = vadd.f32 %v4707, %v4829
  %v4831 = vpop.f32.mrf.mxu0
  %v4832 = vpop.f32.mrf.mxu0
  %v4833 = vadd.f32 %v4707, %v4832
  %v4834 = vpop.f32.mrf.mxu0
  %4835 = vdwg.mxu0
  %v4836 = vmax.f32 %v4822, 0.0
  %v4837 = vmax.f32 %v4825, 0.0
  %v4838 = vmax.f32 %v4830, 0.0
  %v4839 = vmax.f32 %v4833, 0.0
  %v4840 = vmul.f32 %v4836, %v77
  %v4841 = vmul.f32 %v4837, %v78
  %v4842 = vmul.f32 %v4838, %v79
  %v4843 = vmul.f32 %v4839, %v80
  %s4844 = scalar_lea.vmem %s12, 192
  %v4845 = vld [vmem:[%s4844] sm:$0xf]
  %v4846 = vld [vmem:[%s4844 + $0x4] sm:$0xf]
  %v4847 = vld [vmem:[%s4844 + $0x8] sm:$0xf]
  %v4848 = vld [vmem:[%s4844 + $0xc] sm:$0xf]
  %v4849 = vld [vmem:[%s4844 + $0x10] sm:$0xf]
  %v4850 = vld [vmem:[%s4844 + $0x14] sm:$0xf]
  %v4851 = vld [vmem:[%s4844 + $0x18] sm:$0xf]
  %v4852 = vld [vmem:[%s4844 + $0x1c] sm:$0xf]
  %v4853 = vld [vmem:[%s4844 + $0x20] sm:$0xf]
  %v4854 = vld [vmem:[%s4844 + $0x24] sm:$0xf]
  %v4855 = vld [vmem:[%s4844 + $0x28] sm:$0xf]
  %v4856 = vld [vmem:[%s4844 + $0x2c] sm:$0xf]
  %v4857 = vld [vmem:[%s4844 + $0x30] sm:$0xf]
  %v4858 = vld [vmem:[%s4844 + $0x34] sm:$0xf]
  %v4859 = vld [vmem:[%s4844 + $0x38] sm:$0xf]
  %v4860 = vld [vmem:[%s4844 + $0x3c] sm:$0xf]
  %v4861 = vld [vmem:[%s4844 + $0x40] sm:$0xf]
  %v4862 = vld [vmem:[%s4844 + $0x44] sm:$0xf]
  %v4863 = vld [vmem:[%s4844 + $0x48] sm:$0xf]
  %v4864 = vld [vmem:[%s4844 + $0x4c] sm:$0xf]
  %v4865 = vld [vmem:[%s4844 + $0x50] sm:$0xf]
  %v4866 = vld [vmem:[%s4844 + $0x54] sm:$0xf]
  %v4867 = vld [vmem:[%s4844 + $0x58] sm:$0xf]
  %v4868 = vld [vmem:[%s4844 + $0x5c] sm:$0xf]
  %v4869 = vld [vmem:[%s4844 + $0x60] sm:$0xf]
  %v4870 = vld [vmem:[%s4844 + $0x64] sm:$0xf]
  %v4871 = vld [vmem:[%s4844 + $0x68] sm:$0xf]
  %v4872 = vld [vmem:[%s4844 + $0x6c] sm:$0xf]
  %v4873 = vld [vmem:[%s4844 + $0x70] sm:$0xf]
  %v4874 = vld [vmem:[%s4844 + $0x74] sm:$0xf]
  %v4875 = vld [vmem:[%s4844 + $0x78] sm:$0xf]
  %v4876 = vld [vmem:[%s4844 + $0x7c] sm:$0xf]
  %v4877 = vld [vmem:[%s4844 + $0x80] sm:$0xf]
  %v4878 = vld [vmem:[%s4844 + $0x84] sm:$0xf]
  %v4879 = vld [vmem:[%s4844 + $0x88] sm:$0xf]
  %v4880 = vld [vmem:[%s4844 + $0x8c] sm:$0xf]
  %v4881 = vld [vmem:[%s4844 + $0x90] sm:$0xf]
  %v4882 = vld [vmem:[%s4844 + $0x94] sm:$0xf]
  %v4883 = vld [vmem:[%s4844 + $0x98] sm:$0xf]
  %v4884 = vld [vmem:[%s4844 + $0x9c] sm:$0xf]
  %v4885 = vld [vmem:[%s4844 + $0xa0] sm:$0xf]
  %v4886 = vld [vmem:[%s4844 + $0xa4] sm:$0xf]
  %v4887 = vld [vmem:[%s4844 + $0xa8] sm:$0xf]
  %v4888 = vld [vmem:[%s4844 + $0xac] sm:$0xf]
  %v4889 = vld [vmem:[%s4844 + $0xb0] sm:$0xf]
  %v4890 = vld [vmem:[%s4844 + $0xb4] sm:$0xf]
  %v4891 = vld [vmem:[%s4844 + $0xb8] sm:$0xf]
  %v4892 = vld [vmem:[%s4844 + $0xbc] sm:$0xf]
  %s4893 = scalar_lea.vmem %s13, 1
  %v4894 = vld [vmem:[%s4893] sm:$0x1]
  %v4899 = vrot.slane %v4840, 7
  %v4900 = vrot.slane %v4841, 7
  %v4901 = vsel %vm2107, %v4899, %v4900
  %v4902 = vrot.slane %v4842, 7
  %v4903 = vrot.slane %v4843, 7
  %v4904 = vsel %vm2107, %v4902, %v4903
  %v4909 = vsel %vm2107, 0.0, %v4899
  %v4910 = vsel %vm2107, 0.0, %v4902
  %v4911 = vrot.slane %v4840, 1
  %v4912 = vrot.slane %v4841, 1
  %v4913 = vsel %vm2120, %v4911, %v4912
  %v4914 = vrot.slane %v4842, 1
  %v4915 = vrot.slane %v4843, 1
  %v4916 = vsel %vm2120, %v4914, %v4915
  %v4921 = vsel %vm2120, %v4912, 0.0
  %v4922 = vsel %vm2120, %v4915, 0.0
  %v4923 = vpack.c.bf16 %v4901, %v4909
  %v4924 = vpack.c.bf16 %v4841, %v4840
  %v4925 = vpack.c.bf16 %v4921, %v4913
  %v4926 = vpack.c.bf16 %v4904, %v4910
  %v4927 = vpack.c.bf16 %v4843, %v4842
  %v4928 = vpack.c.bf16 %v4922, %v4916
  %v4930 = vlaneseq
  %v4931 = vshrl.u32 %v4930, 7
  %v4932 = vsub.s32 0, %v4931
  %v4933 = vrot.slane %v4894, %v4932
  %v4983 = vunpack.c.l.b16 %v4845
  %v4984 = vunpack.c.l.b16 %v4846
  %v4985 = vunpack.c.l.b16 %v4847
  %v4986 = vunpack.c.l.b16 %v4848
  %v4987 = vunpack.c.l.b16 %v4849
  %v4988 = vunpack.c.l.b16 %v4850
  %v4989 = vunpack.c.l.b16 %v4851
  %v4990 = vunpack.c.l.b16 %v4852
  %v4991 = vunpack.c.l.b16 %v4853
  %v4992 = vunpack.c.l.b16 %v4854
  %v4993 = vunpack.c.l.b16 %v4855
  %v4994 = vunpack.c.l.b16 %v4856
  %v4995 = vunpack.c.l.b16 %v4857
  %v4996 = vunpack.c.l.b16 %v4858
  %v4997 = vunpack.c.l.b16 %v4859
  %v4998 = vunpack.c.l.b16 %v4860
  %v4999 = vunpack.c.l.b16 %v4861
  %v5000 = vunpack.c.l.b16 %v4862
  %v5001 = vunpack.c.l.b16 %v4863
  %v5002 = vunpack.c.l.b16 %v4864
  %v5003 = vunpack.c.l.b16 %v4865
  %v5004 = vunpack.c.l.b16 %v4866
  %v5005 = vunpack.c.l.b16 %v4867
  %v5006 = vunpack.c.l.b16 %v4868
  %v5007 = vunpack.c.l.b16 %v4869
  %v5008 = vunpack.c.l.b16 %v4870
  %v5009 = vunpack.c.l.b16 %v4871
  %v5010 = vunpack.c.l.b16 %v4872
  %v5011 = vunpack.c.l.b16 %v4873
  %v5012 = vunpack.c.l.b16 %v4874
  %v5013 = vunpack.c.l.b16 %v4875
  %v5014 = vunpack.c.l.b16 %v4876
  %v5015 = vunpack.c.l.b16 %v4877
  %v5016 = vunpack.c.l.b16 %v4878
  %v5017 = vunpack.c.l.b16 %v4879
  %v5018 = vunpack.c.l.b16 %v4880
  %v5019 = vunpack.c.l.b16 %v4881
  %v5020 = vunpack.c.l.b16 %v4882
  %v5021 = vunpack.c.l.b16 %v4883
  %v5022 = vunpack.c.l.b16 %v4884
  %v5023 = vunpack.c.l.b16 %v4885
  %v5024 = vunpack.c.l.b16 %v4886
  %v5025 = vunpack.c.l.b16 %v4887
  %v5026 = vunpack.c.l.b16 %v4888
  %v5027 = vunpack.c.l.b16 %v4889
  %v5028 = vunpack.c.l.b16 %v4890
  %v5029 = vunpack.c.l.b16 %v4891
  %v5030 = vunpack.c.l.b16 %v4892
  %v5031 = vpack.c.b16 %v4984, %v4983
  %v5032 = vpack.c.b16 %v4986, %v4985
  %v5033 = vpack.c.b16 %v4988, %v4987
  %v5034 = vpack.c.b16 %v4990, %v4989
  %v5035 = vpack.c.b16 %v4992, %v4991
  %v5036 = vpack.c.b16 %v4994, %v4993
  %v5037 = vpack.c.b16 %v4996, %v4995
  %v5038 = vpack.c.b16 %v4998, %v4997
  %v5039 = vpack.c.b16 %v5000, %v4999
  %v5040 = vpack.c.b16 %v5002, %v5001
  %v5041 = vpack.c.b16 %v5004, %v5003
  %v5042 = vpack.c.b16 %v5006, %v5005
  %v5043 = vpack.c.b16 %v5008, %v5007
  %v5044 = vpack.c.b16 %v5010, %v5009
  %v5045 = vpack.c.b16 %v5012, %v5011
  %v5046 = vpack.c.b16 %v5014, %v5013
  %v5047 = vpack.c.b16 %v5016, %v5015
  %v5048 = vpack.c.b16 %v5018, %v5017
  %v5049 = vpack.c.b16 %v5020, %v5019
  %v5050 = vpack.c.b16 %v5022, %v5021
  %v5051 = vpack.c.b16 %v5024, %v5023
  %v5052 = vpack.c.b16 %v5026, %v5025
  %v5053 = vpack.c.b16 %v5028, %v5027
  %v5054 = vpack.c.b16 %v5030, %v5029
  %5079 = vmatprep.subr.bf16.mxu0 0
  %5080 = vmatpush1.bf16.msra.mxu0 %v5038
  %5081 = vmatprep.subr.bf16.mxu0 0
  %5082 = vmatpush1.bf16.msra.mxu0 %v5037
  %5083 = vmatprep.subr.bf16.mxu0 0
  %5084 = vmatpush1.bf16.msra.mxu0 %v5036
  %5085 = vmatprep.subr.bf16.mxu0 0
  %5086 = vmatpush1.bf16.msra.mxu0 %v5035
  %5087 = vmatprep.subr.bf16.mxu0 0
  %5088 = vmatpush1.bf16.msra.mxu0 %v5034
  %5089 = vmatprep.subr.bf16.mxu0 0
  %5090 = vmatpush1.bf16.msra.mxu0 %v5033
  %5091 = vmatprep.subr.bf16.mxu0 0
  %5092 = vmatpush1.bf16.msra.mxu0 %v5032
  %5093 = vmatprep.subr.bf16.mxu0 0
  %5094 = vmatpush1.bf16.msra.mxu0 %v5031
  %5095 = vmatprep.subr.bf16.mxu0 0
  %5096 = vmatpush2.bf16.msra.mxu0 %v5046
  %5097 = vmatprep.subr.bf16.mxu0 0
  %5098 = vmatpush2.bf16.msra.mxu0 %v5045
  %5099 = vmatprep.subr.bf16.mxu0 0
  %5100 = vmatpush2.bf16.msra.mxu0 %v5044
  %5101 = vmatprep.subr.bf16.mxu0 0
  %5102 = vmatpush2.bf16.msra.mxu0 %v5043
  %5103 = vmatprep.subr.bf16.mxu0 0
  %5104 = vmatpush2.bf16.msra.mxu0 %v5042
  %5105 = vmatprep.subr.bf16.mxu0 0
  %5106 = vmatpush2.bf16.msra.mxu0 %v5041
  %5107 = vmatprep.subr.bf16.mxu0 0
  %5108 = vmatpush2.bf16.msra.mxu0 %v5040
  %5109 = vmatprep.subr.bf16.mxu0 0
  %5110 = vmatpush2.bf16.msra.mxu0 %v5039
  %5111 = vmatprep.mubr.bf16.mxu0 %v4924
  %5112 = vmatmul.mubr.bf16.gmra.mxu0 %v4923
  %v5113 = vpop.f32.mrf.mxu0
  %v5114 = vadd.f32 %v4933, %v5113
  %v5115 = vpop.f32.mrf.mxu0
  %v5116 = vpop.f32.mrf.mxu0
  %v5117 = vadd.f32 %v4933, %v5116
  %v5118 = vpop.f32.mrf.mxu0
  %5119 = vmatprep.mubr.bf16.mxu0 %v4927
  %5120 = vmatmul.mubr.bf16.gmra.mxu0 %v4926
  %v5121 = vpop.f32.mrf.mxu0
  %v5122 = vadd.f32 %v4933, %v5121
  %v5123 = vpop.f32.mrf.mxu0
  %v5124 = vpop.f32.mrf.mxu0
  %v5125 = vadd.f32 %v4933, %v5124
  %v5126 = vpop.f32.mrf.mxu0
  %5127 = vdwg.mxu0
  %5128 = vmatprep.subr.bf16.mxu0 0
  %5129 = vmatpush1.bf16.msra.mxu0 %v5054
  %5130 = vmatprep.subr.bf16.mxu0 0
  %5131 = vmatpush1.bf16.msra.mxu0 %v5053
  %5132 = vmatprep.subr.bf16.mxu0 0
  %5133 = vmatpush1.bf16.msra.mxu0 %v5052
  %5134 = vmatprep.subr.bf16.mxu0 0
  %5135 = vmatpush1.bf16.msra.mxu0 %v5051
  %5136 = vmatprep.subr.bf16.mxu0 0
  %5137 = vmatpush1.bf16.msra.mxu0 %v5050
  %5138 = vmatprep.subr.bf16.mxu0 0
  %5139 = vmatpush1.bf16.msra.mxu0 %v5049
  %5140 = vmatprep.subr.bf16.mxu0 0
  %5141 = vmatpush1.bf16.msra.mxu0 %v5048
  %5142 = vmatprep.subr.bf16.mxu0 0
  %5143 = vmatpush1.bf16.msra.mxu0 %v5047
  %5144 = vmatprep.subr.bf16.mxu0 0
  %5145 = vmatpush2.bf16.msra.mxu0 0
  %5146 = vmatprep.subr.bf16.mxu0 0
  %5147 = vmatpush2.bf16.msra.mxu0 0
  %5148 = vmatprep.subr.bf16.mxu0 0
  %5149 = vmatpush2.bf16.msra.mxu0 0
  %5150 = vmatprep.subr.bf16.mxu0 0
  %5151 = vmatpush2.bf16.msra.mxu0 0
  %5152 = vmatprep.subr.bf16.mxu0 0
  %5153 = vmatpush2.bf16.msra.mxu0 0
  %5154 = vmatprep.subr.bf16.mxu0 0
  %5155 = vmatpush2.bf16.msra.mxu0 0
  %5156 = vmatprep.subr.bf16.mxu0 0
  %5157 = vmatpush2.bf16.msra.mxu0 0
  %5158 = vmatprep.subr.bf16.mxu0 0
  %5159 = vmatpush2.bf16.msra.mxu0 0
  %5160 = vmatprep.mubr.bf16.mxu0 0
  %5161 = vmatmul.mubr.bf16.gmra.mxu0 %v4925
  %v5162 = vpop.f32.mrf.mxu0
  %v5163 = vadd.f32 %v5114, %v5162
  %v5164 = vpop.f32.mrf.mxu0
  %v5165 = vpop.f32.mrf.mxu0
  %v5166 = vadd.f32 %v5117, %v5165
  %v5167 = vpop.f32.mrf.mxu0
  %5168 = vmatprep.mubr.bf16.mxu0 0
  %5169 = vmatmul.mubr.bf16.gmra.mxu0 %v4928
  %v5170 = vpop.f32.mrf.mxu0
  %v5171 = vadd.f32 %v5122, %v5170
  %v5172 = vpop.f32.mrf.mxu0
  %v5173 = vpop.f32.mrf.mxu0
  %v5174 = vadd.f32 %v5125, %v5173
  %v5175 = vpop.f32.mrf.mxu0
  %5176 = vdwg.mxu0
  %v5177 = vmul.f32 %v5163, %v77
  %v5178 = vmul.f32 %v5166, %v78
  %v5179 = vmul.f32 %v5171, %v79
  %v5180 = vmul.f32 %v5174, %v80
  %v5181 = vadd.f32 %v4620, %v5177
  %v5182 = vadd.f32 %v4621, %v5178
  %v5183 = vadd.f32 %v4622, %v5179
  %v5184 = vadd.f32 %v4623, %v5180
  %s5185 = scalar_lea.vmem %s14, 1
  %v5186 = vld [vmem:[%s5185] sm:$0x1]
  %s5187 = scalar_lea.vmem %s15, 1
  %v5188 = vld [vmem:[%s5187] sm:$0x1]
  %v5189 = vsel %vm165, %v5181, 0.0
  %5190 = vadd.xlane.f32.xlu0 %v5189
  %v5191 = vpop.xlane.xlu0 %5190
  %v5192 = vsel %vm165, %v5182, 0.0
  %5193 = vadd.xlane.f32.xlu0 %v5192
  %v5194 = vpop.xlane.xlu0 %5193
  %v5195 = vsel %vm165, %v5183, 0.0
  %5196 = vadd.xlane.f32.xlu0 %v5195
  %v5197 = vpop.xlane.xlu0 %5196
  %v5198 = vsel %vm165, %v5184, 0.0
  %5199 = vadd.xlane.f32.xlu0 %v5198
  %v5200 = vpop.xlane.xlu0 %5199
  %v5201 = vmul.f32 %v5191, %v2013
  %v5202 = vmul.f32 %v5194, %v2013
  %v5203 = vmul.f32 %v5197, %v2013
  %v5204 = vmul.f32 %v5200, %v2013
  %v5205 = vsub.f32 %v5181, %v5201
  %v5206 = vsub.f32 %v5182, %v5202
  %v5207 = vsub.f32 %v5183, %v5203
  %v5208 = vsub.f32 %v5184, %v5204
  %v5209 = vmul.f32 %v5205, %v5205
  %v5210 = vmul.f32 %v5206, %v5206
  %v5211 = vmul.f32 %v5207, %v5207
  %v5212 = vmul.f32 %v5208, %v5208
  %v5213 = vsel %vm165, %v5209, 0.0
  %5214 = vadd.xlane.f32.xlu0 %v5213
  %v5215 = vpop.xlane.xlu0 %5214
  %v5216 = vsel %vm165, %v5210, 0.0
  %5217 = vadd.xlane.f32.xlu0 %v5216
  %v5218 = vpop.xlane.xlu0 %5217
  %v5219 = vsel %vm165, %v5211, 0.0
  %5220 = vadd.xlane.f32.xlu0 %v5219
  %v5221 = vpop.xlane.xlu0 %5220
  %v5222 = vsel %vm165, %v5212, 0.0
  %5223 = vadd.xlane.f32.xlu0 %v5222
  %v5224 = vpop.xlane.xlu0 %5223
  %v5225 = vmul.f32 %v5215, %v2013
  %v5226 = vmul.f32 %v5218, %v2013
  %v5227 = vmul.f32 %v5221, %v2013
  %v5228 = vmul.f32 %v5224, %v2013
  %v5229 = vadd.f32 %v5225, 1e-05
  %v5230 = vadd.f32 %v5226, 1e-05
  %v5231 = vadd.f32 %v5227, 1e-05
  %v5232 = vadd.f32 %v5228, 1e-05
  %v5233 = vrsqrt.pop %v5229
  %v5234 = vrsqrt.pop %v5230
  %v5235 = vrsqrt.pop %v5231
  %v5236 = vrsqrt.pop %v5232
  %v5237 = vmul.f32 %v5205, %v5233
  %v5238 = vmul.f32 %v5206, %v5234
  %v5239 = vmul.f32 %v5207, %v5235
  %v5240 = vmul.f32 %v5208, %v5236
  %v5242 = vlaneseq
  %v5243 = vshrl.u32 %v5242, 7
  %v5244 = vsub.s32 0, %v5243
  %v5245 = vrot.slane %v5186, %v5244
  %v5247 = vmul.f32 %v5237, %v5245
  %v5248 = vmul.f32 %v5238, %v5245
  %v5249 = vmul.f32 %v5239, %v5245
  %v5250 = vmul.f32 %v5240, %v5245
  %v5252 = vlaneseq
  %v5253 = vshrl.u32 %v5252, 7
  %v5254 = vsub.s32 0, %v5253
  %v5255 = vrot.slane %v5188, %v5254
  %v5257 = vadd.f32 %v5247, %v5255
  %v5258 = vadd.f32 %v5248, %v5255
  %v5259 = vadd.f32 %v5249, %v5255
  %v5260 = vadd.f32 %v5250, %v5255
  %v5261 = vmul.f32 %v5257, %v77
  %v5262 = vmul.f32 %v5258, %v78
  %v5263 = vmul.f32 %v5259, %v79
  %v5264 = vmul.f32 %v5260, %v80
  %5265 = vst.msk [vmem:[%s16] sm:$0xff] %vm165, %v5261
  %5266 = vst.msk [vmem:[%s16 + $0x8] sm:$0xff] %vm165, %v5262
  %5267 = vst.msk [vmem:[%s16 + $0x10] sm:$0xff] %vm165, %v5263
  %5268 = vst.msk [vmem:[%s16 + $0x18] sm:$0xff] %vm165, %v5264
  // Predicated region
  $region62: #{_lambda_.1} parent=0 // pred_check
    _
  $region63: #{_lambda_.1} parent=0 // pred_check_branch
    %5270 = sbr.rel (0) target = $region65
  $region64: #{_lambda_.1} parent=0 // pred_region
    _
  $region65: #{_lambda_.1} parent=0 // pred_fallthru
    _
  // Predicated region
  $region66: #{_lambda_.1} parent=0 // pred_check
    _
  $region67: #{_lambda_.1} parent=0 // pred_check_branch
    %5272 = sbr.rel (0) target = $region69
  $region68: #{_lambda_.1} parent=0 // pred_region
    _
  $region69: #{_lambda_.1} parent=0 // pred_fallthru
    _

</llo_original>
